<compile_context>
chip_gen: v7x
topology: tpu7x:2x2x1
jax: 0.10.0
libtpu: 0.0.40
codegen_flags: <defaults>
</compile_context>

<pallas_src>
import functools

import jax
import jax.numpy as jnp
from jax import lax
from jax.experimental import pallas as pl
from jax.experimental.pallas import tpu as pltpu


# ----------------------------------------------------------------------------
# Pallas kernel: out(Cout, tm) = relu?( W(Cout, K) @ P(K, tm) + b(Cout, 1) )
# ----------------------------------------------------------------------------
def _matmul_bias_act_kernel(w_ref, p_ref, b_ref, o_ref, *, apply_relu):
    acc = jnp.dot(w_ref[...], p_ref[...], preferred_element_type=jnp.float32)
    acc = acc + b_ref[...]          # (Cout, 1) broadcasts across the lane dim
    if apply_relu:
        acc = jnp.maximum(acc, 0.0)
    o_ref[...] = acc.astype(o_ref.dtype)


# Lane-axis (M) tile candidates: multiples of 128, capped so a double-buffered
# (K, tm) bf16 patch block stays small even with v7x's 64 MiB VMEM.
_TM_CANDIDATES = (512, 384, 256, 128)


def _pick_tile_m(m):
    for tm in _TM_CANDIDATES:
        if m % tm == 0:
            return tm
    return m    # single full-M block (full-dim blocks satisfy the (8,128) rule)


def matmul_bias_act(w, p, b, *, relu):
    """w: (Cout, K), p: (K, M), b: (Cout,)  ->  (Cout, M) float32.

    Lane-dense orientation: the large M = batch*spatial dim sits in lanes.
    Only M is tiled (K stays whole), so no accumulator is needed and every
    grid step is one MXU matmul + bias + optional ReLU.
    """
    cout, k = w.shape
    k2, m = p.shape
    assert k == k2, (k, k2)
    tm = _pick_tile_m(m)
    kernel = functools.partial(_matmul_bias_act_kernel, apply_relu=relu)
    return pl.pallas_call(
        kernel,
        out_shape=jax.ShapeDtypeStruct((cout, m), jnp.float32),
        grid=(m // tm,),
        in_specs=[
            pl.BlockSpec((cout, k), lambda i: (0, 0)),   # weights: resident
            pl.BlockSpec((k, tm), lambda i: (0, i)),     # patches: streamed
            pl.BlockSpec((cout, 1), lambda i: (0, 0)),   # bias:   resident
        ],
        out_specs=pl.BlockSpec((cout, tm), lambda i: (0, i)),
        compiler_params=pltpu.CompilerParams(
            dimension_semantics=("parallel",)),
    )(w.astype(jnp.bfloat16), p.astype(jnp.bfloat16),
      b.reshape(cout, 1).astype(jnp.float32))


# ----------------------------------------------------------------------------
# Conv / ConvTranspose via im2col in channel-major layout + Pallas matmul
# ----------------------------------------------------------------------------
def _im2col_km(x, k):
    """x: (C, N, H, W) -> patches (C*k*k, N*Ho*Wo); row order (c, kh, kw)."""
    c, n, h, w = x.shape
    ho, wo = h - k + 1, w - k + 1
    cols = [x[:, :, i:i + ho, j:j + wo] for i in range(k) for j in range(k)]
    patches = jnp.stack(cols, axis=1)                     # (C, k*k, N, Ho, Wo)
    return patches.reshape(c * k * k, n * ho * wo), ho, wo


def _conv2d(x, w, b, *, relu):
    """x: (Cin, N, H, W); w: (Cout, Cin, k, k) [PyTorch Conv2d]; stride 1, VALID.
    Returns (Cout, N, Ho, Wo)."""
    cout, cin, k, _ = w.shape
    n = x.shape[1]
    patches, ho, wo = _im2col_km(x, k)                    # (Cin*k*k, N*Ho*Wo)
    w2 = w.reshape(cout, cin * k * k)                     # row order matches patches
    out = matmul_bias_act(w2, patches, b, relu=relu)      # (Cout, M)
    return out.reshape(cout, n, ho, wo)


def _conv_transpose2d(x, w, b, *, relu):
    """x: (Cin, N, H, W); w: (Cin, Cout, k, k) [PyTorch ConvTranspose2d],
    stride 1, padding 0: equivalent to a VALID conv of the (k-1)-zero-padded
    input with the spatially flipped, channel-swapped kernel."""
    k = w.shape[2]
    # TODO(synk): the (k-1) zero pad + im2col still run as XLA glue; an
    # in-kernel masked im2col would remove this small HBM intermediate.
    xp = jnp.pad(x, ((0, 0), (0, 0), (k - 1, k - 1), (k - 1, k - 1)))
    w_conv = jnp.transpose(w[:, :, ::-1, ::-1], (1, 0, 2, 3))   # (Cout, Cin, k, k)
    return _conv2d(xp, w_conv, b, relu=relu)


# ----------------------------------------------------------------------------
# Fused predictor: Linear(9216,120) -> Linear(120,84) -> Linear(84,100)
# Single pallas_call; all weights resident in VMEM; no HBM round-trips for
# the tiny fc2/fc3 activations and no extra kernel-launch overhead.
# ----------------------------------------------------------------------------
def _predictor_kernel(x_ref, w1_ref, b1_ref, w2_ref, b2_ref, w3_ref, b3_ref,
                      o_ref):
    h = jnp.dot(x_ref[...], w1_ref[...],
                preferred_element_type=jnp.float32) + b1_ref[...]
    h = jnp.dot(h.astype(jnp.bfloat16), w2_ref[...],
                preferred_element_type=jnp.float32) + b2_ref[...]
    h = jnp.dot(h.astype(jnp.bfloat16), w3_ref[...],
                preferred_element_type=jnp.float32) + b3_ref[...]
    o_ref[...] = h.astype(o_ref.dtype)


def predictor(params, flat):
    """flat: (N, 9216) -> (N, 100)."""
    n = flat.shape[0]
    x = flat.astype(jnp.bfloat16)
    w1 = params["fc1_w"].T.astype(jnp.bfloat16)           # (9216, 120)
    w2 = params["fc2_w"].T.astype(jnp.bfloat16)           # (120, 84)
    w3 = params["fc3_w"].T.astype(jnp.bfloat16)           # (84, 100)
    b1 = params["fc1_b"].reshape(1, -1)
    b2 = params["fc2_b"].reshape(1, -1)
    b3 = params["fc3_b"].reshape(1, -1)

    def full(a):
        return pl.BlockSpec(a.shape, lambda i: (0, 0))

    return pl.pallas_call(
        _predictor_kernel,
        out_shape=jax.ShapeDtypeStruct((n, 100), jnp.float32),
        grid=(1,),
        in_specs=[full(x), full(w1), full(b1), full(w2), full(b2),
                  full(w3), full(b3)],
        out_specs=pl.BlockSpec((n, 100), lambda i: (0, 0)),
    )(x, w1, b1, w2, b2, w3, b3)


# ----------------------------------------------------------------------------
# Parameters (deterministic, PyTorch-like uniform fan-in init)
# ----------------------------------------------------------------------------
def init_params(key):
    def u(k, shape, fan_in):
        bound = 1.0 / (fan_in ** 0.5)
        return jax.random.uniform(k, shape, jnp.float32, -bound, bound)

    ks = jax.random.split(key, 14)
    return {
        "conv1_w": u(ks[0], (6, 3, 5, 5), 3 * 25),
        "conv1_b": u(ks[1], (6,), 3 * 25),
        "conv2_w": u(ks[2], (16, 6, 5, 5), 6 * 25),
        "conv2_b": u(ks[3], (16,), 6 * 25),
        "fc1_w": u(ks[4], (120, 9216), 9216),    # PyTorch Linear: (out, in)
        "fc1_b": u(ks[5], (120,), 9216),
        "fc2_w": u(ks[6], (84, 120), 120),
        "fc2_b": u(ks[7], (84,), 120),
        "fc3_w": u(ks[8], (100, 84), 84),
        "fc3_b": u(ks[9], (100,), 84),
        # PyTorch ConvTranspose2d default init uses fan_in = Cout * k * k.
        "deconv1_w": u(ks[10], (16, 6, 5, 5), 6 * 25),   # (Cin, Cout, k, k)
        "deconv1_b": u(ks[11], (6,), 6 * 25),
        "deconv2_w": u(ks[12], (6, 3, 5, 5), 3 * 25),
        "deconv2_b": u(ks[13], (3,), 3 * 25),
    }


# ----------------------------------------------------------------------------
# Forward pass (mirrors Cifar100Autoencoder.forward)
# ----------------------------------------------------------------------------
def forward(params, x):
    """x: (N, 3, 32, 32) NCHW -> (pred (N, 100), x_dec (N, 3, 32, 32))."""
    n = x.shape[0]
    xc = jnp.transpose(x, (1, 0, 2, 3))                  # channel-major (3,N,32,32)

    # encoder: Conv(3->6, k5) + ReLU, Conv(6->16, k5) + ReLU
    h = _conv2d(xc, params["conv1_w"], params["conv1_b"], relu=True)   # (6,N,28,28)
    h = _conv2d(h, params["conv2_w"], params["conv2_b"], relu=True)    # (16,N,24,24)

    # predictor (PyTorch flatten order: (N, C*H*W) with C major)
    flat = jnp.transpose(h, (1, 0, 2, 3)).reshape(n, -1)               # (N, 9216)
    pred = predictor(params, flat)

    # decoder: ConvT(16->6, k5) + ReLU, ConvT(6->3, k5) + ReLU
    # TODO(synk): the PyTorch forward feeds the flattened (N, 9216) tensor to
    # the decoder, which is a runtime shape error in torch; we decode the
    # un-flattened encoder feature map (N, 16, 24, 24) instead.
    d = _conv_transpose2d(h, params["deconv1_w"], params["deconv1_b"], relu=True)
    xd = _conv_transpose2d(d, params["deconv2_w"], params["deconv2_b"], relu=True)
    x_dec = jnp.transpose(xd, (1, 0, 2, 3))                            # NCHW
    return pred, x_dec


# ----------------------------------------------------------------------------
# Pure-JAX reference (for correctness check of the Pallas path)
# ----------------------------------------------------------------------------
def _ref_conv(x, w, b, relu):
    y = lax.conv_general_dilated(
        x, w, (1, 1), "VALID", dimension_numbers=("NCHW", "OIHW", "NCHW"),
        precision=lax.Precision.HIGHEST)
    y = y + b[None, :, None, None]
    return jnp.maximum(y, 0.0) if relu else y


def _ref_forward(params, x):
    h = _ref_conv(x, params["conv1_w"], params["conv1_b"], True)
    h = _ref_conv(h, params["conv2_w"], params["conv2_b"], True)
    flat = h.reshape(h.shape[0], -1)
    hi = lax.Precision.HIGHEST
    p = jnp.dot(flat, params["fc1_w"].T, precision=hi) + params["fc1_b"]
    p = jnp.dot(p, params["fc2_w"].T, precision=hi) + params["fc2_b"]
    pred = jnp.dot(p, params["fc3_w"].T, precision=hi) + params["fc3_b"]

    def ref_tconv(t, w, b):
        k = w.shape[2]
        tp = jnp.pad(t, ((0, 0), (0, 0), (k - 1, k - 1), (k - 1, k - 1)))
        wc = jnp.transpose(w[:, :, ::-1, ::-1], (1, 0, 2, 3))
        return _ref_conv(tp, wc, b, True)

    d = ref_tconv(h, params["deconv1_w"], params["deconv1_b"])
    x_ = ref_tconv(d, params["deconv2_w"], params["deconv2_b"])
    return pred, x_


if __name__ == "__main__":
    key = jax.random.PRNGKey(0)
    pkey, xkey = jax.random.split(key)
    params = init_params(pkey)

    # CIFAR-100 sized input (the 9216-wide Linear pins spatial size to 32x32).
    x = jax.random.normal(xkey, (2, 3, 32, 32), jnp.float32)

    pred, x_dec = jax.jit(forward)(params, x)
    jax.block_until_ready((pred, x_dec))

    assert pred.shape == (2, 100), pred.shape
    assert x_dec.shape == (2, 3, 32, 32), x_dec.shape

    ref_pred, ref_x = _ref_forward(params, x)
    err_p = float(jnp.max(jnp.abs(pred - ref_pred)))
    err_x = float(jnp.max(jnp.abs(x_dec - ref_x)))
    assert jnp.allclose(pred, ref_pred, atol=5e-2, rtol=5e-2), err_p
    assert jnp.allclose(x_dec, ref_x, atol=5e-2, rtol=5e-2), err_x

    print("KERNEL_OK")
</pallas_src>

<mosaic_0001>
module attributes {stable_mosaic.version = 11 : i64} {
  func.func @_matmul_bias_act_kernel(%arg0: i32, %arg1: memref<6x75xbf16, #tpu.memory_space<vmem>>, %arg2: memref<75x1568xbf16, #tpu.memory_space<vmem>>, %arg3: memref<6x1xf32, #tpu.memory_space<vmem>>, %arg4: memref<6x1568xf32, #tpu.memory_space<vmem>>) attributes {dimension_semantics = [#tpu.dimension_semantics<parallel>], iteration_bounds = array<i64: 1>, scalar_prefetch = 0 : i64, scratch_operands = 0 : i64, tpu.core_type = #tpu.core_type<tc>, window_params = [{pipeline_mode = #tpu.pipeline_mode<synchronous>, transform_indices = @transform_0, window_bounds = array<i64: 6, 75>}, {transform_indices = @transform_1, window_bounds = array<i64: 75, 1568>}, {pipeline_mode = #tpu.pipeline_mode<synchronous>, transform_indices = @transform_2, window_bounds = array<i64: 6, 1>}, {transform_indices = @transform_3, window_bounds = array<i64: 6, 1568>}]} {
    %c0 = arith.constant 0 : index
    %c0_0 = arith.constant 0 : index
    %0 = vector.load %arg1[%c0, %c0_0] : memref<6x75xbf16, #tpu.memory_space<vmem>>, vector<6x75xbf16>
    %c0_1 = arith.constant 0 : index
    %c0_2 = arith.constant 0 : index
    %1 = vector.load %arg2[%c0_1, %c0_2] : memref<75x1568xbf16, #tpu.memory_space<vmem>>, vector<75x1568xbf16>
    %cst = arith.constant dense<0.000000e+00> : vector<6x1568xf32>
    %2 = tpu.matmul %0, %1, %cst {dimension_numbers = #tpu.dot_dimension_numbers<[1], [0], [0], [1], [0, 0, 1, 1], [], []>} : vector<6x75xbf16>, vector<75x1568xbf16>, vector<6x1568xf32> -> vector<6x1568xf32>
    %c0_3 = arith.constant 0 : index
    %c0_4 = arith.constant 0 : index
    %3 = vector.load %arg3[%c0_3, %c0_4] : memref<6x1xf32, #tpu.memory_space<vmem>>, vector<6x1xf32>
    %4 = vector.broadcast %3 : vector<6x1xf32> to vector<6x1568xf32>
    %5 = arith.addf %2, %4 : vector<6x1568xf32>
    %cst_5 = arith.constant 0.000000e+00 : f32
    %6 = vector.broadcast %cst_5 : f32 to vector<6x1568xf32>
    %7 = arith.maximumf %5, %6 : vector<6x1568xf32>
    %c0_6 = arith.constant 0 : index
    %c0_7 = arith.constant 0 : index
    %8 = vector.load %arg4[%c0_6, %c0_7] : memref<6x1568xf32, #tpu.memory_space<vmem>>, vector<6x1568xf32>
    tpu.vector_store %arg4[%c0_6, %c0_7], %7 {strides = array<i32>} : memref<6x1568xf32, #tpu.memory_space<vmem>>, vector<6x1568xf32>,
    return
  }
  func.func @transform_0(%arg0: i32) -> (i32, i32) {
    %c0_i32 = arith.constant 0 : i32
    %c0_i32_0 = arith.constant 0 : i32
    %c0_i32_1 = arith.constant 0 : i32
    return %c0_i32, %c0_i32_0 : i32, i32
  }
  func.func @transform_1(%arg0: i32) -> (i32, i32) {
    %c0_i32 = arith.constant 0 : i32
    %c0_i32_0 = arith.constant 0 : i32
    return %c0_i32, %arg0 : i32, i32
  }
  func.func @transform_2(%arg0: i32) -> (i32, i32) {
    %c0_i32 = arith.constant 0 : i32
    %c0_i32_0 = arith.constant 0 : i32
    %c0_i32_1 = arith.constant 0 : i32
    return %c0_i32, %c0_i32_0 : i32, i32
  }
  func.func @transform_3(%arg0: i32) -> (i32, i32) {
    %c0_i32 = arith.constant 0 : i32
    %c0_i32_0 = arith.constant 0 : i32
    return %c0_i32, %arg0 : i32, i32
  }
}

module attributes {stable_mosaic.version = 11 : i64} {
  func.func @_matmul_bias_act_kernel(%arg0: i32, %arg1: memref<16x150xbf16, #tpu.memory_space<vmem>>, %arg2: memref<150x384xbf16, #tpu.memory_space<vmem>>, %arg3: memref<16x1xf32, #tpu.memory_space<vmem>>, %arg4: memref<16x384xf32, #tpu.memory_space<vmem>>) attributes {dimension_semantics = [#tpu.dimension_semantics<parallel>], iteration_bounds = array<i64: 3>, scalar_prefetch = 0 : i64, scratch_operands = 0 : i64, tpu.core_type = #tpu.core_type<tc>, window_params = [{pipeline_mode = #tpu.pipeline_mode<synchronous>, transform_indices = @transform_0, window_bounds = array<i64: 16, 150>}, {transform_indices = @transform_1, window_bounds = array<i64: 150, 384>}, {pipeline_mode = #tpu.pipeline_mode<synchronous>, transform_indices = @transform_2, window_bounds = array<i64: 16, 1>}, {transform_indices = @transform_3, window_bounds = array<i64: 16, 384>}]} {
    %c0 = arith.constant 0 : index
    %c0_0 = arith.constant 0 : index
    %0 = vector.load %arg1[%c0, %c0_0] : memref<16x150xbf16, #tpu.memory_space<vmem>>, vector<16x150xbf16>
    %c0_1 = arith.constant 0 : index
    %c0_2 = arith.constant 0 : index
    %1 = vector.load %arg2[%c0_1, %c0_2] : memref<150x384xbf16, #tpu.memory_space<vmem>>, vector<150x384xbf16>
    %cst = arith.constant dense<0.000000e+00> : vector<16x384xf32>
    %2 = tpu.matmul %0, %1, %cst {dimension_numbers = #tpu.dot_dimension_numbers<[1], [0], [0], [1], [0, 0, 1, 1], [], []>} : vector<16x150xbf16>, vector<150x384xbf16>, vector<16x384xf32> -> vector<16x384xf32>
    %c0_3 = arith.constant 0 : index
    %c0_4 = arith.constant 0 : index
    %3 = vector.load %arg3[%c0_3, %c0_4] : memref<16x1xf32, #tpu.memory_space<vmem>>, vector<16x1xf32>
    %4 = vector.broadcast %3 : vector<16x1xf32> to vector<16x384xf32>
    %5 = arith.addf %2, %4 : vector<16x384xf32>
    %cst_5 = arith.constant 0.000000e+00 : f32
    %6 = vector.broadcast %cst_5 : f32 to vector<16x384xf32>
    %7 = arith.maximumf %5, %6 : vector<16x384xf32>
    %c0_6 = arith.constant 0 : index
    %c0_7 = arith.constant 0 : index
    %8 = vector.load %arg4[%c0_6, %c0_7] : memref<16x384xf32, #tpu.memory_space<vmem>>, vector<16x384xf32>
    tpu.vector_store %arg4[%c0_6, %c0_7], %7 {strides = array<i32>} : memref<16x384xf32, #tpu.memory_space<vmem>>, vector<16x384xf32>,
    return
  }
  func.func @transform_0(%arg0: i32) -> (i32, i32) {
    %c0_i32 = arith.constant 0 : i32
    %c0_i32_0 = arith.constant 0 : i32
    %c0_i32_1 = arith.constant 0 : i32
    return %c0_i32, %c0_i32_0 : i32, i32
  }
  func.func @transform_1(%arg0: i32) -> (i32, i32) {
    %c0_i32 = arith.constant 0 : i32
    %c0_i32_0 = arith.constant 0 : i32
    return %c0_i32, %arg0 : i32, i32
  }
  func.func @transform_2(%arg0: i32) -> (i32, i32) {
    %c0_i32 = arith.constant 0 : i32
    %c0_i32_0 = arith.constant 0 : i32
    %c0_i32_1 = arith.constant 0 : i32
    return %c0_i32, %c0_i32_0 : i32, i32
  }
  func.func @transform_3(%arg0: i32) -> (i32, i32) {
    %c0_i32 = arith.constant 0 : i32
    %c0_i32_0 = arith.constant 0 : i32
    return %c0_i32, %arg0 : i32, i32
  }
}

module attributes {stable_mosaic.version = 11 : i64} {
  func.func @_predictor_kernel(%arg0: i32, %arg1: memref<2x9216xbf16, #tpu.memory_space<vmem>>, %arg2: memref<9216x120xbf16, #tpu.memory_space<vmem>>, %arg3: memref<1x120xf32, #tpu.memory_space<vmem>>, %arg4: memref<120x84xbf16, #tpu.memory_space<vmem>>, %arg5: memref<1x84xf32, #tpu.memory_space<vmem>>, %arg6: memref<84x100xbf16, #tpu.memory_space<vmem>>, %arg7: memref<1x100xf32, #tpu.memory_space<vmem>>, %arg8: memref<2x100xf32, #tpu.memory_space<vmem>>) attributes {dimension_semantics = [#tpu.dimension_semantics<arbitrary>], iteration_bounds = array<i64: 1>, scalar_prefetch = 0 : i64, scratch_operands = 0 : i64, tpu.core_type = #tpu.core_type<tc>, window_params = [{pipeline_mode = #tpu.pipeline_mode<synchronous>, transform_indices = @transform_0, window_bounds = array<i64: 2, 9216>}, {pipeline_mode = #tpu.pipeline_mode<synchronous>, transform_indices = @transform_1, window_bounds = array<i64: 9216, 120>}, {pipeline_mode = #tpu.pipeline_mode<synchronous>, transform_indices = @transform_2, window_bounds = array<i64: 1, 120>}, {pipeline_mode = #tpu.pipeline_mode<synchronous>, transform_indices = @transform_3, window_bounds = array<i64: 120, 84>}, {pipeline_mode = #tpu.pipeline_mode<synchronous>, transform_indices = @transform_4, window_bounds = array<i64: 1, 84>}, {pipeline_mode = #tpu.pipeline_mode<synchronous>, transform_indices = @transform_5, window_bounds = array<i64: 84, 100>}, {pipeline_mode = #tpu.pipeline_mode<synchronous>, transform_indices = @transform_6, window_bounds = array<i64: 1, 100>}, {pipeline_mode = #tpu.pipeline_mode<synchronous>, transform_indices = @transform_7, window_bounds = array<i64: 2, 100>}]} {
    %c0 = arith.constant 0 : index
    %c0_0 = arith.constant 0 : index
    %0 = vector.load %arg1[%c0, %c0_0] : memref<2x9216xbf16, #tpu.memory_space<vmem>>, vector<2x9216xbf16>
    %c0_1 = arith.constant 0 : index
    %c0_2 = arith.constant 0 : index
    %1 = vector.load %arg2[%c0_1, %c0_2] : memref<9216x120xbf16, #tpu.memory_space<vmem>>, vector<9216x120xbf16>
    %cst = arith.constant dense<0.000000e+00> : vector<2x120xf32>
    %2 = tpu.matmul %0, %1, %cst {dimension_numbers = #tpu.dot_dimension_numbers<[1], [0], [0], [1], [0, 0, 1, 1], [], []>} : vector<2x9216xbf16>, vector<9216x120xbf16>, vector<2x120xf32> -> vector<2x120xf32>
    %c0_3 = arith.constant 0 : index
    %c0_4 = arith.constant 0 : index
    %3 = vector.load %arg3[%c0_3, %c0_4] : memref<1x120xf32, #tpu.memory_space<vmem>>, vector<1x120xf32>
    %4 = vector.broadcast %3 : vector<1x120xf32> to vector<2x120xf32>
    %5 = arith.addf %2, %4 : vector<2x120xf32>
    %6 = arith.truncf %5 : vector<2x120xf32> to vector<2x120xbf16>
    %c0_5 = arith.constant 0 : index
    %c0_6 = arith.constant 0 : index
    %7 = vector.load %arg4[%c0_5, %c0_6] : memref<120x84xbf16, #tpu.memory_space<vmem>>, vector<120x84xbf16>
    %cst_7 = arith.constant dense<0.000000e+00> : vector<2x84xf32>
    %8 = tpu.matmul %6, %7, %cst_7 {dimension_numbers = #tpu.dot_dimension_numbers<[1], [0], [0], [1], [0, 0, 1, 1], [], []>} : vector<2x120xbf16>, vector<120x84xbf16>, vector<2x84xf32> -> vector<2x84xf32>
    %c0_8 = arith.constant 0 : index
    %c0_9 = arith.constant 0 : index
    %9 = vector.load %arg5[%c0_8, %c0_9] : memref<1x84xf32, #tpu.memory_space<vmem>>, vector<1x84xf32>
    %10 = vector.broadcast %9 : vector<1x84xf32> to vector<2x84xf32>
    %11 = arith.addf %8, %10 : vector<2x84xf32>
    %12 = arith.truncf %11 : vector<2x84xf32> to vector<2x84xbf16>
    %c0_10 = arith.constant 0 : index
    %c0_11 = arith.constant 0 : index
    %13 = vector.load %arg6[%c0_10, %c0_11] : memref<84x100xbf16, #tpu.memory_space<vmem>>, vector<84x100xbf16>
    %cst_12 = arith.constant dense<0.000000e+00> : vector<2x100xf32>
    %14 = tpu.matmul %12, %13, %cst_12 {dimension_numbers = #tpu.dot_dimension_numbers<[1], [0], [0], [1], [0, 0, 1, 1], [], []>} : vector<2x84xbf16>, vector<84x100xbf16>, vector<2x100xf32> -> vector<2x100xf32>
    %c0_13 = arith.constant 0 : index
    %c0_14 = arith.constant 0 : index
    %15 = vector.load %arg7[%c0_13, %c0_14] : memref<1x100xf32, #tpu.memory_space<vmem>>, vector<1x100xf32>
    %16 = vector.broadcast %15 : vector<1x100xf32> to vector<2x100xf32>
    %17 = arith.addf %14, %16 : vector<2x100xf32>
    %c0_15 = arith.constant 0 : index
    %c0_16 = arith.constant 0 : index
    %18 = vector.load %arg8[%c0_15, %c0_16] : memref<2x100xf32, #tpu.memory_space<vmem>>, vector<2x100xf32>
    tpu.vector_store %arg8[%c0_15, %c0_16], %17 {strides = array<i32>} : memref<2x100xf32, #tpu.memory_space<vmem>>, vector<2x100xf32>,
    return
  }
  func.func @transform_0(%arg0: i32) -> (i32, i32) {
    %c0_i32 = arith.constant 0 : i32
    %c0_i32_0 = arith.constant 0 : i32
    %c0_i32_1 = arith.constant 0 : i32
    return %c0_i32, %c0_i32_0 : i32, i32
  }
  func.func @transform_1(%arg0: i32) -> (i32, i32) {
    %c0_i32 = arith.constant 0 : i32
    %c0_i32_0 = arith.constant 0 : i32
    %c0_i32_1 = arith.constant 0 : i32
    return %c0_i32, %c0_i32_0 : i32, i32
  }
  func.func @transform_2(%arg0: i32) -> (i32, i32) {
    %c0_i32 = arith.constant 0 : i32
    %c0_i32_0 = arith.constant 0 : i32
    %c0_i32_1 = arith.constant 0 : i32
    return %c0_i32, %c0_i32_0 : i32, i32
  }
  func.func @transform_3(%arg0: i32) -> (i32, i32) {
    %c0_i32 = arith.constant 0 : i32
    %c0_i32_0 = arith.constant 0 : i32
    %c0_i32_1 = arith.constant 0 : i32
    return %c0_i32, %c0_i32_0 : i32, i32
  }
  func.func @transform_4(%arg0: i32) -> (i32, i32) {
    %c0_i32 = arith.constant 0 : i32
    %c0_i32_0 = arith.constant 0 : i32
    %c0_i32_1 = arith.constant 0 : i32
    return %c0_i32, %c0_i32_0 : i32, i32
  }
  func.func @transform_5(%arg0: i32) -> (i32, i32) {
    %c0_i32 = arith.constant 0 : i32
    %c0_i32_0 = arith.constant 0 : i32
    %c0_i32_1 = arith.constant 0 : i32
    return %c0_i32, %c0_i32_0 : i32, i32
  }
  func.func @transform_6(%arg0: i32) -> (i32, i32) {
    %c0_i32 = arith.constant 0 : i32
    %c0_i32_0 = arith.constant 0 : i32
    %c0_i32_1 = arith.constant 0 : i32
    return %c0_i32, %c0_i32_0 : i32, i32
  }
  func.func @transform_7(%arg0: i32) -> (i32, i32) {
    %c0_i32 = arith.constant 0 : i32
    %c0_i32_0 = arith.constant 0 : i32
    %c0_i32_1 = arith.constant 0 : i32
    return %c0_i32, %c0_i32_0 : i32, i32
  }
}

module attributes {stable_mosaic.version = 11 : i64} {
  func.func @_matmul_bias_act_kernel(%arg0: i32, %arg1: memref<6x400xbf16, #tpu.memory_space<vmem>>, %arg2: memref<400x1568xbf16, #tpu.memory_space<vmem>>, %arg3: memref<6x1xf32, #tpu.memory_space<vmem>>, %arg4: memref<6x1568xf32, #tpu.memory_space<vmem>>) attributes {dimension_semantics = [#tpu.dimension_semantics<parallel>], iteration_bounds = array<i64: 1>, scalar_prefetch = 0 : i64, scratch_operands = 0 : i64, tpu.core_type = #tpu.core_type<tc>, window_params = [{pipeline_mode = #tpu.pipeline_mode<synchronous>, transform_indices = @transform_0, window_bounds = array<i64: 6, 400>}, {transform_indices = @transform_1, window_bounds = array<i64: 400, 1568>}, {pipeline_mode = #tpu.pipeline_mode<synchronous>, transform_indices = @transform_2, window_bounds = array<i64: 6, 1>}, {transform_indices = @transform_3, window_bounds = array<i64: 6, 1568>}]} {
    %c0 = arith.constant 0 : index
    %c0_0 = arith.constant 0 : index
    %0 = vector.load %arg1[%c0, %c0_0] : memref<6x400xbf16, #tpu.memory_space<vmem>>, vector<6x400xbf16>
    %c0_1 = arith.constant 0 : index
    %c0_2 = arith.constant 0 : index
    %1 = vector.load %arg2[%c0_1, %c0_2] : memref<400x1568xbf16, #tpu.memory_space<vmem>>, vector<400x1568xbf16>
    %cst = arith.constant dense<0.000000e+00> : vector<6x1568xf32>
    %2 = tpu.matmul %0, %1, %cst {dimension_numbers = #tpu.dot_dimension_numbers<[1], [0], [0], [1], [0, 0, 1, 1], [], []>} : vector<6x400xbf16>, vector<400x1568xbf16>, vector<6x1568xf32> -> vector<6x1568xf32>
    %c0_3 = arith.constant 0 : index
    %c0_4 = arith.constant 0 : index
    %3 = vector.load %arg3[%c0_3, %c0_4] : memref<6x1xf32, #tpu.memory_space<vmem>>, vector<6x1xf32>
    %4 = vector.broadcast %3 : vector<6x1xf32> to vector<6x1568xf32>
    %5 = arith.addf %2, %4 : vector<6x1568xf32>
    %cst_5 = arith.constant 0.000000e+00 : f32
    %6 = vector.broadcast %cst_5 : f32 to vector<6x1568xf32>
    %7 = arith.maximumf %5, %6 : vector<6x1568xf32>
    %c0_6 = arith.constant 0 : index
    %c0_7 = arith.constant 0 : index
    %8 = vector.load %arg4[%c0_6, %c0_7] : memref<6x1568xf32, #tpu.memory_space<vmem>>, vector<6x1568xf32>
    tpu.vector_store %arg4[%c0_6, %c0_7], %7 {strides = array<i32>} : memref<6x1568xf32, #tpu.memory_space<vmem>>, vector<6x1568xf32>,
    return
  }
  func.func @transform_0(%arg0: i32) -> (i32, i32) {
    %c0_i32 = arith.constant 0 : i32
    %c0_i32_0 = arith.constant 0 : i32
    %c0_i32_1 = arith.constant 0 : i32
    return %c0_i32, %c0_i32_0 : i32, i32
  }
  func.func @transform_1(%arg0: i32) -> (i32, i32) {
    %c0_i32 = arith.constant 0 : i32
    %c0_i32_0 = arith.constant 0 : i32
    return %c0_i32, %arg0 : i32, i32
  }
  func.func @transform_2(%arg0: i32) -> (i32, i32) {
    %c0_i32 = arith.constant 0 : i32
    %c0_i32_0 = arith.constant 0 : i32
    %c0_i32_1 = arith.constant 0 : i32
    return %c0_i32, %c0_i32_0 : i32, i32
  }
  func.func @transform_3(%arg0: i32) -> (i32, i32) {
    %c0_i32 = arith.constant 0 : i32
    %c0_i32_0 = arith.constant 0 : i32
    return %c0_i32, %arg0 : i32, i32
  }
}

module attributes {stable_mosaic.version = 11 : i64} {
  func.func @_matmul_bias_act_kernel(%arg0: i32, %arg1: memref<3x150xbf16, #tpu.memory_space<vmem>>, %arg2: memref<150x512xbf16, #tpu.memory_space<vmem>>, %arg3: memref<3x1xf32, #tpu.memory_space<vmem>>, %arg4: memref<3x512xf32, #tpu.memory_space<vmem>>) attributes {dimension_semantics = [#tpu.dimension_semantics<parallel>], iteration_bounds = array<i64: 4>, scalar_prefetch = 0 : i64, scratch_operands = 0 : i64, tpu.core_type = #tpu.core_type<tc>, window_params = [{pipeline_mode = #tpu.pipeline_mode<synchronous>, transform_indices = @transform_0, window_bounds = array<i64: 3, 150>}, {transform_indices = @transform_1, window_bounds = array<i64: 150, 512>}, {pipeline_mode = #tpu.pipeline_mode<synchronous>, transform_indices = @transform_2, window_bounds = array<i64: 3, 1>}, {transform_indices = @transform_3, window_bounds = array<i64: 3, 512>}]} {
    %c0 = arith.constant 0 : index
    %c0_0 = arith.constant 0 : index
    %0 = vector.load %arg1[%c0, %c0_0] : memref<3x150xbf16, #tpu.memory_space<vmem>>, vector<3x150xbf16>
    %c0_1 = arith.constant 0 : index
    %c0_2 = arith.constant 0 : index
    %1 = vector.load %arg2[%c0_1, %c0_2] : memref<150x512xbf16, #tpu.memory_space<vmem>>, vector<150x512xbf16>
    %cst = arith.constant dense<0.000000e+00> : vector<3x512xf32>
    %2 = tpu.matmul %0, %1, %cst {dimension_numbers = #tpu.dot_dimension_numbers<[1], [0], [0], [1], [0, 0, 1, 1], [], []>} : vector<3x150xbf16>, vector<150x512xbf16>, vector<3x512xf32> -> vector<3x512xf32>
    %c0_3 = arith.constant 0 : index
    %c0_4 = arith.constant 0 : index
    %3 = vector.load %arg3[%c0_3, %c0_4] : memref<3x1xf32, #tpu.memory_space<vmem>>, vector<3x1xf32>
    %4 = vector.broadcast %3 : vector<3x1xf32> to vector<3x512xf32>
    %5 = arith.addf %2, %4 : vector<3x512xf32>
    %cst_5 = arith.constant 0.000000e+00 : f32
    %6 = vector.broadcast %cst_5 : f32 to vector<3x512xf32>
    %7 = arith.maximumf %5, %6 : vector<3x512xf32>
    %c0_6 = arith.constant 0 : index
    %c0_7 = arith.constant 0 : index
    %8 = vector.load %arg4[%c0_6, %c0_7] : memref<3x512xf32, #tpu.memory_space<vmem>>, vector<3x512xf32>
    tpu.vector_store %arg4[%c0_6, %c0_7], %7 {strides = array<i32>} : memref<3x512xf32, #tpu.memory_space<vmem>>, vector<3x512xf32>,
    return
  }
  func.func @transform_0(%arg0: i32) -> (i32, i32) {
    %c0_i32 = arith.constant 0 : i32
    %c0_i32_0 = arith.constant 0 : i32
    %c0_i32_1 = arith.constant 0 : i32
    return %c0_i32, %c0_i32_0 : i32, i32
  }
  func.func @transform_1(%arg0: i32) -> (i32, i32) {
    %c0_i32 = arith.constant 0 : i32
    %c0_i32_0 = arith.constant 0 : i32
    return %c0_i32, %arg0 : i32, i32
  }
  func.func @transform_2(%arg0: i32) -> (i32, i32) {
    %c0_i32 = arith.constant 0 : i32
    %c0_i32_0 = arith.constant 0 : i32
    %c0_i32_1 = arith.constant 0 : i32
    return %c0_i32, %c0_i32_0 : i32, i32
  }
  func.func @transform_3(%arg0: i32) -> (i32, i32) {
    %c0_i32 = arith.constant 0 : i32
    %c0_i32_0 = arith.constant 0 : i32
    return %c0_i32, %arg0 : i32, i32
  }
}

</mosaic_0001>

<llo_original>
// kernel: forward.5
$region0: #{forward.5}
  #allocation0 [shape = 'u32[]', space=smem, size = 0x4, offset = 0x4, fixed_abs, tag = 'smem constant byte address 0x4 - core index']
  #allocation1 [shape = 'u32[144,128]{1,0:T(1,128)}', space=vmem, size = 0x12000, scoped, tag = 'internal scratch']
  %s0 = inlined_call_operand.vmem [shape: bf16[6,75], index: 0, kind: input, shape index: {}]
  %s1 = inlined_call_operand.vmem [shape: bf16[75,1568], index: 1, kind: input, shape index: {}]
  %s2 = inlined_call_operand.vmem [shape: f32[6,1], index: 2, kind: input, shape index: {}]
  %s3 = inlined_call_operand.vmem [shape: f32[6,1568], index: 3, kind: output, shape index: {}]
  %s4 = sld [smem:[#allocation0]]
  $region22: #{forward.5} parent=0
    _
  %s6 = ssub.s32 1, %s4
  %s7 = scalar_select 0, %s6, %s4
  // Predicated region
  $region2: #{forward.5} parent=0 // pred_check
    _
  $region3: #{forward.5} parent=0 // pred_check_branch
    %9 = sbr.rel (0) target = $region5
  $region4: #{forward.5} parent=0 // pred_region
    _
  $region5: #{forward.5} parent=0 // pred_fallthru
    _
  // Predicated region
  $region6: #{forward.5} parent=0 // pred_check
    _
  $region7: #{forward.5} parent=0 // pred_check_branch
    %11 = sbr.rel (0) target = $region9
  $region8: #{forward.5} parent=0 // pred_region
    _
  $region9: #{forward.5} parent=0 // pred_fallthru
    _
  // Predicated region
  $region10: #{forward.5} parent=0 // pred_check
    _
  $region11: #{forward.5} parent=0 // pred_check_branch
    %13 = sbr.rel (0) target = $region13
  $region12: #{forward.5} parent=0 // pred_region
    _
  $region13: #{forward.5} parent=0 // pred_fallthru
    _
  %v15 = vld [vmem:[%s0] sm:$0x7]
  %v16 = vld [vmem:[%s1] sm:$0xff]
  %v17 = vld [vmem:[%s1 + $0x8] sm:$0xff]
  %v18 = vld [vmem:[%s1 + $0x10] sm:$0xff]
  %v19 = vld [vmem:[%s1 + $0x18] sm:$0xff]
  %v20 = vld [vmem:[%s1 + $0x20] sm:$0xff]
  %v21 = vld [vmem:[%s1 + $0x28] sm:$0xff]
  %v22 = vld [vmem:[%s1 + $0x30] sm:$0xf]
  %v23 = vld [vmem:[%s1 + $0x34] sm:$0xff]
  %v24 = vld [vmem:[%s1 + $0x3c] sm:$0xff]
  %v25 = vld [vmem:[%s1 + $0x44] sm:$0xff]
  %v26 = vld [vmem:[%s1 + $0x4c] sm:$0xff]
  %v27 = vld [vmem:[%s1 + $0x54] sm:$0xff]
  %v28 = vld [vmem:[%s1 + $0x5c] sm:$0xff]
  %v29 = vld [vmem:[%s1 + $0x64] sm:$0xf]
  %v30 = vld [vmem:[%s1 + $0x68] sm:$0xff]
  %v31 = vld [vmem:[%s1 + $0x70] sm:$0xff]
  %v32 = vld [vmem:[%s1 + $0x78] sm:$0xff]
  %v33 = vld [vmem:[%s1 + $0x80] sm:$0xff]
  %v34 = vld [vmem:[%s1 + $0x88] sm:$0xff]
  %v35 = vld [vmem:[%s1 + $0x90] sm:$0xff]
  %v36 = vld [vmem:[%s1 + $0x98] sm:$0xf]
  %v37 = vld [vmem:[%s1 + $0x9c] sm:$0xff]
  %v38 = vld [vmem:[%s1 + $0xa4] sm:$0xff]
  %v39 = vld [vmem:[%s1 + $0xac] sm:$0xff]
  %v40 = vld [vmem:[%s1 + $0xb4] sm:$0xff]
  %v41 = vld [vmem:[%s1 + $0xbc] sm:$0xff]
  %v42 = vld [vmem:[%s1 + $0xc4] sm:$0xff]
  %v43 = vld [vmem:[%s1 + $0xcc] sm:$0xf]
  %v44 = vld [vmem:[%s1 + $0xd0] sm:$0xff]
  %v45 = vld [vmem:[%s1 + $0xd8] sm:$0xff]
  %v46 = vld [vmem:[%s1 + $0xe0] sm:$0xff]
  %v47 = vld [vmem:[%s1 + $0xe8] sm:$0xff]
  %v48 = vld [vmem:[%s1 + $0xf0] sm:$0xff]
  %v49 = vld [vmem:[%s1 + $0xf8] sm:$0xff]
  %v50 = vld [vmem:[%s1 + $0x100] sm:$0xf]
  %v51 = vld [vmem:[%s1 + $0x104] sm:$0xff]
  %v52 = vld [vmem:[%s1 + $0x10c] sm:$0xff]
  %v53 = vld [vmem:[%s1 + $0x114] sm:$0xff]
  %v54 = vld [vmem:[%s1 + $0x11c] sm:$0xff]
  %v55 = vld [vmem:[%s1 + $0x124] sm:$0xff]
  %v56 = vld [vmem:[%s1 + $0x12c] sm:$0xff]
  %v57 = vld [vmem:[%s1 + $0x134] sm:$0xf]
  %v58 = vld [vmem:[%s1 + $0x138] sm:$0xff]
  %v59 = vld [vmem:[%s1 + $0x140] sm:$0xff]
  %v60 = vld [vmem:[%s1 + $0x148] sm:$0xff]
  %v61 = vld [vmem:[%s1 + $0x150] sm:$0xff]
  %v62 = vld [vmem:[%s1 + $0x158] sm:$0xff]
  %v63 = vld [vmem:[%s1 + $0x160] sm:$0xff]
  %v64 = vld [vmem:[%s1 + $0x168] sm:$0xf]
  %v65 = vld [vmem:[%s1 + $0x16c] sm:$0xff]
  %v66 = vld [vmem:[%s1 + $0x174] sm:$0xff]
  %v67 = vld [vmem:[%s1 + $0x17c] sm:$0xff]
  %v68 = vld [vmem:[%s1 + $0x184] sm:$0xff]
  %v69 = vld [vmem:[%s1 + $0x18c] sm:$0xff]
  %v70 = vld [vmem:[%s1 + $0x194] sm:$0xff]
  %v71 = vld [vmem:[%s1 + $0x19c] sm:$0xf]
  %v72 = vld [vmem:[%s1 + $0x1a0] sm:$0xff]
  %v73 = vld [vmem:[%s1 + $0x1a8] sm:$0xff]
  %v74 = vld [vmem:[%s1 + $0x1b0] sm:$0xff]
  %v75 = vld [vmem:[%s1 + $0x1b8] sm:$0xff]
  %v76 = vld [vmem:[%s1 + $0x1c0] sm:$0xff]
  %v77 = vld [vmem:[%s1 + $0x1c8] sm:$0xff]
  %v78 = vld [vmem:[%s1 + $0x1d0] sm:$0xf]
  %v79 = vld [vmem:[%s1 + $0x1d4] sm:$0x33]
  %v80 = vld [vmem:[%s1 + $0x1dc] sm:$0x33]
  %v81 = vld [vmem:[%s1 + $0x1e4] sm:$0x33]
  %v82 = vld [vmem:[%s1 + $0x1ec] sm:$0x33]
  %v83 = vld [vmem:[%s1 + $0x1f4] sm:$0x33]
  %v84 = vld [vmem:[%s1 + $0x1fc] sm:$0x33]
  %v85 = vld [vmem:[%s1 + $0x204] sm:$0x3]
  %v86 = vld [vmem:[%s2] sm:$0x3f]
  %88 = vset.pattern.permute.xlu0 0
  %89 = vperm.xlu0 %88, %v86
  %v90 = vpop.permute.xlu0 %89
  %v162 = vunpack.c.l.b16 %v16
  %v163 = vunpack.c.h.b16 %v16
  %v164 = vunpack.c.l.b16 %v17
  %v165 = vunpack.c.h.b16 %v17
  %v166 = vunpack.c.l.b16 %v18
  %v167 = vunpack.c.h.b16 %v18
  %v168 = vunpack.c.l.b16 %v19
  %v169 = vunpack.c.h.b16 %v19
  %v170 = vunpack.c.l.b16 %v20
  %v171 = vunpack.c.h.b16 %v20
  %v172 = vunpack.c.l.b16 %v21
  %v173 = vunpack.c.h.b16 %v21
  %v174 = vunpack.c.l.b16 %v22
  %v175 = vunpack.c.l.b16 %v23
  %v176 = vunpack.c.h.b16 %v23
  %v177 = vunpack.c.l.b16 %v24
  %v178 = vunpack.c.h.b16 %v24
  %v179 = vunpack.c.l.b16 %v25
  %v180 = vunpack.c.h.b16 %v25
  %v181 = vunpack.c.l.b16 %v26
  %v182 = vunpack.c.h.b16 %v26
  %v183 = vunpack.c.l.b16 %v27
  %v184 = vunpack.c.h.b16 %v27
  %v185 = vunpack.c.l.b16 %v28
  %v186 = vunpack.c.h.b16 %v28
  %v187 = vunpack.c.l.b16 %v29
  %v188 = vunpack.c.l.b16 %v30
  %v189 = vunpack.c.h.b16 %v30
  %v190 = vunpack.c.l.b16 %v31
  %v191 = vunpack.c.h.b16 %v31
  %v192 = vunpack.c.l.b16 %v32
  %v193 = vunpack.c.h.b16 %v32
  %v194 = vunpack.c.l.b16 %v33
  %v195 = vunpack.c.h.b16 %v33
  %v196 = vunpack.c.l.b16 %v34
  %v197 = vunpack.c.h.b16 %v34
  %v198 = vunpack.c.l.b16 %v35
  %v199 = vunpack.c.h.b16 %v35
  %v200 = vunpack.c.l.b16 %v36
  %v201 = vunpack.c.l.b16 %v37
  %v202 = vunpack.c.h.b16 %v37
  %v203 = vunpack.c.l.b16 %v38
  %v204 = vunpack.c.h.b16 %v38
  %v205 = vunpack.c.l.b16 %v39
  %v206 = vunpack.c.h.b16 %v39
  %v207 = vunpack.c.l.b16 %v40
  %v208 = vunpack.c.h.b16 %v40
  %v209 = vunpack.c.l.b16 %v41
  %v210 = vunpack.c.h.b16 %v41
  %v211 = vunpack.c.l.b16 %v42
  %v212 = vunpack.c.h.b16 %v42
  %v213 = vunpack.c.l.b16 %v43
  %v214 = vunpack.c.l.b16 %v44
  %v215 = vunpack.c.h.b16 %v44
  %v216 = vunpack.c.l.b16 %v45
  %v217 = vunpack.c.h.b16 %v45
  %v218 = vunpack.c.l.b16 %v46
  %v219 = vunpack.c.h.b16 %v46
  %v220 = vunpack.c.l.b16 %v47
  %v221 = vunpack.c.h.b16 %v47
  %v222 = vunpack.c.l.b16 %v48
  %v223 = vunpack.c.h.b16 %v48
  %v224 = vunpack.c.l.b16 %v49
  %v225 = vunpack.c.h.b16 %v49
  %v226 = vunpack.c.l.b16 %v50
  %v227 = vunpack.c.l.b16 %v51
  %v228 = vunpack.c.h.b16 %v51
  %v229 = vunpack.c.l.b16 %v52
  %v230 = vunpack.c.h.b16 %v52
  %v231 = vunpack.c.l.b16 %v53
  %v232 = vunpack.c.h.b16 %v53
  %v233 = vunpack.c.l.b16 %v54
  %v234 = vunpack.c.h.b16 %v54
  %v235 = vunpack.c.l.b16 %v55
  %v236 = vunpack.c.h.b16 %v55
  %v237 = vunpack.c.l.b16 %v56
  %v238 = vunpack.c.h.b16 %v56
  %v239 = vunpack.c.l.b16 %v57
  %v240 = vunpack.c.l.b16 %v58
  %v241 = vunpack.c.h.b16 %v58
  %v242 = vunpack.c.l.b16 %v59
  %v243 = vunpack.c.h.b16 %v59
  %v244 = vunpack.c.l.b16 %v60
  %v245 = vunpack.c.h.b16 %v60
  %v246 = vunpack.c.l.b16 %v61
  %v247 = vunpack.c.h.b16 %v61
  %v248 = vunpack.c.l.b16 %v62
  %v249 = vunpack.c.h.b16 %v62
  %v250 = vunpack.c.l.b16 %v63
  %v251 = vunpack.c.h.b16 %v63
  %v252 = vunpack.c.l.b16 %v64
  %v253 = vunpack.c.l.b16 %v65
  %v254 = vunpack.c.h.b16 %v65
  %v255 = vunpack.c.l.b16 %v66
  %v256 = vunpack.c.h.b16 %v66
  %v257 = vunpack.c.l.b16 %v67
  %v258 = vunpack.c.h.b16 %v67
  %v259 = vunpack.c.l.b16 %v68
  %v260 = vunpack.c.h.b16 %v68
  %v261 = vunpack.c.l.b16 %v69
  %v262 = vunpack.c.h.b16 %v69
  %v263 = vunpack.c.l.b16 %v70
  %v264 = vunpack.c.h.b16 %v70
  %v265 = vunpack.c.l.b16 %v71
  %v266 = vunpack.c.l.b16 %v72
  %v267 = vunpack.c.h.b16 %v72
  %v268 = vunpack.c.l.b16 %v73
  %v269 = vunpack.c.h.b16 %v73
  %v270 = vunpack.c.l.b16 %v74
  %v271 = vunpack.c.h.b16 %v74
  %v272 = vunpack.c.l.b16 %v75
  %v273 = vunpack.c.h.b16 %v75
  %v274 = vunpack.c.l.b16 %v76
  %v275 = vunpack.c.h.b16 %v76
  %v276 = vunpack.c.l.b16 %v77
  %v277 = vunpack.c.h.b16 %v77
  %v278 = vunpack.c.l.b16 %v78
  %v279 = vunpack.c.l.b16 %v79
  %v280 = vunpack.c.h.b16 %v79
  %v281 = vunpack.c.l.b16 %v80
  %v282 = vunpack.c.h.b16 %v80
  %v283 = vunpack.c.l.b16 %v81
  %v284 = vunpack.c.h.b16 %v81
  %v285 = vunpack.c.l.b16 %v82
  %v286 = vunpack.c.h.b16 %v82
  %v287 = vunpack.c.l.b16 %v83
  %v288 = vunpack.c.h.b16 %v83
  %v289 = vunpack.c.l.b16 %v84
  %v290 = vunpack.c.h.b16 %v84
  %v291 = vunpack.c.l.b16 %v85
  %v292 = vpack.c.b16 %v175, %v162
  %v293 = vpack.c.b16 %v176, %v163
  %v294 = vpack.c.b16 %v177, %v164
  %v295 = vpack.c.b16 %v178, %v165
  %v296 = vpack.c.b16 %v179, %v166
  %v297 = vpack.c.b16 %v180, %v167
  %v298 = vpack.c.b16 %v181, %v168
  %v299 = vpack.c.b16 %v182, %v169
  %v300 = vpack.c.b16 %v183, %v170
  %v301 = vpack.c.b16 %v184, %v171
  %v302 = vpack.c.b16 %v185, %v172
  %v303 = vpack.c.b16 %v186, %v173
  %v304 = vpack.c.b16 %v187, %v174
  %v305 = vpack.c.b16 %v201, %v188
  %v306 = vpack.c.b16 %v202, %v189
  %v307 = vpack.c.b16 %v203, %v190
  %v308 = vpack.c.b16 %v204, %v191
  %v309 = vpack.c.b16 %v205, %v192
  %v310 = vpack.c.b16 %v206, %v193
  %v311 = vpack.c.b16 %v207, %v194
  %v312 = vpack.c.b16 %v208, %v195
  %v313 = vpack.c.b16 %v209, %v196
  %v314 = vpack.c.b16 %v210, %v197
  %v315 = vpack.c.b16 %v211, %v198
  %v316 = vpack.c.b16 %v212, %v199
  %v317 = vpack.c.b16 %v213, %v200
  %v318 = vpack.c.b16 %v227, %v214
  %v319 = vpack.c.b16 %v228, %v215
  %v320 = vpack.c.b16 %v229, %v216
  %v321 = vpack.c.b16 %v230, %v217
  %v322 = vpack.c.b16 %v231, %v218
  %v323 = vpack.c.b16 %v232, %v219
  %v324 = vpack.c.b16 %v233, %v220
  %v325 = vpack.c.b16 %v234, %v221
  %v326 = vpack.c.b16 %v235, %v222
  %v327 = vpack.c.b16 %v236, %v223
  %v328 = vpack.c.b16 %v237, %v224
  %v329 = vpack.c.b16 %v238, %v225
  %v330 = vpack.c.b16 %v239, %v226
  %v331 = vpack.c.b16 %v253, %v240
  %v332 = vpack.c.b16 %v254, %v241
  %v333 = vpack.c.b16 %v255, %v242
  %v334 = vpack.c.b16 %v256, %v243
  %v335 = vpack.c.b16 %v257, %v244
  %v336 = vpack.c.b16 %v258, %v245
  %v337 = vpack.c.b16 %v259, %v246
  %v338 = vpack.c.b16 %v260, %v247
  %v339 = vpack.c.b16 %v261, %v248
  %v340 = vpack.c.b16 %v262, %v249
  %v341 = vpack.c.b16 %v263, %v250
  %v342 = vpack.c.b16 %v264, %v251
  %v343 = vpack.c.b16 %v265, %v252
  %v344 = vpack.c.b16 %v279, %v266
  %v345 = vpack.c.b16 %v280, %v267
  %v346 = vpack.c.b16 %v281, %v268
  %v347 = vpack.c.b16 %v282, %v269
  %v348 = vpack.c.b16 %v283, %v270
  %v349 = vpack.c.b16 %v284, %v271
  %v350 = vpack.c.b16 %v285, %v272
  %v351 = vpack.c.b16 %v286, %v273
  %v352 = vpack.c.b16 %v287, %v274
  %v353 = vpack.c.b16 %v288, %v275
  %v354 = vpack.c.b16 %v289, %v276
  %v355 = vpack.c.b16 %v290, %v277
  %v356 = vpack.c.b16 %v291, %v278
  %vm409 = vcmask 613376
  %v411 = vsel %vm409, %v15, 0
  %vm413 = vcmask 1044480
  %vm414 = vcmask 1045504
  %v415 = vsel %vm413, 4294967295, 65535
  %v416 = vsel %vm414, %v415, 0
  %v418 = vand.u32 %v344, %v416
  %v421 = vand.u32 %v345, %v416
  %v424 = vand.u32 %v346, %v416
  %v427 = vand.u32 %v347, %v416
  %v430 = vand.u32 %v348, %v416
  %v433 = vand.u32 %v349, %v416
  %v436 = vand.u32 %v350, %v416
  %v439 = vand.u32 %v351, %v416
  %v442 = vand.u32 %v352, %v416
  %v445 = vand.u32 %v353, %v416
  %v448 = vand.u32 %v354, %v416
  %v451 = vand.u32 %v355, %v416
  %v454 = vand.u32 %v356, %v416
  %456 = vmatprep.subr.bf16.mxu0 %v293
  %457 = vmatpush1.bf16.msra.mxu0 %v292
  %458 = vmatprep.subr.bf16.mxu0 %v306
  %459 = vmatpush1.bf16.msra.mxu0 %v305
  %460 = vmatprep.subr.bf16.mxu0 %v319
  %461 = vmatpush1.bf16.msra.mxu0 %v318
  %462 = vmatprep.subr.bf16.mxu0 %v332
  %463 = vmatpush1.bf16.msra.mxu0 %v331
  %464 = vmatprep.subr.bf16.mxu0 %v421
  %465 = vmatpush1.bf16.msra.mxu0 %v418
  %466 = vmatprep.subr.bf16.mxu0 0
  %467 = vmatpush1.bf16.msra.mxu0 0
  %468 = vmatprep.subr.bf16.mxu0 0
  %469 = vmatpush1.bf16.msra.mxu0 0
  %470 = vmatprep.subr.bf16.mxu0 0
  %471 = vmatpush1.bf16.msra.mxu0 0
  %472 = vmatprep.subr.bf16.mxu0 0
  %473 = vmatpush1.bf16.msra.mxu0 0
  %474 = vmatprep.subr.bf16.mxu0 0
  %475 = vmatpush1.bf16.msra.mxu0 0
  %476 = vmatprep.subr.bf16.mxu0 0
  %477 = vmatpush1.bf16.msra.mxu0 0
  %478 = vmatprep.subr.bf16.mxu0 0
  %479 = vmatpush1.bf16.msra.mxu0 0
  %480 = vmatprep.subr.bf16.mxu0 0
  %481 = vmatpush1.bf16.msra.mxu0 0
  %482 = vmatprep.subr.bf16.mxu0 0
  %483 = vmatpush1.bf16.msra.mxu0 0
  %484 = vmatprep.subr.bf16.mxu0 0
  %485 = vmatpush1.bf16.msra.mxu0 0
  %486 = vmatprep.subr.bf16.mxu0 0
  %487 = vmatpush1.bf16.msra.mxu0 0
  %488 = vmatprep.mubr.bf16.mxu0 0
  %489 = vmatmul.mubr.bf16.gmra.mrb[0].mxu0 %v411
  %v490 = vpop.f32.mrb[0].mxu0
  %v491 = vadd.f32 %v90, %v490
  %v492 = vpop.f32.mrb[0].mxu0
  %v493 = vadd.f32 %v90, %v492
  %v494 = vpop.f32.mrb[0].mxu0
  %v495 = vpop.f32.mrb[0].mxu0
  %496 = vdwg.mxu0
  %497 = vmatprep.subr.bf16.mxu0 %v295
  %498 = vmatpush1.bf16.msra.mxu0 %v294
  %499 = vmatprep.subr.bf16.mxu0 %v308
  %500 = vmatpush1.bf16.msra.mxu0 %v307
  %501 = vmatprep.subr.bf16.mxu0 %v321
  %502 = vmatpush1.bf16.msra.mxu0 %v320
  %503 = vmatprep.subr.bf16.mxu0 %v334
  %504 = vmatpush1.bf16.msra.mxu0 %v333
  %505 = vmatprep.subr.bf16.mxu0 %v427
  %506 = vmatpush1.bf16.msra.mxu0 %v424
  %507 = vmatprep.subr.bf16.mxu0 0
  %508 = vmatpush1.bf16.msra.mxu0 0
  %509 = vmatprep.subr.bf16.mxu0 0
  %510 = vmatpush1.bf16.msra.mxu0 0
  %511 = vmatprep.subr.bf16.mxu0 0
  %512 = vmatpush1.bf16.msra.mxu0 0
  %513 = vmatprep.subr.bf16.mxu0 0
  %514 = vmatpush1.bf16.msra.mxu0 0
  %515 = vmatprep.subr.bf16.mxu0 0
  %516 = vmatpush1.bf16.msra.mxu0 0
  %517 = vmatprep.subr.bf16.mxu0 0
  %518 = vmatpush1.bf16.msra.mxu0 0
  %519 = vmatprep.subr.bf16.mxu0 0
  %520 = vmatpush1.bf16.msra.mxu0 0
  %521 = vmatprep.subr.bf16.mxu0 0
  %522 = vmatpush1.bf16.msra.mxu0 0
  %523 = vmatprep.subr.bf16.mxu0 0
  %524 = vmatpush1.bf16.msra.mxu0 0
  %525 = vmatprep.subr.bf16.mxu0 0
  %526 = vmatpush1.bf16.msra.mxu0 0
  %527 = vmatprep.subr.bf16.mxu0 0
  %528 = vmatpush1.bf16.msra.mxu0 0
  %529 = vmatprep.mubr.bf16.mxu0 0
  %530 = vmatmul.mubr.bf16.gmra.mrb[0].mxu0 %v411
  %v531 = vpop.f32.mrb[0].mxu0
  %v532 = vadd.f32 %v90, %v531
  %v533 = vpop.f32.mrb[0].mxu0
  %v534 = vadd.f32 %v90, %v533
  %v535 = vpop.f32.mrb[0].mxu0
  %v536 = vpop.f32.mrb[0].mxu0
  %537 = vdwg.mxu0
  %538 = vmatprep.subr.bf16.mxu0 %v297
  %539 = vmatpush1.bf16.msra.mxu0 %v296
  %540 = vmatprep.subr.bf16.mxu0 %v310
  %541 = vmatpush1.bf16.msra.mxu0 %v309
  %542 = vmatprep.subr.bf16.mxu0 %v323
  %543 = vmatpush1.bf16.msra.mxu0 %v322
  %544 = vmatprep.subr.bf16.mxu0 %v336
  %545 = vmatpush1.bf16.msra.mxu0 %v335
  %546 = vmatprep.subr.bf16.mxu0 %v433
  %547 = vmatpush1.bf16.msra.mxu0 %v430
  %548 = vmatprep.subr.bf16.mxu0 0
  %549 = vmatpush1.bf16.msra.mxu0 0
  %550 = vmatprep.subr.bf16.mxu0 0
  %551 = vmatpush1.bf16.msra.mxu0 0
  %552 = vmatprep.subr.bf16.mxu0 0
  %553 = vmatpush1.bf16.msra.mxu0 0
  %554 = vmatprep.subr.bf16.mxu0 0
  %555 = vmatpush1.bf16.msra.mxu0 0
  %556 = vmatprep.subr.bf16.mxu0 0
  %557 = vmatpush1.bf16.msra.mxu0 0
  %558 = vmatprep.subr.bf16.mxu0 0
  %559 = vmatpush1.bf16.msra.mxu0 0
  %560 = vmatprep.subr.bf16.mxu0 0
  %561 = vmatpush1.bf16.msra.mxu0 0
  %562 = vmatprep.subr.bf16.mxu0 0
  %563 = vmatpush1.bf16.msra.mxu0 0
  %564 = vmatprep.subr.bf16.mxu0 0
  %565 = vmatpush1.bf16.msra.mxu0 0
  %566 = vmatprep.subr.bf16.mxu0 0
  %567 = vmatpush1.bf16.msra.mxu0 0
  %568 = vmatprep.subr.bf16.mxu0 0
  %569 = vmatpush1.bf16.msra.mxu0 0
  %570 = vmatprep.mubr.bf16.mxu0 0
  %571 = vmatmul.mubr.bf16.gmra.mrb[0].mxu0 %v411
  %v572 = vpop.f32.mrb[0].mxu0
  %v573 = vadd.f32 %v90, %v572
  %v574 = vpop.f32.mrb[0].mxu0
  %v575 = vadd.f32 %v90, %v574
  %v576 = vpop.f32.mrb[0].mxu0
  %v577 = vpop.f32.mrb[0].mxu0
  %578 = vdwg.mxu0
  %579 = vmatprep.subr.bf16.mxu0 %v299
  %580 = vmatpush1.bf16.msra.mxu0 %v298
  %581 = vmatprep.subr.bf16.mxu0 %v312
  %582 = vmatpush1.bf16.msra.mxu0 %v311
  %583 = vmatprep.subr.bf16.mxu0 %v325
  %584 = vmatpush1.bf16.msra.mxu0 %v324
  %585 = vmatprep.subr.bf16.mxu0 %v338
  %586 = vmatpush1.bf16.msra.mxu0 %v337
  %587 = vmatprep.subr.bf16.mxu0 %v439
  %588 = vmatpush1.bf16.msra.mxu0 %v436
  %589 = vmatprep.subr.bf16.mxu0 0
  %590 = vmatpush1.bf16.msra.mxu0 0
  %591 = vmatprep.subr.bf16.mxu0 0
  %592 = vmatpush1.bf16.msra.mxu0 0
  %593 = vmatprep.subr.bf16.mxu0 0
  %594 = vmatpush1.bf16.msra.mxu0 0
  %595 = vmatprep.subr.bf16.mxu0 0
  %596 = vmatpush1.bf16.msra.mxu0 0
  %597 = vmatprep.subr.bf16.mxu0 0
  %598 = vmatpush1.bf16.msra.mxu0 0
  %599 = vmatprep.subr.bf16.mxu0 0
  %600 = vmatpush1.bf16.msra.mxu0 0
  %601 = vmatprep.subr.bf16.mxu0 0
  %602 = vmatpush1.bf16.msra.mxu0 0
  %603 = vmatprep.subr.bf16.mxu0 0
  %604 = vmatpush1.bf16.msra.mxu0 0
  %605 = vmatprep.subr.bf16.mxu0 0
  %606 = vmatpush1.bf16.msra.mxu0 0
  %607 = vmatprep.subr.bf16.mxu0 0
  %608 = vmatpush1.bf16.msra.mxu0 0
  %609 = vmatprep.subr.bf16.mxu0 0
  %610 = vmatpush1.bf16.msra.mxu0 0
  %611 = vmatprep.mubr.bf16.mxu0 0
  %612 = vmatmul.mubr.bf16.gmra.mrb[0].mxu0 %v411
  %v613 = vpop.f32.mrb[0].mxu0
  %v614 = vadd.f32 %v90, %v613
  %v615 = vpop.f32.mrb[0].mxu0
  %v616 = vadd.f32 %v90, %v615
  %v617 = vpop.f32.mrb[0].mxu0
  %v618 = vpop.f32.mrb[0].mxu0
  %619 = vdwg.mxu0
  %620 = vmatprep.subr.bf16.mxu0 %v301
  %621 = vmatpush1.bf16.msra.mxu0 %v300
  %622 = vmatprep.subr.bf16.mxu0 %v314
  %623 = vmatpush1.bf16.msra.mxu0 %v313
  %624 = vmatprep.subr.bf16.mxu0 %v327
  %625 = vmatpush1.bf16.msra.mxu0 %v326
  %626 = vmatprep.subr.bf16.mxu0 %v340
  %627 = vmatpush1.bf16.msra.mxu0 %v339
  %628 = vmatprep.subr.bf16.mxu0 %v445
  %629 = vmatpush1.bf16.msra.mxu0 %v442
  %630 = vmatprep.subr.bf16.mxu0 0
  %631 = vmatpush1.bf16.msra.mxu0 0
  %632 = vmatprep.subr.bf16.mxu0 0
  %633 = vmatpush1.bf16.msra.mxu0 0
  %634 = vmatprep.subr.bf16.mxu0 0
  %635 = vmatpush1.bf16.msra.mxu0 0
  %636 = vmatprep.subr.bf16.mxu0 0
  %637 = vmatpush1.bf16.msra.mxu0 0
  %638 = vmatprep.subr.bf16.mxu0 0
  %639 = vmatpush1.bf16.msra.mxu0 0
  %640 = vmatprep.subr.bf16.mxu0 0
  %641 = vmatpush1.bf16.msra.mxu0 0
  %642 = vmatprep.subr.bf16.mxu0 0
  %643 = vmatpush1.bf16.msra.mxu0 0
  %644 = vmatprep.subr.bf16.mxu0 0
  %645 = vmatpush1.bf16.msra.mxu0 0
  %646 = vmatprep.subr.bf16.mxu0 0
  %647 = vmatpush1.bf16.msra.mxu0 0
  %648 = vmatprep.subr.bf16.mxu0 0
  %649 = vmatpush1.bf16.msra.mxu0 0
  %650 = vmatprep.subr.bf16.mxu0 0
  %651 = vmatpush1.bf16.msra.mxu0 0
  %652 = vmatprep.mubr.bf16.mxu0 0
  %653 = vmatmul.mubr.bf16.gmra.mrb[0].mxu0 %v411
  %v654 = vpop.f32.mrb[0].mxu0
  %v655 = vadd.f32 %v90, %v654
  %v656 = vpop.f32.mrb[0].mxu0
  %v657 = vadd.f32 %v90, %v656
  %v658 = vpop.f32.mrb[0].mxu0
  %v659 = vpop.f32.mrb[0].mxu0
  %660 = vdwg.mxu0
  %661 = vmatprep.subr.bf16.mxu0 %v303
  %662 = vmatpush1.bf16.msra.mxu0 %v302
  %663 = vmatprep.subr.bf16.mxu0 %v316
  %664 = vmatpush1.bf16.msra.mxu0 %v315
  %665 = vmatprep.subr.bf16.mxu0 %v329
  %666 = vmatpush1.bf16.msra.mxu0 %v328
  %667 = vmatprep.subr.bf16.mxu0 %v342
  %668 = vmatpush1.bf16.msra.mxu0 %v341
  %669 = vmatprep.subr.bf16.mxu0 %v451
  %670 = vmatpush1.bf16.msra.mxu0 %v448
  %671 = vmatprep.subr.bf16.mxu0 0
  %672 = vmatpush1.bf16.msra.mxu0 0
  %673 = vmatprep.subr.bf16.mxu0 0
  %674 = vmatpush1.bf16.msra.mxu0 0
  %675 = vmatprep.subr.bf16.mxu0 0
  %676 = vmatpush1.bf16.msra.mxu0 0
  %677 = vmatprep.subr.bf16.mxu0 0
  %678 = vmatpush1.bf16.msra.mxu0 0
  %679 = vmatprep.subr.bf16.mxu0 0
  %680 = vmatpush1.bf16.msra.mxu0 0
  %681 = vmatprep.subr.bf16.mxu0 0
  %682 = vmatpush1.bf16.msra.mxu0 0
  %683 = vmatprep.subr.bf16.mxu0 0
  %684 = vmatpush1.bf16.msra.mxu0 0
  %685 = vmatprep.subr.bf16.mxu0 0
  %686 = vmatpush1.bf16.msra.mxu0 0
  %687 = vmatprep.subr.bf16.mxu0 0
  %688 = vmatpush1.bf16.msra.mxu0 0
  %689 = vmatprep.subr.bf16.mxu0 0
  %690 = vmatpush1.bf16.msra.mxu0 0
  %691 = vmatprep.subr.bf16.mxu0 0
  %692 = vmatpush1.bf16.msra.mxu0 0
  %693 = vmatprep.mubr.bf16.mxu0 0
  %694 = vmatmul.mubr.bf16.gmra.mrb[0].mxu0 %v411
  %v695 = vpop.f32.mrb[0].mxu0
  %v696 = vadd.f32 %v90, %v695
  %v697 = vpop.f32.mrb[0].mxu0
  %v698 = vadd.f32 %v90, %v697
  %v699 = vpop.f32.mrb[0].mxu0
  %v700 = vpop.f32.mrb[0].mxu0
  %701 = vdwg.mxu0
  %702 = vmatprep.subr.bf16.mxu0 0
  %703 = vmatpush1.bf16.msra.mxu0 %v304
  %704 = vmatprep.subr.bf16.mxu0 0
  %705 = vmatpush1.bf16.msra.mxu0 %v317
  %706 = vmatprep.subr.bf16.mxu0 0
  %707 = vmatpush1.bf16.msra.mxu0 %v330
  %708 = vmatprep.subr.bf16.mxu0 0
  %709 = vmatpush1.bf16.msra.mxu0 %v343
  %710 = vmatprep.subr.bf16.mxu0 0
  %711 = vmatpush1.bf16.msra.mxu0 %v454
  %712 = vmatprep.subr.bf16.mxu0 0
  %713 = vmatpush1.bf16.msra.mxu0 0
  %714 = vmatprep.subr.bf16.mxu0 0
  %715 = vmatpush1.bf16.msra.mxu0 0
  %716 = vmatprep.subr.bf16.mxu0 0
  %717 = vmatpush1.bf16.msra.mxu0 0
  %718 = vmatprep.subr.bf16.mxu0 0
  %719 = vmatpush1.bf16.msra.mxu0 0
  %720 = vmatprep.subr.bf16.mxu0 0
  %721 = vmatpush1.bf16.msra.mxu0 0
  %722 = vmatprep.subr.bf16.mxu0 0
  %723 = vmatpush1.bf16.msra.mxu0 0
  %724 = vmatprep.subr.bf16.mxu0 0
  %725 = vmatpush1.bf16.msra.mxu0 0
  %726 = vmatprep.subr.bf16.mxu0 0
  %727 = vmatpush1.bf16.msra.mxu0 0
  %728 = vmatprep.subr.bf16.mxu0 0
  %729 = vmatpush1.bf16.msra.mxu0 0
  %730 = vmatprep.subr.bf16.mxu0 0
  %731 = vmatpush1.bf16.msra.mxu0 0
  %732 = vmatprep.subr.bf16.mxu0 0
  %733 = vmatpush1.bf16.msra.mxu0 0
  %734 = vmatprep.mubr.bf16.mxu0 0
  %735 = vmatmul.mubr.bf16.gmra.mrb[0].mxu0 %v411
  %v736 = vpop.f32.mrb[0].mxu0
  %v737 = vadd.f32 %v90, %v736
  %v738 = vpop.f32.mrb[0].mxu0
  %v739 = vpop.f32.mrb[0].mxu0
  %v740 = vpop.f32.mrb[0].mxu0
  %741 = vdwg.mxu0
  %v742 = vmax.f32 %v491, 0.0
  %v743 = vmax.f32 %v493, 0.0
  %v744 = vmax.f32 %v532, 0.0
  %v745 = vmax.f32 %v534, 0.0
  %v746 = vmax.f32 %v573, 0.0
  %v747 = vmax.f32 %v575, 0.0
  %v748 = vmax.f32 %v614, 0.0
  %v749 = vmax.f32 %v616, 0.0
  %v750 = vmax.f32 %v655, 0.0
  %v751 = vmax.f32 %v657, 0.0
  %v752 = vmax.f32 %v696, 0.0
  %v753 = vmax.f32 %v698, 0.0
  %v754 = vmax.f32 %v737, 0.0
  %755 = vst [vmem:[%s3] sm:$0x3f] %v742
  %756 = vst [vmem:[%s3 + $0x8] sm:$0x3f] %v743
  %757 = vst [vmem:[%s3 + $0x10] sm:$0x3f] %v744
  %758 = vst [vmem:[%s3 + $0x18] sm:$0x3f] %v745
  %759 = vst [vmem:[%s3 + $0x20] sm:$0x3f] %v746
  %760 = vst [vmem:[%s3 + $0x28] sm:$0x3f] %v747
  %761 = vst [vmem:[%s3 + $0x30] sm:$0x3f] %v748
  %762 = vst [vmem:[%s3 + $0x38] sm:$0x3f] %v749
  %763 = vst [vmem:[%s3 + $0x40] sm:$0x3f] %v750
  %764 = vst [vmem:[%s3 + $0x48] sm:$0x3f] %v751
  %765 = vst [vmem:[%s3 + $0x50] sm:$0x3f] %v752
  %766 = vst [vmem:[%s3 + $0x58] sm:$0x3f] %v753
  %vm767 = vcmask 259072
  %768 = vst.msk [vmem:[%s3 + $0x60] sm:$0x3f] %vm767, %v754
  // Predicated region
  $region14: #{forward.5} parent=0 // pred_check
    _
  $region15: #{forward.5} parent=0 // pred_check_branch
    %770 = sbr.rel (0) target = $region17
  $region16: #{forward.5} parent=0 // pred_region
    _
  $region17: #{forward.5} parent=0 // pred_fallthru
    _
  // Predicated region
  $region18: #{forward.5} parent=0 // pred_check
    _
  $region19: #{forward.5} parent=0 // pred_check_branch
    %772 = sbr.rel (0) target = $region21
  $region20: #{forward.5} parent=0 // pred_region
    _
  $region21: #{forward.5} parent=0 // pred_fallthru
    _

// kernel: forward.6
$region0: #{forward.6}
  #allocation0 [shape = 'u32[]', space=smem, size = 0x4, offset = 0x4, fixed_abs, tag = 'smem constant byte address 0x4 - core index']
  #allocation1 [shape = 'u32[144,128]{1,0:T(1,128)}', space=vmem, size = 0x12000, scoped, tag = 'internal scratch']
  %s0 = inlined_call_operand.vmem [shape: bf16[16,150], index: 0, kind: input, shape index: {}]
  %s1 = inlined_call_operand.vmem [shape: bf16[150,1152], index: 1, kind: input, shape index: {}]
  %s2 = inlined_call_operand.vmem [shape: f32[16,1], index: 2, kind: input, shape index: {}]
  %s3 = inlined_call_operand.vmem [shape: f32[16,1152], index: 3, kind: output, shape index: {}]
  %s4 = sld [smem:[#allocation0]]
  $region90: #{forward.6} parent=0
    _
  %s6 = ssub.s32 1, %s4
  %s7 = scalar_select 0, %s6, %s4
  $region1: #{forward.6} parent=0
    #allocation2 [shape = 'u8[233472]{0}', space=vmem, size = 0x39000, scoped, tag = 'input window, operand 1']
    #allocation3 [shape = 'u8[49152]{0}', space=vmem, size = 0xc000, scoped, tag = 'output window, operand 0']
    loop: start=0, step=1, limit=5
    $region2: #{forward.6} parent=1 // loop_pre_header
      _
    $region3: #{forward.6} parent=1 // loop_header
      %s9 = sphi 0, %s13
      %p10 = scmp.ge.s32.totalorder %s9, 5
      %s17 = sphi 0, %s17
      %s19 = sphi 0, %s17
      %s20 = sphi 0, %s19
      %s34 = sphi 0, %s20
      %s40 = sphi 0, %s42
      %s43 = sphi 0, %s40
      %s44 = sphi 0, %s43
      %s60 = sphi 0, %s44
      %s64 = sphi 0, %s64
      %s66 = sphi 0, %s64
      %s67 = sphi 0, %s66
      %s81 = sphi 0, %s67
      %s87 = sphi 0, %s89
      %s90 = sphi 0, %s87
      %s91 = sphi 0, %s90
      %s107 = sphi 0, %s91
    $region4: #{forward.6} parent=1 // loop_header_branch
      %12 = sbr.rel (%p10) target = $region8
    $region5: #{forward.6} parent=1 // loop_body
      %s14 = ssub.s32 %s9, 1
      %s15 = ssub.s32 %s9, 2
      %s16 = sadd.s32 %s9, 1
      %s18 = sadd.s32 %s17, 1
      %p21 = scmp.eq.s32.totalorder %s9, 2
      %p22 = scmp.ne.s32.totalorder %s17, %s19
      %p23 = scmp.eq.s32.totalorder %s9, 0
      %p24 = por %p22, %p23
      %p25 = scmp.ne.s32.totalorder %s17, %s19
      %p26 = scmp.eq.s32.totalorder %s14, 2
      %p27 = por %p25, %p26
      %p28 = scmp.ne.s32.totalorder %s19, %s20
      %p29 = scmp.eq.s32.totalorder %s14, 0
      %p30 = por %p28, %p29
      %p31 = scmp.ne.s32.totalorder %s19, %s20
      %p32 = scmp.eq.s32.totalorder %s15, 2
      %p33 = por %p31, %p32
      %p35 = scmp.ne.s32.totalorder %s20, %s34
      %p36 = scmp.eq.s32.totalorder %s15, 0
      %p37 = por %p35, %p36
      %s38 = ssub.s32 %s9, %s16
      %p39 = scmp.eq.s32.totalorder %s38, 0
      %s41 = sadd.s32 %s40, 1
      %s42 = scalar_select %p39, %s40, %s41
      %p45 = pneg %p39
      %p46 = scmp.eq.s32.totalorder %s9, 2
      %p47 = por %p45, %p46
      %p48 = scmp.ne.s32.totalorder %s40, %s43
      %p49 = scmp.eq.s32.totalorder %s9, 0
      %p50 = por %p48, %p49
      %p51 = scmp.ne.s32.totalorder %s40, %s43
      %p52 = scmp.eq.s32.totalorder %s14, 2
      %p53 = por %p51, %p52
      %p54 = scmp.ne.s32.totalorder %s43, %s44
      %p55 = scmp.eq.s32.totalorder %s14, 0
      %p56 = por %p54, %p55
      %p57 = scmp.ne.s32.totalorder %s43, %s44
      %p58 = scmp.eq.s32.totalorder %s15, 2
      %p59 = por %p57, %p58
      %p61 = scmp.ne.s32.totalorder %s44, %s60
      %p62 = scmp.eq.s32.totalorder %s15, 0
      %p63 = por %p61, %p62
      %s65 = sadd.s32 %s64, 1
      %p68 = scmp.eq.s32.totalorder %s9, 2
      %p69 = scmp.ne.s32.totalorder %s64, %s66
      %p70 = scmp.eq.s32.totalorder %s9, 0
      %p71 = por %p69, %p70
      %p72 = scmp.ne.s32.totalorder %s64, %s66
      %p73 = scmp.eq.s32.totalorder %s14, 2
      %p74 = por %p72, %p73
      %p75 = scmp.ne.s32.totalorder %s66, %s67
      %p76 = scmp.eq.s32.totalorder %s14, 0
      %p77 = por %p75, %p76
      %p78 = scmp.ne.s32.totalorder %s66, %s67
      %p79 = scmp.eq.s32.totalorder %s15, 2
      %p80 = por %p78, %p79
      %p82 = scmp.ne.s32.totalorder %s67, %s81
      %p83 = scmp.eq.s32.totalorder %s15, 0
      %p84 = por %p82, %p83
      %s85 = ssub.s32 %s9, %s16
      %p86 = scmp.eq.s32.totalorder %s85, 0
      %s88 = sadd.s32 %s87, 1
      %s89 = scalar_select %p86, %s87, %s88
      %p92 = pneg %p86
      %p93 = scmp.eq.s32.totalorder %s9, 2
      %p94 = por %p92, %p93
      %p95 = scmp.ne.s32.totalorder %s87, %s90
      %p96 = scmp.eq.s32.totalorder %s9, 0
      %p97 = por %p95, %p96
      %p98 = scmp.ne.s32.totalorder %s87, %s90
      %p99 = scmp.eq.s32.totalorder %s14, 2
      %p100 = por %p98, %p99
      %p101 = scmp.ne.s32.totalorder %s90, %s91
      %p102 = scmp.eq.s32.totalorder %s14, 0
      %p103 = por %p101, %p102
      %p104 = scmp.ne.s32.totalorder %s90, %s91
      %p105 = scmp.eq.s32.totalorder %s15, 2
      %p106 = por %p104, %p105
      %p108 = scmp.ne.s32.totalorder %s91, %s107
      %p109 = scmp.eq.s32.totalorder %s15, 0
      %p110 = por %p108, %p109
      %p111 = scmp.le.s32.totalorder 1, %s9
      %p112 = scmp.lt.s32.totalorder %s9, 4
      %p113 = pnand %p111, %p112
      %p114 = pneg %p113
      // Predicated region
      $region9: #{forward.6} parent=5 // pred_check
        _
      $region10: #{forward.6} parent=5 // pred_check_branch
        %116 = sbr.rel (%p113) target = $region12
      $region11: #{forward.6} parent=5 // pred_region
        %s117 = ssub.s32 %s9, 1
        // Predicated region
        $region13: #{forward.6} parent=11 // pred_check
          %p118 = pneg %p30
        $region14: #{forward.6} parent=11 // pred_check_branch
          %120 = sbr.rel (%p118) target = $region16
        $region15: #{forward.6} parent=11 // pred_region
          _
        $region16: #{forward.6} parent=11 // pred_fallthru
          _
        // Predicated region
        $region17: #{forward.6} parent=11 // pred_check
          %p121 = pneg %p77
        $region18: #{forward.6} parent=11 // pred_check_branch
          %123 = sbr.rel (%p121) target = $region20
        $region19: #{forward.6} parent=11 // pred_region
          _
        $region20: #{forward.6} parent=11 // pred_fallthru
          _
      $region12: #{forward.6} parent=5 // pred_fallthru
        _
      %p124 = scmp.lt.s32.totalorder %s9, 3
      // Predicated region
      $region21: #{forward.6} parent=5 // pred_check
        %p125 = pneg %p124
      $region22: #{forward.6} parent=5 // pred_check_branch
        %127 = sbr.rel (%p125) target = $region24
      $region23: #{forward.6} parent=5 // pred_region
        // Predicated region
        $region25: #{forward.6} parent=23 // pred_check
          %p128 = pneg %p50
        $region26: #{forward.6} parent=23 // pred_check_branch
          %130 = sbr.rel (%p128) target = $region28
        $region27: #{forward.6} parent=23 // pred_region
          %s131 = sand.u32 %s40, 1
          %s132 = sand.u32 %s40, 1
          %s133 = smul.addr %s132, 228
          %s134 = scalar_lea.vmem [#allocation2], %s133
          %s135 = smul.u32 3, %s9
          %s136 = smul.addr %s135, 4
          %s137 = scalar_lea.vmem %s1, %s136
          // Predicated region
          $region29: #{forward.6} parent=27 // pred_check
            _
          $region30: #{forward.6} parent=27 // pred_check_branch
            %139 = sbr.rel (0) target = $region32
          $region31: #{forward.6} parent=27 // pred_region
            // Predicated region
            $region33: #{forward.6} parent=31 // pred_check
              _
            $region34: #{forward.6} parent=31 // pred_check_branch
              %141 = sbr.rel (0) target = $region36
            $region35: #{forward.6} parent=31 // pred_region
              %s142 = scalar_lea.vmem %s137, 8
              %s143 = scalar_lea.vmem %s134, 8 [#allocation2]
              loop: start=0, step=1, limit=1
              $region37: #{forward.6} parent=35 // loop_pre_header
                _
              $region38: #{forward.6} parent=35 // loop_header
                %s145 = sphi 0, %s149
                %p146 = scmp.ge.s32.totalorder %s145, 1
                %s150 = sphi %s137, %s137
                %s151 = sphi %s134, %s134
              $region39: #{forward.6} parent=35 // loop_header_branch
                %148 = sbr.rel (%p146) target = $region43
              $region40: #{forward.6} parent=35 // loop_body
                %v152 = vld [vmem:[%s150] sm:$0xff]
                %153 = vst [vmem:[%s151] sm:$0xff] %v152
                %v154 = vld [vmem:[%s150 + $0x24] sm:$0xff]
                %155 = vst [vmem:[%s151 + $0xc] sm:$0xff] %v154
                %v156 = vld [vmem:[%s150 + $0x48] sm:$0xff]
                %157 = vst [vmem:[%s151 + $0x18] sm:$0xff] %v156
                %v158 = vld [vmem:[%s150 + $0x6c] sm:$0xff]
                %159 = vst [vmem:[%s151 + $0x24] sm:$0xff] %v158
                %v160 = vld [vmem:[%s150 + $0x90] sm:$0xff]
                %161 = vst [vmem:[%s151 + $0x30] sm:$0xff] %v160
                %v162 = vld [vmem:[%s150 + $0xb4] sm:$0xff]
                %163 = vst [vmem:[%s151 + $0x3c] sm:$0xff] %v162
                %v164 = vld [vmem:[%s150 + $0xd8] sm:$0xff]
                %165 = vst [vmem:[%s151 + $0x48] sm:$0xff] %v164
                %v166 = vld [vmem:[%s150 + $0xfc] sm:$0xff]
                %167 = vst [vmem:[%s151 + $0x54] sm:$0xff] %v166
                %v168 = vld [vmem:[%s150 + $0x120] sm:$0xff]
                %169 = vst [vmem:[%s151 + $0x60] sm:$0xff] %v168
                %v170 = vld [vmem:[%s150 + $0x144] sm:$0xff]
                %171 = vst [vmem:[%s151 + $0x6c] sm:$0xff] %v170
                %v172 = vld [vmem:[%s150 + $0x168] sm:$0xff]
                %173 = vst [vmem:[%s151 + $0x78] sm:$0xff] %v172
                %v174 = vld [vmem:[%s150 + $0x18c] sm:$0xff]
                %175 = vst [vmem:[%s151 + $0x84] sm:$0xff] %v174
                %v176 = vld [vmem:[%s150 + $0x1b0] sm:$0xff]
                %177 = vst [vmem:[%s151 + $0x90] sm:$0xff] %v176
                %v178 = vld [vmem:[%s150 + $0x1d4] sm:$0xff]
                %179 = vst [vmem:[%s151 + $0x9c] sm:$0xff] %v178
                %v180 = vld [vmem:[%s150 + $0x1f8] sm:$0xff]
                %181 = vst [vmem:[%s151 + $0xa8] sm:$0xff] %v180
                %v182 = vld [vmem:[%s150 + $0x21c] sm:$0xff]
                %183 = vst [vmem:[%s151 + $0xb4] sm:$0xff] %v182
                %v184 = vld [vmem:[%s150 + $0x240] sm:$0xff]
                %185 = vst [vmem:[%s151 + $0xc0] sm:$0xff] %v184
                %v186 = vld [vmem:[%s150 + $0x264] sm:$0xff]
                %187 = vst [vmem:[%s151 + $0xcc] sm:$0xff] %v186
                %v188 = vld [vmem:[%s150 + $0x288] sm:$0xff]
                %189 = vst [vmem:[%s151 + $0xd8] sm:$0xff] %v188
              $region41: #{forward.6} parent=35 // loop_footer
                %s149 = sadd.s32 1, %s145
              $region42: #{forward.6} parent=35 // loop_footer_branch
                %144 = sbr.rel target = $region38
              $region43: #{forward.6} parent=35 // loop_exit
                _
              loop: start=0, step=1, limit=1
              $region44: #{forward.6} parent=35 // loop_pre_header
                _
              $region45: #{forward.6} parent=35 // loop_header
                %s192 = sphi 0, %s196
                %p193 = scmp.ge.s32.totalorder %s192, 1
                %s197 = sphi %s142, %s142
                %s198 = sphi %s143, %s143
              $region46: #{forward.6} parent=35 // loop_header_branch
                %195 = sbr.rel (%p193) target = $region50
              $region47: #{forward.6} parent=35 // loop_body
                %v199 = vld [vmem:[%s197] sm:$0xf]
                %200 = vst [vmem:[%s198] sm:$0xf] %v199
                %v201 = vld [vmem:[%s197 + $0x24] sm:$0xf]
                %202 = vst [vmem:[%s198 + $0xc] sm:$0xf] %v201
                %v203 = vld [vmem:[%s197 + $0x48] sm:$0xf]
                %204 = vst [vmem:[%s198 + $0x18] sm:$0xf] %v203
                %v205 = vld [vmem:[%s197 + $0x6c] sm:$0xf]
                %206 = vst [vmem:[%s198 + $0x24] sm:$0xf] %v205
                %v207 = vld [vmem:[%s197 + $0x90] sm:$0xf]
                %208 = vst [vmem:[%s198 + $0x30] sm:$0xf] %v207
                %v209 = vld [vmem:[%s197 + $0xb4] sm:$0xf]
                %210 = vst [vmem:[%s198 + $0x3c] sm:$0xf] %v209
                %v211 = vld [vmem:[%s197 + $0xd8] sm:$0xf]
                %212 = vst [vmem:[%s198 + $0x48] sm:$0xf] %v211
                %v213 = vld [vmem:[%s197 + $0xfc] sm:$0xf]
                %214 = vst [vmem:[%s198 + $0x54] sm:$0xf] %v213
                %v215 = vld [vmem:[%s197 + $0x120] sm:$0xf]
                %216 = vst [vmem:[%s198 + $0x60] sm:$0xf] %v215
                %v217 = vld [vmem:[%s197 + $0x144] sm:$0xf]
                %218 = vst [vmem:[%s198 + $0x6c] sm:$0xf] %v217
                %v219 = vld [vmem:[%s197 + $0x168] sm:$0xf]
                %220 = vst [vmem:[%s198 + $0x78] sm:$0xf] %v219
                %v221 = vld [vmem:[%s197 + $0x18c] sm:$0xf]
                %222 = vst [vmem:[%s198 + $0x84] sm:$0xf] %v221
                %v223 = vld [vmem:[%s197 + $0x1b0] sm:$0xf]
                %224 = vst [vmem:[%s198 + $0x90] sm:$0xf] %v223
                %v225 = vld [vmem:[%s197 + $0x1d4] sm:$0xf]
                %226 = vst [vmem:[%s198 + $0x9c] sm:$0xf] %v225
                %v227 = vld [vmem:[%s197 + $0x1f8] sm:$0xf]
                %228 = vst [vmem:[%s198 + $0xa8] sm:$0xf] %v227
                %v229 = vld [vmem:[%s197 + $0x21c] sm:$0xf]
                %230 = vst [vmem:[%s198 + $0xb4] sm:$0xf] %v229
                %v231 = vld [vmem:[%s197 + $0x240] sm:$0xf]
                %232 = vst [vmem:[%s198 + $0xc0] sm:$0xf] %v231
                %v233 = vld [vmem:[%s197 + $0x264] sm:$0xf]
                %234 = vst [vmem:[%s198 + $0xcc] sm:$0xf] %v233
                %v235 = vld [vmem:[%s197 + $0x288] sm:$0xf]
                %236 = vst [vmem:[%s198 + $0xd8] sm:$0xf] %v235
              $region48: #{forward.6} parent=35 // loop_footer
                %s196 = sadd.s32 1, %s192
              $region49: #{forward.6} parent=35 // loop_footer_branch
                %191 = sbr.rel target = $region45
              $region50: #{forward.6} parent=35 // loop_exit
                _
            $region36: #{forward.6} parent=31 // pred_fallthru
              _
          $region32: #{forward.6} parent=27 // pred_fallthru
            _
          %237 = vnop
        $region28: #{forward.6} parent=23 // pred_fallthru
          _
      $region24: #{forward.6} parent=5 // pred_fallthru
        _
      %p238 = scmp.le.s32.totalorder 1, %s9
      %p239 = scmp.lt.s32.totalorder %s9, 4
      %p240 = pnand %p238, %p239
      %p241 = pneg %p240
      // Predicated region
      $region51: #{forward.6} parent=5 // pred_check
        _
      $region52: #{forward.6} parent=5 // pred_check_branch
        %243 = sbr.rel (%p240) target = $region54
      $region53: #{forward.6} parent=5 // pred_region
        %s244 = ssub.s32 %s9, 1
        %s245 = sand.u32 %s43, 1
        %s246 = sand.u32 %s43, 1
        %s247 = smul.addr %s246, 228
        %s248 = scalar_lea.vmem [#allocation2], %s247
        // Predicated region
        $region55: #{forward.6} parent=53 // pred_check
          %p249 = pneg %p56
        $region56: #{forward.6} parent=53 // pred_check_branch
          %251 = sbr.rel (%p249) target = $region58
        $region57: #{forward.6} parent=53 // pred_region
          _
        $region58: #{forward.6} parent=53 // pred_fallthru
          _
        %p252 = pneg %p30
        %p253 = pneg %p27
        %s254 = sand.u32 %s43, 1
        %s255 = sand.u32 %s43, 1
        %s256 = smul.addr %s255, 228
        %s257 = scalar_lea.vmem [#allocation2], %s256
        %p258 = pneg %p56
        %p259 = pneg %p53
        %p260 = pneg %p77
        %p261 = pneg %p74
        %p262 = pneg %p103
        %p263 = pneg %p100
        %s264 = sand.u32 %s90, 1
        %s265 = sand.u32 %s90, 1
        %s266 = smul.addr %s265, 48
        %s267 = scalar_lea.vmem [#allocation3], %s266
        %s268 = smul.u32 3, %s14
        %s269 = smul.u32 3, %s14
        %v271 = vld [vmem:[%s0] sm:$0xff]
        %v272 = vld [vmem:[%s0 + $0x8] sm:$0xff]
        %v273 = vld [vmem:[%s248] sm:$0xff]
        %v274 = vld [vmem:[%s248 + $0x8] sm:$0xf]
        %v275 = vld [vmem:[%s248 + $0xc] sm:$0xff]
        %v276 = vld [vmem:[%s248 + $0x14] sm:$0xf]
        %v277 = vld [vmem:[%s248 + $0x18] sm:$0xff]
        %v278 = vld [vmem:[%s248 + $0x20] sm:$0xf]
        %v279 = vld [vmem:[%s248 + $0x24] sm:$0xff]
        %v280 = vld [vmem:[%s248 + $0x2c] sm:$0xf]
        %v281 = vld [vmem:[%s248 + $0x30] sm:$0xff]
        %v282 = vld [vmem:[%s248 + $0x38] sm:$0xf]
        %v283 = vld [vmem:[%s248 + $0x3c] sm:$0xff]
        %v284 = vld [vmem:[%s248 + $0x44] sm:$0xf]
        %v285 = vld [vmem:[%s248 + $0x48] sm:$0xff]
        %v286 = vld [vmem:[%s248 + $0x50] sm:$0xf]
        %v287 = vld [vmem:[%s248 + $0x54] sm:$0xff]
        %v288 = vld [vmem:[%s248 + $0x5c] sm:$0xf]
        %v289 = vld [vmem:[%s248 + $0x60] sm:$0xff]
        %v290 = vld [vmem:[%s248 + $0x68] sm:$0xf]
        %v291 = vld [vmem:[%s248 + $0x6c] sm:$0xff]
        %v292 = vld [vmem:[%s248 + $0x74] sm:$0xf]
        %v293 = vld [vmem:[%s248 + $0x78] sm:$0xff]
        %v294 = vld [vmem:[%s248 + $0x80] sm:$0xf]
        %v295 = vld [vmem:[%s248 + $0x84] sm:$0xff]
        %v296 = vld [vmem:[%s248 + $0x8c] sm:$0xf]
        %v297 = vld [vmem:[%s248 + $0x90] sm:$0xff]
        %v298 = vld [vmem:[%s248 + $0x98] sm:$0xf]
        %v299 = vld [vmem:[%s248 + $0x9c] sm:$0xff]
        %v300 = vld [vmem:[%s248 + $0xa4] sm:$0xf]
        %v301 = vld [vmem:[%s248 + $0xa8] sm:$0xff]
        %v302 = vld [vmem:[%s248 + $0xb0] sm:$0xf]
        %v303 = vld [vmem:[%s248 + $0xb4] sm:$0xff]
        %v304 = vld [vmem:[%s248 + $0xbc] sm:$0xf]
        %v305 = vld [vmem:[%s248 + $0xc0] sm:$0xff]
        %v306 = vld [vmem:[%s248 + $0xc8] sm:$0xf]
        %v307 = vld [vmem:[%s248 + $0xcc] sm:$0xff]
        %v308 = vld [vmem:[%s248 + $0xd4] sm:$0xf]
        %v309 = vld [vmem:[%s248 + $0xd8] sm:$0x77]
        %v310 = vld [vmem:[%s248 + $0xe0] sm:$0x7]
        %v311 = vld [vmem:[%s2] sm:$0xff]
        %v312 = vld [vmem:[%s2 + $0x8] sm:$0xff]
        %314 = vset.pattern.permute.xlu0 0
        %315 = vperm.xlu0 %314, %v311
        %v316 = vpop.permute.xlu0 %315
        %319 = vset.pattern.permute.xlu0 0
        %320 = vperm.xlu0 %319, %v312
        %v321 = vpop.permute.xlu0 %320
        %v325 = vunpack.c.l.b16 %v271
        %v326 = vunpack.c.h.b16 %v271
        %v327 = vunpack.c.l.b16 %v272
        %v328 = vunpack.c.h.b16 %v272
        %v329 = vpack.c.b16 %v327, %v325
        %v330 = vpack.c.b16 %v328, %v326
        %v370 = vunpack.c.l.b16 %v273
        %v371 = vunpack.c.h.b16 %v273
        %v372 = vunpack.c.l.b16 %v274
        %v373 = vunpack.c.l.b16 %v275
        %v374 = vunpack.c.h.b16 %v275
        %v375 = vunpack.c.l.b16 %v276
        %v376 = vunpack.c.l.b16 %v277
        %v377 = vunpack.c.h.b16 %v277
        %v378 = vunpack.c.l.b16 %v278
        %v379 = vunpack.c.l.b16 %v279
        %v380 = vunpack.c.h.b16 %v279
        %v381 = vunpack.c.l.b16 %v280
        %v382 = vunpack.c.l.b16 %v281
        %v383 = vunpack.c.h.b16 %v281
        %v384 = vunpack.c.l.b16 %v282
        %v385 = vunpack.c.l.b16 %v283
        %v386 = vunpack.c.h.b16 %v283
        %v387 = vunpack.c.l.b16 %v284
        %v388 = vunpack.c.l.b16 %v285
        %v389 = vunpack.c.h.b16 %v285
        %v390 = vunpack.c.l.b16 %v286
        %v391 = vunpack.c.l.b16 %v287
        %v392 = vunpack.c.h.b16 %v287
        %v393 = vunpack.c.l.b16 %v288
        %v394 = vunpack.c.l.b16 %v289
        %v395 = vunpack.c.h.b16 %v289
        %v396 = vunpack.c.l.b16 %v290
        %v397 = vunpack.c.l.b16 %v291
        %v398 = vunpack.c.h.b16 %v291
        %v399 = vunpack.c.l.b16 %v292
        %v400 = vunpack.c.l.b16 %v293
        %v401 = vunpack.c.h.b16 %v293
        %v402 = vunpack.c.l.b16 %v294
        %v403 = vunpack.c.l.b16 %v295
        %v404 = vunpack.c.h.b16 %v295
        %v405 = vunpack.c.l.b16 %v296
        %v406 = vunpack.c.l.b16 %v297
        %v407 = vunpack.c.h.b16 %v297
        %v408 = vunpack.c.l.b16 %v298
        %v409 = vunpack.c.l.b16 %v299
        %v410 = vunpack.c.h.b16 %v299
        %v411 = vunpack.c.l.b16 %v300
        %v412 = vunpack.c.l.b16 %v301
        %v413 = vunpack.c.h.b16 %v301
        %v414 = vunpack.c.l.b16 %v302
        %v415 = vunpack.c.l.b16 %v303
        %v416 = vunpack.c.h.b16 %v303
        %v417 = vunpack.c.l.b16 %v304
        %v418 = vunpack.c.l.b16 %v305
        %v419 = vunpack.c.h.b16 %v305
        %v420 = vunpack.c.l.b16 %v306
        %v421 = vunpack.c.l.b16 %v307
        %v422 = vunpack.c.h.b16 %v307
        %v423 = vunpack.c.l.b16 %v308
        %v424 = vunpack.c.l.b16 %v309
        %v425 = vunpack.c.h.b16 %v309
        %v426 = vunpack.c.l.b16 %v310
        %v427 = vpack.c.b16 %v373, %v370
        %v428 = vpack.c.b16 %v374, %v371
        %v429 = vpack.c.b16 %v375, %v372
        %v430 = vpack.c.b16 %v379, %v376
        %v431 = vpack.c.b16 %v380, %v377
        %v432 = vpack.c.b16 %v381, %v378
        %v433 = vpack.c.b16 %v385, %v382
        %v434 = vpack.c.b16 %v386, %v383
        %v435 = vpack.c.b16 %v387, %v384
        %v436 = vpack.c.b16 %v391, %v388
        %v437 = vpack.c.b16 %v392, %v389
        %v438 = vpack.c.b16 %v393, %v390
        %v439 = vpack.c.b16 %v397, %v394
        %v440 = vpack.c.b16 %v398, %v395
        %v441 = vpack.c.b16 %v399, %v396
        %v442 = vpack.c.b16 %v403, %v400
        %v443 = vpack.c.b16 %v404, %v401
        %v444 = vpack.c.b16 %v405, %v402
        %v445 = vpack.c.b16 %v409, %v406
        %v446 = vpack.c.b16 %v410, %v407
        %v447 = vpack.c.b16 %v411, %v408
        %v448 = vpack.c.b16 %v415, %v412
        %v449 = vpack.c.b16 %v416, %v413
        %v450 = vpack.c.b16 %v417, %v414
        %v451 = vpack.c.b16 %v421, %v418
        %v452 = vpack.c.b16 %v422, %v419
        %v453 = vpack.c.b16 %v423, %v420
        %v454 = vpack.c.b16 %v424, %v424
        %v455 = vpack.c.b16 %v425, %v425
        %v456 = vpack.c.b16 %v426, %v426
        %vm484 = vcmask 179200
        %v486 = vsel %vm484, %v330, 0
        %vm488 = vcmask 1042432
        %v490 = vsel %vm488, %v454, 0
        %v493 = vsel %vm488, %v455, 0
        %v496 = vsel %vm488, %v456, 0
        %498 = vmatprep.subr.bf16.mxu0 %v428
        %499 = vmatpush1.bf16.msra.mxu0 %v427
        %500 = vmatprep.subr.bf16.mxu0 %v431
        %501 = vmatpush1.bf16.msra.mxu0 %v430
        %502 = vmatprep.subr.bf16.mxu0 %v434
        %503 = vmatpush1.bf16.msra.mxu0 %v433
        %504 = vmatprep.subr.bf16.mxu0 %v437
        %505 = vmatpush1.bf16.msra.mxu0 %v436
        %506 = vmatprep.subr.bf16.mxu0 %v440
        %507 = vmatpush1.bf16.msra.mxu0 %v439
        %508 = vmatprep.subr.bf16.mxu0 %v443
        %509 = vmatpush1.bf16.msra.mxu0 %v442
        %510 = vmatprep.subr.bf16.mxu0 %v446
        %511 = vmatpush1.bf16.msra.mxu0 %v445
        %512 = vmatprep.subr.bf16.mxu0 %v449
        %513 = vmatpush1.bf16.msra.mxu0 %v448
        %514 = vmatprep.subr.bf16.mxu0 %v452
        %515 = vmatpush1.bf16.msra.mxu0 %v451
        %516 = vmatprep.subr.bf16.mxu0 %v493
        %517 = vmatpush1.bf16.msra.mxu0 %v490
        %518 = vmatprep.subr.bf16.mxu0 0
        %519 = vmatpush1.bf16.msra.mxu0 0
        %520 = vmatprep.subr.bf16.mxu0 0
        %521 = vmatpush1.bf16.msra.mxu0 0
        %522 = vmatprep.subr.bf16.mxu0 0
        %523 = vmatpush1.bf16.msra.mxu0 0
        %524 = vmatprep.subr.bf16.mxu0 0
        %525 = vmatpush1.bf16.msra.mxu0 0
        %526 = vmatprep.subr.bf16.mxu0 0
        %527 = vmatpush1.bf16.msra.mxu0 0
        %528 = vmatprep.subr.bf16.mxu0 0
        %529 = vmatpush1.bf16.msra.mxu0 0
        %530 = vmatprep.mubr.bf16.mxu0 %v486
        %531 = vmatmul.mubr.bf16.gmra.mrb[0].mxu0 %v329
        %v532 = vpop.f32.mrb[0].mxu0
        %v533 = vadd.f32 %v316, %v532
        %v534 = vpop.f32.mrb[0].mxu0
        %v535 = vadd.f32 %v316, %v534
        %v536 = vpop.f32.mrb[0].mxu0
        %v537 = vadd.f32 %v321, %v536
        %v538 = vpop.f32.mrb[0].mxu0
        %v539 = vadd.f32 %v321, %v538
        %540 = vdwg.mxu0
        %541 = vmatprep.subr.bf16.mxu0 0
        %542 = vmatpush1.bf16.msra.mxu0 %v429
        %543 = vmatprep.subr.bf16.mxu0 0
        %544 = vmatpush1.bf16.msra.mxu0 %v432
        %545 = vmatprep.subr.bf16.mxu0 0
        %546 = vmatpush1.bf16.msra.mxu0 %v435
        %547 = vmatprep.subr.bf16.mxu0 0
        %548 = vmatpush1.bf16.msra.mxu0 %v438
        %549 = vmatprep.subr.bf16.mxu0 0
        %550 = vmatpush1.bf16.msra.mxu0 %v441
        %551 = vmatprep.subr.bf16.mxu0 0
        %552 = vmatpush1.bf16.msra.mxu0 %v444
        %553 = vmatprep.subr.bf16.mxu0 0
        %554 = vmatpush1.bf16.msra.mxu0 %v447
        %555 = vmatprep.subr.bf16.mxu0 0
        %556 = vmatpush1.bf16.msra.mxu0 %v450
        %557 = vmatprep.subr.bf16.mxu0 0
        %558 = vmatpush1.bf16.msra.mxu0 %v453
        %559 = vmatprep.subr.bf16.mxu0 0
        %560 = vmatpush1.bf16.msra.mxu0 %v496
        %561 = vmatprep.subr.bf16.mxu0 0
        %562 = vmatpush1.bf16.msra.mxu0 0
        %563 = vmatprep.subr.bf16.mxu0 0
        %564 = vmatpush1.bf16.msra.mxu0 0
        %565 = vmatprep.subr.bf16.mxu0 0
        %566 = vmatpush1.bf16.msra.mxu0 0
        %567 = vmatprep.subr.bf16.mxu0 0
        %568 = vmatpush1.bf16.msra.mxu0 0
        %569 = vmatprep.subr.bf16.mxu0 0
        %570 = vmatpush1.bf16.msra.mxu0 0
        %571 = vmatprep.subr.bf16.mxu0 0
        %572 = vmatpush1.bf16.msra.mxu0 0
        %573 = vmatprep.mubr.bf16.mxu0 %v486
        %574 = vmatmul.mubr.bf16.gmra.mrb[0].mxu0 %v329
        %v575 = vpop.f32.mrb[0].mxu0
        %v576 = vadd.f32 %v316, %v575
        %v577 = vpop.f32.mrb[0].mxu0
        %v578 = vpop.f32.mrb[0].mxu0
        %v579 = vadd.f32 %v321, %v578
        %v580 = vpop.f32.mrb[0].mxu0
        %581 = vdwg.mxu0
        %v582 = vmax.f32 %v533, 0.0
        %v583 = vmax.f32 %v535, 0.0
        %v584 = vmax.f32 %v576, 0.0
        %v585 = vmax.f32 %v537, 0.0
        %v586 = vmax.f32 %v539, 0.0
        %v587 = vmax.f32 %v579, 0.0
        %588 = vst [vmem:[%s267] sm:$0xff] %v582
        %589 = vst [vmem:[%s267 + $0x8] sm:$0xff] %v583
        %590 = vst [vmem:[%s267 + $0x10] sm:$0xff] %v584
        %591 = vst [vmem:[%s267 + $0x18] sm:$0xff] %v585
        %592 = vst [vmem:[%s267 + $0x20] sm:$0xff] %v586
        %593 = vst [vmem:[%s267 + $0x28] sm:$0xff] %v587
        %s594 = sand.u32 %s90, 1
        %s595 = sand.u32 %s90, 1
        %s596 = smul.addr %s595, 48
        %s597 = scalar_lea.vmem [#allocation3], %s596
        // Predicated region
        $region59: #{forward.6} parent=53 // pred_check
          %p598 = pneg %p100
        $region60: #{forward.6} parent=53 // pred_check_branch
          %600 = sbr.rel (%p598) target = $region62
        $region61: #{forward.6} parent=53 // pred_region
          %s601 = smul.u32 3, %s14
          %s602 = smul.addr %s601, 8
          %s603 = scalar_lea.vmem %s3, %s602
          // Predicated region
          $region63: #{forward.6} parent=61 // pred_check
            _
          $region64: #{forward.6} parent=61 // pred_check_branch
            %605 = sbr.rel (0) target = $region66
          $region65: #{forward.6} parent=61 // pred_region
            // Predicated region
            $region67: #{forward.6} parent=65 // pred_check
              _
            $region68: #{forward.6} parent=65 // pred_check_branch
              %607 = sbr.rel (0) target = $region70
            $region69: #{forward.6} parent=65 // pred_region
              loop: start=0, step=1, limit=1
              $region71: #{forward.6} parent=69 // loop_pre_header
                _
              $region72: #{forward.6} parent=69 // loop_header
                %s609 = sphi 0, %s613
                %p610 = scmp.ge.s32.totalorder %s609, 1
                %s614 = sphi %s597, %s597
                %s615 = sphi %s603, %s603
              $region73: #{forward.6} parent=69 // loop_header_branch
                %612 = sbr.rel (%p610) target = $region77
              $region74: #{forward.6} parent=69 // loop_body
                %v616 = vld [vmem:[%s614] sm:$0xff]
                %617 = vst [vmem:[%s615] sm:$0xff] %v616
                %v618 = vld [vmem:[%s614 + $0x8] sm:$0xff]
                %619 = vst [vmem:[%s615 + $0x8] sm:$0xff] %v618
                %v620 = vld [vmem:[%s614 + $0x10] sm:$0xff]
                %621 = vst [vmem:[%s615 + $0x10] sm:$0xff] %v620
                %v622 = vld [vmem:[%s614 + $0x18] sm:$0xff]
                %623 = vst [vmem:[%s615 + $0x48] sm:$0xff] %v622
                %v624 = vld [vmem:[%s614 + $0x20] sm:$0xff]
                %625 = vst [vmem:[%s615 + $0x50] sm:$0xff] %v624
                %v626 = vld [vmem:[%s614 + $0x28] sm:$0xff]
                %627 = vst [vmem:[%s615 + $0x58] sm:$0xff] %v626
              $region75: #{forward.6} parent=69 // loop_footer
                %s613 = sadd.s32 1, %s609
              $region76: #{forward.6} parent=69 // loop_footer_branch
                %608 = sbr.rel target = $region72
              $region77: #{forward.6} parent=69 // loop_exit
                _
            $region70: #{forward.6} parent=65 // pred_fallthru
              _
            // Predicated region
            $region78: #{forward.6} parent=65 // pred_check
              _
            $region79: #{forward.6} parent=65 // pred_check_branch
              %629 = sbr.rel target = $region81
            $region80: #{forward.6} parent=65 // pred_region
              _
            $region81: #{forward.6} parent=65 // pred_fallthru
              _
          $region66: #{forward.6} parent=61 // pred_fallthru
            _
          %630 = vnop
        $region62: #{forward.6} parent=53 // pred_fallthru
          _
      $region54: #{forward.6} parent=5 // pred_fallthru
        _
      %p631 = scmp.le.s32.totalorder 2, %s9
      // Predicated region
      $region82: #{forward.6} parent=5 // pred_check
        %p632 = pneg %p631
      $region83: #{forward.6} parent=5 // pred_check_branch
        %634 = sbr.rel (%p632) target = $region85
      $region84: #{forward.6} parent=5 // pred_region
        %s635 = ssub.s32 %s9, 2
        // Predicated region
        $region86: #{forward.6} parent=84 // pred_check
          %p636 = pneg %p106
        $region87: #{forward.6} parent=84 // pred_check_branch
          %638 = sbr.rel (%p636) target = $region89
        $region88: #{forward.6} parent=84 // pred_region
          %s639 = sand.u32 %s91, 1
          %s640 = sand.u32 %s91, 1
          %s641 = smul.addr %s640, 48
          %s642 = scalar_lea.vmem [#allocation3], %s641
        $region89: #{forward.6} parent=84 // pred_fallthru
          _
      $region85: #{forward.6} parent=5 // pred_fallthru
        _
    $region6: #{forward.6} parent=1 // loop_footer
      %s13 = sadd.s32 1, %s9
    $region7: #{forward.6} parent=1 // loop_footer_branch
      %8 = sbr.rel target = $region3
    $region8: #{forward.6} parent=1 // loop_exit
      _

// kernel: forward.7
$region0: #{forward.7}
  #allocation0 [shape = 'u32[]', space=smem, size = 0x4, offset = 0x4, fixed_abs, tag = 'smem constant byte address 0x4 - core index']
  #allocation1 [shape = 'u32[144,128]{1,0:T(1,128)}', space=vmem, size = 0x12000, scoped, tag = 'internal scratch']
  %s0 = inlined_call_operand.vmem [shape: bf16[2,9216], index: 0, kind: input, shape index: {}]
  %s1 = inlined_call_operand.vmem [shape: bf16[9216,120], index: 1, kind: input, shape index: {}]
  %s2 = inlined_call_operand.vmem [shape: f32[1,120], index: 2, kind: input, shape index: {}]
  %s3 = inlined_call_operand.vmem [shape: bf16[120,84], index: 3, kind: input, shape index: {}]
  %s4 = inlined_call_operand.vmem [shape: f32[1,84], index: 4, kind: input, shape index: {}]
  %s5 = inlined_call_operand.vmem [shape: bf16[84,100], index: 5, kind: input, shape index: {}]
  %s6 = inlined_call_operand.vmem [shape: f32[1,100], index: 6, kind: input, shape index: {}]
  %s7 = inlined_call_operand.hbm [shape: f32[2,100], index: 7, kind: output, shape index: {}]
  %s8 = sld [smem:[#allocation0]]
  $region38: #{forward.7} parent=0
    _
  %s10 = ssub.s32 1, %s8
  %s11 = scalar_select 0, %s10, %s8
  $region1: #{forward.7} parent=0
    #allocation2 [shape = 'u8[1024]{0}', space=vmem, size = 0x400, scoped, tag = 'output window, operand 0, single buffered']
    #allocation3 [shape = 's32[1]{0}', space=sflag, size = 0x4, scoped, tag = 'scoped memory for forward.7']
    %12 = vsyncpa [#allocation3], 0
    // Predicated region
    $region2: #{forward.7} parent=1 // pred_check
      _
    $region3: #{forward.7} parent=1 // pred_check_branch
      %14 = sbr.rel (0) target = $region5
    $region4: #{forward.7} parent=1 // pred_region
      _
    $region5: #{forward.7} parent=1 // pred_fallthru
      _
    // Predicated region
    $region6: #{forward.7} parent=1 // pred_check
      _
    $region7: #{forward.7} parent=1 // pred_check_branch
      %16 = sbr.rel (0) target = $region9
    $region8: #{forward.7} parent=1 // pred_region
      _
    $region9: #{forward.7} parent=1 // pred_fallthru
      _
    // Predicated region
    $region10: #{forward.7} parent=1 // pred_check
      _
    $region11: #{forward.7} parent=1 // pred_check_branch
      %18 = sbr.rel (0) target = $region13
    $region12: #{forward.7} parent=1 // pred_region
      _
    $region13: #{forward.7} parent=1 // pred_fallthru
      _
    // Predicated region
    $region14: #{forward.7} parent=1 // pred_check
      _
    $region15: #{forward.7} parent=1 // pred_check_branch
      %20 = sbr.rel (0) target = $region17
    $region16: #{forward.7} parent=1 // pred_region
      _
    $region17: #{forward.7} parent=1 // pred_fallthru
      _
    // Predicated region
    $region18: #{forward.7} parent=1 // pred_check
      _
    $region19: #{forward.7} parent=1 // pred_check_branch
      %22 = sbr.rel (0) target = $region21
    $region20: #{forward.7} parent=1 // pred_region
      _
    $region21: #{forward.7} parent=1 // pred_fallthru
      _
    // Predicated region
    $region22: #{forward.7} parent=1 // pred_check
      _
    $region23: #{forward.7} parent=1 // pred_check_branch
      %24 = sbr.rel (0) target = $region25
    $region24: #{forward.7} parent=1 // pred_region
      _
    $region25: #{forward.7} parent=1 // pred_fallthru
      _
    // Predicated region
    $region26: #{forward.7} parent=1 // pred_check
      _
    $region27: #{forward.7} parent=1 // pred_check_branch
      %26 = sbr.rel (0) target = $region29
    $region28: #{forward.7} parent=1 // pred_region
      _
    $region29: #{forward.7} parent=1 // pred_fallthru
      _
    %v28 = vld [vmem:[%s0] sm:$0xff]
    %v29 = vld [vmem:[%s0 + $0x8] sm:$0xff]
    %v30 = vld [vmem:[%s0 + $0x10] sm:$0xff]
    %v31 = vld [vmem:[%s0 + $0x18] sm:$0xff]
    %v32 = vld [vmem:[%s0 + $0x20] sm:$0xff]
    %v33 = vld [vmem:[%s0 + $0x28] sm:$0xff]
    %v34 = vld [vmem:[%s0 + $0x30] sm:$0xff]
    %v35 = vld [vmem:[%s0 + $0x38] sm:$0xff]
    %v36 = vld [vmem:[%s0 + $0x40] sm:$0xff]
    %v37 = vld [vmem:[%s1] sm:$0xf]
    %v38 = vld [vmem:[%s1 + $0x4] sm:$0xf]
    %v39 = vld [vmem:[%s1 + $0x8] sm:$0xf]
    %v40 = vld [vmem:[%s1 + $0xc] sm:$0xf]
    %v41 = vld [vmem:[%s1 + $0x10] sm:$0xf]
    %v42 = vld [vmem:[%s1 + $0x14] sm:$0xf]
    %v43 = vld [vmem:[%s1 + $0x18] sm:$0xf]
    %v44 = vld [vmem:[%s1 + $0x1c] sm:$0xf]
    %v45 = vld [vmem:[%s1 + $0x20] sm:$0xf]
    %v46 = vld [vmem:[%s1 + $0x24] sm:$0xf]
    %v47 = vld [vmem:[%s1 + $0x28] sm:$0xf]
    %v48 = vld [vmem:[%s1 + $0x2c] sm:$0xf]
    %v49 = vld [vmem:[%s1 + $0x30] sm:$0xf]
    %v50 = vld [vmem:[%s1 + $0x34] sm:$0xf]
    %v51 = vld [vmem:[%s1 + $0x38] sm:$0xf]
    %v52 = vld [vmem:[%s1 + $0x3c] sm:$0xf]
    %v53 = vld [vmem:[%s1 + $0x40] sm:$0xf]
    %v54 = vld [vmem:[%s1 + $0x44] sm:$0xf]
    %v55 = vld [vmem:[%s1 + $0x48] sm:$0xf]
    %v56 = vld [vmem:[%s1 + $0x4c] sm:$0xf]
    %v57 = vld [vmem:[%s1 + $0x50] sm:$0xf]
    %v58 = vld [vmem:[%s1 + $0x54] sm:$0xf]
    %v59 = vld [vmem:[%s1 + $0x58] sm:$0xf]
    %v60 = vld [vmem:[%s1 + $0x5c] sm:$0xf]
    %v61 = vld [vmem:[%s1 + $0x60] sm:$0xf]
    %v62 = vld [vmem:[%s1 + $0x64] sm:$0xf]
    %v63 = vld [vmem:[%s1 + $0x68] sm:$0xf]
    %v64 = vld [vmem:[%s1 + $0x6c] sm:$0xf]
    %v65 = vld [vmem:[%s1 + $0x70] sm:$0xf]
    %v66 = vld [vmem:[%s1 + $0x74] sm:$0xf]
    %v67 = vld [vmem:[%s1 + $0x78] sm:$0xf]
    %v68 = vld [vmem:[%s1 + $0x7c] sm:$0xf]
    %v69 = vld [vmem:[%s1 + $0x80] sm:$0xf]
    %v70 = vld [vmem:[%s1 + $0x84] sm:$0xf]
    %v71 = vld [vmem:[%s1 + $0x88] sm:$0xf]
    %v72 = vld [vmem:[%s1 + $0x8c] sm:$0xf]
    %v73 = vld [vmem:[%s1 + $0x90] sm:$0xf]
    %v74 = vld [vmem:[%s1 + $0x94] sm:$0xf]
    %v75 = vld [vmem:[%s1 + $0x98] sm:$0xf]
    %v76 = vld [vmem:[%s1 + $0x9c] sm:$0xf]
    %v77 = vld [vmem:[%s1 + $0xa0] sm:$0xf]
    %v78 = vld [vmem:[%s1 + $0xa4] sm:$0xf]
    %v79 = vld [vmem:[%s1 + $0xa8] sm:$0xf]
    %v80 = vld [vmem:[%s1 + $0xac] sm:$0xf]
    %v81 = vld [vmem:[%s1 + $0xb0] sm:$0xf]
    %v82 = vld [vmem:[%s1 + $0xb4] sm:$0xf]
    %v83 = vld [vmem:[%s1 + $0xb8] sm:$0xf]
    %v84 = vld [vmem:[%s1 + $0xbc] sm:$0xf]
    %v85 = vld [vmem:[%s1 + $0xc0] sm:$0xf]
    %v86 = vld [vmem:[%s1 + $0xc4] sm:$0xf]
    %v87 = vld [vmem:[%s1 + $0xc8] sm:$0xf]
    %v88 = vld [vmem:[%s1 + $0xcc] sm:$0xf]
    %v89 = vld [vmem:[%s1 + $0xd0] sm:$0xf]
    %v90 = vld [vmem:[%s1 + $0xd4] sm:$0xf]
    %v91 = vld [vmem:[%s1 + $0xd8] sm:$0xf]
    %v92 = vld [vmem:[%s1 + $0xdc] sm:$0xf]
    %v93 = vld [vmem:[%s1 + $0xe0] sm:$0xf]
    %v94 = vld [vmem:[%s1 + $0xe4] sm:$0xf]
    %v95 = vld [vmem:[%s1 + $0xe8] sm:$0xf]
    %v96 = vld [vmem:[%s1 + $0xec] sm:$0xf]
    %v97 = vld [vmem:[%s1 + $0xf0] sm:$0xf]
    %v98 = vld [vmem:[%s1 + $0xf4] sm:$0xf]
    %v99 = vld [vmem:[%s1 + $0xf8] sm:$0xf]
    %v100 = vld [vmem:[%s1 + $0xfc] sm:$0xf]
    %v101 = vld [vmem:[%s1 + $0x100] sm:$0xf]
    %v102 = vld [vmem:[%s1 + $0x104] sm:$0xf]
    %v103 = vld [vmem:[%s1 + $0x108] sm:$0xf]
    %v104 = vld [vmem:[%s1 + $0x10c] sm:$0xf]
    %v105 = vld [vmem:[%s1 + $0x110] sm:$0xf]
    %v106 = vld [vmem:[%s1 + $0x114] sm:$0xf]
    %v107 = vld [vmem:[%s1 + $0x118] sm:$0xf]
    %v108 = vld [vmem:[%s1 + $0x11c] sm:$0xf]
    %v109 = vld [vmem:[%s1 + $0x120] sm:$0xf]
    %v110 = vld [vmem:[%s1 + $0x124] sm:$0xf]
    %v111 = vld [vmem:[%s1 + $0x128] sm:$0xf]
    %v112 = vld [vmem:[%s1 + $0x12c] sm:$0xf]
    %v113 = vld [vmem:[%s1 + $0x130] sm:$0xf]
    %v114 = vld [vmem:[%s1 + $0x134] sm:$0xf]
    %v115 = vld [vmem:[%s1 + $0x138] sm:$0xf]
    %v116 = vld [vmem:[%s1 + $0x13c] sm:$0xf]
    %v117 = vld [vmem:[%s1 + $0x140] sm:$0xf]
    %v118 = vld [vmem:[%s1 + $0x144] sm:$0xf]
    %v119 = vld [vmem:[%s1 + $0x148] sm:$0xf]
    %v120 = vld [vmem:[%s1 + $0x14c] sm:$0xf]
    %v121 = vld [vmem:[%s1 + $0x150] sm:$0xf]
    %v122 = vld [vmem:[%s1 + $0x154] sm:$0xf]
    %v123 = vld [vmem:[%s1 + $0x158] sm:$0xf]
    %v124 = vld [vmem:[%s1 + $0x15c] sm:$0xf]
    %v125 = vld [vmem:[%s1 + $0x160] sm:$0xf]
    %v126 = vld [vmem:[%s1 + $0x164] sm:$0xf]
    %v127 = vld [vmem:[%s1 + $0x168] sm:$0xf]
    %v128 = vld [vmem:[%s1 + $0x16c] sm:$0xf]
    %v129 = vld [vmem:[%s1 + $0x170] sm:$0xf]
    %v130 = vld [vmem:[%s1 + $0x174] sm:$0xf]
    %v131 = vld [vmem:[%s1 + $0x178] sm:$0xf]
    %v132 = vld [vmem:[%s1 + $0x17c] sm:$0xf]
    %v133 = vld [vmem:[%s1 + $0x180] sm:$0xf]
    %v134 = vld [vmem:[%s1 + $0x184] sm:$0xf]
    %v135 = vld [vmem:[%s1 + $0x188] sm:$0xf]
    %v136 = vld [vmem:[%s1 + $0x18c] sm:$0xf]
    %v137 = vld [vmem:[%s1 + $0x190] sm:$0xf]
    %v138 = vld [vmem:[%s1 + $0x194] sm:$0xf]
    %v139 = vld [vmem:[%s1 + $0x198] sm:$0xf]
    %v140 = vld [vmem:[%s1 + $0x19c] sm:$0xf]
    %v141 = vld [vmem:[%s1 + $0x1a0] sm:$0xf]
    %v142 = vld [vmem:[%s1 + $0x1a4] sm:$0xf]
    %v143 = vld [vmem:[%s1 + $0x1a8] sm:$0xf]
    %v144 = vld [vmem:[%s1 + $0x1ac] sm:$0xf]
    %v145 = vld [vmem:[%s1 + $0x1b0] sm:$0xf]
    %v146 = vld [vmem:[%s1 + $0x1b4] sm:$0xf]
    %v147 = vld [vmem:[%s1 + $0x1b8] sm:$0xf]
    %v148 = vld [vmem:[%s1 + $0x1bc] sm:$0xf]
    %v149 = vld [vmem:[%s1 + $0x1c0] sm:$0xf]
    %v150 = vld [vmem:[%s1 + $0x1c4] sm:$0xf]
    %v151 = vld [vmem:[%s1 + $0x1c8] sm:$0xf]
    %v152 = vld [vmem:[%s1 + $0x1cc] sm:$0xf]
    %v153 = vld [vmem:[%s1 + $0x1d0] sm:$0xf]
    %v154 = vld [vmem:[%s1 + $0x1d4] sm:$0xf]
    %v155 = vld [vmem:[%s1 + $0x1d8] sm:$0xf]
    %v156 = vld [vmem:[%s1 + $0x1dc] sm:$0xf]
    %v157 = vld [vmem:[%s1 + $0x1e0] sm:$0xf]
    %v158 = vld [vmem:[%s1 + $0x1e4] sm:$0xf]
    %v159 = vld [vmem:[%s1 + $0x1e8] sm:$0xf]
    %v160 = vld [vmem:[%s1 + $0x1ec] sm:$0xf]
    %v161 = vld [vmem:[%s1 + $0x1f0] sm:$0xf]
    %v162 = vld [vmem:[%s1 + $0x1f4] sm:$0xf]
    %v163 = vld [vmem:[%s1 + $0x1f8] sm:$0xf]
    %v164 = vld [vmem:[%s1 + $0x1fc] sm:$0xf]
    %v165 = vld [vmem:[%s1 + $0x200] sm:$0xf]
    %v166 = vld [vmem:[%s1 + $0x204] sm:$0xf]
    %v167 = vld [vmem:[%s1 + $0x208] sm:$0xf]
    %v168 = vld [vmem:[%s1 + $0x20c] sm:$0xf]
    %v169 = vld [vmem:[%s1 + $0x210] sm:$0xf]
    %v170 = vld [vmem:[%s1 + $0x214] sm:$0xf]
    %v171 = vld [vmem:[%s1 + $0x218] sm:$0xf]
    %v172 = vld [vmem:[%s1 + $0x21c] sm:$0xf]
    %v173 = vld [vmem:[%s1 + $0x220] sm:$0xf]
    %v174 = vld [vmem:[%s1 + $0x224] sm:$0xf]
    %v175 = vld [vmem:[%s1 + $0x228] sm:$0xf]
    %v176 = vld [vmem:[%s1 + $0x22c] sm:$0xf]
    %v177 = vld [vmem:[%s1 + $0x230] sm:$0xf]
    %v178 = vld [vmem:[%s1 + $0x234] sm:$0xf]
    %v179 = vld [vmem:[%s1 + $0x238] sm:$0xf]
    %v180 = vld [vmem:[%s1 + $0x23c] sm:$0xf]
    %v181 = vld [vmem:[%s1 + $0x240] sm:$0xf]
    %v182 = vld [vmem:[%s1 + $0x244] sm:$0xf]
    %v183 = vld [vmem:[%s1 + $0x248] sm:$0xf]
    %v184 = vld [vmem:[%s1 + $0x24c] sm:$0xf]
    %v185 = vld [vmem:[%s1 + $0x250] sm:$0xf]
    %v186 = vld [vmem:[%s1 + $0x254] sm:$0xf]
    %v187 = vld [vmem:[%s1 + $0x258] sm:$0xf]
    %v188 = vld [vmem:[%s1 + $0x25c] sm:$0xf]
    %v189 = vld [vmem:[%s1 + $0x260] sm:$0xf]
    %v190 = vld [vmem:[%s1 + $0x264] sm:$0xf]
    %v191 = vld [vmem:[%s1 + $0x268] sm:$0xf]
    %v192 = vld [vmem:[%s1 + $0x26c] sm:$0xf]
    %v193 = vld [vmem:[%s1 + $0x270] sm:$0xf]
    %v194 = vld [vmem:[%s1 + $0x274] sm:$0xf]
    %v195 = vld [vmem:[%s1 + $0x278] sm:$0xf]
    %v196 = vld [vmem:[%s1 + $0x27c] sm:$0xf]
    %v197 = vld [vmem:[%s1 + $0x280] sm:$0xf]
    %v198 = vld [vmem:[%s1 + $0x284] sm:$0xf]
    %v199 = vld [vmem:[%s1 + $0x288] sm:$0xf]
    %v200 = vld [vmem:[%s1 + $0x28c] sm:$0xf]
    %v201 = vld [vmem:[%s1 + $0x290] sm:$0xf]
    %v202 = vld [vmem:[%s1 + $0x294] sm:$0xf]
    %v203 = vld [vmem:[%s1 + $0x298] sm:$0xf]
    %v204 = vld [vmem:[%s1 + $0x29c] sm:$0xf]
    %v205 = vld [vmem:[%s1 + $0x2a0] sm:$0xf]
    %v206 = vld [vmem:[%s1 + $0x2a4] sm:$0xf]
    %v207 = vld [vmem:[%s1 + $0x2a8] sm:$0xf]
    %v208 = vld [vmem:[%s1 + $0x2ac] sm:$0xf]
    %v209 = vld [vmem:[%s1 + $0x2b0] sm:$0xf]
    %v210 = vld [vmem:[%s1 + $0x2b4] sm:$0xf]
    %v211 = vld [vmem:[%s1 + $0x2b8] sm:$0xf]
    %v212 = vld [vmem:[%s1 + $0x2bc] sm:$0xf]
    %v213 = vld [vmem:[%s1 + $0x2c0] sm:$0xf]
    %v214 = vld [vmem:[%s1 + $0x2c4] sm:$0xf]
    %v215 = vld [vmem:[%s1 + $0x2c8] sm:$0xf]
    %v216 = vld [vmem:[%s1 + $0x2cc] sm:$0xf]
    %v217 = vld [vmem:[%s1 + $0x2d0] sm:$0xf]
    %v218 = vld [vmem:[%s1 + $0x2d4] sm:$0xf]
    %v219 = vld [vmem:[%s1 + $0x2d8] sm:$0xf]
    %v220 = vld [vmem:[%s1 + $0x2dc] sm:$0xf]
    %v221 = vld [vmem:[%s1 + $0x2e0] sm:$0xf]
    %v222 = vld [vmem:[%s1 + $0x2e4] sm:$0xf]
    %v223 = vld [vmem:[%s1 + $0x2e8] sm:$0xf]
    %v224 = vld [vmem:[%s1 + $0x2ec] sm:$0xf]
    %v225 = vld [vmem:[%s1 + $0x2f0] sm:$0xf]
    %v226 = vld [vmem:[%s1 + $0x2f4] sm:$0xf]
    %v227 = vld [vmem:[%s1 + $0x2f8] sm:$0xf]
    %v228 = vld [vmem:[%s1 + $0x2fc] sm:$0xf]
    %v229 = vld [vmem:[%s1 + $0x300] sm:$0xf]
    %v230 = vld [vmem:[%s1 + $0x304] sm:$0xf]
    %v231 = vld [vmem:[%s1 + $0x308] sm:$0xf]
    %v232 = vld [vmem:[%s1 + $0x30c] sm:$0xf]
    %v233 = vld [vmem:[%s1 + $0x310] sm:$0xf]
    %v234 = vld [vmem:[%s1 + $0x314] sm:$0xf]
    %v235 = vld [vmem:[%s1 + $0x318] sm:$0xf]
    %v236 = vld [vmem:[%s1 + $0x31c] sm:$0xf]
    %v237 = vld [vmem:[%s1 + $0x320] sm:$0xf]
    %v238 = vld [vmem:[%s1 + $0x324] sm:$0xf]
    %v239 = vld [vmem:[%s1 + $0x328] sm:$0xf]
    %v240 = vld [vmem:[%s1 + $0x32c] sm:$0xf]
    %v241 = vld [vmem:[%s1 + $0x330] sm:$0xf]
    %v242 = vld [vmem:[%s1 + $0x334] sm:$0xf]
    %v243 = vld [vmem:[%s1 + $0x338] sm:$0xf]
    %v244 = vld [vmem:[%s1 + $0x33c] sm:$0xf]
    %v245 = vld [vmem:[%s1 + $0x340] sm:$0xf]
    %v246 = vld [vmem:[%s1 + $0x344] sm:$0xf]
    %v247 = vld [vmem:[%s1 + $0x348] sm:$0xf]
    %v248 = vld [vmem:[%s1 + $0x34c] sm:$0xf]
    %v249 = vld [vmem:[%s1 + $0x350] sm:$0xf]
    %v250 = vld [vmem:[%s1 + $0x354] sm:$0xf]
    %v251 = vld [vmem:[%s1 + $0x358] sm:$0xf]
    %v252 = vld [vmem:[%s1 + $0x35c] sm:$0xf]
    %v253 = vld [vmem:[%s1 + $0x360] sm:$0xf]
    %v254 = vld [vmem:[%s1 + $0x364] sm:$0xf]
    %v255 = vld [vmem:[%s1 + $0x368] sm:$0xf]
    %v256 = vld [vmem:[%s1 + $0x36c] sm:$0xf]
    %v257 = vld [vmem:[%s1 + $0x370] sm:$0xf]
    %v258 = vld [vmem:[%s1 + $0x374] sm:$0xf]
    %v259 = vld [vmem:[%s1 + $0x378] sm:$0xf]
    %v260 = vld [vmem:[%s1 + $0x37c] sm:$0xf]
    %v261 = vld [vmem:[%s1 + $0x380] sm:$0xf]
    %v262 = vld [vmem:[%s1 + $0x384] sm:$0xf]
    %v263 = vld [vmem:[%s1 + $0x388] sm:$0xf]
    %v264 = vld [vmem:[%s1 + $0x38c] sm:$0xf]
    %v265 = vld [vmem:[%s1 + $0x390] sm:$0xf]
    %v266 = vld [vmem:[%s1 + $0x394] sm:$0xf]
    %v267 = vld [vmem:[%s1 + $0x398] sm:$0xf]
    %v268 = vld [vmem:[%s1 + $0x39c] sm:$0xf]
    %v269 = vld [vmem:[%s1 + $0x3a0] sm:$0xf]
    %v270 = vld [vmem:[%s1 + $0x3a4] sm:$0xf]
    %v271 = vld [vmem:[%s1 + $0x3a8] sm:$0xf]
    %v272 = vld [vmem:[%s1 + $0x3ac] sm:$0xf]
    %v273 = vld [vmem:[%s1 + $0x3b0] sm:$0xf]
    %v274 = vld [vmem:[%s1 + $0x3b4] sm:$0xf]
    %v275 = vld [vmem:[%s1 + $0x3b8] sm:$0xf]
    %v276 = vld [vmem:[%s1 + $0x3bc] sm:$0xf]
    %v277 = vld [vmem:[%s1 + $0x3c0] sm:$0xf]
    %v278 = vld [vmem:[%s1 + $0x3c4] sm:$0xf]
    %v279 = vld [vmem:[%s1 + $0x3c8] sm:$0xf]
    %v280 = vld [vmem:[%s1 + $0x3cc] sm:$0xf]
    %v281 = vld [vmem:[%s1 + $0x3d0] sm:$0xf]
    %v282 = vld [vmem:[%s1 + $0x3d4] sm:$0xf]
    %v283 = vld [vmem:[%s1 + $0x3d8] sm:$0xf]
    %v284 = vld [vmem:[%s1 + $0x3dc] sm:$0xf]
    %v285 = vld [vmem:[%s1 + $0x3e0] sm:$0xf]
    %v286 = vld [vmem:[%s1 + $0x3e4] sm:$0xf]
    %v287 = vld [vmem:[%s1 + $0x3e8] sm:$0xf]
    %v288 = vld [vmem:[%s1 + $0x3ec] sm:$0xf]
    %v289 = vld [vmem:[%s1 + $0x3f0] sm:$0xf]
    %v290 = vld [vmem:[%s1 + $0x3f4] sm:$0xf]
    %v291 = vld [vmem:[%s1 + $0x3f8] sm:$0xf]
    %v292 = vld [vmem:[%s1 + $0x3fc] sm:$0xf]
    %v293 = vld [vmem:[%s1 + $0x400] sm:$0xf]
    %v294 = vld [vmem:[%s1 + $0x404] sm:$0xf]
    %v295 = vld [vmem:[%s1 + $0x408] sm:$0xf]
    %v296 = vld [vmem:[%s1 + $0x40c] sm:$0xf]
    %v297 = vld [vmem:[%s1 + $0x410] sm:$0xf]
    %v298 = vld [vmem:[%s1 + $0x414] sm:$0xf]
    %v299 = vld [vmem:[%s1 + $0x418] sm:$0xf]
    %v300 = vld [vmem:[%s1 + $0x41c] sm:$0xf]
    %v301 = vld [vmem:[%s1 + $0x420] sm:$0xf]
    %v302 = vld [vmem:[%s1 + $0x424] sm:$0xf]
    %v303 = vld [vmem:[%s1 + $0x428] sm:$0xf]
    %v304 = vld [vmem:[%s1 + $0x42c] sm:$0xf]
    %v305 = vld [vmem:[%s1 + $0x430] sm:$0xf]
    %v306 = vld [vmem:[%s1 + $0x434] sm:$0xf]
    %v307 = vld [vmem:[%s1 + $0x438] sm:$0xf]
    %v308 = vld [vmem:[%s1 + $0x43c] sm:$0xf]
    %v309 = vld [vmem:[%s1 + $0x440] sm:$0xf]
    %v310 = vld [vmem:[%s1 + $0x444] sm:$0xf]
    %v311 = vld [vmem:[%s1 + $0x448] sm:$0xf]
    %v312 = vld [vmem:[%s1 + $0x44c] sm:$0xf]
    %v313 = vld [vmem:[%s1 + $0x450] sm:$0xf]
    %v314 = vld [vmem:[%s1 + $0x454] sm:$0xf]
    %v315 = vld [vmem:[%s1 + $0x458] sm:$0xf]
    %v316 = vld [vmem:[%s1 + $0x45c] sm:$0xf]
    %v317 = vld [vmem:[%s1 + $0x460] sm:$0xf]
    %v318 = vld [vmem:[%s1 + $0x464] sm:$0xf]
    %v319 = vld [vmem:[%s1 + $0x468] sm:$0xf]
    %v320 = vld [vmem:[%s1 + $0x46c] sm:$0xf]
    %v321 = vld [vmem:[%s1 + $0x470] sm:$0xf]
    %v322 = vld [vmem:[%s1 + $0x474] sm:$0xf]
    %v323 = vld [vmem:[%s1 + $0x478] sm:$0xf]
    %v324 = vld [vmem:[%s1 + $0x47c] sm:$0xf]
    %v325 = vld [vmem:[%s1 + $0x480] sm:$0xf]
    %v326 = vld [vmem:[%s1 + $0x484] sm:$0xf]
    %v327 = vld [vmem:[%s1 + $0x488] sm:$0xf]
    %v328 = vld [vmem:[%s1 + $0x48c] sm:$0xf]
    %v329 = vld [vmem:[%s1 + $0x490] sm:$0xf]
    %v330 = vld [vmem:[%s1 + $0x494] sm:$0xf]
    %v331 = vld [vmem:[%s1 + $0x498] sm:$0xf]
    %v332 = vld [vmem:[%s1 + $0x49c] sm:$0xf]
    %v333 = vld [vmem:[%s1 + $0x4a0] sm:$0xf]
    %v334 = vld [vmem:[%s1 + $0x4a4] sm:$0xf]
    %v335 = vld [vmem:[%s1 + $0x4a8] sm:$0xf]
    %v336 = vld [vmem:[%s1 + $0x4ac] sm:$0xf]
    %v337 = vld [vmem:[%s1 + $0x4b0] sm:$0xf]
    %v338 = vld [vmem:[%s1 + $0x4b4] sm:$0xf]
    %v339 = vld [vmem:[%s1 + $0x4b8] sm:$0xf]
    %v340 = vld [vmem:[%s1 + $0x4bc] sm:$0xf]
    %v341 = vld [vmem:[%s1 + $0x4c0] sm:$0xf]
    %v342 = vld [vmem:[%s1 + $0x4c4] sm:$0xf]
    %v343 = vld [vmem:[%s1 + $0x4c8] sm:$0xf]
    %v344 = vld [vmem:[%s1 + $0x4cc] sm:$0xf]
    %v345 = vld [vmem:[%s1 + $0x4d0] sm:$0xf]
    %v346 = vld [vmem:[%s1 + $0x4d4] sm:$0xf]
    %v347 = vld [vmem:[%s1 + $0x4d8] sm:$0xf]
    %v348 = vld [vmem:[%s1 + $0x4dc] sm:$0xf]
    %v349 = vld [vmem:[%s1 + $0x4e0] sm:$0xf]
    %v350 = vld [vmem:[%s1 + $0x4e4] sm:$0xf]
    %v351 = vld [vmem:[%s1 + $0x4e8] sm:$0xf]
    %v352 = vld [vmem:[%s1 + $0x4ec] sm:$0xf]
    %v353 = vld [vmem:[%s1 + $0x4f0] sm:$0xf]
    %v354 = vld [vmem:[%s1 + $0x4f4] sm:$0xf]
    %v355 = vld [vmem:[%s1 + $0x4f8] sm:$0xf]
    %v356 = vld [vmem:[%s1 + $0x4fc] sm:$0xf]
    %v357 = vld [vmem:[%s1 + $0x500] sm:$0xf]
    %v358 = vld [vmem:[%s1 + $0x504] sm:$0xf]
    %v359 = vld [vmem:[%s1 + $0x508] sm:$0xf]
    %v360 = vld [vmem:[%s1 + $0x50c] sm:$0xf]
    %v361 = vld [vmem:[%s1 + $0x510] sm:$0xf]
    %v362 = vld [vmem:[%s1 + $0x514] sm:$0xf]
    %v363 = vld [vmem:[%s1 + $0x518] sm:$0xf]
    %v364 = vld [vmem:[%s1 + $0x51c] sm:$0xf]
    %v365 = vld [vmem:[%s1 + $0x520] sm:$0xf]
    %v366 = vld [vmem:[%s1 + $0x524] sm:$0xf]
    %v367 = vld [vmem:[%s1 + $0x528] sm:$0xf]
    %v368 = vld [vmem:[%s1 + $0x52c] sm:$0xf]
    %v369 = vld [vmem:[%s1 + $0x530] sm:$0xf]
    %v370 = vld [vmem:[%s1 + $0x534] sm:$0xf]
    %v371 = vld [vmem:[%s1 + $0x538] sm:$0xf]
    %v372 = vld [vmem:[%s1 + $0x53c] sm:$0xf]
    %v373 = vld [vmem:[%s1 + $0x540] sm:$0xf]
    %v374 = vld [vmem:[%s1 + $0x544] sm:$0xf]
    %v375 = vld [vmem:[%s1 + $0x548] sm:$0xf]
    %v376 = vld [vmem:[%s1 + $0x54c] sm:$0xf]
    %v377 = vld [vmem:[%s1 + $0x550] sm:$0xf]
    %v378 = vld [vmem:[%s1 + $0x554] sm:$0xf]
    %v379 = vld [vmem:[%s1 + $0x558] sm:$0xf]
    %v380 = vld [vmem:[%s1 + $0x55c] sm:$0xf]
    %v381 = vld [vmem:[%s1 + $0x560] sm:$0xf]
    %v382 = vld [vmem:[%s1 + $0x564] sm:$0xf]
    %v383 = vld [vmem:[%s1 + $0x568] sm:$0xf]
    %v384 = vld [vmem:[%s1 + $0x56c] sm:$0xf]
    %v385 = vld [vmem:[%s1 + $0x570] sm:$0xf]
    %v386 = vld [vmem:[%s1 + $0x574] sm:$0xf]
    %v387 = vld [vmem:[%s1 + $0x578] sm:$0xf]
    %v388 = vld [vmem:[%s1 + $0x57c] sm:$0xf]
    %v389 = vld [vmem:[%s1 + $0x580] sm:$0xf]
    %v390 = vld [vmem:[%s1 + $0x584] sm:$0xf]
    %v391 = vld [vmem:[%s1 + $0x588] sm:$0xf]
    %v392 = vld [vmem:[%s1 + $0x58c] sm:$0xf]
    %v393 = vld [vmem:[%s1 + $0x590] sm:$0xf]
    %v394 = vld [vmem:[%s1 + $0x594] sm:$0xf]
    %v395 = vld [vmem:[%s1 + $0x598] sm:$0xf]
    %v396 = vld [vmem:[%s1 + $0x59c] sm:$0xf]
    %v397 = vld [vmem:[%s1 + $0x5a0] sm:$0xf]
    %v398 = vld [vmem:[%s1 + $0x5a4] sm:$0xf]
    %v399 = vld [vmem:[%s1 + $0x5a8] sm:$0xf]
    %v400 = vld [vmem:[%s1 + $0x5ac] sm:$0xf]
    %v401 = vld [vmem:[%s1 + $0x5b0] sm:$0xf]
    %v402 = vld [vmem:[%s1 + $0x5b4] sm:$0xf]
    %v403 = vld [vmem:[%s1 + $0x5b8] sm:$0xf]
    %v404 = vld [vmem:[%s1 + $0x5bc] sm:$0xf]
    %v405 = vld [vmem:[%s1 + $0x5c0] sm:$0xf]
    %v406 = vld [vmem:[%s1 + $0x5c4] sm:$0xf]
    %v407 = vld [vmem:[%s1 + $0x5c8] sm:$0xf]
    %v408 = vld [vmem:[%s1 + $0x5cc] sm:$0xf]
    %v409 = vld [vmem:[%s1 + $0x5d0] sm:$0xf]
    %v410 = vld [vmem:[%s1 + $0x5d4] sm:$0xf]
    %v411 = vld [vmem:[%s1 + $0x5d8] sm:$0xf]
    %v412 = vld [vmem:[%s1 + $0x5dc] sm:$0xf]
    %v413 = vld [vmem:[%s1 + $0x5e0] sm:$0xf]
    %v414 = vld [vmem:[%s1 + $0x5e4] sm:$0xf]
    %v415 = vld [vmem:[%s1 + $0x5e8] sm:$0xf]
    %v416 = vld [vmem:[%s1 + $0x5ec] sm:$0xf]
    %v417 = vld [vmem:[%s1 + $0x5f0] sm:$0xf]
    %v418 = vld [vmem:[%s1 + $0x5f4] sm:$0xf]
    %v419 = vld [vmem:[%s1 + $0x5f8] sm:$0xf]
    %v420 = vld [vmem:[%s1 + $0x5fc] sm:$0xf]
    %v421 = vld [vmem:[%s1 + $0x600] sm:$0xf]
    %v422 = vld [vmem:[%s1 + $0x604] sm:$0xf]
    %v423 = vld [vmem:[%s1 + $0x608] sm:$0xf]
    %v424 = vld [vmem:[%s1 + $0x60c] sm:$0xf]
    %v425 = vld [vmem:[%s1 + $0x610] sm:$0xf]
    %v426 = vld [vmem:[%s1 + $0x614] sm:$0xf]
    %v427 = vld [vmem:[%s1 + $0x618] sm:$0xf]
    %v428 = vld [vmem:[%s1 + $0x61c] sm:$0xf]
    %v429 = vld [vmem:[%s1 + $0x620] sm:$0xf]
    %v430 = vld [vmem:[%s1 + $0x624] sm:$0xf]
    %v431 = vld [vmem:[%s1 + $0x628] sm:$0xf]
    %v432 = vld [vmem:[%s1 + $0x62c] sm:$0xf]
    %v433 = vld [vmem:[%s1 + $0x630] sm:$0xf]
    %v434 = vld [vmem:[%s1 + $0x634] sm:$0xf]
    %v435 = vld [vmem:[%s1 + $0x638] sm:$0xf]
    %v436 = vld [vmem:[%s1 + $0x63c] sm:$0xf]
    %v437 = vld [vmem:[%s1 + $0x640] sm:$0xf]
    %v438 = vld [vmem:[%s1 + $0x644] sm:$0xf]
    %v439 = vld [vmem:[%s1 + $0x648] sm:$0xf]
    %v440 = vld [vmem:[%s1 + $0x64c] sm:$0xf]
    %v441 = vld [vmem:[%s1 + $0x650] sm:$0xf]
    %v442 = vld [vmem:[%s1 + $0x654] sm:$0xf]
    %v443 = vld [vmem:[%s1 + $0x658] sm:$0xf]
    %v444 = vld [vmem:[%s1 + $0x65c] sm:$0xf]
    %v445 = vld [vmem:[%s1 + $0x660] sm:$0xf]
    %v446 = vld [vmem:[%s1 + $0x664] sm:$0xf]
    %v447 = vld [vmem:[%s1 + $0x668] sm:$0xf]
    %v448 = vld [vmem:[%s1 + $0x66c] sm:$0xf]
    %v449 = vld [vmem:[%s1 + $0x670] sm:$0xf]
    %v450 = vld [vmem:[%s1 + $0x674] sm:$0xf]
    %v451 = vld [vmem:[%s1 + $0x678] sm:$0xf]
    %v452 = vld [vmem:[%s1 + $0x67c] sm:$0xf]
    %v453 = vld [vmem:[%s1 + $0x680] sm:$0xf]
    %v454 = vld [vmem:[%s1 + $0x684] sm:$0xf]
    %v455 = vld [vmem:[%s1 + $0x688] sm:$0xf]
    %v456 = vld [vmem:[%s1 + $0x68c] sm:$0xf]
    %v457 = vld [vmem:[%s1 + $0x690] sm:$0xf]
    %v458 = vld [vmem:[%s1 + $0x694] sm:$0xf]
    %v459 = vld [vmem:[%s1 + $0x698] sm:$0xf]
    %v460 = vld [vmem:[%s1 + $0x69c] sm:$0xf]
    %v461 = vld [vmem:[%s1 + $0x6a0] sm:$0xf]
    %v462 = vld [vmem:[%s1 + $0x6a4] sm:$0xf]
    %v463 = vld [vmem:[%s1 + $0x6a8] sm:$0xf]
    %v464 = vld [vmem:[%s1 + $0x6ac] sm:$0xf]
    %v465 = vld [vmem:[%s1 + $0x6b0] sm:$0xf]
    %v466 = vld [vmem:[%s1 + $0x6b4] sm:$0xf]
    %v467 = vld [vmem:[%s1 + $0x6b8] sm:$0xf]
    %v468 = vld [vmem:[%s1 + $0x6bc] sm:$0xf]
    %v469 = vld [vmem:[%s1 + $0x6c0] sm:$0xf]
    %v470 = vld [vmem:[%s1 + $0x6c4] sm:$0xf]
    %v471 = vld [vmem:[%s1 + $0x6c8] sm:$0xf]
    %v472 = vld [vmem:[%s1 + $0x6cc] sm:$0xf]
    %v473 = vld [vmem:[%s1 + $0x6d0] sm:$0xf]
    %v474 = vld [vmem:[%s1 + $0x6d4] sm:$0xf]
    %v475 = vld [vmem:[%s1 + $0x6d8] sm:$0xf]
    %v476 = vld [vmem:[%s1 + $0x6dc] sm:$0xf]
    %v477 = vld [vmem:[%s1 + $0x6e0] sm:$0xf]
    %v478 = vld [vmem:[%s1 + $0x6e4] sm:$0xf]
    %v479 = vld [vmem:[%s1 + $0x6e8] sm:$0xf]
    %v480 = vld [vmem:[%s1 + $0x6ec] sm:$0xf]
    %v481 = vld [vmem:[%s1 + $0x6f0] sm:$0xf]
    %v482 = vld [vmem:[%s1 + $0x6f4] sm:$0xf]
    %v483 = vld [vmem:[%s1 + $0x6f8] sm:$0xf]
    %v484 = vld [vmem:[%s1 + $0x6fc] sm:$0xf]
    %v485 = vld [vmem:[%s1 + $0x700] sm:$0xf]
    %v486 = vld [vmem:[%s1 + $0x704] sm:$0xf]
    %v487 = vld [vmem:[%s1 + $0x708] sm:$0xf]
    %v488 = vld [vmem:[%s1 + $0x70c] sm:$0xf]
    %v489 = vld [vmem:[%s1 + $0x710] sm:$0xf]
    %v490 = vld [vmem:[%s1 + $0x714] sm:$0xf]
    %v491 = vld [vmem:[%s1 + $0x718] sm:$0xf]
    %v492 = vld [vmem:[%s1 + $0x71c] sm:$0xf]
    %v493 = vld [vmem:[%s1 + $0x720] sm:$0xf]
    %v494 = vld [vmem:[%s1 + $0x724] sm:$0xf]
    %v495 = vld [vmem:[%s1 + $0x728] sm:$0xf]
    %v496 = vld [vmem:[%s1 + $0x72c] sm:$0xf]
    %v497 = vld [vmem:[%s1 + $0x730] sm:$0xf]
    %v498 = vld [vmem:[%s1 + $0x734] sm:$0xf]
    %v499 = vld [vmem:[%s1 + $0x738] sm:$0xf]
    %v500 = vld [vmem:[%s1 + $0x73c] sm:$0xf]
    %v501 = vld [vmem:[%s1 + $0x740] sm:$0xf]
    %v502 = vld [vmem:[%s1 + $0x744] sm:$0xf]
    %v503 = vld [vmem:[%s1 + $0x748] sm:$0xf]
    %v504 = vld [vmem:[%s1 + $0x74c] sm:$0xf]
    %v505 = vld [vmem:[%s1 + $0x750] sm:$0xf]
    %v506 = vld [vmem:[%s1 + $0x754] sm:$0xf]
    %v507 = vld [vmem:[%s1 + $0x758] sm:$0xf]
    %v508 = vld [vmem:[%s1 + $0x75c] sm:$0xf]
    %v509 = vld [vmem:[%s1 + $0x760] sm:$0xf]
    %v510 = vld [vmem:[%s1 + $0x764] sm:$0xf]
    %v511 = vld [vmem:[%s1 + $0x768] sm:$0xf]
    %v512 = vld [vmem:[%s1 + $0x76c] sm:$0xf]
    %v513 = vld [vmem:[%s1 + $0x770] sm:$0xf]
    %v514 = vld [vmem:[%s1 + $0x774] sm:$0xf]
    %v515 = vld [vmem:[%s1 + $0x778] sm:$0xf]
    %v516 = vld [vmem:[%s1 + $0x77c] sm:$0xf]
    %v517 = vld [vmem:[%s1 + $0x780] sm:$0xf]
    %v518 = vld [vmem:[%s1 + $0x784] sm:$0xf]
    %v519 = vld [vmem:[%s1 + $0x788] sm:$0xf]
    %v520 = vld [vmem:[%s1 + $0x78c] sm:$0xf]
    %v521 = vld [vmem:[%s1 + $0x790] sm:$0xf]
    %v522 = vld [vmem:[%s1 + $0x794] sm:$0xf]
    %v523 = vld [vmem:[%s1 + $0x798] sm:$0xf]
    %v524 = vld [vmem:[%s1 + $0x79c] sm:$0xf]
    %v525 = vld [vmem:[%s1 + $0x7a0] sm:$0xf]
    %v526 = vld [vmem:[%s1 + $0x7a4] sm:$0xf]
    %v527 = vld [vmem:[%s1 + $0x7a8] sm:$0xf]
    %v528 = vld [vmem:[%s1 + $0x7ac] sm:$0xf]
    %v529 = vld [vmem:[%s1 + $0x7b0] sm:$0xf]
    %v530 = vld [vmem:[%s1 + $0x7b4] sm:$0xf]
    %v531 = vld [vmem:[%s1 + $0x7b8] sm:$0xf]
    %v532 = vld [vmem:[%s1 + $0x7bc] sm:$0xf]
    %v533 = vld [vmem:[%s1 + $0x7c0] sm:$0xf]
    %v534 = vld [vmem:[%s1 + $0x7c4] sm:$0xf]
    %v535 = vld [vmem:[%s1 + $0x7c8] sm:$0xf]
    %v536 = vld [vmem:[%s1 + $0x7cc] sm:$0xf]
    %v537 = vld [vmem:[%s1 + $0x7d0] sm:$0xf]
    %v538 = vld [vmem:[%s1 + $0x7d4] sm:$0xf]
    %v539 = vld [vmem:[%s1 + $0x7d8] sm:$0xf]
    %v540 = vld [vmem:[%s1 + $0x7dc] sm:$0xf]
    %v541 = vld [vmem:[%s1 + $0x7e0] sm:$0xf]
    %v542 = vld [vmem:[%s1 + $0x7e4] sm:$0xf]
    %v543 = vld [vmem:[%s1 + $0x7e8] sm:$0xf]
    %v544 = vld [vmem:[%s1 + $0x7ec] sm:$0xf]
    %v545 = vld [vmem:[%s1 + $0x7f0] sm:$0xf]
    %v546 = vld [vmem:[%s1 + $0x7f4] sm:$0xf]
    %v547 = vld [vmem:[%s1 + $0x7f8] sm:$0xf]
    %v548 = vld [vmem:[%s1 + $0x7fc] sm:$0xf]
    %v549 = vld [vmem:[%s1 + $0x800] sm:$0xf]
    %v550 = vld [vmem:[%s1 + $0x804] sm:$0xf]
    %v551 = vld [vmem:[%s1 + $0x808] sm:$0xf]
    %v552 = vld [vmem:[%s1 + $0x80c] sm:$0xf]
    %v553 = vld [vmem:[%s1 + $0x810] sm:$0xf]
    %v554 = vld [vmem:[%s1 + $0x814] sm:$0xf]
    %v555 = vld [vmem:[%s1 + $0x818] sm:$0xf]
    %v556 = vld [vmem:[%s1 + $0x81c] sm:$0xf]
    %v557 = vld [vmem:[%s1 + $0x820] sm:$0xf]
    %v558 = vld [vmem:[%s1 + $0x824] sm:$0xf]
    %v559 = vld [vmem:[%s1 + $0x828] sm:$0xf]
    %v560 = vld [vmem:[%s1 + $0x82c] sm:$0xf]
    %v561 = vld [vmem:[%s1 + $0x830] sm:$0xf]
    %v562 = vld [vmem:[%s1 + $0x834] sm:$0xf]
    %v563 = vld [vmem:[%s1 + $0x838] sm:$0xf]
    %v564 = vld [vmem:[%s1 + $0x83c] sm:$0xf]
    %v565 = vld [vmem:[%s1 + $0x840] sm:$0xf]
    %v566 = vld [vmem:[%s1 + $0x844] sm:$0xf]
    %v567 = vld [vmem:[%s1 + $0x848] sm:$0xf]
    %v568 = vld [vmem:[%s1 + $0x84c] sm:$0xf]
    %v569 = vld [vmem:[%s1 + $0x850] sm:$0xf]
    %v570 = vld [vmem:[%s1 + $0x854] sm:$0xf]
    %v571 = vld [vmem:[%s1 + $0x858] sm:$0xf]
    %v572 = vld [vmem:[%s1 + $0x85c] sm:$0xf]
    %v573 = vld [vmem:[%s1 + $0x860] sm:$0xf]
    %v574 = vld [vmem:[%s1 + $0x864] sm:$0xf]
    %v575 = vld [vmem:[%s1 + $0x868] sm:$0xf]
    %v576 = vld [vmem:[%s1 + $0x86c] sm:$0xf]
    %v577 = vld [vmem:[%s1 + $0x870] sm:$0xf]
    %v578 = vld [vmem:[%s1 + $0x874] sm:$0xf]
    %v579 = vld [vmem:[%s1 + $0x878] sm:$0xf]
    %v580 = vld [vmem:[%s1 + $0x87c] sm:$0xf]
    %v581 = vld [vmem:[%s1 + $0x880] sm:$0xf]
    %v582 = vld [vmem:[%s1 + $0x884] sm:$0xf]
    %v583 = vld [vmem:[%s1 + $0x888] sm:$0xf]
    %v584 = vld [vmem:[%s1 + $0x88c] sm:$0xf]
    %v585 = vld [vmem:[%s1 + $0x890] sm:$0xf]
    %v586 = vld [vmem:[%s1 + $0x894] sm:$0xf]
    %v587 = vld [vmem:[%s1 + $0x898] sm:$0xf]
    %v588 = vld [vmem:[%s1 + $0x89c] sm:$0xf]
    %v589 = vld [vmem:[%s1 + $0x8a0] sm:$0xf]
    %v590 = vld [vmem:[%s1 + $0x8a4] sm:$0xf]
    %v591 = vld [vmem:[%s1 + $0x8a8] sm:$0xf]
    %v592 = vld [vmem:[%s1 + $0x8ac] sm:$0xf]
    %v593 = vld [vmem:[%s1 + $0x8b0] sm:$0xf]
    %v594 = vld [vmem:[%s1 + $0x8b4] sm:$0xf]
    %v595 = vld [vmem:[%s1 + $0x8b8] sm:$0xf]
    %v596 = vld [vmem:[%s1 + $0x8bc] sm:$0xf]
    %v597 = vld [vmem:[%s1 + $0x8c0] sm:$0xf]
    %v598 = vld [vmem:[%s1 + $0x8c4] sm:$0xf]
    %v599 = vld [vmem:[%s1 + $0x8c8] sm:$0xf]
    %v600 = vld [vmem:[%s1 + $0x8cc] sm:$0xf]
    %v601 = vld [vmem:[%s1 + $0x8d0] sm:$0xf]
    %v602 = vld [vmem:[%s1 + $0x8d4] sm:$0xf]
    %v603 = vld [vmem:[%s1 + $0x8d8] sm:$0xf]
    %v604 = vld [vmem:[%s1 + $0x8dc] sm:$0xf]
    %v605 = vld [vmem:[%s1 + $0x8e0] sm:$0xf]
    %v606 = vld [vmem:[%s1 + $0x8e4] sm:$0xf]
    %v607 = vld [vmem:[%s1 + $0x8e8] sm:$0xf]
    %v608 = vld [vmem:[%s1 + $0x8ec] sm:$0xf]
    %v609 = vld [vmem:[%s1 + $0x8f0] sm:$0xf]
    %v610 = vld [vmem:[%s1 + $0x8f4] sm:$0xf]
    %v611 = vld [vmem:[%s1 + $0x8f8] sm:$0xf]
    %v612 = vld [vmem:[%s1 + $0x8fc] sm:$0xf]
    %v613 = vld [vmem:[%s1 + $0x900] sm:$0xf]
    %v614 = vld [vmem:[%s1 + $0x904] sm:$0xf]
    %v615 = vld [vmem:[%s1 + $0x908] sm:$0xf]
    %v616 = vld [vmem:[%s1 + $0x90c] sm:$0xf]
    %v617 = vld [vmem:[%s1 + $0x910] sm:$0xf]
    %v618 = vld [vmem:[%s1 + $0x914] sm:$0xf]
    %v619 = vld [vmem:[%s1 + $0x918] sm:$0xf]
    %v620 = vld [vmem:[%s1 + $0x91c] sm:$0xf]
    %v621 = vld [vmem:[%s1 + $0x920] sm:$0xf]
    %v622 = vld [vmem:[%s1 + $0x924] sm:$0xf]
    %v623 = vld [vmem:[%s1 + $0x928] sm:$0xf]
    %v624 = vld [vmem:[%s1 + $0x92c] sm:$0xf]
    %v625 = vld [vmem:[%s1 + $0x930] sm:$0xf]
    %v626 = vld [vmem:[%s1 + $0x934] sm:$0xf]
    %v627 = vld [vmem:[%s1 + $0x938] sm:$0xf]
    %v628 = vld [vmem:[%s1 + $0x93c] sm:$0xf]
    %v629 = vld [vmem:[%s1 + $0x940] sm:$0xf]
    %v630 = vld [vmem:[%s1 + $0x944] sm:$0xf]
    %v631 = vld [vmem:[%s1 + $0x948] sm:$0xf]
    %v632 = vld [vmem:[%s1 + $0x94c] sm:$0xf]
    %v633 = vld [vmem:[%s1 + $0x950] sm:$0xf]
    %v634 = vld [vmem:[%s1 + $0x954] sm:$0xf]
    %v635 = vld [vmem:[%s1 + $0x958] sm:$0xf]
    %v636 = vld [vmem:[%s1 + $0x95c] sm:$0xf]
    %v637 = vld [vmem:[%s1 + $0x960] sm:$0xf]
    %v638 = vld [vmem:[%s1 + $0x964] sm:$0xf]
    %v639 = vld [vmem:[%s1 + $0x968] sm:$0xf]
    %v640 = vld [vmem:[%s1 + $0x96c] sm:$0xf]
    %v641 = vld [vmem:[%s1 + $0x970] sm:$0xf]
    %v642 = vld [vmem:[%s1 + $0x974] sm:$0xf]
    %v643 = vld [vmem:[%s1 + $0x978] sm:$0xf]
    %v644 = vld [vmem:[%s1 + $0x97c] sm:$0xf]
    %v645 = vld [vmem:[%s1 + $0x980] sm:$0xf]
    %v646 = vld [vmem:[%s1 + $0x984] sm:$0xf]
    %v647 = vld [vmem:[%s1 + $0x988] sm:$0xf]
    %v648 = vld [vmem:[%s1 + $0x98c] sm:$0xf]
    %v649 = vld [vmem:[%s1 + $0x990] sm:$0xf]
    %v650 = vld [vmem:[%s1 + $0x994] sm:$0xf]
    %v651 = vld [vmem:[%s1 + $0x998] sm:$0xf]
    %v652 = vld [vmem:[%s1 + $0x99c] sm:$0xf]
    %v653 = vld [vmem:[%s1 + $0x9a0] sm:$0xf]
    %v654 = vld [vmem:[%s1 + $0x9a4] sm:$0xf]
    %v655 = vld [vmem:[%s1 + $0x9a8] sm:$0xf]
    %v656 = vld [vmem:[%s1 + $0x9ac] sm:$0xf]
    %v657 = vld [vmem:[%s1 + $0x9b0] sm:$0xf]
    %v658 = vld [vmem:[%s1 + $0x9b4] sm:$0xf]
    %v659 = vld [vmem:[%s1 + $0x9b8] sm:$0xf]
    %v660 = vld [vmem:[%s1 + $0x9bc] sm:$0xf]
    %v661 = vld [vmem:[%s1 + $0x9c0] sm:$0xf]
    %v662 = vld [vmem:[%s1 + $0x9c4] sm:$0xf]
    %v663 = vld [vmem:[%s1 + $0x9c8] sm:$0xf]
    %v664 = vld [vmem:[%s1 + $0x9cc] sm:$0xf]
    %v665 = vld [vmem:[%s1 + $0x9d0] sm:$0xf]
    %v666 = vld [vmem:[%s1 + $0x9d4] sm:$0xf]
    %v667 = vld [vmem:[%s1 + $0x9d8] sm:$0xf]
    %v668 = vld [vmem:[%s1 + $0x9dc] sm:$0xf]
    %v669 = vld [vmem:[%s1 + $0x9e0] sm:$0xf]
    %v670 = vld [vmem:[%s1 + $0x9e4] sm:$0xf]
    %v671 = vld [vmem:[%s1 + $0x9e8] sm:$0xf]
    %v672 = vld [vmem:[%s1 + $0x9ec] sm:$0xf]
    %v673 = vld [vmem:[%s1 + $0x9f0] sm:$0xf]
    %v674 = vld [vmem:[%s1 + $0x9f4] sm:$0xf]
    %v675 = vld [vmem:[%s1 + $0x9f8] sm:$0xf]
    %v676 = vld [vmem:[%s1 + $0x9fc] sm:$0xf]
    %v677 = vld [vmem:[%s1 + $0xa00] sm:$0xf]
    %v678 = vld [vmem:[%s1 + $0xa04] sm:$0xf]
    %v679 = vld [vmem:[%s1 + $0xa08] sm:$0xf]
    %v680 = vld [vmem:[%s1 + $0xa0c] sm:$0xf]
    %v681 = vld [vmem:[%s1 + $0xa10] sm:$0xf]
    %v682 = vld [vmem:[%s1 + $0xa14] sm:$0xf]
    %v683 = vld [vmem:[%s1 + $0xa18] sm:$0xf]
    %v684 = vld [vmem:[%s1 + $0xa1c] sm:$0xf]
    %v685 = vld [vmem:[%s1 + $0xa20] sm:$0xf]
    %v686 = vld [vmem:[%s1 + $0xa24] sm:$0xf]
    %v687 = vld [vmem:[%s1 + $0xa28] sm:$0xf]
    %v688 = vld [vmem:[%s1 + $0xa2c] sm:$0xf]
    %v689 = vld [vmem:[%s1 + $0xa30] sm:$0xf]
    %v690 = vld [vmem:[%s1 + $0xa34] sm:$0xf]
    %v691 = vld [vmem:[%s1 + $0xa38] sm:$0xf]
    %v692 = vld [vmem:[%s1 + $0xa3c] sm:$0xf]
    %v693 = vld [vmem:[%s1 + $0xa40] sm:$0xf]
    %v694 = vld [vmem:[%s1 + $0xa44] sm:$0xf]
    %v695 = vld [vmem:[%s1 + $0xa48] sm:$0xf]
    %v696 = vld [vmem:[%s1 + $0xa4c] sm:$0xf]
    %v697 = vld [vmem:[%s1 + $0xa50] sm:$0xf]
    %v698 = vld [vmem:[%s1 + $0xa54] sm:$0xf]
    %v699 = vld [vmem:[%s1 + $0xa58] sm:$0xf]
    %v700 = vld [vmem:[%s1 + $0xa5c] sm:$0xf]
    %v701 = vld [vmem:[%s1 + $0xa60] sm:$0xf]
    %v702 = vld [vmem:[%s1 + $0xa64] sm:$0xf]
    %v703 = vld [vmem:[%s1 + $0xa68] sm:$0xf]
    %v704 = vld [vmem:[%s1 + $0xa6c] sm:$0xf]
    %v705 = vld [vmem:[%s1 + $0xa70] sm:$0xf]
    %v706 = vld [vmem:[%s1 + $0xa74] sm:$0xf]
    %v707 = vld [vmem:[%s1 + $0xa78] sm:$0xf]
    %v708 = vld [vmem:[%s1 + $0xa7c] sm:$0xf]
    %v709 = vld [vmem:[%s1 + $0xa80] sm:$0xf]
    %v710 = vld [vmem:[%s1 + $0xa84] sm:$0xf]
    %v711 = vld [vmem:[%s1 + $0xa88] sm:$0xf]
    %v712 = vld [vmem:[%s1 + $0xa8c] sm:$0xf]
    %v713 = vld [vmem:[%s1 + $0xa90] sm:$0xf]
    %v714 = vld [vmem:[%s1 + $0xa94] sm:$0xf]
    %v715 = vld [vmem:[%s1 + $0xa98] sm:$0xf]
    %v716 = vld [vmem:[%s1 + $0xa9c] sm:$0xf]
    %v717 = vld [vmem:[%s1 + $0xaa0] sm:$0xf]
    %v718 = vld [vmem:[%s1 + $0xaa4] sm:$0xf]
    %v719 = vld [vmem:[%s1 + $0xaa8] sm:$0xf]
    %v720 = vld [vmem:[%s1 + $0xaac] sm:$0xf]
    %v721 = vld [vmem:[%s1 + $0xab0] sm:$0xf]
    %v722 = vld [vmem:[%s1 + $0xab4] sm:$0xf]
    %v723 = vld [vmem:[%s1 + $0xab8] sm:$0xf]
    %v724 = vld [vmem:[%s1 + $0xabc] sm:$0xf]
    %v725 = vld [vmem:[%s1 + $0xac0] sm:$0xf]
    %v726 = vld [vmem:[%s1 + $0xac4] sm:$0xf]
    %v727 = vld [vmem:[%s1 + $0xac8] sm:$0xf]
    %v728 = vld [vmem:[%s1 + $0xacc] sm:$0xf]
    %v729 = vld [vmem:[%s1 + $0xad0] sm:$0xf]
    %v730 = vld [vmem:[%s1 + $0xad4] sm:$0xf]
    %v731 = vld [vmem:[%s1 + $0xad8] sm:$0xf]
    %v732 = vld [vmem:[%s1 + $0xadc] sm:$0xf]
    %v733 = vld [vmem:[%s1 + $0xae0] sm:$0xf]
    %v734 = vld [vmem:[%s1 + $0xae4] sm:$0xf]
    %v735 = vld [vmem:[%s1 + $0xae8] sm:$0xf]
    %v736 = vld [vmem:[%s1 + $0xaec] sm:$0xf]
    %v737 = vld [vmem:[%s1 + $0xaf0] sm:$0xf]
    %v738 = vld [vmem:[%s1 + $0xaf4] sm:$0xf]
    %v739 = vld [vmem:[%s1 + $0xaf8] sm:$0xf]
    %v740 = vld [vmem:[%s1 + $0xafc] sm:$0xf]
    %v741 = vld [vmem:[%s1 + $0xb00] sm:$0xf]
    %v742 = vld [vmem:[%s1 + $0xb04] sm:$0xf]
    %v743 = vld [vmem:[%s1 + $0xb08] sm:$0xf]
    %v744 = vld [vmem:[%s1 + $0xb0c] sm:$0xf]
    %v745 = vld [vmem:[%s1 + $0xb10] sm:$0xf]
    %v746 = vld [vmem:[%s1 + $0xb14] sm:$0xf]
    %v747 = vld [vmem:[%s1 + $0xb18] sm:$0xf]
    %v748 = vld [vmem:[%s1 + $0xb1c] sm:$0xf]
    %v749 = vld [vmem:[%s1 + $0xb20] sm:$0xf]
    %v750 = vld [vmem:[%s1 + $0xb24] sm:$0xf]
    %v751 = vld [vmem:[%s1 + $0xb28] sm:$0xf]
    %v752 = vld [vmem:[%s1 + $0xb2c] sm:$0xf]
    %v753 = vld [vmem:[%s1 + $0xb30] sm:$0xf]
    %v754 = vld [vmem:[%s1 + $0xb34] sm:$0xf]
    %v755 = vld [vmem:[%s1 + $0xb38] sm:$0xf]
    %v756 = vld [vmem:[%s1 + $0xb3c] sm:$0xf]
    %v757 = vld [vmem:[%s1 + $0xb40] sm:$0xf]
    %v758 = vld [vmem:[%s1 + $0xb44] sm:$0xf]
    %v759 = vld [vmem:[%s1 + $0xb48] sm:$0xf]
    %v760 = vld [vmem:[%s1 + $0xb4c] sm:$0xf]
    %v761 = vld [vmem:[%s1 + $0xb50] sm:$0xf]
    %v762 = vld [vmem:[%s1 + $0xb54] sm:$0xf]
    %v763 = vld [vmem:[%s1 + $0xb58] sm:$0xf]
    %v764 = vld [vmem:[%s1 + $0xb5c] sm:$0xf]
    %v765 = vld [vmem:[%s1 + $0xb60] sm:$0xf]
    %v766 = vld [vmem:[%s1 + $0xb64] sm:$0xf]
    %v767 = vld [vmem:[%s1 + $0xb68] sm:$0xf]
    %v768 = vld [vmem:[%s1 + $0xb6c] sm:$0xf]
    %v769 = vld [vmem:[%s1 + $0xb70] sm:$0xf]
    %v770 = vld [vmem:[%s1 + $0xb74] sm:$0xf]
    %v771 = vld [vmem:[%s1 + $0xb78] sm:$0xf]
    %v772 = vld [vmem:[%s1 + $0xb7c] sm:$0xf]
    %v773 = vld [vmem:[%s1 + $0xb80] sm:$0xf]
    %v774 = vld [vmem:[%s1 + $0xb84] sm:$0xf]
    %v775 = vld [vmem:[%s1 + $0xb88] sm:$0xf]
    %v776 = vld [vmem:[%s1 + $0xb8c] sm:$0xf]
    %v777 = vld [vmem:[%s1 + $0xb90] sm:$0xf]
    %v778 = vld [vmem:[%s1 + $0xb94] sm:$0xf]
    %v779 = vld [vmem:[%s1 + $0xb98] sm:$0xf]
    %v780 = vld [vmem:[%s1 + $0xb9c] sm:$0xf]
    %v781 = vld [vmem:[%s1 + $0xba0] sm:$0xf]
    %v782 = vld [vmem:[%s1 + $0xba4] sm:$0xf]
    %v783 = vld [vmem:[%s1 + $0xba8] sm:$0xf]
    %v784 = vld [vmem:[%s1 + $0xbac] sm:$0xf]
    %v785 = vld [vmem:[%s1 + $0xbb0] sm:$0xf]
    %v786 = vld [vmem:[%s1 + $0xbb4] sm:$0xf]
    %v787 = vld [vmem:[%s1 + $0xbb8] sm:$0xf]
    %v788 = vld [vmem:[%s1 + $0xbbc] sm:$0xf]
    %v789 = vld [vmem:[%s1 + $0xbc0] sm:$0xf]
    %v790 = vld [vmem:[%s1 + $0xbc4] sm:$0xf]
    %v791 = vld [vmem:[%s1 + $0xbc8] sm:$0xf]
    %v792 = vld [vmem:[%s1 + $0xbcc] sm:$0xf]
    %v793 = vld [vmem:[%s1 + $0xbd0] sm:$0xf]
    %v794 = vld [vmem:[%s1 + $0xbd4] sm:$0xf]
    %v795 = vld [vmem:[%s1 + $0xbd8] sm:$0xf]
    %v796 = vld [vmem:[%s1 + $0xbdc] sm:$0xf]
    %v797 = vld [vmem:[%s1 + $0xbe0] sm:$0xf]
    %v798 = vld [vmem:[%s1 + $0xbe4] sm:$0xf]
    %v799 = vld [vmem:[%s1 + $0xbe8] sm:$0xf]
    %v800 = vld [vmem:[%s1 + $0xbec] sm:$0xf]
    %v801 = vld [vmem:[%s1 + $0xbf0] sm:$0xf]
    %v802 = vld [vmem:[%s1 + $0xbf4] sm:$0xf]
    %v803 = vld [vmem:[%s1 + $0xbf8] sm:$0xf]
    %v804 = vld [vmem:[%s1 + $0xbfc] sm:$0xf]
    %v805 = vld [vmem:[%s1 + $0xc00] sm:$0xf]
    %v806 = vld [vmem:[%s1 + $0xc04] sm:$0xf]
    %v807 = vld [vmem:[%s1 + $0xc08] sm:$0xf]
    %v808 = vld [vmem:[%s1 + $0xc0c] sm:$0xf]
    %v809 = vld [vmem:[%s1 + $0xc10] sm:$0xf]
    %v810 = vld [vmem:[%s1 + $0xc14] sm:$0xf]
    %v811 = vld [vmem:[%s1 + $0xc18] sm:$0xf]
    %v812 = vld [vmem:[%s1 + $0xc1c] sm:$0xf]
    %v813 = vld [vmem:[%s1 + $0xc20] sm:$0xf]
    %v814 = vld [vmem:[%s1 + $0xc24] sm:$0xf]
    %v815 = vld [vmem:[%s1 + $0xc28] sm:$0xf]
    %v816 = vld [vmem:[%s1 + $0xc2c] sm:$0xf]
    %v817 = vld [vmem:[%s1 + $0xc30] sm:$0xf]
    %v818 = vld [vmem:[%s1 + $0xc34] sm:$0xf]
    %v819 = vld [vmem:[%s1 + $0xc38] sm:$0xf]
    %v820 = vld [vmem:[%s1 + $0xc3c] sm:$0xf]
    %v821 = vld [vmem:[%s1 + $0xc40] sm:$0xf]
    %v822 = vld [vmem:[%s1 + $0xc44] sm:$0xf]
    %v823 = vld [vmem:[%s1 + $0xc48] sm:$0xf]
    %v824 = vld [vmem:[%s1 + $0xc4c] sm:$0xf]
    %v825 = vld [vmem:[%s1 + $0xc50] sm:$0xf]
    %v826 = vld [vmem:[%s1 + $0xc54] sm:$0xf]
    %v827 = vld [vmem:[%s1 + $0xc58] sm:$0xf]
    %v828 = vld [vmem:[%s1 + $0xc5c] sm:$0xf]
    %v829 = vld [vmem:[%s1 + $0xc60] sm:$0xf]
    %v830 = vld [vmem:[%s1 + $0xc64] sm:$0xf]
    %v831 = vld [vmem:[%s1 + $0xc68] sm:$0xf]
    %v832 = vld [vmem:[%s1 + $0xc6c] sm:$0xf]
    %v833 = vld [vmem:[%s1 + $0xc70] sm:$0xf]
    %v834 = vld [vmem:[%s1 + $0xc74] sm:$0xf]
    %v835 = vld [vmem:[%s1 + $0xc78] sm:$0xf]
    %v836 = vld [vmem:[%s1 + $0xc7c] sm:$0xf]
    %v837 = vld [vmem:[%s1 + $0xc80] sm:$0xf]
    %v838 = vld [vmem:[%s1 + $0xc84] sm:$0xf]
    %v839 = vld [vmem:[%s1 + $0xc88] sm:$0xf]
    %v840 = vld [vmem:[%s1 + $0xc8c] sm:$0xf]
    %v841 = vld [vmem:[%s1 + $0xc90] sm:$0xf]
    %v842 = vld [vmem:[%s1 + $0xc94] sm:$0xf]
    %v843 = vld [vmem:[%s1 + $0xc98] sm:$0xf]
    %v844 = vld [vmem:[%s1 + $0xc9c] sm:$0xf]
    %v845 = vld [vmem:[%s1 + $0xca0] sm:$0xf]
    %v846 = vld [vmem:[%s1 + $0xca4] sm:$0xf]
    %v847 = vld [vmem:[%s1 + $0xca8] sm:$0xf]
    %v848 = vld [vmem:[%s1 + $0xcac] sm:$0xf]
    %v849 = vld [vmem:[%s1 + $0xcb0] sm:$0xf]
    %v850 = vld [vmem:[%s1 + $0xcb4] sm:$0xf]
    %v851 = vld [vmem:[%s1 + $0xcb8] sm:$0xf]
    %v852 = vld [vmem:[%s1 + $0xcbc] sm:$0xf]
    %v853 = vld [vmem:[%s1 + $0xcc0] sm:$0xf]
    %v854 = vld [vmem:[%s1 + $0xcc4] sm:$0xf]
    %v855 = vld [vmem:[%s1 + $0xcc8] sm:$0xf]
    %v856 = vld [vmem:[%s1 + $0xccc] sm:$0xf]
    %v857 = vld [vmem:[%s1 + $0xcd0] sm:$0xf]
    %v858 = vld [vmem:[%s1 + $0xcd4] sm:$0xf]
    %v859 = vld [vmem:[%s1 + $0xcd8] sm:$0xf]
    %v860 = vld [vmem:[%s1 + $0xcdc] sm:$0xf]
    %v861 = vld [vmem:[%s1 + $0xce0] sm:$0xf]
    %v862 = vld [vmem:[%s1 + $0xce4] sm:$0xf]
    %v863 = vld [vmem:[%s1 + $0xce8] sm:$0xf]
    %v864 = vld [vmem:[%s1 + $0xcec] sm:$0xf]
    %v865 = vld [vmem:[%s1 + $0xcf0] sm:$0xf]
    %v866 = vld [vmem:[%s1 + $0xcf4] sm:$0xf]
    %v867 = vld [vmem:[%s1 + $0xcf8] sm:$0xf]
    %v868 = vld [vmem:[%s1 + $0xcfc] sm:$0xf]
    %v869 = vld [vmem:[%s1 + $0xd00] sm:$0xf]
    %v870 = vld [vmem:[%s1 + $0xd04] sm:$0xf]
    %v871 = vld [vmem:[%s1 + $0xd08] sm:$0xf]
    %v872 = vld [vmem:[%s1 + $0xd0c] sm:$0xf]
    %v873 = vld [vmem:[%s1 + $0xd10] sm:$0xf]
    %v874 = vld [vmem:[%s1 + $0xd14] sm:$0xf]
    %v875 = vld [vmem:[%s1 + $0xd18] sm:$0xf]
    %v876 = vld [vmem:[%s1 + $0xd1c] sm:$0xf]
    %v877 = vld [vmem:[%s1 + $0xd20] sm:$0xf]
    %v878 = vld [vmem:[%s1 + $0xd24] sm:$0xf]
    %v879 = vld [vmem:[%s1 + $0xd28] sm:$0xf]
    %v880 = vld [vmem:[%s1 + $0xd2c] sm:$0xf]
    %v881 = vld [vmem:[%s1 + $0xd30] sm:$0xf]
    %v882 = vld [vmem:[%s1 + $0xd34] sm:$0xf]
    %v883 = vld [vmem:[%s1 + $0xd38] sm:$0xf]
    %v884 = vld [vmem:[%s1 + $0xd3c] sm:$0xf]
    %v885 = vld [vmem:[%s1 + $0xd40] sm:$0xf]
    %v886 = vld [vmem:[%s1 + $0xd44] sm:$0xf]
    %v887 = vld [vmem:[%s1 + $0xd48] sm:$0xf]
    %v888 = vld [vmem:[%s1 + $0xd4c] sm:$0xf]
    %v889 = vld [vmem:[%s1 + $0xd50] sm:$0xf]
    %v890 = vld [vmem:[%s1 + $0xd54] sm:$0xf]
    %v891 = vld [vmem:[%s1 + $0xd58] sm:$0xf]
    %v892 = vld [vmem:[%s1 + $0xd5c] sm:$0xf]
    %v893 = vld [vmem:[%s1 + $0xd60] sm:$0xf]
    %v894 = vld [vmem:[%s1 + $0xd64] sm:$0xf]
    %v895 = vld [vmem:[%s1 + $0xd68] sm:$0xf]
    %v896 = vld [vmem:[%s1 + $0xd6c] sm:$0xf]
    %v897 = vld [vmem:[%s1 + $0xd70] sm:$0xf]
    %v898 = vld [vmem:[%s1 + $0xd74] sm:$0xf]
    %v899 = vld [vmem:[%s1 + $0xd78] sm:$0xf]
    %v900 = vld [vmem:[%s1 + $0xd7c] sm:$0xf]
    %v901 = vld [vmem:[%s1 + $0xd80] sm:$0xf]
    %v902 = vld [vmem:[%s1 + $0xd84] sm:$0xf]
    %v903 = vld [vmem:[%s1 + $0xd88] sm:$0xf]
    %v904 = vld [vmem:[%s1 + $0xd8c] sm:$0xf]
    %v905 = vld [vmem:[%s1 + $0xd90] sm:$0xf]
    %v906 = vld [vmem:[%s1 + $0xd94] sm:$0xf]
    %v907 = vld [vmem:[%s1 + $0xd98] sm:$0xf]
    %v908 = vld [vmem:[%s1 + $0xd9c] sm:$0xf]
    %v909 = vld [vmem:[%s1 + $0xda0] sm:$0xf]
    %v910 = vld [vmem:[%s1 + $0xda4] sm:$0xf]
    %v911 = vld [vmem:[%s1 + $0xda8] sm:$0xf]
    %v912 = vld [vmem:[%s1 + $0xdac] sm:$0xf]
    %v913 = vld [vmem:[%s1 + $0xdb0] sm:$0xf]
    %v914 = vld [vmem:[%s1 + $0xdb4] sm:$0xf]
    %v915 = vld [vmem:[%s1 + $0xdb8] sm:$0xf]
    %v916 = vld [vmem:[%s1 + $0xdbc] sm:$0xf]
    %v917 = vld [vmem:[%s1 + $0xdc0] sm:$0xf]
    %v918 = vld [vmem:[%s1 + $0xdc4] sm:$0xf]
    %v919 = vld [vmem:[%s1 + $0xdc8] sm:$0xf]
    %v920 = vld [vmem:[%s1 + $0xdcc] sm:$0xf]
    %v921 = vld [vmem:[%s1 + $0xdd0] sm:$0xf]
    %v922 = vld [vmem:[%s1 + $0xdd4] sm:$0xf]
    %v923 = vld [vmem:[%s1 + $0xdd8] sm:$0xf]
    %v924 = vld [vmem:[%s1 + $0xddc] sm:$0xf]
    %v925 = vld [vmem:[%s1 + $0xde0] sm:$0xf]
    %v926 = vld [vmem:[%s1 + $0xde4] sm:$0xf]
    %v927 = vld [vmem:[%s1 + $0xde8] sm:$0xf]
    %v928 = vld [vmem:[%s1 + $0xdec] sm:$0xf]
    %v929 = vld [vmem:[%s1 + $0xdf0] sm:$0xf]
    %v930 = vld [vmem:[%s1 + $0xdf4] sm:$0xf]
    %v931 = vld [vmem:[%s1 + $0xdf8] sm:$0xf]
    %v932 = vld [vmem:[%s1 + $0xdfc] sm:$0xf]
    %v933 = vld [vmem:[%s1 + $0xe00] sm:$0xf]
    %v934 = vld [vmem:[%s1 + $0xe04] sm:$0xf]
    %v935 = vld [vmem:[%s1 + $0xe08] sm:$0xf]
    %v936 = vld [vmem:[%s1 + $0xe0c] sm:$0xf]
    %v937 = vld [vmem:[%s1 + $0xe10] sm:$0xf]
    %v938 = vld [vmem:[%s1 + $0xe14] sm:$0xf]
    %v939 = vld [vmem:[%s1 + $0xe18] sm:$0xf]
    %v940 = vld [vmem:[%s1 + $0xe1c] sm:$0xf]
    %v941 = vld [vmem:[%s1 + $0xe20] sm:$0xf]
    %v942 = vld [vmem:[%s1 + $0xe24] sm:$0xf]
    %v943 = vld [vmem:[%s1 + $0xe28] sm:$0xf]
    %v944 = vld [vmem:[%s1 + $0xe2c] sm:$0xf]
    %v945 = vld [vmem:[%s1 + $0xe30] sm:$0xf]
    %v946 = vld [vmem:[%s1 + $0xe34] sm:$0xf]
    %v947 = vld [vmem:[%s1 + $0xe38] sm:$0xf]
    %v948 = vld [vmem:[%s1 + $0xe3c] sm:$0xf]
    %v949 = vld [vmem:[%s1 + $0xe40] sm:$0xf]
    %v950 = vld [vmem:[%s1 + $0xe44] sm:$0xf]
    %v951 = vld [vmem:[%s1 + $0xe48] sm:$0xf]
    %v952 = vld [vmem:[%s1 + $0xe4c] sm:$0xf]
    %v953 = vld [vmem:[%s1 + $0xe50] sm:$0xf]
    %v954 = vld [vmem:[%s1 + $0xe54] sm:$0xf]
    %v955 = vld [vmem:[%s1 + $0xe58] sm:$0xf]
    %v956 = vld [vmem:[%s1 + $0xe5c] sm:$0xf]
    %v957 = vld [vmem:[%s1 + $0xe60] sm:$0xf]
    %v958 = vld [vmem:[%s1 + $0xe64] sm:$0xf]
    %v959 = vld [vmem:[%s1 + $0xe68] sm:$0xf]
    %v960 = vld [vmem:[%s1 + $0xe6c] sm:$0xf]
    %v961 = vld [vmem:[%s1 + $0xe70] sm:$0xf]
    %v962 = vld [vmem:[%s1 + $0xe74] sm:$0xf]
    %v963 = vld [vmem:[%s1 + $0xe78] sm:$0xf]
    %v964 = vld [vmem:[%s1 + $0xe7c] sm:$0xf]
    %v965 = vld [vmem:[%s1 + $0xe80] sm:$0xf]
    %v966 = vld [vmem:[%s1 + $0xe84] sm:$0xf]
    %v967 = vld [vmem:[%s1 + $0xe88] sm:$0xf]
    %v968 = vld [vmem:[%s1 + $0xe8c] sm:$0xf]
    %v969 = vld [vmem:[%s1 + $0xe90] sm:$0xf]
    %v970 = vld [vmem:[%s1 + $0xe94] sm:$0xf]
    %v971 = vld [vmem:[%s1 + $0xe98] sm:$0xf]
    %v972 = vld [vmem:[%s1 + $0xe9c] sm:$0xf]
    %v973 = vld [vmem:[%s1 + $0xea0] sm:$0xf]
    %v974 = vld [vmem:[%s1 + $0xea4] sm:$0xf]
    %v975 = vld [vmem:[%s1 + $0xea8] sm:$0xf]
    %v976 = vld [vmem:[%s1 + $0xeac] sm:$0xf]
    %v977 = vld [vmem:[%s1 + $0xeb0] sm:$0xf]
    %v978 = vld [vmem:[%s1 + $0xeb4] sm:$0xf]
    %v979 = vld [vmem:[%s1 + $0xeb8] sm:$0xf]
    %v980 = vld [vmem:[%s1 + $0xebc] sm:$0xf]
    %v981 = vld [vmem:[%s1 + $0xec0] sm:$0xf]
    %v982 = vld [vmem:[%s1 + $0xec4] sm:$0xf]
    %v983 = vld [vmem:[%s1 + $0xec8] sm:$0xf]
    %v984 = vld [vmem:[%s1 + $0xecc] sm:$0xf]
    %v985 = vld [vmem:[%s1 + $0xed0] sm:$0xf]
    %v986 = vld [vmem:[%s1 + $0xed4] sm:$0xf]
    %v987 = vld [vmem:[%s1 + $0xed8] sm:$0xf]
    %v988 = vld [vmem:[%s1 + $0xedc] sm:$0xf]
    %v989 = vld [vmem:[%s1 + $0xee0] sm:$0xf]
    %v990 = vld [vmem:[%s1 + $0xee4] sm:$0xf]
    %v991 = vld [vmem:[%s1 + $0xee8] sm:$0xf]
    %v992 = vld [vmem:[%s1 + $0xeec] sm:$0xf]
    %v993 = vld [vmem:[%s1 + $0xef0] sm:$0xf]
    %v994 = vld [vmem:[%s1 + $0xef4] sm:$0xf]
    %v995 = vld [vmem:[%s1 + $0xef8] sm:$0xf]
    %v996 = vld [vmem:[%s1 + $0xefc] sm:$0xf]
    %v997 = vld [vmem:[%s1 + $0xf00] sm:$0xf]
    %v998 = vld [vmem:[%s1 + $0xf04] sm:$0xf]
    %v999 = vld [vmem:[%s1 + $0xf08] sm:$0xf]
    %v1000 = vld [vmem:[%s1 + $0xf0c] sm:$0xf]
    %v1001 = vld [vmem:[%s1 + $0xf10] sm:$0xf]
    %v1002 = vld [vmem:[%s1 + $0xf14] sm:$0xf]
    %v1003 = vld [vmem:[%s1 + $0xf18] sm:$0xf]
    %v1004 = vld [vmem:[%s1 + $0xf1c] sm:$0xf]
    %v1005 = vld [vmem:[%s1 + $0xf20] sm:$0xf]
    %v1006 = vld [vmem:[%s1 + $0xf24] sm:$0xf]
    %v1007 = vld [vmem:[%s1 + $0xf28] sm:$0xf]
    %v1008 = vld [vmem:[%s1 + $0xf2c] sm:$0xf]
    %v1009 = vld [vmem:[%s1 + $0xf30] sm:$0xf]
    %v1010 = vld [vmem:[%s1 + $0xf34] sm:$0xf]
    %v1011 = vld [vmem:[%s1 + $0xf38] sm:$0xf]
    %v1012 = vld [vmem:[%s1 + $0xf3c] sm:$0xf]
    %v1013 = vld [vmem:[%s1 + $0xf40] sm:$0xf]
    %v1014 = vld [vmem:[%s1 + $0xf44] sm:$0xf]
    %v1015 = vld [vmem:[%s1 + $0xf48] sm:$0xf]
    %v1016 = vld [vmem:[%s1 + $0xf4c] sm:$0xf]
    %v1017 = vld [vmem:[%s1 + $0xf50] sm:$0xf]
    %v1018 = vld [vmem:[%s1 + $0xf54] sm:$0xf]
    %v1019 = vld [vmem:[%s1 + $0xf58] sm:$0xf]
    %v1020 = vld [vmem:[%s1 + $0xf5c] sm:$0xf]
    %v1021 = vld [vmem:[%s1 + $0xf60] sm:$0xf]
    %v1022 = vld [vmem:[%s1 + $0xf64] sm:$0xf]
    %v1023 = vld [vmem:[%s1 + $0xf68] sm:$0xf]
    %v1024 = vld [vmem:[%s1 + $0xf6c] sm:$0xf]
    %v1025 = vld [vmem:[%s1 + $0xf70] sm:$0xf]
    %v1026 = vld [vmem:[%s1 + $0xf74] sm:$0xf]
    %v1027 = vld [vmem:[%s1 + $0xf78] sm:$0xf]
    %v1028 = vld [vmem:[%s1 + $0xf7c] sm:$0xf]
    %v1029 = vld [vmem:[%s1 + $0xf80] sm:$0xf]
    %v1030 = vld [vmem:[%s1 + $0xf84] sm:$0xf]
    %v1031 = vld [vmem:[%s1 + $0xf88] sm:$0xf]
    %v1032 = vld [vmem:[%s1 + $0xf8c] sm:$0xf]
    %v1033 = vld [vmem:[%s1 + $0xf90] sm:$0xf]
    %v1034 = vld [vmem:[%s1 + $0xf94] sm:$0xf]
    %v1035 = vld [vmem:[%s1 + $0xf98] sm:$0xf]
    %v1036 = vld [vmem:[%s1 + $0xf9c] sm:$0xf]
    %v1037 = vld [vmem:[%s1 + $0xfa0] sm:$0xf]
    %v1038 = vld [vmem:[%s1 + $0xfa4] sm:$0xf]
    %v1039 = vld [vmem:[%s1 + $0xfa8] sm:$0xf]
    %v1040 = vld [vmem:[%s1 + $0xfac] sm:$0xf]
    %v1041 = vld [vmem:[%s1 + $0xfb0] sm:$0xf]
    %v1042 = vld [vmem:[%s1 + $0xfb4] sm:$0xf]
    %v1043 = vld [vmem:[%s1 + $0xfb8] sm:$0xf]
    %v1044 = vld [vmem:[%s1 + $0xfbc] sm:$0xf]
    %v1045 = vld [vmem:[%s1 + $0xfc0] sm:$0xf]
    %v1046 = vld [vmem:[%s1 + $0xfc4] sm:$0xf]
    %v1047 = vld [vmem:[%s1 + $0xfc8] sm:$0xf]
    %v1048 = vld [vmem:[%s1 + $0xfcc] sm:$0xf]
    %v1049 = vld [vmem:[%s1 + $0xfd0] sm:$0xf]
    %v1050 = vld [vmem:[%s1 + $0xfd4] sm:$0xf]
    %v1051 = vld [vmem:[%s1 + $0xfd8] sm:$0xf]
    %v1052 = vld [vmem:[%s1 + $0xfdc] sm:$0xf]
    %v1053 = vld [vmem:[%s1 + $0xfe0] sm:$0xf]
    %v1054 = vld [vmem:[%s1 + $0xfe4] sm:$0xf]
    %v1055 = vld [vmem:[%s1 + $0xfe8] sm:$0xf]
    %v1056 = vld [vmem:[%s1 + $0xfec] sm:$0xf]
    %v1057 = vld [vmem:[%s1 + $0xff0] sm:$0xf]
    %v1058 = vld [vmem:[%s1 + $0xff4] sm:$0xf]
    %v1059 = vld [vmem:[%s1 + $0xff8] sm:$0xf]
    %v1060 = vld [vmem:[%s1 + $0xffc] sm:$0xf]
    %v1061 = vld [vmem:[%s1 + $0x1000] sm:$0xf]
    %v1062 = vld [vmem:[%s1 + $0x1004] sm:$0xf]
    %v1063 = vld [vmem:[%s1 + $0x1008] sm:$0xf]
    %v1064 = vld [vmem:[%s1 + $0x100c] sm:$0xf]
    %v1065 = vld [vmem:[%s1 + $0x1010] sm:$0xf]
    %v1066 = vld [vmem:[%s1 + $0x1014] sm:$0xf]
    %v1067 = vld [vmem:[%s1 + $0x1018] sm:$0xf]
    %v1068 = vld [vmem:[%s1 + $0x101c] sm:$0xf]
    %v1069 = vld [vmem:[%s1 + $0x1020] sm:$0xf]
    %v1070 = vld [vmem:[%s1 + $0x1024] sm:$0xf]
    %v1071 = vld [vmem:[%s1 + $0x1028] sm:$0xf]
    %v1072 = vld [vmem:[%s1 + $0x102c] sm:$0xf]
    %v1073 = vld [vmem:[%s1 + $0x1030] sm:$0xf]
    %v1074 = vld [vmem:[%s1 + $0x1034] sm:$0xf]
    %v1075 = vld [vmem:[%s1 + $0x1038] sm:$0xf]
    %v1076 = vld [vmem:[%s1 + $0x103c] sm:$0xf]
    %v1077 = vld [vmem:[%s1 + $0x1040] sm:$0xf]
    %v1078 = vld [vmem:[%s1 + $0x1044] sm:$0xf]
    %v1079 = vld [vmem:[%s1 + $0x1048] sm:$0xf]
    %v1080 = vld [vmem:[%s1 + $0x104c] sm:$0xf]
    %v1081 = vld [vmem:[%s1 + $0x1050] sm:$0xf]
    %v1082 = vld [vmem:[%s1 + $0x1054] sm:$0xf]
    %v1083 = vld [vmem:[%s1 + $0x1058] sm:$0xf]
    %v1084 = vld [vmem:[%s1 + $0x105c] sm:$0xf]
    %v1085 = vld [vmem:[%s1 + $0x1060] sm:$0xf]
    %v1086 = vld [vmem:[%s1 + $0x1064] sm:$0xf]
    %v1087 = vld [vmem:[%s1 + $0x1068] sm:$0xf]
    %v1088 = vld [vmem:[%s1 + $0x106c] sm:$0xf]
    %v1089 = vld [vmem:[%s1 + $0x1070] sm:$0xf]
    %v1090 = vld [vmem:[%s1 + $0x1074] sm:$0xf]
    %v1091 = vld [vmem:[%s1 + $0x1078] sm:$0xf]
    %v1092 = vld [vmem:[%s1 + $0x107c] sm:$0xf]
    %v1093 = vld [vmem:[%s1 + $0x1080] sm:$0xf]
    %v1094 = vld [vmem:[%s1 + $0x1084] sm:$0xf]
    %v1095 = vld [vmem:[%s1 + $0x1088] sm:$0xf]
    %v1096 = vld [vmem:[%s1 + $0x108c] sm:$0xf]
    %v1097 = vld [vmem:[%s1 + $0x1090] sm:$0xf]
    %v1098 = vld [vmem:[%s1 + $0x1094] sm:$0xf]
    %v1099 = vld [vmem:[%s1 + $0x1098] sm:$0xf]
    %v1100 = vld [vmem:[%s1 + $0x109c] sm:$0xf]
    %v1101 = vld [vmem:[%s1 + $0x10a0] sm:$0xf]
    %v1102 = vld [vmem:[%s1 + $0x10a4] sm:$0xf]
    %v1103 = vld [vmem:[%s1 + $0x10a8] sm:$0xf]
    %v1104 = vld [vmem:[%s1 + $0x10ac] sm:$0xf]
    %v1105 = vld [vmem:[%s1 + $0x10b0] sm:$0xf]
    %v1106 = vld [vmem:[%s1 + $0x10b4] sm:$0xf]
    %v1107 = vld [vmem:[%s1 + $0x10b8] sm:$0xf]
    %v1108 = vld [vmem:[%s1 + $0x10bc] sm:$0xf]
    %v1109 = vld [vmem:[%s1 + $0x10c0] sm:$0xf]
    %v1110 = vld [vmem:[%s1 + $0x10c4] sm:$0xf]
    %v1111 = vld [vmem:[%s1 + $0x10c8] sm:$0xf]
    %v1112 = vld [vmem:[%s1 + $0x10cc] sm:$0xf]
    %v1113 = vld [vmem:[%s1 + $0x10d0] sm:$0xf]
    %v1114 = vld [vmem:[%s1 + $0x10d4] sm:$0xf]
    %v1115 = vld [vmem:[%s1 + $0x10d8] sm:$0xf]
    %v1116 = vld [vmem:[%s1 + $0x10dc] sm:$0xf]
    %v1117 = vld [vmem:[%s1 + $0x10e0] sm:$0xf]
    %v1118 = vld [vmem:[%s1 + $0x10e4] sm:$0xf]
    %v1119 = vld [vmem:[%s1 + $0x10e8] sm:$0xf]
    %v1120 = vld [vmem:[%s1 + $0x10ec] sm:$0xf]
    %v1121 = vld [vmem:[%s1 + $0x10f0] sm:$0xf]
    %v1122 = vld [vmem:[%s1 + $0x10f4] sm:$0xf]
    %v1123 = vld [vmem:[%s1 + $0x10f8] sm:$0xf]
    %v1124 = vld [vmem:[%s1 + $0x10fc] sm:$0xf]
    %v1125 = vld [vmem:[%s1 + $0x1100] sm:$0xf]
    %v1126 = vld [vmem:[%s1 + $0x1104] sm:$0xf]
    %v1127 = vld [vmem:[%s1 + $0x1108] sm:$0xf]
    %v1128 = vld [vmem:[%s1 + $0x110c] sm:$0xf]
    %v1129 = vld [vmem:[%s1 + $0x1110] sm:$0xf]
    %v1130 = vld [vmem:[%s1 + $0x1114] sm:$0xf]
    %v1131 = vld [vmem:[%s1 + $0x1118] sm:$0xf]
    %v1132 = vld [vmem:[%s1 + $0x111c] sm:$0xf]
    %v1133 = vld [vmem:[%s1 + $0x1120] sm:$0xf]
    %v1134 = vld [vmem:[%s1 + $0x1124] sm:$0xf]
    %v1135 = vld [vmem:[%s1 + $0x1128] sm:$0xf]
    %v1136 = vld [vmem:[%s1 + $0x112c] sm:$0xf]
    %v1137 = vld [vmem:[%s1 + $0x1130] sm:$0xf]
    %v1138 = vld [vmem:[%s1 + $0x1134] sm:$0xf]
    %v1139 = vld [vmem:[%s1 + $0x1138] sm:$0xf]
    %v1140 = vld [vmem:[%s1 + $0x113c] sm:$0xf]
    %v1141 = vld [vmem:[%s1 + $0x1140] sm:$0xf]
    %v1142 = vld [vmem:[%s1 + $0x1144] sm:$0xf]
    %v1143 = vld [vmem:[%s1 + $0x1148] sm:$0xf]
    %v1144 = vld [vmem:[%s1 + $0x114c] sm:$0xf]
    %v1145 = vld [vmem:[%s1 + $0x1150] sm:$0xf]
    %v1146 = vld [vmem:[%s1 + $0x1154] sm:$0xf]
    %v1147 = vld [vmem:[%s1 + $0x1158] sm:$0xf]
    %v1148 = vld [vmem:[%s1 + $0x115c] sm:$0xf]
    %v1149 = vld [vmem:[%s1 + $0x1160] sm:$0xf]
    %v1150 = vld [vmem:[%s1 + $0x1164] sm:$0xf]
    %v1151 = vld [vmem:[%s1 + $0x1168] sm:$0xf]
    %v1152 = vld [vmem:[%s1 + $0x116c] sm:$0xf]
    %v1153 = vld [vmem:[%s1 + $0x1170] sm:$0xf]
    %v1154 = vld [vmem:[%s1 + $0x1174] sm:$0xf]
    %v1155 = vld [vmem:[%s1 + $0x1178] sm:$0xf]
    %v1156 = vld [vmem:[%s1 + $0x117c] sm:$0xf]
    %v1157 = vld [vmem:[%s1 + $0x1180] sm:$0xf]
    %v1158 = vld [vmem:[%s1 + $0x1184] sm:$0xf]
    %v1159 = vld [vmem:[%s1 + $0x1188] sm:$0xf]
    %v1160 = vld [vmem:[%s1 + $0x118c] sm:$0xf]
    %v1161 = vld [vmem:[%s1 + $0x1190] sm:$0xf]
    %v1162 = vld [vmem:[%s1 + $0x1194] sm:$0xf]
    %v1163 = vld [vmem:[%s1 + $0x1198] sm:$0xf]
    %v1164 = vld [vmem:[%s1 + $0x119c] sm:$0xf]
    %v1165 = vld [vmem:[%s1 + $0x11a0] sm:$0xf]
    %v1166 = vld [vmem:[%s1 + $0x11a4] sm:$0xf]
    %v1167 = vld [vmem:[%s1 + $0x11a8] sm:$0xf]
    %v1168 = vld [vmem:[%s1 + $0x11ac] sm:$0xf]
    %v1169 = vld [vmem:[%s1 + $0x11b0] sm:$0xf]
    %v1170 = vld [vmem:[%s1 + $0x11b4] sm:$0xf]
    %v1171 = vld [vmem:[%s1 + $0x11b8] sm:$0xf]
    %v1172 = vld [vmem:[%s1 + $0x11bc] sm:$0xf]
    %v1173 = vld [vmem:[%s1 + $0x11c0] sm:$0xf]
    %v1174 = vld [vmem:[%s1 + $0x11c4] sm:$0xf]
    %v1175 = vld [vmem:[%s1 + $0x11c8] sm:$0xf]
    %v1176 = vld [vmem:[%s1 + $0x11cc] sm:$0xf]
    %v1177 = vld [vmem:[%s1 + $0x11d0] sm:$0xf]
    %v1178 = vld [vmem:[%s1 + $0x11d4] sm:$0xf]
    %v1179 = vld [vmem:[%s1 + $0x11d8] sm:$0xf]
    %v1180 = vld [vmem:[%s1 + $0x11dc] sm:$0xf]
    %v1181 = vld [vmem:[%s1 + $0x11e0] sm:$0xf]
    %v1182 = vld [vmem:[%s1 + $0x11e4] sm:$0xf]
    %v1183 = vld [vmem:[%s1 + $0x11e8] sm:$0xf]
    %v1184 = vld [vmem:[%s1 + $0x11ec] sm:$0xf]
    %v1185 = vld [vmem:[%s1 + $0x11f0] sm:$0xf]
    %v1186 = vld [vmem:[%s1 + $0x11f4] sm:$0xf]
    %v1187 = vld [vmem:[%s1 + $0x11f8] sm:$0xf]
    %v1188 = vld [vmem:[%s1 + $0x11fc] sm:$0xf]
    %v1189 = vld [vmem:[%s2] sm:$0x1]
    %v1191 = vlaneseq
    %v1192 = vshrl.u32 %v1191, 7
    %v1193 = vsub.s32 0, %v1192
    %v1194 = vrot.slane %v1189, %v1193
    %v1205 = vcombine.high %v28, %v28
    %v1207 = vunpack.c.l.s4 1966171168
    %v1208 = vunpack.c.0.s8 %v1207
    %v1209 = vlaneseq
    %v1210 = vshrl.u32 %v1209, 7
    %v1211 = vsub.s32 %v1208, %v1210
    %v1212 = vrot.slane %v28, %v1211
    %v1214 = vunpack.c.l.s4 1966171168
    %v1215 = vunpack.c.0.s8 %v1214
    %v1216 = vlaneseq
    %v1217 = vshrl.u32 %v1216, 7
    %v1218 = vsub.s32 %v1215, %v1217
    %v1219 = vrot.slane %v1205, %v1218
    %v1220 = vcombine.high %v1212, %v1212
    %v1221 = vcombine.high %v1219, %v1219
    %v1223 = vunpack.c.l.s4 1966171168
    %v1224 = vunpack.c.0.s8 %v1223
    %v1225 = vlaneseq
    %v1226 = vshrl.u32 %v1225, 7
    %v1227 = vsub.s32 %v1224, %v1226
    %v1228 = vrot.slane %v1212, %v1227
    %v1230 = vunpack.c.l.s4 1966171168
    %v1231 = vunpack.c.0.s8 %v1230
    %v1232 = vlaneseq
    %v1233 = vshrl.u32 %v1232, 7
    %v1234 = vsub.s32 %v1231, %v1233
    %v1235 = vrot.slane %v1219, %v1234
    %v1237 = vunpack.c.l.s4 1966171168
    %v1238 = vunpack.c.0.s8 %v1237
    %v1239 = vlaneseq
    %v1240 = vshrl.u32 %v1239, 7
    %v1241 = vsub.s32 %v1238, %v1240
    %v1242 = vrot.slane %v1220, %v1241
    %v1244 = vunpack.c.l.s4 1966171168
    %v1245 = vunpack.c.0.s8 %v1244
    %v1246 = vlaneseq
    %v1247 = vshrl.u32 %v1246, 7
    %v1248 = vsub.s32 %v1245, %v1247
    %v1249 = vrot.slane %v1221, %v1248
    %v1250 = vcombine.high %v1228, %v1228
    %v1251 = vcombine.high %v1235, %v1235
    %v1252 = vcombine.high %v1242, %v1242
    %v1253 = vcombine.high %v1249, %v1249
    %v1254 = vcombine.high %v29, %v29
    %v1256 = vunpack.c.l.s4 1966171168
    %v1257 = vunpack.c.0.s8 %v1256
    %v1258 = vlaneseq
    %v1259 = vshrl.u32 %v1258, 7
    %v1260 = vsub.s32 %v1257, %v1259
    %v1261 = vrot.slane %v29, %v1260
    %v1263 = vunpack.c.l.s4 1966171168
    %v1264 = vunpack.c.0.s8 %v1263
    %v1265 = vlaneseq
    %v1266 = vshrl.u32 %v1265, 7
    %v1267 = vsub.s32 %v1264, %v1266
    %v1268 = vrot.slane %v1254, %v1267
    %v1269 = vcombine.high %v1261, %v1261
    %v1270 = vcombine.high %v1268, %v1268
    %v1272 = vunpack.c.l.s4 1966171168
    %v1273 = vunpack.c.0.s8 %v1272
    %v1274 = vlaneseq
    %v1275 = vshrl.u32 %v1274, 7
    %v1276 = vsub.s32 %v1273, %v1275
    %v1277 = vrot.slane %v1261, %v1276
    %v1279 = vunpack.c.l.s4 1966171168
    %v1280 = vunpack.c.0.s8 %v1279
    %v1281 = vlaneseq
    %v1282 = vshrl.u32 %v1281, 7
    %v1283 = vsub.s32 %v1280, %v1282
    %v1284 = vrot.slane %v1268, %v1283
    %v1286 = vunpack.c.l.s4 1966171168
    %v1287 = vunpack.c.0.s8 %v1286
    %v1288 = vlaneseq
    %v1289 = vshrl.u32 %v1288, 7
    %v1290 = vsub.s32 %v1287, %v1289
    %v1291 = vrot.slane %v1269, %v1290
    %v1293 = vunpack.c.l.s4 1966171168
    %v1294 = vunpack.c.0.s8 %v1293
    %v1295 = vlaneseq
    %v1296 = vshrl.u32 %v1295, 7
    %v1297 = vsub.s32 %v1294, %v1296
    %v1298 = vrot.slane %v1270, %v1297
    %v1299 = vcombine.high %v1277, %v1277
    %v1300 = vcombine.high %v1284, %v1284
    %v1301 = vcombine.high %v1291, %v1291
    %v1302 = vcombine.high %v1298, %v1298
    %v1303 = vcombine.high %v30, %v30
    %v1305 = vunpack.c.l.s4 1966171168
    %v1306 = vunpack.c.0.s8 %v1305
    %v1307 = vlaneseq
    %v1308 = vshrl.u32 %v1307, 7
    %v1309 = vsub.s32 %v1306, %v1308
    %v1310 = vrot.slane %v30, %v1309
    %v1312 = vunpack.c.l.s4 1966171168
    %v1313 = vunpack.c.0.s8 %v1312
    %v1314 = vlaneseq
    %v1315 = vshrl.u32 %v1314, 7
    %v1316 = vsub.s32 %v1313, %v1315
    %v1317 = vrot.slane %v1303, %v1316
    %v1318 = vcombine.high %v1310, %v1310
    %v1319 = vcombine.high %v1317, %v1317
    %v1321 = vunpack.c.l.s4 1966171168
    %v1322 = vunpack.c.0.s8 %v1321
    %v1323 = vlaneseq
    %v1324 = vshrl.u32 %v1323, 7
    %v1325 = vsub.s32 %v1322, %v1324
    %v1326 = vrot.slane %v1310, %v1325
    %v1328 = vunpack.c.l.s4 1966171168
    %v1329 = vunpack.c.0.s8 %v1328
    %v1330 = vlaneseq
    %v1331 = vshrl.u32 %v1330, 7
    %v1332 = vsub.s32 %v1329, %v1331
    %v1333 = vrot.slane %v1317, %v1332
    %v1335 = vunpack.c.l.s4 1966171168
    %v1336 = vunpack.c.0.s8 %v1335
    %v1337 = vlaneseq
    %v1338 = vshrl.u32 %v1337, 7
    %v1339 = vsub.s32 %v1336, %v1338
    %v1340 = vrot.slane %v1318, %v1339
    %v1342 = vunpack.c.l.s4 1966171168
    %v1343 = vunpack.c.0.s8 %v1342
    %v1344 = vlaneseq
    %v1345 = vshrl.u32 %v1344, 7
    %v1346 = vsub.s32 %v1343, %v1345
    %v1347 = vrot.slane %v1319, %v1346
    %v1348 = vcombine.high %v1326, %v1326
    %v1349 = vcombine.high %v1333, %v1333
    %v1350 = vcombine.high %v1340, %v1340
    %v1351 = vcombine.high %v1347, %v1347
    %v1352 = vcombine.high %v31, %v31
    %v1354 = vunpack.c.l.s4 1966171168
    %v1355 = vunpack.c.0.s8 %v1354
    %v1356 = vlaneseq
    %v1357 = vshrl.u32 %v1356, 7
    %v1358 = vsub.s32 %v1355, %v1357
    %v1359 = vrot.slane %v31, %v1358
    %v1361 = vunpack.c.l.s4 1966171168
    %v1362 = vunpack.c.0.s8 %v1361
    %v1363 = vlaneseq
    %v1364 = vshrl.u32 %v1363, 7
    %v1365 = vsub.s32 %v1362, %v1364
    %v1366 = vrot.slane %v1352, %v1365
    %v1367 = vcombine.high %v1359, %v1359
    %v1368 = vcombine.high %v1366, %v1366
    %v1370 = vunpack.c.l.s4 1966171168
    %v1371 = vunpack.c.0.s8 %v1370
    %v1372 = vlaneseq
    %v1373 = vshrl.u32 %v1372, 7
    %v1374 = vsub.s32 %v1371, %v1373
    %v1375 = vrot.slane %v1359, %v1374
    %v1377 = vunpack.c.l.s4 1966171168
    %v1378 = vunpack.c.0.s8 %v1377
    %v1379 = vlaneseq
    %v1380 = vshrl.u32 %v1379, 7
    %v1381 = vsub.s32 %v1378, %v1380
    %v1382 = vrot.slane %v1366, %v1381
    %v1384 = vunpack.c.l.s4 1966171168
    %v1385 = vunpack.c.0.s8 %v1384
    %v1386 = vlaneseq
    %v1387 = vshrl.u32 %v1386, 7
    %v1388 = vsub.s32 %v1385, %v1387
    %v1389 = vrot.slane %v1367, %v1388
    %v1391 = vunpack.c.l.s4 1966171168
    %v1392 = vunpack.c.0.s8 %v1391
    %v1393 = vlaneseq
    %v1394 = vshrl.u32 %v1393, 7
    %v1395 = vsub.s32 %v1392, %v1394
    %v1396 = vrot.slane %v1368, %v1395
    %v1397 = vcombine.high %v1375, %v1375
    %v1398 = vcombine.high %v1382, %v1382
    %v1399 = vcombine.high %v1389, %v1389
    %v1400 = vcombine.high %v1396, %v1396
    %v1401 = vcombine.high %v32, %v32
    %v1403 = vunpack.c.l.s4 1966171168
    %v1404 = vunpack.c.0.s8 %v1403
    %v1405 = vlaneseq
    %v1406 = vshrl.u32 %v1405, 7
    %v1407 = vsub.s32 %v1404, %v1406
    %v1408 = vrot.slane %v32, %v1407
    %v1410 = vunpack.c.l.s4 1966171168
    %v1411 = vunpack.c.0.s8 %v1410
    %v1412 = vlaneseq
    %v1413 = vshrl.u32 %v1412, 7
    %v1414 = vsub.s32 %v1411, %v1413
    %v1415 = vrot.slane %v1401, %v1414
    %v1416 = vcombine.high %v1408, %v1408
    %v1417 = vcombine.high %v1415, %v1415
    %v1419 = vunpack.c.l.s4 1966171168
    %v1420 = vunpack.c.0.s8 %v1419
    %v1421 = vlaneseq
    %v1422 = vshrl.u32 %v1421, 7
    %v1423 = vsub.s32 %v1420, %v1422
    %v1424 = vrot.slane %v1408, %v1423
    %v1426 = vunpack.c.l.s4 1966171168
    %v1427 = vunpack.c.0.s8 %v1426
    %v1428 = vlaneseq
    %v1429 = vshrl.u32 %v1428, 7
    %v1430 = vsub.s32 %v1427, %v1429
    %v1431 = vrot.slane %v1415, %v1430
    %v1433 = vunpack.c.l.s4 1966171168
    %v1434 = vunpack.c.0.s8 %v1433
    %v1435 = vlaneseq
    %v1436 = vshrl.u32 %v1435, 7
    %v1437 = vsub.s32 %v1434, %v1436
    %v1438 = vrot.slane %v1416, %v1437
    %v1440 = vunpack.c.l.s4 1966171168
    %v1441 = vunpack.c.0.s8 %v1440
    %v1442 = vlaneseq
    %v1443 = vshrl.u32 %v1442, 7
    %v1444 = vsub.s32 %v1441, %v1443
    %v1445 = vrot.slane %v1417, %v1444
    %v1446 = vcombine.high %v1424, %v1424
    %v1447 = vcombine.high %v1431, %v1431
    %v1448 = vcombine.high %v1438, %v1438
    %v1449 = vcombine.high %v1445, %v1445
    %v1450 = vcombine.high %v33, %v33
    %v1452 = vunpack.c.l.s4 1966171168
    %v1453 = vunpack.c.0.s8 %v1452
    %v1454 = vlaneseq
    %v1455 = vshrl.u32 %v1454, 7
    %v1456 = vsub.s32 %v1453, %v1455
    %v1457 = vrot.slane %v33, %v1456
    %v1459 = vunpack.c.l.s4 1966171168
    %v1460 = vunpack.c.0.s8 %v1459
    %v1461 = vlaneseq
    %v1462 = vshrl.u32 %v1461, 7
    %v1463 = vsub.s32 %v1460, %v1462
    %v1464 = vrot.slane %v1450, %v1463
    %v1465 = vcombine.high %v1457, %v1457
    %v1466 = vcombine.high %v1464, %v1464
    %v1468 = vunpack.c.l.s4 1966171168
    %v1469 = vunpack.c.0.s8 %v1468
    %v1470 = vlaneseq
    %v1471 = vshrl.u32 %v1470, 7
    %v1472 = vsub.s32 %v1469, %v1471
    %v1473 = vrot.slane %v1457, %v1472
    %v1475 = vunpack.c.l.s4 1966171168
    %v1476 = vunpack.c.0.s8 %v1475
    %v1477 = vlaneseq
    %v1478 = vshrl.u32 %v1477, 7
    %v1479 = vsub.s32 %v1476, %v1478
    %v1480 = vrot.slane %v1464, %v1479
    %v1482 = vunpack.c.l.s4 1966171168
    %v1483 = vunpack.c.0.s8 %v1482
    %v1484 = vlaneseq
    %v1485 = vshrl.u32 %v1484, 7
    %v1486 = vsub.s32 %v1483, %v1485
    %v1487 = vrot.slane %v1465, %v1486
    %v1489 = vunpack.c.l.s4 1966171168
    %v1490 = vunpack.c.0.s8 %v1489
    %v1491 = vlaneseq
    %v1492 = vshrl.u32 %v1491, 7
    %v1493 = vsub.s32 %v1490, %v1492
    %v1494 = vrot.slane %v1466, %v1493
    %v1495 = vcombine.high %v1473, %v1473
    %v1496 = vcombine.high %v1480, %v1480
    %v1497 = vcombine.high %v1487, %v1487
    %v1498 = vcombine.high %v1494, %v1494
    %v1499 = vcombine.high %v34, %v34
    %v1501 = vunpack.c.l.s4 1966171168
    %v1502 = vunpack.c.0.s8 %v1501
    %v1503 = vlaneseq
    %v1504 = vshrl.u32 %v1503, 7
    %v1505 = vsub.s32 %v1502, %v1504
    %v1506 = vrot.slane %v34, %v1505
    %v1508 = vunpack.c.l.s4 1966171168
    %v1509 = vunpack.c.0.s8 %v1508
    %v1510 = vlaneseq
    %v1511 = vshrl.u32 %v1510, 7
    %v1512 = vsub.s32 %v1509, %v1511
    %v1513 = vrot.slane %v1499, %v1512
    %v1514 = vcombine.high %v1506, %v1506
    %v1515 = vcombine.high %v1513, %v1513
    %v1517 = vunpack.c.l.s4 1966171168
    %v1518 = vunpack.c.0.s8 %v1517
    %v1519 = vlaneseq
    %v1520 = vshrl.u32 %v1519, 7
    %v1521 = vsub.s32 %v1518, %v1520
    %v1522 = vrot.slane %v1506, %v1521
    %v1524 = vunpack.c.l.s4 1966171168
    %v1525 = vunpack.c.0.s8 %v1524
    %v1526 = vlaneseq
    %v1527 = vshrl.u32 %v1526, 7
    %v1528 = vsub.s32 %v1525, %v1527
    %v1529 = vrot.slane %v1513, %v1528
    %v1531 = vunpack.c.l.s4 1966171168
    %v1532 = vunpack.c.0.s8 %v1531
    %v1533 = vlaneseq
    %v1534 = vshrl.u32 %v1533, 7
    %v1535 = vsub.s32 %v1532, %v1534
    %v1536 = vrot.slane %v1514, %v1535
    %v1538 = vunpack.c.l.s4 1966171168
    %v1539 = vunpack.c.0.s8 %v1538
    %v1540 = vlaneseq
    %v1541 = vshrl.u32 %v1540, 7
    %v1542 = vsub.s32 %v1539, %v1541
    %v1543 = vrot.slane %v1515, %v1542
    %v1544 = vcombine.high %v1522, %v1522
    %v1545 = vcombine.high %v1529, %v1529
    %v1546 = vcombine.high %v1536, %v1536
    %v1547 = vcombine.high %v1543, %v1543
    %v1548 = vcombine.high %v35, %v35
    %v1550 = vunpack.c.l.s4 1966171168
    %v1551 = vunpack.c.0.s8 %v1550
    %v1552 = vlaneseq
    %v1553 = vshrl.u32 %v1552, 7
    %v1554 = vsub.s32 %v1551, %v1553
    %v1555 = vrot.slane %v35, %v1554
    %v1557 = vunpack.c.l.s4 1966171168
    %v1558 = vunpack.c.0.s8 %v1557
    %v1559 = vlaneseq
    %v1560 = vshrl.u32 %v1559, 7
    %v1561 = vsub.s32 %v1558, %v1560
    %v1562 = vrot.slane %v1548, %v1561
    %v1563 = vcombine.high %v1555, %v1555
    %v1564 = vcombine.high %v1562, %v1562
    %v1566 = vunpack.c.l.s4 1966171168
    %v1567 = vunpack.c.0.s8 %v1566
    %v1568 = vlaneseq
    %v1569 = vshrl.u32 %v1568, 7
    %v1570 = vsub.s32 %v1567, %v1569
    %v1571 = vrot.slane %v1555, %v1570
    %v1573 = vunpack.c.l.s4 1966171168
    %v1574 = vunpack.c.0.s8 %v1573
    %v1575 = vlaneseq
    %v1576 = vshrl.u32 %v1575, 7
    %v1577 = vsub.s32 %v1574, %v1576
    %v1578 = vrot.slane %v1562, %v1577
    %v1580 = vunpack.c.l.s4 1966171168
    %v1581 = vunpack.c.0.s8 %v1580
    %v1582 = vlaneseq
    %v1583 = vshrl.u32 %v1582, 7
    %v1584 = vsub.s32 %v1581, %v1583
    %v1585 = vrot.slane %v1563, %v1584
    %v1587 = vunpack.c.l.s4 1966171168
    %v1588 = vunpack.c.0.s8 %v1587
    %v1589 = vlaneseq
    %v1590 = vshrl.u32 %v1589, 7
    %v1591 = vsub.s32 %v1588, %v1590
    %v1592 = vrot.slane %v1564, %v1591
    %v1593 = vcombine.high %v1571, %v1571
    %v1594 = vcombine.high %v1578, %v1578
    %v1595 = vcombine.high %v1585, %v1585
    %v1596 = vcombine.high %v1592, %v1592
    %v1597 = vcombine.high %v36, %v36
    %v1599 = vunpack.c.l.s4 1966171168
    %v1600 = vunpack.c.0.s8 %v1599
    %v1601 = vlaneseq
    %v1602 = vshrl.u32 %v1601, 7
    %v1603 = vsub.s32 %v1600, %v1602
    %v1604 = vrot.slane %v36, %v1603
    %v1606 = vunpack.c.l.s4 1966171168
    %v1607 = vunpack.c.0.s8 %v1606
    %v1608 = vlaneseq
    %v1609 = vshrl.u32 %v1608, 7
    %v1610 = vsub.s32 %v1607, %v1609
    %v1611 = vrot.slane %v1597, %v1610
    %v1612 = vcombine.high %v1604, %v1604
    %v1613 = vcombine.high %v1611, %v1611
    %v1615 = vunpack.c.l.s4 1966171168
    %v1616 = vunpack.c.0.s8 %v1615
    %v1617 = vlaneseq
    %v1618 = vshrl.u32 %v1617, 7
    %v1619 = vsub.s32 %v1616, %v1618
    %v1620 = vrot.slane %v1604, %v1619
    %v1622 = vunpack.c.l.s4 1966171168
    %v1623 = vunpack.c.0.s8 %v1622
    %v1624 = vlaneseq
    %v1625 = vshrl.u32 %v1624, 7
    %v1626 = vsub.s32 %v1623, %v1625
    %v1627 = vrot.slane %v1611, %v1626
    %v1629 = vunpack.c.l.s4 1966171168
    %v1630 = vunpack.c.0.s8 %v1629
    %v1631 = vlaneseq
    %v1632 = vshrl.u32 %v1631, 7
    %v1633 = vsub.s32 %v1630, %v1632
    %v1634 = vrot.slane %v1612, %v1633
    %v1636 = vunpack.c.l.s4 1966171168
    %v1637 = vunpack.c.0.s8 %v1636
    %v1638 = vlaneseq
    %v1639 = vshrl.u32 %v1638, 7
    %v1640 = vsub.s32 %v1637, %v1639
    %v1641 = vrot.slane %v1613, %v1640
    %v1642 = vcombine.high %v1620, %v1620
    %v1643 = vcombine.high %v1627, %v1627
    %v1644 = vcombine.high %v1634, %v1634
    %v1645 = vcombine.high %v1641, %v1641
    %v2870 = vunpack.c.l.b16 %v37
    %v2871 = vunpack.c.l.b16 %v38
    %v2872 = vunpack.c.l.b16 %v39
    %v2873 = vunpack.c.l.b16 %v40
    %v2874 = vunpack.c.l.b16 %v41
    %v2875 = vunpack.c.l.b16 %v42
    %v2876 = vunpack.c.l.b16 %v43
    %v2877 = vunpack.c.l.b16 %v44
    %v2878 = vunpack.c.l.b16 %v45
    %v2879 = vunpack.c.l.b16 %v46
    %v2880 = vunpack.c.l.b16 %v47
    %v2881 = vunpack.c.l.b16 %v48
    %v2882 = vunpack.c.l.b16 %v49
    %v2883 = vunpack.c.l.b16 %v50
    %v2884 = vunpack.c.l.b16 %v51
    %v2885 = vunpack.c.l.b16 %v52
    %v2886 = vunpack.c.l.b16 %v53
    %v2887 = vunpack.c.l.b16 %v54
    %v2888 = vunpack.c.l.b16 %v55
    %v2889 = vunpack.c.l.b16 %v56
    %v2890 = vunpack.c.l.b16 %v57
    %v2891 = vunpack.c.l.b16 %v58
    %v2892 = vunpack.c.l.b16 %v59
    %v2893 = vunpack.c.l.b16 %v60
    %v2894 = vunpack.c.l.b16 %v61
    %v2895 = vunpack.c.l.b16 %v62
    %v2896 = vunpack.c.l.b16 %v63
    %v2897 = vunpack.c.l.b16 %v64
    %v2898 = vunpack.c.l.b16 %v65
    %v2899 = vunpack.c.l.b16 %v66
    %v2900 = vunpack.c.l.b16 %v67
    %v2901 = vunpack.c.l.b16 %v68
    %v2902 = vunpack.c.l.b16 %v69
    %v2903 = vunpack.c.l.b16 %v70
    %v2904 = vunpack.c.l.b16 %v71
    %v2905 = vunpack.c.l.b16 %v72
    %v2906 = vunpack.c.l.b16 %v73
    %v2907 = vunpack.c.l.b16 %v74
    %v2908 = vunpack.c.l.b16 %v75
    %v2909 = vunpack.c.l.b16 %v76
    %v2910 = vunpack.c.l.b16 %v77
    %v2911 = vunpack.c.l.b16 %v78
    %v2912 = vunpack.c.l.b16 %v79
    %v2913 = vunpack.c.l.b16 %v80
    %v2914 = vunpack.c.l.b16 %v81
    %v2915 = vunpack.c.l.b16 %v82
    %v2916 = vunpack.c.l.b16 %v83
    %v2917 = vunpack.c.l.b16 %v84
    %v2918 = vunpack.c.l.b16 %v85
    %v2919 = vunpack.c.l.b16 %v86
    %v2920 = vunpack.c.l.b16 %v87
    %v2921 = vunpack.c.l.b16 %v88
    %v2922 = vunpack.c.l.b16 %v89
    %v2923 = vunpack.c.l.b16 %v90
    %v2924 = vunpack.c.l.b16 %v91
    %v2925 = vunpack.c.l.b16 %v92
    %v2926 = vunpack.c.l.b16 %v93
    %v2927 = vunpack.c.l.b16 %v94
    %v2928 = vunpack.c.l.b16 %v95
    %v2929 = vunpack.c.l.b16 %v96
    %v2930 = vunpack.c.l.b16 %v97
    %v2931 = vunpack.c.l.b16 %v98
    %v2932 = vunpack.c.l.b16 %v99
    %v2933 = vunpack.c.l.b16 %v100
    %v2934 = vunpack.c.l.b16 %v101
    %v2935 = vunpack.c.l.b16 %v102
    %v2936 = vunpack.c.l.b16 %v103
    %v2937 = vunpack.c.l.b16 %v104
    %v2938 = vunpack.c.l.b16 %v105
    %v2939 = vunpack.c.l.b16 %v106
    %v2940 = vunpack.c.l.b16 %v107
    %v2941 = vunpack.c.l.b16 %v108
    %v2942 = vunpack.c.l.b16 %v109
    %v2943 = vunpack.c.l.b16 %v110
    %v2944 = vunpack.c.l.b16 %v111
    %v2945 = vunpack.c.l.b16 %v112
    %v2946 = vunpack.c.l.b16 %v113
    %v2947 = vunpack.c.l.b16 %v114
    %v2948 = vunpack.c.l.b16 %v115
    %v2949 = vunpack.c.l.b16 %v116
    %v2950 = vunpack.c.l.b16 %v117
    %v2951 = vunpack.c.l.b16 %v118
    %v2952 = vunpack.c.l.b16 %v119
    %v2953 = vunpack.c.l.b16 %v120
    %v2954 = vunpack.c.l.b16 %v121
    %v2955 = vunpack.c.l.b16 %v122
    %v2956 = vunpack.c.l.b16 %v123
    %v2957 = vunpack.c.l.b16 %v124
    %v2958 = vunpack.c.l.b16 %v125
    %v2959 = vunpack.c.l.b16 %v126
    %v2960 = vunpack.c.l.b16 %v127
    %v2961 = vunpack.c.l.b16 %v128
    %v2962 = vunpack.c.l.b16 %v129
    %v2963 = vunpack.c.l.b16 %v130
    %v2964 = vunpack.c.l.b16 %v131
    %v2965 = vunpack.c.l.b16 %v132
    %v2966 = vunpack.c.l.b16 %v133
    %v2967 = vunpack.c.l.b16 %v134
    %v2968 = vunpack.c.l.b16 %v135
    %v2969 = vunpack.c.l.b16 %v136
    %v2970 = vunpack.c.l.b16 %v137
    %v2971 = vunpack.c.l.b16 %v138
    %v2972 = vunpack.c.l.b16 %v139
    %v2973 = vunpack.c.l.b16 %v140
    %v2974 = vunpack.c.l.b16 %v141
    %v2975 = vunpack.c.l.b16 %v142
    %v2976 = vunpack.c.l.b16 %v143
    %v2977 = vunpack.c.l.b16 %v144
    %v2978 = vunpack.c.l.b16 %v145
    %v2979 = vunpack.c.l.b16 %v146
    %v2980 = vunpack.c.l.b16 %v147
    %v2981 = vunpack.c.l.b16 %v148
    %v2982 = vunpack.c.l.b16 %v149
    %v2983 = vunpack.c.l.b16 %v150
    %v2984 = vunpack.c.l.b16 %v151
    %v2985 = vunpack.c.l.b16 %v152
    %v2986 = vunpack.c.l.b16 %v153
    %v2987 = vunpack.c.l.b16 %v154
    %v2988 = vunpack.c.l.b16 %v155
    %v2989 = vunpack.c.l.b16 %v156
    %v2990 = vunpack.c.l.b16 %v157
    %v2991 = vunpack.c.l.b16 %v158
    %v2992 = vunpack.c.l.b16 %v159
    %v2993 = vunpack.c.l.b16 %v160
    %v2994 = vunpack.c.l.b16 %v161
    %v2995 = vunpack.c.l.b16 %v162
    %v2996 = vunpack.c.l.b16 %v163
    %v2997 = vunpack.c.l.b16 %v164
    %v2998 = vunpack.c.l.b16 %v165
    %v2999 = vunpack.c.l.b16 %v166
    %v3000 = vunpack.c.l.b16 %v167
    %v3001 = vunpack.c.l.b16 %v168
    %v3002 = vunpack.c.l.b16 %v169
    %v3003 = vunpack.c.l.b16 %v170
    %v3004 = vunpack.c.l.b16 %v171
    %v3005 = vunpack.c.l.b16 %v172
    %v3006 = vunpack.c.l.b16 %v173
    %v3007 = vunpack.c.l.b16 %v174
    %v3008 = vunpack.c.l.b16 %v175
    %v3009 = vunpack.c.l.b16 %v176
    %v3010 = vunpack.c.l.b16 %v177
    %v3011 = vunpack.c.l.b16 %v178
    %v3012 = vunpack.c.l.b16 %v179
    %v3013 = vunpack.c.l.b16 %v180
    %v3014 = vunpack.c.l.b16 %v181
    %v3015 = vunpack.c.l.b16 %v182
    %v3016 = vunpack.c.l.b16 %v183
    %v3017 = vunpack.c.l.b16 %v184
    %v3018 = vunpack.c.l.b16 %v185
    %v3019 = vunpack.c.l.b16 %v186
    %v3020 = vunpack.c.l.b16 %v187
    %v3021 = vunpack.c.l.b16 %v188
    %v3022 = vunpack.c.l.b16 %v189
    %v3023 = vunpack.c.l.b16 %v190
    %v3024 = vunpack.c.l.b16 %v191
    %v3025 = vunpack.c.l.b16 %v192
    %v3026 = vunpack.c.l.b16 %v193
    %v3027 = vunpack.c.l.b16 %v194
    %v3028 = vunpack.c.l.b16 %v195
    %v3029 = vunpack.c.l.b16 %v196
    %v3030 = vunpack.c.l.b16 %v197
    %v3031 = vunpack.c.l.b16 %v198
    %v3032 = vunpack.c.l.b16 %v199
    %v3033 = vunpack.c.l.b16 %v200
    %v3034 = vunpack.c.l.b16 %v201
    %v3035 = vunpack.c.l.b16 %v202
    %v3036 = vunpack.c.l.b16 %v203
    %v3037 = vunpack.c.l.b16 %v204
    %v3038 = vunpack.c.l.b16 %v205
    %v3039 = vunpack.c.l.b16 %v206
    %v3040 = vunpack.c.l.b16 %v207
    %v3041 = vunpack.c.l.b16 %v208
    %v3042 = vunpack.c.l.b16 %v209
    %v3043 = vunpack.c.l.b16 %v210
    %v3044 = vunpack.c.l.b16 %v211
    %v3045 = vunpack.c.l.b16 %v212
    %v3046 = vunpack.c.l.b16 %v213
    %v3047 = vunpack.c.l.b16 %v214
    %v3048 = vunpack.c.l.b16 %v215
    %v3049 = vunpack.c.l.b16 %v216
    %v3050 = vunpack.c.l.b16 %v217
    %v3051 = vunpack.c.l.b16 %v218
    %v3052 = vunpack.c.l.b16 %v219
    %v3053 = vunpack.c.l.b16 %v220
    %v3054 = vunpack.c.l.b16 %v221
    %v3055 = vunpack.c.l.b16 %v222
    %v3056 = vunpack.c.l.b16 %v223
    %v3057 = vunpack.c.l.b16 %v224
    %v3058 = vunpack.c.l.b16 %v225
    %v3059 = vunpack.c.l.b16 %v226
    %v3060 = vunpack.c.l.b16 %v227
    %v3061 = vunpack.c.l.b16 %v228
    %v3062 = vunpack.c.l.b16 %v229
    %v3063 = vunpack.c.l.b16 %v230
    %v3064 = vunpack.c.l.b16 %v231
    %v3065 = vunpack.c.l.b16 %v232
    %v3066 = vunpack.c.l.b16 %v233
    %v3067 = vunpack.c.l.b16 %v234
    %v3068 = vunpack.c.l.b16 %v235
    %v3069 = vunpack.c.l.b16 %v236
    %v3070 = vunpack.c.l.b16 %v237
    %v3071 = vunpack.c.l.b16 %v238
    %v3072 = vunpack.c.l.b16 %v239
    %v3073 = vunpack.c.l.b16 %v240
    %v3074 = vunpack.c.l.b16 %v241
    %v3075 = vunpack.c.l.b16 %v242
    %v3076 = vunpack.c.l.b16 %v243
    %v3077 = vunpack.c.l.b16 %v244
    %v3078 = vunpack.c.l.b16 %v245
    %v3079 = vunpack.c.l.b16 %v246
    %v3080 = vunpack.c.l.b16 %v247
    %v3081 = vunpack.c.l.b16 %v248
    %v3082 = vunpack.c.l.b16 %v249
    %v3083 = vunpack.c.l.b16 %v250
    %v3084 = vunpack.c.l.b16 %v251
    %v3085 = vunpack.c.l.b16 %v252
    %v3086 = vunpack.c.l.b16 %v253
    %v3087 = vunpack.c.l.b16 %v254
    %v3088 = vunpack.c.l.b16 %v255
    %v3089 = vunpack.c.l.b16 %v256
    %v3090 = vunpack.c.l.b16 %v257
    %v3091 = vunpack.c.l.b16 %v258
    %v3092 = vunpack.c.l.b16 %v259
    %v3093 = vunpack.c.l.b16 %v260
    %v3094 = vunpack.c.l.b16 %v261
    %v3095 = vunpack.c.l.b16 %v262
    %v3096 = vunpack.c.l.b16 %v263
    %v3097 = vunpack.c.l.b16 %v264
    %v3098 = vunpack.c.l.b16 %v265
    %v3099 = vunpack.c.l.b16 %v266
    %v3100 = vunpack.c.l.b16 %v267
    %v3101 = vunpack.c.l.b16 %v268
    %v3102 = vunpack.c.l.b16 %v269
    %v3103 = vunpack.c.l.b16 %v270
    %v3104 = vunpack.c.l.b16 %v271
    %v3105 = vunpack.c.l.b16 %v272
    %v3106 = vunpack.c.l.b16 %v273
    %v3107 = vunpack.c.l.b16 %v274
    %v3108 = vunpack.c.l.b16 %v275
    %v3109 = vunpack.c.l.b16 %v276
    %v3110 = vunpack.c.l.b16 %v277
    %v3111 = vunpack.c.l.b16 %v278
    %v3112 = vunpack.c.l.b16 %v279
    %v3113 = vunpack.c.l.b16 %v280
    %v3114 = vunpack.c.l.b16 %v281
    %v3115 = vunpack.c.l.b16 %v282
    %v3116 = vunpack.c.l.b16 %v283
    %v3117 = vunpack.c.l.b16 %v284
    %v3118 = vunpack.c.l.b16 %v285
    %v3119 = vunpack.c.l.b16 %v286
    %v3120 = vunpack.c.l.b16 %v287
    %v3121 = vunpack.c.l.b16 %v288
    %v3122 = vunpack.c.l.b16 %v289
    %v3123 = vunpack.c.l.b16 %v290
    %v3124 = vunpack.c.l.b16 %v291
    %v3125 = vunpack.c.l.b16 %v292
    %v3126 = vunpack.c.l.b16 %v293
    %v3127 = vunpack.c.l.b16 %v294
    %v3128 = vunpack.c.l.b16 %v295
    %v3129 = vunpack.c.l.b16 %v296
    %v3130 = vunpack.c.l.b16 %v297
    %v3131 = vunpack.c.l.b16 %v298
    %v3132 = vunpack.c.l.b16 %v299
    %v3133 = vunpack.c.l.b16 %v300
    %v3134 = vunpack.c.l.b16 %v301
    %v3135 = vunpack.c.l.b16 %v302
    %v3136 = vunpack.c.l.b16 %v303
    %v3137 = vunpack.c.l.b16 %v304
    %v3138 = vunpack.c.l.b16 %v305
    %v3139 = vunpack.c.l.b16 %v306
    %v3140 = vunpack.c.l.b16 %v307
    %v3141 = vunpack.c.l.b16 %v308
    %v3142 = vunpack.c.l.b16 %v309
    %v3143 = vunpack.c.l.b16 %v310
    %v3144 = vunpack.c.l.b16 %v311
    %v3145 = vunpack.c.l.b16 %v312
    %v3146 = vunpack.c.l.b16 %v313
    %v3147 = vunpack.c.l.b16 %v314
    %v3148 = vunpack.c.l.b16 %v315
    %v3149 = vunpack.c.l.b16 %v316
    %v3150 = vunpack.c.l.b16 %v317
    %v3151 = vunpack.c.l.b16 %v318
    %v3152 = vunpack.c.l.b16 %v319
    %v3153 = vunpack.c.l.b16 %v320
    %v3154 = vunpack.c.l.b16 %v321
    %v3155 = vunpack.c.l.b16 %v322
    %v3156 = vunpack.c.l.b16 %v323
    %v3157 = vunpack.c.l.b16 %v324
    %v3158 = vunpack.c.l.b16 %v325
    %v3159 = vunpack.c.l.b16 %v326
    %v3160 = vunpack.c.l.b16 %v327
    %v3161 = vunpack.c.l.b16 %v328
    %v3162 = vunpack.c.l.b16 %v329
    %v3163 = vunpack.c.l.b16 %v330
    %v3164 = vunpack.c.l.b16 %v331
    %v3165 = vunpack.c.l.b16 %v332
    %v3166 = vunpack.c.l.b16 %v333
    %v3167 = vunpack.c.l.b16 %v334
    %v3168 = vunpack.c.l.b16 %v335
    %v3169 = vunpack.c.l.b16 %v336
    %v3170 = vunpack.c.l.b16 %v337
    %v3171 = vunpack.c.l.b16 %v338
    %v3172 = vunpack.c.l.b16 %v339
    %v3173 = vunpack.c.l.b16 %v340
    %v3174 = vunpack.c.l.b16 %v341
    %v3175 = vunpack.c.l.b16 %v342
    %v3176 = vunpack.c.l.b16 %v343
    %v3177 = vunpack.c.l.b16 %v344
    %v3178 = vunpack.c.l.b16 %v345
    %v3179 = vunpack.c.l.b16 %v346
    %v3180 = vunpack.c.l.b16 %v347
    %v3181 = vunpack.c.l.b16 %v348
    %v3182 = vunpack.c.l.b16 %v349
    %v3183 = vunpack.c.l.b16 %v350
    %v3184 = vunpack.c.l.b16 %v351
    %v3185 = vunpack.c.l.b16 %v352
    %v3186 = vunpack.c.l.b16 %v353
    %v3187 = vunpack.c.l.b16 %v354
    %v3188 = vunpack.c.l.b16 %v355
    %v3189 = vunpack.c.l.b16 %v356
    %v3190 = vunpack.c.l.b16 %v357
    %v3191 = vunpack.c.l.b16 %v358
    %v3192 = vunpack.c.l.b16 %v359
    %v3193 = vunpack.c.l.b16 %v360
    %v3194 = vunpack.c.l.b16 %v361
    %v3195 = vunpack.c.l.b16 %v362
    %v3196 = vunpack.c.l.b16 %v363
    %v3197 = vunpack.c.l.b16 %v364
    %v3198 = vunpack.c.l.b16 %v365
    %v3199 = vunpack.c.l.b16 %v366
    %v3200 = vunpack.c.l.b16 %v367
    %v3201 = vunpack.c.l.b16 %v368
    %v3202 = vunpack.c.l.b16 %v369
    %v3203 = vunpack.c.l.b16 %v370
    %v3204 = vunpack.c.l.b16 %v371
    %v3205 = vunpack.c.l.b16 %v372
    %v3206 = vunpack.c.l.b16 %v373
    %v3207 = vunpack.c.l.b16 %v374
    %v3208 = vunpack.c.l.b16 %v375
    %v3209 = vunpack.c.l.b16 %v376
    %v3210 = vunpack.c.l.b16 %v377
    %v3211 = vunpack.c.l.b16 %v378
    %v3212 = vunpack.c.l.b16 %v379
    %v3213 = vunpack.c.l.b16 %v380
    %v3214 = vunpack.c.l.b16 %v381
    %v3215 = vunpack.c.l.b16 %v382
    %v3216 = vunpack.c.l.b16 %v383
    %v3217 = vunpack.c.l.b16 %v384
    %v3218 = vunpack.c.l.b16 %v385
    %v3219 = vunpack.c.l.b16 %v386
    %v3220 = vunpack.c.l.b16 %v387
    %v3221 = vunpack.c.l.b16 %v388
    %v3222 = vunpack.c.l.b16 %v389
    %v3223 = vunpack.c.l.b16 %v390
    %v3224 = vunpack.c.l.b16 %v391
    %v3225 = vunpack.c.l.b16 %v392
    %v3226 = vunpack.c.l.b16 %v393
    %v3227 = vunpack.c.l.b16 %v394
    %v3228 = vunpack.c.l.b16 %v395
    %v3229 = vunpack.c.l.b16 %v396
    %v3230 = vunpack.c.l.b16 %v397
    %v3231 = vunpack.c.l.b16 %v398
    %v3232 = vunpack.c.l.b16 %v399
    %v3233 = vunpack.c.l.b16 %v400
    %v3234 = vunpack.c.l.b16 %v401
    %v3235 = vunpack.c.l.b16 %v402
    %v3236 = vunpack.c.l.b16 %v403
    %v3237 = vunpack.c.l.b16 %v404
    %v3238 = vunpack.c.l.b16 %v405
    %v3239 = vunpack.c.l.b16 %v406
    %v3240 = vunpack.c.l.b16 %v407
    %v3241 = vunpack.c.l.b16 %v408
    %v3242 = vunpack.c.l.b16 %v409
    %v3243 = vunpack.c.l.b16 %v410
    %v3244 = vunpack.c.l.b16 %v411
    %v3245 = vunpack.c.l.b16 %v412
    %v3246 = vunpack.c.l.b16 %v413
    %v3247 = vunpack.c.l.b16 %v414
    %v3248 = vunpack.c.l.b16 %v415
    %v3249 = vunpack.c.l.b16 %v416
    %v3250 = vunpack.c.l.b16 %v417
    %v3251 = vunpack.c.l.b16 %v418
    %v3252 = vunpack.c.l.b16 %v419
    %v3253 = vunpack.c.l.b16 %v420
    %v3254 = vunpack.c.l.b16 %v421
    %v3255 = vunpack.c.l.b16 %v422
    %v3256 = vunpack.c.l.b16 %v423
    %v3257 = vunpack.c.l.b16 %v424
    %v3258 = vunpack.c.l.b16 %v425
    %v3259 = vunpack.c.l.b16 %v426
    %v3260 = vunpack.c.l.b16 %v427
    %v3261 = vunpack.c.l.b16 %v428
    %v3262 = vunpack.c.l.b16 %v429
    %v3263 = vunpack.c.l.b16 %v430
    %v3264 = vunpack.c.l.b16 %v431
    %v3265 = vunpack.c.l.b16 %v432
    %v3266 = vunpack.c.l.b16 %v433
    %v3267 = vunpack.c.l.b16 %v434
    %v3268 = vunpack.c.l.b16 %v435
    %v3269 = vunpack.c.l.b16 %v436
    %v3270 = vunpack.c.l.b16 %v437
    %v3271 = vunpack.c.l.b16 %v438
    %v3272 = vunpack.c.l.b16 %v439
    %v3273 = vunpack.c.l.b16 %v440
    %v3274 = vunpack.c.l.b16 %v441
    %v3275 = vunpack.c.l.b16 %v442
    %v3276 = vunpack.c.l.b16 %v443
    %v3277 = vunpack.c.l.b16 %v444
    %v3278 = vunpack.c.l.b16 %v445
    %v3279 = vunpack.c.l.b16 %v446
    %v3280 = vunpack.c.l.b16 %v447
    %v3281 = vunpack.c.l.b16 %v448
    %v3282 = vunpack.c.l.b16 %v449
    %v3283 = vunpack.c.l.b16 %v450
    %v3284 = vunpack.c.l.b16 %v451
    %v3285 = vunpack.c.l.b16 %v452
    %v3286 = vunpack.c.l.b16 %v453
    %v3287 = vunpack.c.l.b16 %v454
    %v3288 = vunpack.c.l.b16 %v455
    %v3289 = vunpack.c.l.b16 %v456
    %v3290 = vunpack.c.l.b16 %v457
    %v3291 = vunpack.c.l.b16 %v458
    %v3292 = vunpack.c.l.b16 %v459
    %v3293 = vunpack.c.l.b16 %v460
    %v3294 = vunpack.c.l.b16 %v461
    %v3295 = vunpack.c.l.b16 %v462
    %v3296 = vunpack.c.l.b16 %v463
    %v3297 = vunpack.c.l.b16 %v464
    %v3298 = vunpack.c.l.b16 %v465
    %v3299 = vunpack.c.l.b16 %v466
    %v3300 = vunpack.c.l.b16 %v467
    %v3301 = vunpack.c.l.b16 %v468
    %v3302 = vunpack.c.l.b16 %v469
    %v3303 = vunpack.c.l.b16 %v470
    %v3304 = vunpack.c.l.b16 %v471
    %v3305 = vunpack.c.l.b16 %v472
    %v3306 = vunpack.c.l.b16 %v473
    %v3307 = vunpack.c.l.b16 %v474
    %v3308 = vunpack.c.l.b16 %v475
    %v3309 = vunpack.c.l.b16 %v476
    %v3310 = vunpack.c.l.b16 %v477
    %v3311 = vunpack.c.l.b16 %v478
    %v3312 = vunpack.c.l.b16 %v479
    %v3313 = vunpack.c.l.b16 %v480
    %v3314 = vunpack.c.l.b16 %v481
    %v3315 = vunpack.c.l.b16 %v482
    %v3316 = vunpack.c.l.b16 %v483
    %v3317 = vunpack.c.l.b16 %v484
    %v3318 = vunpack.c.l.b16 %v485
    %v3319 = vunpack.c.l.b16 %v486
    %v3320 = vunpack.c.l.b16 %v487
    %v3321 = vunpack.c.l.b16 %v488
    %v3322 = vunpack.c.l.b16 %v489
    %v3323 = vunpack.c.l.b16 %v490
    %v3324 = vunpack.c.l.b16 %v491
    %v3325 = vunpack.c.l.b16 %v492
    %v3326 = vunpack.c.l.b16 %v493
    %v3327 = vunpack.c.l.b16 %v494
    %v3328 = vunpack.c.l.b16 %v495
    %v3329 = vunpack.c.l.b16 %v496
    %v3330 = vunpack.c.l.b16 %v497
    %v3331 = vunpack.c.l.b16 %v498
    %v3332 = vunpack.c.l.b16 %v499
    %v3333 = vunpack.c.l.b16 %v500
    %v3334 = vunpack.c.l.b16 %v501
    %v3335 = vunpack.c.l.b16 %v502
    %v3336 = vunpack.c.l.b16 %v503
    %v3337 = vunpack.c.l.b16 %v504
    %v3338 = vunpack.c.l.b16 %v505
    %v3339 = vunpack.c.l.b16 %v506
    %v3340 = vunpack.c.l.b16 %v507
    %v3341 = vunpack.c.l.b16 %v508
    %v3342 = vunpack.c.l.b16 %v509
    %v3343 = vunpack.c.l.b16 %v510
    %v3344 = vunpack.c.l.b16 %v511
    %v3345 = vunpack.c.l.b16 %v512
    %v3346 = vunpack.c.l.b16 %v513
    %v3347 = vunpack.c.l.b16 %v514
    %v3348 = vunpack.c.l.b16 %v515
    %v3349 = vunpack.c.l.b16 %v516
    %v3350 = vunpack.c.l.b16 %v517
    %v3351 = vunpack.c.l.b16 %v518
    %v3352 = vunpack.c.l.b16 %v519
    %v3353 = vunpack.c.l.b16 %v520
    %v3354 = vunpack.c.l.b16 %v521
    %v3355 = vunpack.c.l.b16 %v522
    %v3356 = vunpack.c.l.b16 %v523
    %v3357 = vunpack.c.l.b16 %v524
    %v3358 = vunpack.c.l.b16 %v525
    %v3359 = vunpack.c.l.b16 %v526
    %v3360 = vunpack.c.l.b16 %v527
    %v3361 = vunpack.c.l.b16 %v528
    %v3362 = vunpack.c.l.b16 %v529
    %v3363 = vunpack.c.l.b16 %v530
    %v3364 = vunpack.c.l.b16 %v531
    %v3365 = vunpack.c.l.b16 %v532
    %v3366 = vunpack.c.l.b16 %v533
    %v3367 = vunpack.c.l.b16 %v534
    %v3368 = vunpack.c.l.b16 %v535
    %v3369 = vunpack.c.l.b16 %v536
    %v3370 = vunpack.c.l.b16 %v537
    %v3371 = vunpack.c.l.b16 %v538
    %v3372 = vunpack.c.l.b16 %v539
    %v3373 = vunpack.c.l.b16 %v540
    %v3374 = vunpack.c.l.b16 %v541
    %v3375 = vunpack.c.l.b16 %v542
    %v3376 = vunpack.c.l.b16 %v543
    %v3377 = vunpack.c.l.b16 %v544
    %v3378 = vunpack.c.l.b16 %v545
    %v3379 = vunpack.c.l.b16 %v546
    %v3380 = vunpack.c.l.b16 %v547
    %v3381 = vunpack.c.l.b16 %v548
    %v3382 = vunpack.c.l.b16 %v549
    %v3383 = vunpack.c.l.b16 %v550
    %v3384 = vunpack.c.l.b16 %v551
    %v3385 = vunpack.c.l.b16 %v552
    %v3386 = vunpack.c.l.b16 %v553
    %v3387 = vunpack.c.l.b16 %v554
    %v3388 = vunpack.c.l.b16 %v555
    %v3389 = vunpack.c.l.b16 %v556
    %v3390 = vunpack.c.l.b16 %v557
    %v3391 = vunpack.c.l.b16 %v558
    %v3392 = vunpack.c.l.b16 %v559
    %v3393 = vunpack.c.l.b16 %v560
    %v3394 = vunpack.c.l.b16 %v561
    %v3395 = vunpack.c.l.b16 %v562
    %v3396 = vunpack.c.l.b16 %v563
    %v3397 = vunpack.c.l.b16 %v564
    %v3398 = vunpack.c.l.b16 %v565
    %v3399 = vunpack.c.l.b16 %v566
    %v3400 = vunpack.c.l.b16 %v567
    %v3401 = vunpack.c.l.b16 %v568
    %v3402 = vunpack.c.l.b16 %v569
    %v3403 = vunpack.c.l.b16 %v570
    %v3404 = vunpack.c.l.b16 %v571
    %v3405 = vunpack.c.l.b16 %v572
    %v3406 = vunpack.c.l.b16 %v573
    %v3407 = vunpack.c.l.b16 %v574
    %v3408 = vunpack.c.l.b16 %v575
    %v3409 = vunpack.c.l.b16 %v576
    %v3410 = vunpack.c.l.b16 %v577
    %v3411 = vunpack.c.l.b16 %v578
    %v3412 = vunpack.c.l.b16 %v579
    %v3413 = vunpack.c.l.b16 %v580
    %v3414 = vunpack.c.l.b16 %v581
    %v3415 = vunpack.c.l.b16 %v582
    %v3416 = vunpack.c.l.b16 %v583
    %v3417 = vunpack.c.l.b16 %v584
    %v3418 = vunpack.c.l.b16 %v585
    %v3419 = vunpack.c.l.b16 %v586
    %v3420 = vunpack.c.l.b16 %v587
    %v3421 = vunpack.c.l.b16 %v588
    %v3422 = vunpack.c.l.b16 %v589
    %v3423 = vunpack.c.l.b16 %v590
    %v3424 = vunpack.c.l.b16 %v591
    %v3425 = vunpack.c.l.b16 %v592
    %v3426 = vunpack.c.l.b16 %v593
    %v3427 = vunpack.c.l.b16 %v594
    %v3428 = vunpack.c.l.b16 %v595
    %v3429 = vunpack.c.l.b16 %v596
    %v3430 = vunpack.c.l.b16 %v597
    %v3431 = vunpack.c.l.b16 %v598
    %v3432 = vunpack.c.l.b16 %v599
    %v3433 = vunpack.c.l.b16 %v600
    %v3434 = vunpack.c.l.b16 %v601
    %v3435 = vunpack.c.l.b16 %v602
    %v3436 = vunpack.c.l.b16 %v603
    %v3437 = vunpack.c.l.b16 %v604
    %v3438 = vunpack.c.l.b16 %v605
    %v3439 = vunpack.c.l.b16 %v606
    %v3440 = vunpack.c.l.b16 %v607
    %v3441 = vunpack.c.l.b16 %v608
    %v3442 = vunpack.c.l.b16 %v609
    %v3443 = vunpack.c.l.b16 %v610
    %v3444 = vunpack.c.l.b16 %v611
    %v3445 = vunpack.c.l.b16 %v612
    %v3446 = vunpack.c.l.b16 %v613
    %v3447 = vunpack.c.l.b16 %v614
    %v3448 = vunpack.c.l.b16 %v615
    %v3449 = vunpack.c.l.b16 %v616
    %v3450 = vunpack.c.l.b16 %v617
    %v3451 = vunpack.c.l.b16 %v618
    %v3452 = vunpack.c.l.b16 %v619
    %v3453 = vunpack.c.l.b16 %v620
    %v3454 = vunpack.c.l.b16 %v621
    %v3455 = vunpack.c.l.b16 %v622
    %v3456 = vunpack.c.l.b16 %v623
    %v3457 = vunpack.c.l.b16 %v624
    %v3458 = vunpack.c.l.b16 %v625
    %v3459 = vunpack.c.l.b16 %v626
    %v3460 = vunpack.c.l.b16 %v627
    %v3461 = vunpack.c.l.b16 %v628
    %v3462 = vunpack.c.l.b16 %v629
    %v3463 = vunpack.c.l.b16 %v630
    %v3464 = vunpack.c.l.b16 %v631
    %v3465 = vunpack.c.l.b16 %v632
    %v3466 = vunpack.c.l.b16 %v633
    %v3467 = vunpack.c.l.b16 %v634
    %v3468 = vunpack.c.l.b16 %v635
    %v3469 = vunpack.c.l.b16 %v636
    %v3470 = vunpack.c.l.b16 %v637
    %v3471 = vunpack.c.l.b16 %v638
    %v3472 = vunpack.c.l.b16 %v639
    %v3473 = vunpack.c.l.b16 %v640
    %v3474 = vunpack.c.l.b16 %v641
    %v3475 = vunpack.c.l.b16 %v642
    %v3476 = vunpack.c.l.b16 %v643
    %v3477 = vunpack.c.l.b16 %v644
    %v3478 = vunpack.c.l.b16 %v645
    %v3479 = vunpack.c.l.b16 %v646
    %v3480 = vunpack.c.l.b16 %v647
    %v3481 = vunpack.c.l.b16 %v648
    %v3482 = vunpack.c.l.b16 %v649
    %v3483 = vunpack.c.l.b16 %v650
    %v3484 = vunpack.c.l.b16 %v651
    %v3485 = vunpack.c.l.b16 %v652
    %v3486 = vunpack.c.l.b16 %v653
    %v3487 = vunpack.c.l.b16 %v654
    %v3488 = vunpack.c.l.b16 %v655
    %v3489 = vunpack.c.l.b16 %v656
    %v3490 = vunpack.c.l.b16 %v657
    %v3491 = vunpack.c.l.b16 %v658
    %v3492 = vunpack.c.l.b16 %v659
    %v3493 = vunpack.c.l.b16 %v660
    %v3494 = vunpack.c.l.b16 %v661
    %v3495 = vunpack.c.l.b16 %v662
    %v3496 = vunpack.c.l.b16 %v663
    %v3497 = vunpack.c.l.b16 %v664
    %v3498 = vunpack.c.l.b16 %v665
    %v3499 = vunpack.c.l.b16 %v666
    %v3500 = vunpack.c.l.b16 %v667
    %v3501 = vunpack.c.l.b16 %v668
    %v3502 = vunpack.c.l.b16 %v669
    %v3503 = vunpack.c.l.b16 %v670
    %v3504 = vunpack.c.l.b16 %v671
    %v3505 = vunpack.c.l.b16 %v672
    %v3506 = vunpack.c.l.b16 %v673
    %v3507 = vunpack.c.l.b16 %v674
    %v3508 = vunpack.c.l.b16 %v675
    %v3509 = vunpack.c.l.b16 %v676
    %v3510 = vunpack.c.l.b16 %v677
    %v3511 = vunpack.c.l.b16 %v678
    %v3512 = vunpack.c.l.b16 %v679
    %v3513 = vunpack.c.l.b16 %v680
    %v3514 = vunpack.c.l.b16 %v681
    %v3515 = vunpack.c.l.b16 %v682
    %v3516 = vunpack.c.l.b16 %v683
    %v3517 = vunpack.c.l.b16 %v684
    %v3518 = vunpack.c.l.b16 %v685
    %v3519 = vunpack.c.l.b16 %v686
    %v3520 = vunpack.c.l.b16 %v687
    %v3521 = vunpack.c.l.b16 %v688
    %v3522 = vunpack.c.l.b16 %v689
    %v3523 = vunpack.c.l.b16 %v690
    %v3524 = vunpack.c.l.b16 %v691
    %v3525 = vunpack.c.l.b16 %v692
    %v3526 = vunpack.c.l.b16 %v693
    %v3527 = vunpack.c.l.b16 %v694
    %v3528 = vunpack.c.l.b16 %v695
    %v3529 = vunpack.c.l.b16 %v696
    %v3530 = vunpack.c.l.b16 %v697
    %v3531 = vunpack.c.l.b16 %v698
    %v3532 = vunpack.c.l.b16 %v699
    %v3533 = vunpack.c.l.b16 %v700
    %v3534 = vunpack.c.l.b16 %v701
    %v3535 = vunpack.c.l.b16 %v702
    %v3536 = vunpack.c.l.b16 %v703
    %v3537 = vunpack.c.l.b16 %v704
    %v3538 = vunpack.c.l.b16 %v705
    %v3539 = vunpack.c.l.b16 %v706
    %v3540 = vunpack.c.l.b16 %v707
    %v3541 = vunpack.c.l.b16 %v708
    %v3542 = vunpack.c.l.b16 %v709
    %v3543 = vunpack.c.l.b16 %v710
    %v3544 = vunpack.c.l.b16 %v711
    %v3545 = vunpack.c.l.b16 %v712
    %v3546 = vunpack.c.l.b16 %v713
    %v3547 = vunpack.c.l.b16 %v714
    %v3548 = vunpack.c.l.b16 %v715
    %v3549 = vunpack.c.l.b16 %v716
    %v3550 = vunpack.c.l.b16 %v717
    %v3551 = vunpack.c.l.b16 %v718
    %v3552 = vunpack.c.l.b16 %v719
    %v3553 = vunpack.c.l.b16 %v720
    %v3554 = vunpack.c.l.b16 %v721
    %v3555 = vunpack.c.l.b16 %v722
    %v3556 = vunpack.c.l.b16 %v723
    %v3557 = vunpack.c.l.b16 %v724
    %v3558 = vunpack.c.l.b16 %v725
    %v3559 = vunpack.c.l.b16 %v726
    %v3560 = vunpack.c.l.b16 %v727
    %v3561 = vunpack.c.l.b16 %v728
    %v3562 = vunpack.c.l.b16 %v729
    %v3563 = vunpack.c.l.b16 %v730
    %v3564 = vunpack.c.l.b16 %v731
    %v3565 = vunpack.c.l.b16 %v732
    %v3566 = vunpack.c.l.b16 %v733
    %v3567 = vunpack.c.l.b16 %v734
    %v3568 = vunpack.c.l.b16 %v735
    %v3569 = vunpack.c.l.b16 %v736
    %v3570 = vunpack.c.l.b16 %v737
    %v3571 = vunpack.c.l.b16 %v738
    %v3572 = vunpack.c.l.b16 %v739
    %v3573 = vunpack.c.l.b16 %v740
    %v3574 = vunpack.c.l.b16 %v741
    %v3575 = vunpack.c.l.b16 %v742
    %v3576 = vunpack.c.l.b16 %v743
    %v3577 = vunpack.c.l.b16 %v744
    %v3578 = vunpack.c.l.b16 %v745
    %v3579 = vunpack.c.l.b16 %v746
    %v3580 = vunpack.c.l.b16 %v747
    %v3581 = vunpack.c.l.b16 %v748
    %v3582 = vunpack.c.l.b16 %v749
    %v3583 = vunpack.c.l.b16 %v750
    %v3584 = vunpack.c.l.b16 %v751
    %v3585 = vunpack.c.l.b16 %v752
    %v3586 = vunpack.c.l.b16 %v753
    %v3587 = vunpack.c.l.b16 %v754
    %v3588 = vunpack.c.l.b16 %v755
    %v3589 = vunpack.c.l.b16 %v756
    %v3590 = vunpack.c.l.b16 %v757
    %v3591 = vunpack.c.l.b16 %v758
    %v3592 = vunpack.c.l.b16 %v759
    %v3593 = vunpack.c.l.b16 %v760
    %v3594 = vunpack.c.l.b16 %v761
    %v3595 = vunpack.c.l.b16 %v762
    %v3596 = vunpack.c.l.b16 %v763
    %v3597 = vunpack.c.l.b16 %v764
    %v3598 = vunpack.c.l.b16 %v765
    %v3599 = vunpack.c.l.b16 %v766
    %v3600 = vunpack.c.l.b16 %v767
    %v3601 = vunpack.c.l.b16 %v768
    %v3602 = vunpack.c.l.b16 %v769
    %v3603 = vunpack.c.l.b16 %v770
    %v3604 = vunpack.c.l.b16 %v771
    %v3605 = vunpack.c.l.b16 %v772
    %v3606 = vunpack.c.l.b16 %v773
    %v3607 = vunpack.c.l.b16 %v774
    %v3608 = vunpack.c.l.b16 %v775
    %v3609 = vunpack.c.l.b16 %v776
    %v3610 = vunpack.c.l.b16 %v777
    %v3611 = vunpack.c.l.b16 %v778
    %v3612 = vunpack.c.l.b16 %v779
    %v3613 = vunpack.c.l.b16 %v780
    %v3614 = vunpack.c.l.b16 %v781
    %v3615 = vunpack.c.l.b16 %v782
    %v3616 = vunpack.c.l.b16 %v783
    %v3617 = vunpack.c.l.b16 %v784
    %v3618 = vunpack.c.l.b16 %v785
    %v3619 = vunpack.c.l.b16 %v786
    %v3620 = vunpack.c.l.b16 %v787
    %v3621 = vunpack.c.l.b16 %v788
    %v3622 = vunpack.c.l.b16 %v789
    %v3623 = vunpack.c.l.b16 %v790
    %v3624 = vunpack.c.l.b16 %v791
    %v3625 = vunpack.c.l.b16 %v792
    %v3626 = vunpack.c.l.b16 %v793
    %v3627 = vunpack.c.l.b16 %v794
    %v3628 = vunpack.c.l.b16 %v795
    %v3629 = vunpack.c.l.b16 %v796
    %v3630 = vunpack.c.l.b16 %v797
    %v3631 = vunpack.c.l.b16 %v798
    %v3632 = vunpack.c.l.b16 %v799
    %v3633 = vunpack.c.l.b16 %v800
    %v3634 = vunpack.c.l.b16 %v801
    %v3635 = vunpack.c.l.b16 %v802
    %v3636 = vunpack.c.l.b16 %v803
    %v3637 = vunpack.c.l.b16 %v804
    %v3638 = vunpack.c.l.b16 %v805
    %v3639 = vunpack.c.l.b16 %v806
    %v3640 = vunpack.c.l.b16 %v807
    %v3641 = vunpack.c.l.b16 %v808
    %v3642 = vunpack.c.l.b16 %v809
    %v3643 = vunpack.c.l.b16 %v810
    %v3644 = vunpack.c.l.b16 %v811
    %v3645 = vunpack.c.l.b16 %v812
    %v3646 = vunpack.c.l.b16 %v813
    %v3647 = vunpack.c.l.b16 %v814
    %v3648 = vunpack.c.l.b16 %v815
    %v3649 = vunpack.c.l.b16 %v816
    %v3650 = vunpack.c.l.b16 %v817
    %v3651 = vunpack.c.l.b16 %v818
    %v3652 = vunpack.c.l.b16 %v819
    %v3653 = vunpack.c.l.b16 %v820
    %v3654 = vunpack.c.l.b16 %v821
    %v3655 = vunpack.c.l.b16 %v822
    %v3656 = vunpack.c.l.b16 %v823
    %v3657 = vunpack.c.l.b16 %v824
    %v3658 = vunpack.c.l.b16 %v825
    %v3659 = vunpack.c.l.b16 %v826
    %v3660 = vunpack.c.l.b16 %v827
    %v3661 = vunpack.c.l.b16 %v828
    %v3662 = vunpack.c.l.b16 %v829
    %v3663 = vunpack.c.l.b16 %v830
    %v3664 = vunpack.c.l.b16 %v831
    %v3665 = vunpack.c.l.b16 %v832
    %v3666 = vunpack.c.l.b16 %v833
    %v3667 = vunpack.c.l.b16 %v834
    %v3668 = vunpack.c.l.b16 %v835
    %v3669 = vunpack.c.l.b16 %v836
    %v3670 = vunpack.c.l.b16 %v837
    %v3671 = vunpack.c.l.b16 %v838
    %v3672 = vunpack.c.l.b16 %v839
    %v3673 = vunpack.c.l.b16 %v840
    %v3674 = vunpack.c.l.b16 %v841
    %v3675 = vunpack.c.l.b16 %v842
    %v3676 = vunpack.c.l.b16 %v843
    %v3677 = vunpack.c.l.b16 %v844
    %v3678 = vunpack.c.l.b16 %v845
    %v3679 = vunpack.c.l.b16 %v846
    %v3680 = vunpack.c.l.b16 %v847
    %v3681 = vunpack.c.l.b16 %v848
    %v3682 = vunpack.c.l.b16 %v849
    %v3683 = vunpack.c.l.b16 %v850
    %v3684 = vunpack.c.l.b16 %v851
    %v3685 = vunpack.c.l.b16 %v852
    %v3686 = vunpack.c.l.b16 %v853
    %v3687 = vunpack.c.l.b16 %v854
    %v3688 = vunpack.c.l.b16 %v855
    %v3689 = vunpack.c.l.b16 %v856
    %v3690 = vunpack.c.l.b16 %v857
    %v3691 = vunpack.c.l.b16 %v858
    %v3692 = vunpack.c.l.b16 %v859
    %v3693 = vunpack.c.l.b16 %v860
    %v3694 = vunpack.c.l.b16 %v861
    %v3695 = vunpack.c.l.b16 %v862
    %v3696 = vunpack.c.l.b16 %v863
    %v3697 = vunpack.c.l.b16 %v864
    %v3698 = vunpack.c.l.b16 %v865
    %v3699 = vunpack.c.l.b16 %v866
    %v3700 = vunpack.c.l.b16 %v867
    %v3701 = vunpack.c.l.b16 %v868
    %v3702 = vunpack.c.l.b16 %v869
    %v3703 = vunpack.c.l.b16 %v870
    %v3704 = vunpack.c.l.b16 %v871
    %v3705 = vunpack.c.l.b16 %v872
    %v3706 = vunpack.c.l.b16 %v873
    %v3707 = vunpack.c.l.b16 %v874
    %v3708 = vunpack.c.l.b16 %v875
    %v3709 = vunpack.c.l.b16 %v876
    %v3710 = vunpack.c.l.b16 %v877
    %v3711 = vunpack.c.l.b16 %v878
    %v3712 = vunpack.c.l.b16 %v879
    %v3713 = vunpack.c.l.b16 %v880
    %v3714 = vunpack.c.l.b16 %v881
    %v3715 = vunpack.c.l.b16 %v882
    %v3716 = vunpack.c.l.b16 %v883
    %v3717 = vunpack.c.l.b16 %v884
    %v3718 = vunpack.c.l.b16 %v885
    %v3719 = vunpack.c.l.b16 %v886
    %v3720 = vunpack.c.l.b16 %v887
    %v3721 = vunpack.c.l.b16 %v888
    %v3722 = vunpack.c.l.b16 %v889
    %v3723 = vunpack.c.l.b16 %v890
    %v3724 = vunpack.c.l.b16 %v891
    %v3725 = vunpack.c.l.b16 %v892
    %v3726 = vunpack.c.l.b16 %v893
    %v3727 = vunpack.c.l.b16 %v894
    %v3728 = vunpack.c.l.b16 %v895
    %v3729 = vunpack.c.l.b16 %v896
    %v3730 = vunpack.c.l.b16 %v897
    %v3731 = vunpack.c.l.b16 %v898
    %v3732 = vunpack.c.l.b16 %v899
    %v3733 = vunpack.c.l.b16 %v900
    %v3734 = vunpack.c.l.b16 %v901
    %v3735 = vunpack.c.l.b16 %v902
    %v3736 = vunpack.c.l.b16 %v903
    %v3737 = vunpack.c.l.b16 %v904
    %v3738 = vunpack.c.l.b16 %v905
    %v3739 = vunpack.c.l.b16 %v906
    %v3740 = vunpack.c.l.b16 %v907
    %v3741 = vunpack.c.l.b16 %v908
    %v3742 = vunpack.c.l.b16 %v909
    %v3743 = vunpack.c.l.b16 %v910
    %v3744 = vunpack.c.l.b16 %v911
    %v3745 = vunpack.c.l.b16 %v912
    %v3746 = vunpack.c.l.b16 %v913
    %v3747 = vunpack.c.l.b16 %v914
    %v3748 = vunpack.c.l.b16 %v915
    %v3749 = vunpack.c.l.b16 %v916
    %v3750 = vunpack.c.l.b16 %v917
    %v3751 = vunpack.c.l.b16 %v918
    %v3752 = vunpack.c.l.b16 %v919
    %v3753 = vunpack.c.l.b16 %v920
    %v3754 = vunpack.c.l.b16 %v921
    %v3755 = vunpack.c.l.b16 %v922
    %v3756 = vunpack.c.l.b16 %v923
    %v3757 = vunpack.c.l.b16 %v924
    %v3758 = vunpack.c.l.b16 %v925
    %v3759 = vunpack.c.l.b16 %v926
    %v3760 = vunpack.c.l.b16 %v927
    %v3761 = vunpack.c.l.b16 %v928
    %v3762 = vunpack.c.l.b16 %v929
    %v3763 = vunpack.c.l.b16 %v930
    %v3764 = vunpack.c.l.b16 %v931
    %v3765 = vunpack.c.l.b16 %v932
    %v3766 = vunpack.c.l.b16 %v933
    %v3767 = vunpack.c.l.b16 %v934
    %v3768 = vunpack.c.l.b16 %v935
    %v3769 = vunpack.c.l.b16 %v936
    %v3770 = vunpack.c.l.b16 %v937
    %v3771 = vunpack.c.l.b16 %v938
    %v3772 = vunpack.c.l.b16 %v939
    %v3773 = vunpack.c.l.b16 %v940
    %v3774 = vunpack.c.l.b16 %v941
    %v3775 = vunpack.c.l.b16 %v942
    %v3776 = vunpack.c.l.b16 %v943
    %v3777 = vunpack.c.l.b16 %v944
    %v3778 = vunpack.c.l.b16 %v945
    %v3779 = vunpack.c.l.b16 %v946
    %v3780 = vunpack.c.l.b16 %v947
    %v3781 = vunpack.c.l.b16 %v948
    %v3782 = vunpack.c.l.b16 %v949
    %v3783 = vunpack.c.l.b16 %v950
    %v3784 = vunpack.c.l.b16 %v951
    %v3785 = vunpack.c.l.b16 %v952
    %v3786 = vunpack.c.l.b16 %v953
    %v3787 = vunpack.c.l.b16 %v954
    %v3788 = vunpack.c.l.b16 %v955
    %v3789 = vunpack.c.l.b16 %v956
    %v3790 = vunpack.c.l.b16 %v957
    %v3791 = vunpack.c.l.b16 %v958
    %v3792 = vunpack.c.l.b16 %v959
    %v3793 = vunpack.c.l.b16 %v960
    %v3794 = vunpack.c.l.b16 %v961
    %v3795 = vunpack.c.l.b16 %v962
    %v3796 = vunpack.c.l.b16 %v963
    %v3797 = vunpack.c.l.b16 %v964
    %v3798 = vunpack.c.l.b16 %v965
    %v3799 = vunpack.c.l.b16 %v966
    %v3800 = vunpack.c.l.b16 %v967
    %v3801 = vunpack.c.l.b16 %v968
    %v3802 = vunpack.c.l.b16 %v969
    %v3803 = vunpack.c.l.b16 %v970
    %v3804 = vunpack.c.l.b16 %v971
    %v3805 = vunpack.c.l.b16 %v972
    %v3806 = vunpack.c.l.b16 %v973
    %v3807 = vunpack.c.l.b16 %v974
    %v3808 = vunpack.c.l.b16 %v975
    %v3809 = vunpack.c.l.b16 %v976
    %v3810 = vunpack.c.l.b16 %v977
    %v3811 = vunpack.c.l.b16 %v978
    %v3812 = vunpack.c.l.b16 %v979
    %v3813 = vunpack.c.l.b16 %v980
    %v3814 = vunpack.c.l.b16 %v981
    %v3815 = vunpack.c.l.b16 %v982
    %v3816 = vunpack.c.l.b16 %v983
    %v3817 = vunpack.c.l.b16 %v984
    %v3818 = vunpack.c.l.b16 %v985
    %v3819 = vunpack.c.l.b16 %v986
    %v3820 = vunpack.c.l.b16 %v987
    %v3821 = vunpack.c.l.b16 %v988
    %v3822 = vunpack.c.l.b16 %v989
    %v3823 = vunpack.c.l.b16 %v990
    %v3824 = vunpack.c.l.b16 %v991
    %v3825 = vunpack.c.l.b16 %v992
    %v3826 = vunpack.c.l.b16 %v993
    %v3827 = vunpack.c.l.b16 %v994
    %v3828 = vunpack.c.l.b16 %v995
    %v3829 = vunpack.c.l.b16 %v996
    %v3830 = vunpack.c.l.b16 %v997
    %v3831 = vunpack.c.l.b16 %v998
    %v3832 = vunpack.c.l.b16 %v999
    %v3833 = vunpack.c.l.b16 %v1000
    %v3834 = vunpack.c.l.b16 %v1001
    %v3835 = vunpack.c.l.b16 %v1002
    %v3836 = vunpack.c.l.b16 %v1003
    %v3837 = vunpack.c.l.b16 %v1004
    %v3838 = vunpack.c.l.b16 %v1005
    %v3839 = vunpack.c.l.b16 %v1006
    %v3840 = vunpack.c.l.b16 %v1007
    %v3841 = vunpack.c.l.b16 %v1008
    %v3842 = vunpack.c.l.b16 %v1009
    %v3843 = vunpack.c.l.b16 %v1010
    %v3844 = vunpack.c.l.b16 %v1011
    %v3845 = vunpack.c.l.b16 %v1012
    %v3846 = vunpack.c.l.b16 %v1013
    %v3847 = vunpack.c.l.b16 %v1014
    %v3848 = vunpack.c.l.b16 %v1015
    %v3849 = vunpack.c.l.b16 %v1016
    %v3850 = vunpack.c.l.b16 %v1017
    %v3851 = vunpack.c.l.b16 %v1018
    %v3852 = vunpack.c.l.b16 %v1019
    %v3853 = vunpack.c.l.b16 %v1020
    %v3854 = vunpack.c.l.b16 %v1021
    %v3855 = vunpack.c.l.b16 %v1022
    %v3856 = vunpack.c.l.b16 %v1023
    %v3857 = vunpack.c.l.b16 %v1024
    %v3858 = vunpack.c.l.b16 %v1025
    %v3859 = vunpack.c.l.b16 %v1026
    %v3860 = vunpack.c.l.b16 %v1027
    %v3861 = vunpack.c.l.b16 %v1028
    %v3862 = vunpack.c.l.b16 %v1029
    %v3863 = vunpack.c.l.b16 %v1030
    %v3864 = vunpack.c.l.b16 %v1031
    %v3865 = vunpack.c.l.b16 %v1032
    %v3866 = vunpack.c.l.b16 %v1033
    %v3867 = vunpack.c.l.b16 %v1034
    %v3868 = vunpack.c.l.b16 %v1035
    %v3869 = vunpack.c.l.b16 %v1036
    %v3870 = vunpack.c.l.b16 %v1037
    %v3871 = vunpack.c.l.b16 %v1038
    %v3872 = vunpack.c.l.b16 %v1039
    %v3873 = vunpack.c.l.b16 %v1040
    %v3874 = vunpack.c.l.b16 %v1041
    %v3875 = vunpack.c.l.b16 %v1042
    %v3876 = vunpack.c.l.b16 %v1043
    %v3877 = vunpack.c.l.b16 %v1044
    %v3878 = vunpack.c.l.b16 %v1045
    %v3879 = vunpack.c.l.b16 %v1046
    %v3880 = vunpack.c.l.b16 %v1047
    %v3881 = vunpack.c.l.b16 %v1048
    %v3882 = vunpack.c.l.b16 %v1049
    %v3883 = vunpack.c.l.b16 %v1050
    %v3884 = vunpack.c.l.b16 %v1051
    %v3885 = vunpack.c.l.b16 %v1052
    %v3886 = vunpack.c.l.b16 %v1053
    %v3887 = vunpack.c.l.b16 %v1054
    %v3888 = vunpack.c.l.b16 %v1055
    %v3889 = vunpack.c.l.b16 %v1056
    %v3890 = vunpack.c.l.b16 %v1057
    %v3891 = vunpack.c.l.b16 %v1058
    %v3892 = vunpack.c.l.b16 %v1059
    %v3893 = vunpack.c.l.b16 %v1060
    %v3894 = vunpack.c.l.b16 %v1061
    %v3895 = vunpack.c.l.b16 %v1062
    %v3896 = vunpack.c.l.b16 %v1063
    %v3897 = vunpack.c.l.b16 %v1064
    %v3898 = vunpack.c.l.b16 %v1065
    %v3899 = vunpack.c.l.b16 %v1066
    %v3900 = vunpack.c.l.b16 %v1067
    %v3901 = vunpack.c.l.b16 %v1068
    %v3902 = vunpack.c.l.b16 %v1069
    %v3903 = vunpack.c.l.b16 %v1070
    %v3904 = vunpack.c.l.b16 %v1071
    %v3905 = vunpack.c.l.b16 %v1072
    %v3906 = vunpack.c.l.b16 %v1073
    %v3907 = vunpack.c.l.b16 %v1074
    %v3908 = vunpack.c.l.b16 %v1075
    %v3909 = vunpack.c.l.b16 %v1076
    %v3910 = vunpack.c.l.b16 %v1077
    %v3911 = vunpack.c.l.b16 %v1078
    %v3912 = vunpack.c.l.b16 %v1079
    %v3913 = vunpack.c.l.b16 %v1080
    %v3914 = vunpack.c.l.b16 %v1081
    %v3915 = vunpack.c.l.b16 %v1082
    %v3916 = vunpack.c.l.b16 %v1083
    %v3917 = vunpack.c.l.b16 %v1084
    %v3918 = vunpack.c.l.b16 %v1085
    %v3919 = vunpack.c.l.b16 %v1086
    %v3920 = vunpack.c.l.b16 %v1087
    %v3921 = vunpack.c.l.b16 %v1088
    %v3922 = vunpack.c.l.b16 %v1089
    %v3923 = vunpack.c.l.b16 %v1090
    %v3924 = vunpack.c.l.b16 %v1091
    %v3925 = vunpack.c.l.b16 %v1092
    %v3926 = vunpack.c.l.b16 %v1093
    %v3927 = vunpack.c.l.b16 %v1094
    %v3928 = vunpack.c.l.b16 %v1095
    %v3929 = vunpack.c.l.b16 %v1096
    %v3930 = vunpack.c.l.b16 %v1097
    %v3931 = vunpack.c.l.b16 %v1098
    %v3932 = vunpack.c.l.b16 %v1099
    %v3933 = vunpack.c.l.b16 %v1100
    %v3934 = vunpack.c.l.b16 %v1101
    %v3935 = vunpack.c.l.b16 %v1102
    %v3936 = vunpack.c.l.b16 %v1103
    %v3937 = vunpack.c.l.b16 %v1104
    %v3938 = vunpack.c.l.b16 %v1105
    %v3939 = vunpack.c.l.b16 %v1106
    %v3940 = vunpack.c.l.b16 %v1107
    %v3941 = vunpack.c.l.b16 %v1108
    %v3942 = vunpack.c.l.b16 %v1109
    %v3943 = vunpack.c.l.b16 %v1110
    %v3944 = vunpack.c.l.b16 %v1111
    %v3945 = vunpack.c.l.b16 %v1112
    %v3946 = vunpack.c.l.b16 %v1113
    %v3947 = vunpack.c.l.b16 %v1114
    %v3948 = vunpack.c.l.b16 %v1115
    %v3949 = vunpack.c.l.b16 %v1116
    %v3950 = vunpack.c.l.b16 %v1117
    %v3951 = vunpack.c.l.b16 %v1118
    %v3952 = vunpack.c.l.b16 %v1119
    %v3953 = vunpack.c.l.b16 %v1120
    %v3954 = vunpack.c.l.b16 %v1121
    %v3955 = vunpack.c.l.b16 %v1122
    %v3956 = vunpack.c.l.b16 %v1123
    %v3957 = vunpack.c.l.b16 %v1124
    %v3958 = vunpack.c.l.b16 %v1125
    %v3959 = vunpack.c.l.b16 %v1126
    %v3960 = vunpack.c.l.b16 %v1127
    %v3961 = vunpack.c.l.b16 %v1128
    %v3962 = vunpack.c.l.b16 %v1129
    %v3963 = vunpack.c.l.b16 %v1130
    %v3964 = vunpack.c.l.b16 %v1131
    %v3965 = vunpack.c.l.b16 %v1132
    %v3966 = vunpack.c.l.b16 %v1133
    %v3967 = vunpack.c.l.b16 %v1134
    %v3968 = vunpack.c.l.b16 %v1135
    %v3969 = vunpack.c.l.b16 %v1136
    %v3970 = vunpack.c.l.b16 %v1137
    %v3971 = vunpack.c.l.b16 %v1138
    %v3972 = vunpack.c.l.b16 %v1139
    %v3973 = vunpack.c.l.b16 %v1140
    %v3974 = vunpack.c.l.b16 %v1141
    %v3975 = vunpack.c.l.b16 %v1142
    %v3976 = vunpack.c.l.b16 %v1143
    %v3977 = vunpack.c.l.b16 %v1144
    %v3978 = vunpack.c.l.b16 %v1145
    %v3979 = vunpack.c.l.b16 %v1146
    %v3980 = vunpack.c.l.b16 %v1147
    %v3981 = vunpack.c.l.b16 %v1148
    %v3982 = vunpack.c.l.b16 %v1149
    %v3983 = vunpack.c.l.b16 %v1150
    %v3984 = vunpack.c.l.b16 %v1151
    %v3985 = vunpack.c.l.b16 %v1152
    %v3986 = vunpack.c.l.b16 %v1153
    %v3987 = vunpack.c.l.b16 %v1154
    %v3988 = vunpack.c.l.b16 %v1155
    %v3989 = vunpack.c.l.b16 %v1156
    %v3990 = vunpack.c.l.b16 %v1157
    %v3991 = vunpack.c.l.b16 %v1158
    %v3992 = vunpack.c.l.b16 %v1159
    %v3993 = vunpack.c.l.b16 %v1160
    %v3994 = vunpack.c.l.b16 %v1161
    %v3995 = vunpack.c.l.b16 %v1162
    %v3996 = vunpack.c.l.b16 %v1163
    %v3997 = vunpack.c.l.b16 %v1164
    %v3998 = vunpack.c.l.b16 %v1165
    %v3999 = vunpack.c.l.b16 %v1166
    %v4000 = vunpack.c.l.b16 %v1167
    %v4001 = vunpack.c.l.b16 %v1168
    %v4002 = vunpack.c.l.b16 %v1169
    %v4003 = vunpack.c.l.b16 %v1170
    %v4004 = vunpack.c.l.b16 %v1171
    %v4005 = vunpack.c.l.b16 %v1172
    %v4006 = vunpack.c.l.b16 %v1173
    %v4007 = vunpack.c.l.b16 %v1174
    %v4008 = vunpack.c.l.b16 %v1175
    %v4009 = vunpack.c.l.b16 %v1176
    %v4010 = vunpack.c.l.b16 %v1177
    %v4011 = vunpack.c.l.b16 %v1178
    %v4012 = vunpack.c.l.b16 %v1179
    %v4013 = vunpack.c.l.b16 %v1180
    %v4014 = vunpack.c.l.b16 %v1181
    %v4015 = vunpack.c.l.b16 %v1182
    %v4016 = vunpack.c.l.b16 %v1183
    %v4017 = vunpack.c.l.b16 %v1184
    %v4018 = vunpack.c.l.b16 %v1185
    %v4019 = vunpack.c.l.b16 %v1186
    %v4020 = vunpack.c.l.b16 %v1187
    %v4021 = vunpack.c.l.b16 %v1188
    %v4022 = vpack.c.b16 %v2871, %v2870
    %v4023 = vpack.c.b16 %v2873, %v2872
    %v4024 = vpack.c.b16 %v2875, %v2874
    %v4025 = vpack.c.b16 %v2877, %v2876
    %v4026 = vpack.c.b16 %v2879, %v2878
    %v4027 = vpack.c.b16 %v2881, %v2880
    %v4028 = vpack.c.b16 %v2883, %v2882
    %v4029 = vpack.c.b16 %v2885, %v2884
    %v4030 = vpack.c.b16 %v2887, %v2886
    %v4031 = vpack.c.b16 %v2889, %v2888
    %v4032 = vpack.c.b16 %v2891, %v2890
    %v4033 = vpack.c.b16 %v2893, %v2892
    %v4034 = vpack.c.b16 %v2895, %v2894
    %v4035 = vpack.c.b16 %v2897, %v2896
    %v4036 = vpack.c.b16 %v2899, %v2898
    %v4037 = vpack.c.b16 %v2901, %v2900
    %v4038 = vpack.c.b16 %v2903, %v2902
    %v4039 = vpack.c.b16 %v2905, %v2904
    %v4040 = vpack.c.b16 %v2907, %v2906
    %v4041 = vpack.c.b16 %v2909, %v2908
    %v4042 = vpack.c.b16 %v2911, %v2910
    %v4043 = vpack.c.b16 %v2913, %v2912
    %v4044 = vpack.c.b16 %v2915, %v2914
    %v4045 = vpack.c.b16 %v2917, %v2916
    %v4046 = vpack.c.b16 %v2919, %v2918
    %v4047 = vpack.c.b16 %v2921, %v2920
    %v4048 = vpack.c.b16 %v2923, %v2922
    %v4049 = vpack.c.b16 %v2925, %v2924
    %v4050 = vpack.c.b16 %v2927, %v2926
    %v4051 = vpack.c.b16 %v2929, %v2928
    %v4052 = vpack.c.b16 %v2931, %v2930
    %v4053 = vpack.c.b16 %v2933, %v2932
    %v4054 = vpack.c.b16 %v2935, %v2934
    %v4055 = vpack.c.b16 %v2937, %v2936
    %v4056 = vpack.c.b16 %v2939, %v2938
    %v4057 = vpack.c.b16 %v2941, %v2940
    %v4058 = vpack.c.b16 %v2943, %v2942
    %v4059 = vpack.c.b16 %v2945, %v2944
    %v4060 = vpack.c.b16 %v2947, %v2946
    %v4061 = vpack.c.b16 %v2949, %v2948
    %v4062 = vpack.c.b16 %v2951, %v2950
    %v4063 = vpack.c.b16 %v2953, %v2952
    %v4064 = vpack.c.b16 %v2955, %v2954
    %v4065 = vpack.c.b16 %v2957, %v2956
    %v4066 = vpack.c.b16 %v2959, %v2958
    %v4067 = vpack.c.b16 %v2961, %v2960
    %v4068 = vpack.c.b16 %v2963, %v2962
    %v4069 = vpack.c.b16 %v2965, %v2964
    %v4070 = vpack.c.b16 %v2967, %v2966
    %v4071 = vpack.c.b16 %v2969, %v2968
    %v4072 = vpack.c.b16 %v2971, %v2970
    %v4073 = vpack.c.b16 %v2973, %v2972
    %v4074 = vpack.c.b16 %v2975, %v2974
    %v4075 = vpack.c.b16 %v2977, %v2976
    %v4076 = vpack.c.b16 %v2979, %v2978
    %v4077 = vpack.c.b16 %v2981, %v2980
    %v4078 = vpack.c.b16 %v2983, %v2982
    %v4079 = vpack.c.b16 %v2985, %v2984
    %v4080 = vpack.c.b16 %v2987, %v2986
    %v4081 = vpack.c.b16 %v2989, %v2988
    %v4082 = vpack.c.b16 %v2991, %v2990
    %v4083 = vpack.c.b16 %v2993, %v2992
    %v4084 = vpack.c.b16 %v2995, %v2994
    %v4085 = vpack.c.b16 %v2997, %v2996
    %v4086 = vpack.c.b16 %v2999, %v2998
    %v4087 = vpack.c.b16 %v3001, %v3000
    %v4088 = vpack.c.b16 %v3003, %v3002
    %v4089 = vpack.c.b16 %v3005, %v3004
    %v4090 = vpack.c.b16 %v3007, %v3006
    %v4091 = vpack.c.b16 %v3009, %v3008
    %v4092 = vpack.c.b16 %v3011, %v3010
    %v4093 = vpack.c.b16 %v3013, %v3012
    %v4094 = vpack.c.b16 %v3015, %v3014
    %v4095 = vpack.c.b16 %v3017, %v3016
    %v4096 = vpack.c.b16 %v3019, %v3018
    %v4097 = vpack.c.b16 %v3021, %v3020
    %v4098 = vpack.c.b16 %v3023, %v3022
    %v4099 = vpack.c.b16 %v3025, %v3024
    %v4100 = vpack.c.b16 %v3027, %v3026
    %v4101 = vpack.c.b16 %v3029, %v3028
    %v4102 = vpack.c.b16 %v3031, %v3030
    %v4103 = vpack.c.b16 %v3033, %v3032
    %v4104 = vpack.c.b16 %v3035, %v3034
    %v4105 = vpack.c.b16 %v3037, %v3036
    %v4106 = vpack.c.b16 %v3039, %v3038
    %v4107 = vpack.c.b16 %v3041, %v3040
    %v4108 = vpack.c.b16 %v3043, %v3042
    %v4109 = vpack.c.b16 %v3045, %v3044
    %v4110 = vpack.c.b16 %v3047, %v3046
    %v4111 = vpack.c.b16 %v3049, %v3048
    %v4112 = vpack.c.b16 %v3051, %v3050
    %v4113 = vpack.c.b16 %v3053, %v3052
    %v4114 = vpack.c.b16 %v3055, %v3054
    %v4115 = vpack.c.b16 %v3057, %v3056
    %v4116 = vpack.c.b16 %v3059, %v3058
    %v4117 = vpack.c.b16 %v3061, %v3060
    %v4118 = vpack.c.b16 %v3063, %v3062
    %v4119 = vpack.c.b16 %v3065, %v3064
    %v4120 = vpack.c.b16 %v3067, %v3066
    %v4121 = vpack.c.b16 %v3069, %v3068
    %v4122 = vpack.c.b16 %v3071, %v3070
    %v4123 = vpack.c.b16 %v3073, %v3072
    %v4124 = vpack.c.b16 %v3075, %v3074
    %v4125 = vpack.c.b16 %v3077, %v3076
    %v4126 = vpack.c.b16 %v3079, %v3078
    %v4127 = vpack.c.b16 %v3081, %v3080
    %v4128 = vpack.c.b16 %v3083, %v3082
    %v4129 = vpack.c.b16 %v3085, %v3084
    %v4130 = vpack.c.b16 %v3087, %v3086
    %v4131 = vpack.c.b16 %v3089, %v3088
    %v4132 = vpack.c.b16 %v3091, %v3090
    %v4133 = vpack.c.b16 %v3093, %v3092
    %v4134 = vpack.c.b16 %v3095, %v3094
    %v4135 = vpack.c.b16 %v3097, %v3096
    %v4136 = vpack.c.b16 %v3099, %v3098
    %v4137 = vpack.c.b16 %v3101, %v3100
    %v4138 = vpack.c.b16 %v3103, %v3102
    %v4139 = vpack.c.b16 %v3105, %v3104
    %v4140 = vpack.c.b16 %v3107, %v3106
    %v4141 = vpack.c.b16 %v3109, %v3108
    %v4142 = vpack.c.b16 %v3111, %v3110
    %v4143 = vpack.c.b16 %v3113, %v3112
    %v4144 = vpack.c.b16 %v3115, %v3114
    %v4145 = vpack.c.b16 %v3117, %v3116
    %v4146 = vpack.c.b16 %v3119, %v3118
    %v4147 = vpack.c.b16 %v3121, %v3120
    %v4148 = vpack.c.b16 %v3123, %v3122
    %v4149 = vpack.c.b16 %v3125, %v3124
    %v4150 = vpack.c.b16 %v3127, %v3126
    %v4151 = vpack.c.b16 %v3129, %v3128
    %v4152 = vpack.c.b16 %v3131, %v3130
    %v4153 = vpack.c.b16 %v3133, %v3132
    %v4154 = vpack.c.b16 %v3135, %v3134
    %v4155 = vpack.c.b16 %v3137, %v3136
    %v4156 = vpack.c.b16 %v3139, %v3138
    %v4157 = vpack.c.b16 %v3141, %v3140
    %v4158 = vpack.c.b16 %v3143, %v3142
    %v4159 = vpack.c.b16 %v3145, %v3144
    %v4160 = vpack.c.b16 %v3147, %v3146
    %v4161 = vpack.c.b16 %v3149, %v3148
    %v4162 = vpack.c.b16 %v3151, %v3150
    %v4163 = vpack.c.b16 %v3153, %v3152
    %v4164 = vpack.c.b16 %v3155, %v3154
    %v4165 = vpack.c.b16 %v3157, %v3156
    %v4166 = vpack.c.b16 %v3159, %v3158
    %v4167 = vpack.c.b16 %v3161, %v3160
    %v4168 = vpack.c.b16 %v3163, %v3162
    %v4169 = vpack.c.b16 %v3165, %v3164
    %v4170 = vpack.c.b16 %v3167, %v3166
    %v4171 = vpack.c.b16 %v3169, %v3168
    %v4172 = vpack.c.b16 %v3171, %v3170
    %v4173 = vpack.c.b16 %v3173, %v3172
    %v4174 = vpack.c.b16 %v3175, %v3174
    %v4175 = vpack.c.b16 %v3177, %v3176
    %v4176 = vpack.c.b16 %v3179, %v3178
    %v4177 = vpack.c.b16 %v3181, %v3180
    %v4178 = vpack.c.b16 %v3183, %v3182
    %v4179 = vpack.c.b16 %v3185, %v3184
    %v4180 = vpack.c.b16 %v3187, %v3186
    %v4181 = vpack.c.b16 %v3189, %v3188
    %v4182 = vpack.c.b16 %v3191, %v3190
    %v4183 = vpack.c.b16 %v3193, %v3192
    %v4184 = vpack.c.b16 %v3195, %v3194
    %v4185 = vpack.c.b16 %v3197, %v3196
    %v4186 = vpack.c.b16 %v3199, %v3198
    %v4187 = vpack.c.b16 %v3201, %v3200
    %v4188 = vpack.c.b16 %v3203, %v3202
    %v4189 = vpack.c.b16 %v3205, %v3204
    %v4190 = vpack.c.b16 %v3207, %v3206
    %v4191 = vpack.c.b16 %v3209, %v3208
    %v4192 = vpack.c.b16 %v3211, %v3210
    %v4193 = vpack.c.b16 %v3213, %v3212
    %v4194 = vpack.c.b16 %v3215, %v3214
    %v4195 = vpack.c.b16 %v3217, %v3216
    %v4196 = vpack.c.b16 %v3219, %v3218
    %v4197 = vpack.c.b16 %v3221, %v3220
    %v4198 = vpack.c.b16 %v3223, %v3222
    %v4199 = vpack.c.b16 %v3225, %v3224
    %v4200 = vpack.c.b16 %v3227, %v3226
    %v4201 = vpack.c.b16 %v3229, %v3228
    %v4202 = vpack.c.b16 %v3231, %v3230
    %v4203 = vpack.c.b16 %v3233, %v3232
    %v4204 = vpack.c.b16 %v3235, %v3234
    %v4205 = vpack.c.b16 %v3237, %v3236
    %v4206 = vpack.c.b16 %v3239, %v3238
    %v4207 = vpack.c.b16 %v3241, %v3240
    %v4208 = vpack.c.b16 %v3243, %v3242
    %v4209 = vpack.c.b16 %v3245, %v3244
    %v4210 = vpack.c.b16 %v3247, %v3246
    %v4211 = vpack.c.b16 %v3249, %v3248
    %v4212 = vpack.c.b16 %v3251, %v3250
    %v4213 = vpack.c.b16 %v3253, %v3252
    %v4214 = vpack.c.b16 %v3255, %v3254
    %v4215 = vpack.c.b16 %v3257, %v3256
    %v4216 = vpack.c.b16 %v3259, %v3258
    %v4217 = vpack.c.b16 %v3261, %v3260
    %v4218 = vpack.c.b16 %v3263, %v3262
    %v4219 = vpack.c.b16 %v3265, %v3264
    %v4220 = vpack.c.b16 %v3267, %v3266
    %v4221 = vpack.c.b16 %v3269, %v3268
    %v4222 = vpack.c.b16 %v3271, %v3270
    %v4223 = vpack.c.b16 %v3273, %v3272
    %v4224 = vpack.c.b16 %v3275, %v3274
    %v4225 = vpack.c.b16 %v3277, %v3276
    %v4226 = vpack.c.b16 %v3279, %v3278
    %v4227 = vpack.c.b16 %v3281, %v3280
    %v4228 = vpack.c.b16 %v3283, %v3282
    %v4229 = vpack.c.b16 %v3285, %v3284
    %v4230 = vpack.c.b16 %v3287, %v3286
    %v4231 = vpack.c.b16 %v3289, %v3288
    %v4232 = vpack.c.b16 %v3291, %v3290
    %v4233 = vpack.c.b16 %v3293, %v3292
    %v4234 = vpack.c.b16 %v3295, %v3294
    %v4235 = vpack.c.b16 %v3297, %v3296
    %v4236 = vpack.c.b16 %v3299, %v3298
    %v4237 = vpack.c.b16 %v3301, %v3300
    %v4238 = vpack.c.b16 %v3303, %v3302
    %v4239 = vpack.c.b16 %v3305, %v3304
    %v4240 = vpack.c.b16 %v3307, %v3306
    %v4241 = vpack.c.b16 %v3309, %v3308
    %v4242 = vpack.c.b16 %v3311, %v3310
    %v4243 = vpack.c.b16 %v3313, %v3312
    %v4244 = vpack.c.b16 %v3315, %v3314
    %v4245 = vpack.c.b16 %v3317, %v3316
    %v4246 = vpack.c.b16 %v3319, %v3318
    %v4247 = vpack.c.b16 %v3321, %v3320
    %v4248 = vpack.c.b16 %v3323, %v3322
    %v4249 = vpack.c.b16 %v3325, %v3324
    %v4250 = vpack.c.b16 %v3327, %v3326
    %v4251 = vpack.c.b16 %v3329, %v3328
    %v4252 = vpack.c.b16 %v3331, %v3330
    %v4253 = vpack.c.b16 %v3333, %v3332
    %v4254 = vpack.c.b16 %v3335, %v3334
    %v4255 = vpack.c.b16 %v3337, %v3336
    %v4256 = vpack.c.b16 %v3339, %v3338
    %v4257 = vpack.c.b16 %v3341, %v3340
    %v4258 = vpack.c.b16 %v3343, %v3342
    %v4259 = vpack.c.b16 %v3345, %v3344
    %v4260 = vpack.c.b16 %v3347, %v3346
    %v4261 = vpack.c.b16 %v3349, %v3348
    %v4262 = vpack.c.b16 %v3351, %v3350
    %v4263 = vpack.c.b16 %v3353, %v3352
    %v4264 = vpack.c.b16 %v3355, %v3354
    %v4265 = vpack.c.b16 %v3357, %v3356
    %v4266 = vpack.c.b16 %v3359, %v3358
    %v4267 = vpack.c.b16 %v3361, %v3360
    %v4268 = vpack.c.b16 %v3363, %v3362
    %v4269 = vpack.c.b16 %v3365, %v3364
    %v4270 = vpack.c.b16 %v3367, %v3366
    %v4271 = vpack.c.b16 %v3369, %v3368
    %v4272 = vpack.c.b16 %v3371, %v3370
    %v4273 = vpack.c.b16 %v3373, %v3372
    %v4274 = vpack.c.b16 %v3375, %v3374
    %v4275 = vpack.c.b16 %v3377, %v3376
    %v4276 = vpack.c.b16 %v3379, %v3378
    %v4277 = vpack.c.b16 %v3381, %v3380
    %v4278 = vpack.c.b16 %v3383, %v3382
    %v4279 = vpack.c.b16 %v3385, %v3384
    %v4280 = vpack.c.b16 %v3387, %v3386
    %v4281 = vpack.c.b16 %v3389, %v3388
    %v4282 = vpack.c.b16 %v3391, %v3390
    %v4283 = vpack.c.b16 %v3393, %v3392
    %v4284 = vpack.c.b16 %v3395, %v3394
    %v4285 = vpack.c.b16 %v3397, %v3396
    %v4286 = vpack.c.b16 %v3399, %v3398
    %v4287 = vpack.c.b16 %v3401, %v3400
    %v4288 = vpack.c.b16 %v3403, %v3402
    %v4289 = vpack.c.b16 %v3405, %v3404
    %v4290 = vpack.c.b16 %v3407, %v3406
    %v4291 = vpack.c.b16 %v3409, %v3408
    %v4292 = vpack.c.b16 %v3411, %v3410
    %v4293 = vpack.c.b16 %v3413, %v3412
    %v4294 = vpack.c.b16 %v3415, %v3414
    %v4295 = vpack.c.b16 %v3417, %v3416
    %v4296 = vpack.c.b16 %v3419, %v3418
    %v4297 = vpack.c.b16 %v3421, %v3420
    %v4298 = vpack.c.b16 %v3423, %v3422
    %v4299 = vpack.c.b16 %v3425, %v3424
    %v4300 = vpack.c.b16 %v3427, %v3426
    %v4301 = vpack.c.b16 %v3429, %v3428
    %v4302 = vpack.c.b16 %v3431, %v3430
    %v4303 = vpack.c.b16 %v3433, %v3432
    %v4304 = vpack.c.b16 %v3435, %v3434
    %v4305 = vpack.c.b16 %v3437, %v3436
    %v4306 = vpack.c.b16 %v3439, %v3438
    %v4307 = vpack.c.b16 %v3441, %v3440
    %v4308 = vpack.c.b16 %v3443, %v3442
    %v4309 = vpack.c.b16 %v3445, %v3444
    %v4310 = vpack.c.b16 %v3447, %v3446
    %v4311 = vpack.c.b16 %v3449, %v3448
    %v4312 = vpack.c.b16 %v3451, %v3450
    %v4313 = vpack.c.b16 %v3453, %v3452
    %v4314 = vpack.c.b16 %v3455, %v3454
    %v4315 = vpack.c.b16 %v3457, %v3456
    %v4316 = vpack.c.b16 %v3459, %v3458
    %v4317 = vpack.c.b16 %v3461, %v3460
    %v4318 = vpack.c.b16 %v3463, %v3462
    %v4319 = vpack.c.b16 %v3465, %v3464
    %v4320 = vpack.c.b16 %v3467, %v3466
    %v4321 = vpack.c.b16 %v3469, %v3468
    %v4322 = vpack.c.b16 %v3471, %v3470
    %v4323 = vpack.c.b16 %v3473, %v3472
    %v4324 = vpack.c.b16 %v3475, %v3474
    %v4325 = vpack.c.b16 %v3477, %v3476
    %v4326 = vpack.c.b16 %v3479, %v3478
    %v4327 = vpack.c.b16 %v3481, %v3480
    %v4328 = vpack.c.b16 %v3483, %v3482
    %v4329 = vpack.c.b16 %v3485, %v3484
    %v4330 = vpack.c.b16 %v3487, %v3486
    %v4331 = vpack.c.b16 %v3489, %v3488
    %v4332 = vpack.c.b16 %v3491, %v3490
    %v4333 = vpack.c.b16 %v3493, %v3492
    %v4334 = vpack.c.b16 %v3495, %v3494
    %v4335 = vpack.c.b16 %v3497, %v3496
    %v4336 = vpack.c.b16 %v3499, %v3498
    %v4337 = vpack.c.b16 %v3501, %v3500
    %v4338 = vpack.c.b16 %v3503, %v3502
    %v4339 = vpack.c.b16 %v3505, %v3504
    %v4340 = vpack.c.b16 %v3507, %v3506
    %v4341 = vpack.c.b16 %v3509, %v3508
    %v4342 = vpack.c.b16 %v3511, %v3510
    %v4343 = vpack.c.b16 %v3513, %v3512
    %v4344 = vpack.c.b16 %v3515, %v3514
    %v4345 = vpack.c.b16 %v3517, %v3516
    %v4346 = vpack.c.b16 %v3519, %v3518
    %v4347 = vpack.c.b16 %v3521, %v3520
    %v4348 = vpack.c.b16 %v3523, %v3522
    %v4349 = vpack.c.b16 %v3525, %v3524
    %v4350 = vpack.c.b16 %v3527, %v3526
    %v4351 = vpack.c.b16 %v3529, %v3528
    %v4352 = vpack.c.b16 %v3531, %v3530
    %v4353 = vpack.c.b16 %v3533, %v3532
    %v4354 = vpack.c.b16 %v3535, %v3534
    %v4355 = vpack.c.b16 %v3537, %v3536
    %v4356 = vpack.c.b16 %v3539, %v3538
    %v4357 = vpack.c.b16 %v3541, %v3540
    %v4358 = vpack.c.b16 %v3543, %v3542
    %v4359 = vpack.c.b16 %v3545, %v3544
    %v4360 = vpack.c.b16 %v3547, %v3546
    %v4361 = vpack.c.b16 %v3549, %v3548
    %v4362 = vpack.c.b16 %v3551, %v3550
    %v4363 = vpack.c.b16 %v3553, %v3552
    %v4364 = vpack.c.b16 %v3555, %v3554
    %v4365 = vpack.c.b16 %v3557, %v3556
    %v4366 = vpack.c.b16 %v3559, %v3558
    %v4367 = vpack.c.b16 %v3561, %v3560
    %v4368 = vpack.c.b16 %v3563, %v3562
    %v4369 = vpack.c.b16 %v3565, %v3564
    %v4370 = vpack.c.b16 %v3567, %v3566
    %v4371 = vpack.c.b16 %v3569, %v3568
    %v4372 = vpack.c.b16 %v3571, %v3570
    %v4373 = vpack.c.b16 %v3573, %v3572
    %v4374 = vpack.c.b16 %v3575, %v3574
    %v4375 = vpack.c.b16 %v3577, %v3576
    %v4376 = vpack.c.b16 %v3579, %v3578
    %v4377 = vpack.c.b16 %v3581, %v3580
    %v4378 = vpack.c.b16 %v3583, %v3582
    %v4379 = vpack.c.b16 %v3585, %v3584
    %v4380 = vpack.c.b16 %v3587, %v3586
    %v4381 = vpack.c.b16 %v3589, %v3588
    %v4382 = vpack.c.b16 %v3591, %v3590
    %v4383 = vpack.c.b16 %v3593, %v3592
    %v4384 = vpack.c.b16 %v3595, %v3594
    %v4385 = vpack.c.b16 %v3597, %v3596
    %v4386 = vpack.c.b16 %v3599, %v3598
    %v4387 = vpack.c.b16 %v3601, %v3600
    %v4388 = vpack.c.b16 %v3603, %v3602
    %v4389 = vpack.c.b16 %v3605, %v3604
    %v4390 = vpack.c.b16 %v3607, %v3606
    %v4391 = vpack.c.b16 %v3609, %v3608
    %v4392 = vpack.c.b16 %v3611, %v3610
    %v4393 = vpack.c.b16 %v3613, %v3612
    %v4394 = vpack.c.b16 %v3615, %v3614
    %v4395 = vpack.c.b16 %v3617, %v3616
    %v4396 = vpack.c.b16 %v3619, %v3618
    %v4397 = vpack.c.b16 %v3621, %v3620
    %v4398 = vpack.c.b16 %v3623, %v3622
    %v4399 = vpack.c.b16 %v3625, %v3624
    %v4400 = vpack.c.b16 %v3627, %v3626
    %v4401 = vpack.c.b16 %v3629, %v3628
    %v4402 = vpack.c.b16 %v3631, %v3630
    %v4403 = vpack.c.b16 %v3633, %v3632
    %v4404 = vpack.c.b16 %v3635, %v3634
    %v4405 = vpack.c.b16 %v3637, %v3636
    %v4406 = vpack.c.b16 %v3639, %v3638
    %v4407 = vpack.c.b16 %v3641, %v3640
    %v4408 = vpack.c.b16 %v3643, %v3642
    %v4409 = vpack.c.b16 %v3645, %v3644
    %v4410 = vpack.c.b16 %v3647, %v3646
    %v4411 = vpack.c.b16 %v3649, %v3648
    %v4412 = vpack.c.b16 %v3651, %v3650
    %v4413 = vpack.c.b16 %v3653, %v3652
    %v4414 = vpack.c.b16 %v3655, %v3654
    %v4415 = vpack.c.b16 %v3657, %v3656
    %v4416 = vpack.c.b16 %v3659, %v3658
    %v4417 = vpack.c.b16 %v3661, %v3660
    %v4418 = vpack.c.b16 %v3663, %v3662
    %v4419 = vpack.c.b16 %v3665, %v3664
    %v4420 = vpack.c.b16 %v3667, %v3666
    %v4421 = vpack.c.b16 %v3669, %v3668
    %v4422 = vpack.c.b16 %v3671, %v3670
    %v4423 = vpack.c.b16 %v3673, %v3672
    %v4424 = vpack.c.b16 %v3675, %v3674
    %v4425 = vpack.c.b16 %v3677, %v3676
    %v4426 = vpack.c.b16 %v3679, %v3678
    %v4427 = vpack.c.b16 %v3681, %v3680
    %v4428 = vpack.c.b16 %v3683, %v3682
    %v4429 = vpack.c.b16 %v3685, %v3684
    %v4430 = vpack.c.b16 %v3687, %v3686
    %v4431 = vpack.c.b16 %v3689, %v3688
    %v4432 = vpack.c.b16 %v3691, %v3690
    %v4433 = vpack.c.b16 %v3693, %v3692
    %v4434 = vpack.c.b16 %v3695, %v3694
    %v4435 = vpack.c.b16 %v3697, %v3696
    %v4436 = vpack.c.b16 %v3699, %v3698
    %v4437 = vpack.c.b16 %v3701, %v3700
    %v4438 = vpack.c.b16 %v3703, %v3702
    %v4439 = vpack.c.b16 %v3705, %v3704
    %v4440 = vpack.c.b16 %v3707, %v3706
    %v4441 = vpack.c.b16 %v3709, %v3708
    %v4442 = vpack.c.b16 %v3711, %v3710
    %v4443 = vpack.c.b16 %v3713, %v3712
    %v4444 = vpack.c.b16 %v3715, %v3714
    %v4445 = vpack.c.b16 %v3717, %v3716
    %v4446 = vpack.c.b16 %v3719, %v3718
    %v4447 = vpack.c.b16 %v3721, %v3720
    %v4448 = vpack.c.b16 %v3723, %v3722
    %v4449 = vpack.c.b16 %v3725, %v3724
    %v4450 = vpack.c.b16 %v3727, %v3726
    %v4451 = vpack.c.b16 %v3729, %v3728
    %v4452 = vpack.c.b16 %v3731, %v3730
    %v4453 = vpack.c.b16 %v3733, %v3732
    %v4454 = vpack.c.b16 %v3735, %v3734
    %v4455 = vpack.c.b16 %v3737, %v3736
    %v4456 = vpack.c.b16 %v3739, %v3738
    %v4457 = vpack.c.b16 %v3741, %v3740
    %v4458 = vpack.c.b16 %v3743, %v3742
    %v4459 = vpack.c.b16 %v3745, %v3744
    %v4460 = vpack.c.b16 %v3747, %v3746
    %v4461 = vpack.c.b16 %v3749, %v3748
    %v4462 = vpack.c.b16 %v3751, %v3750
    %v4463 = vpack.c.b16 %v3753, %v3752
    %v4464 = vpack.c.b16 %v3755, %v3754
    %v4465 = vpack.c.b16 %v3757, %v3756
    %v4466 = vpack.c.b16 %v3759, %v3758
    %v4467 = vpack.c.b16 %v3761, %v3760
    %v4468 = vpack.c.b16 %v3763, %v3762
    %v4469 = vpack.c.b16 %v3765, %v3764
    %v4470 = vpack.c.b16 %v3767, %v3766
    %v4471 = vpack.c.b16 %v3769, %v3768
    %v4472 = vpack.c.b16 %v3771, %v3770
    %v4473 = vpack.c.b16 %v3773, %v3772
    %v4474 = vpack.c.b16 %v3775, %v3774
    %v4475 = vpack.c.b16 %v3777, %v3776
    %v4476 = vpack.c.b16 %v3779, %v3778
    %v4477 = vpack.c.b16 %v3781, %v3780
    %v4478 = vpack.c.b16 %v3783, %v3782
    %v4479 = vpack.c.b16 %v3785, %v3784
    %v4480 = vpack.c.b16 %v3787, %v3786
    %v4481 = vpack.c.b16 %v3789, %v3788
    %v4482 = vpack.c.b16 %v3791, %v3790
    %v4483 = vpack.c.b16 %v3793, %v3792
    %v4484 = vpack.c.b16 %v3795, %v3794
    %v4485 = vpack.c.b16 %v3797, %v3796
    %v4486 = vpack.c.b16 %v3799, %v3798
    %v4487 = vpack.c.b16 %v3801, %v3800
    %v4488 = vpack.c.b16 %v3803, %v3802
    %v4489 = vpack.c.b16 %v3805, %v3804
    %v4490 = vpack.c.b16 %v3807, %v3806
    %v4491 = vpack.c.b16 %v3809, %v3808
    %v4492 = vpack.c.b16 %v3811, %v3810
    %v4493 = vpack.c.b16 %v3813, %v3812
    %v4494 = vpack.c.b16 %v3815, %v3814
    %v4495 = vpack.c.b16 %v3817, %v3816
    %v4496 = vpack.c.b16 %v3819, %v3818
    %v4497 = vpack.c.b16 %v3821, %v3820
    %v4498 = vpack.c.b16 %v3823, %v3822
    %v4499 = vpack.c.b16 %v3825, %v3824
    %v4500 = vpack.c.b16 %v3827, %v3826
    %v4501 = vpack.c.b16 %v3829, %v3828
    %v4502 = vpack.c.b16 %v3831, %v3830
    %v4503 = vpack.c.b16 %v3833, %v3832
    %v4504 = vpack.c.b16 %v3835, %v3834
    %v4505 = vpack.c.b16 %v3837, %v3836
    %v4506 = vpack.c.b16 %v3839, %v3838
    %v4507 = vpack.c.b16 %v3841, %v3840
    %v4508 = vpack.c.b16 %v3843, %v3842
    %v4509 = vpack.c.b16 %v3845, %v3844
    %v4510 = vpack.c.b16 %v3847, %v3846
    %v4511 = vpack.c.b16 %v3849, %v3848
    %v4512 = vpack.c.b16 %v3851, %v3850
    %v4513 = vpack.c.b16 %v3853, %v3852
    %v4514 = vpack.c.b16 %v3855, %v3854
    %v4515 = vpack.c.b16 %v3857, %v3856
    %v4516 = vpack.c.b16 %v3859, %v3858
    %v4517 = vpack.c.b16 %v3861, %v3860
    %v4518 = vpack.c.b16 %v3863, %v3862
    %v4519 = vpack.c.b16 %v3865, %v3864
    %v4520 = vpack.c.b16 %v3867, %v3866
    %v4521 = vpack.c.b16 %v3869, %v3868
    %v4522 = vpack.c.b16 %v3871, %v3870
    %v4523 = vpack.c.b16 %v3873, %v3872
    %v4524 = vpack.c.b16 %v3875, %v3874
    %v4525 = vpack.c.b16 %v3877, %v3876
    %v4526 = vpack.c.b16 %v3879, %v3878
    %v4527 = vpack.c.b16 %v3881, %v3880
    %v4528 = vpack.c.b16 %v3883, %v3882
    %v4529 = vpack.c.b16 %v3885, %v3884
    %v4530 = vpack.c.b16 %v3887, %v3886
    %v4531 = vpack.c.b16 %v3889, %v3888
    %v4532 = vpack.c.b16 %v3891, %v3890
    %v4533 = vpack.c.b16 %v3893, %v3892
    %v4534 = vpack.c.b16 %v3895, %v3894
    %v4535 = vpack.c.b16 %v3897, %v3896
    %v4536 = vpack.c.b16 %v3899, %v3898
    %v4537 = vpack.c.b16 %v3901, %v3900
    %v4538 = vpack.c.b16 %v3903, %v3902
    %v4539 = vpack.c.b16 %v3905, %v3904
    %v4540 = vpack.c.b16 %v3907, %v3906
    %v4541 = vpack.c.b16 %v3909, %v3908
    %v4542 = vpack.c.b16 %v3911, %v3910
    %v4543 = vpack.c.b16 %v3913, %v3912
    %v4544 = vpack.c.b16 %v3915, %v3914
    %v4545 = vpack.c.b16 %v3917, %v3916
    %v4546 = vpack.c.b16 %v3919, %v3918
    %v4547 = vpack.c.b16 %v3921, %v3920
    %v4548 = vpack.c.b16 %v3923, %v3922
    %v4549 = vpack.c.b16 %v3925, %v3924
    %v4550 = vpack.c.b16 %v3927, %v3926
    %v4551 = vpack.c.b16 %v3929, %v3928
    %v4552 = vpack.c.b16 %v3931, %v3930
    %v4553 = vpack.c.b16 %v3933, %v3932
    %v4554 = vpack.c.b16 %v3935, %v3934
    %v4555 = vpack.c.b16 %v3937, %v3936
    %v4556 = vpack.c.b16 %v3939, %v3938
    %v4557 = vpack.c.b16 %v3941, %v3940
    %v4558 = vpack.c.b16 %v3943, %v3942
    %v4559 = vpack.c.b16 %v3945, %v3944
    %v4560 = vpack.c.b16 %v3947, %v3946
    %v4561 = vpack.c.b16 %v3949, %v3948
    %v4562 = vpack.c.b16 %v3951, %v3950
    %v4563 = vpack.c.b16 %v3953, %v3952
    %v4564 = vpack.c.b16 %v3955, %v3954
    %v4565 = vpack.c.b16 %v3957, %v3956
    %v4566 = vpack.c.b16 %v3959, %v3958
    %v4567 = vpack.c.b16 %v3961, %v3960
    %v4568 = vpack.c.b16 %v3963, %v3962
    %v4569 = vpack.c.b16 %v3965, %v3964
    %v4570 = vpack.c.b16 %v3967, %v3966
    %v4571 = vpack.c.b16 %v3969, %v3968
    %v4572 = vpack.c.b16 %v3971, %v3970
    %v4573 = vpack.c.b16 %v3973, %v3972
    %v4574 = vpack.c.b16 %v3975, %v3974
    %v4575 = vpack.c.b16 %v3977, %v3976
    %v4576 = vpack.c.b16 %v3979, %v3978
    %v4577 = vpack.c.b16 %v3981, %v3980
    %v4578 = vpack.c.b16 %v3983, %v3982
    %v4579 = vpack.c.b16 %v3985, %v3984
    %v4580 = vpack.c.b16 %v3987, %v3986
    %v4581 = vpack.c.b16 %v3989, %v3988
    %v4582 = vpack.c.b16 %v3991, %v3990
    %v4583 = vpack.c.b16 %v3993, %v3992
    %v4584 = vpack.c.b16 %v3995, %v3994
    %v4585 = vpack.c.b16 %v3997, %v3996
    %v4586 = vpack.c.b16 %v3999, %v3998
    %v4587 = vpack.c.b16 %v4001, %v4000
    %v4588 = vpack.c.b16 %v4003, %v4002
    %v4589 = vpack.c.b16 %v4005, %v4004
    %v4590 = vpack.c.b16 %v4007, %v4006
    %v4591 = vpack.c.b16 %v4009, %v4008
    %v4592 = vpack.c.b16 %v4011, %v4010
    %v4593 = vpack.c.b16 %v4013, %v4012
    %v4594 = vpack.c.b16 %v4015, %v4014
    %v4595 = vpack.c.b16 %v4017, %v4016
    %v4596 = vpack.c.b16 %v4019, %v4018
    %v4597 = vpack.c.b16 %v4021, %v4020
    %5174 = vmatprep.subr.bf16.mxu0 0
    %5175 = vmatpush1.bf16.msra.mxu0 %v4022
    %5176 = vmatprep.subr.bf16.mxu0 0
    %5177 = vmatpush1.bf16.msra.mxu0 %v4023
    %5178 = vmatprep.subr.bf16.mxu0 0
    %5179 = vmatpush1.bf16.msra.mxu0 %v4024
    %5180 = vmatprep.subr.bf16.mxu0 0
    %5181 = vmatpush1.bf16.msra.mxu0 %v4025
    %5182 = vmatprep.subr.bf16.mxu0 0
    %5183 = vmatpush1.bf16.msra.mxu0 %v4026
    %5184 = vmatprep.subr.bf16.mxu0 0
    %5185 = vmatpush1.bf16.msra.mxu0 %v4027
    %5186 = vmatprep.subr.bf16.mxu0 0
    %5187 = vmatpush1.bf16.msra.mxu0 %v4028
    %5188 = vmatprep.subr.bf16.mxu0 0
    %5189 = vmatpush1.bf16.msra.mxu0 %v4029
    %5190 = vmatprep.subr.bf16.mxu0 0
    %5191 = vmatpush1.bf16.msra.mxu0 %v4030
    %5192 = vmatprep.subr.bf16.mxu0 0
    %5193 = vmatpush1.bf16.msra.mxu0 %v4031
    %5194 = vmatprep.subr.bf16.mxu0 0
    %5195 = vmatpush1.bf16.msra.mxu0 %v4032
    %5196 = vmatprep.subr.bf16.mxu0 0
    %5197 = vmatpush1.bf16.msra.mxu0 %v4033
    %5198 = vmatprep.subr.bf16.mxu0 0
    %5199 = vmatpush1.bf16.msra.mxu0 %v4034
    %5200 = vmatprep.subr.bf16.mxu0 0
    %5201 = vmatpush1.bf16.msra.mxu0 %v4035
    %5202 = vmatprep.subr.bf16.mxu0 0
    %5203 = vmatpush1.bf16.msra.mxu0 %v4036
    %5204 = vmatprep.subr.bf16.mxu0 0
    %5205 = vmatpush1.bf16.msra.mxu0 %v4037
    %5206 = vmatprep.mubr.bf16.mxu0 %v1242
    %5207 = vmatmul.mubr.bf16.gmra.mrb[0].mxu0 %v1228
    %v5208 = vpop.f32.mrb[0].mxu0
    %v5209 = vadd.f32 %v1194, %v5208
    %v5210 = vpop.f32.mrb[0].mxu0
    %v5211 = vpop.f32.mrb[0].mxu0
    %v5212 = vpop.f32.mrb[0].mxu0
    %5213 = vdwg.mxu0
    %5214 = vmatprep.subr.bf16.mxu0 0
    %5215 = vmatpush1.bf16.msra.mxu0 %v4038
    %5216 = vmatprep.subr.bf16.mxu0 0
    %5217 = vmatpush1.bf16.msra.mxu0 %v4039
    %5218 = vmatprep.subr.bf16.mxu0 0
    %5219 = vmatpush1.bf16.msra.mxu0 %v4040
    %5220 = vmatprep.subr.bf16.mxu0 0
    %5221 = vmatpush1.bf16.msra.mxu0 %v4041
    %5222 = vmatprep.subr.bf16.mxu0 0
    %5223 = vmatpush1.bf16.msra.mxu0 %v4042
    %5224 = vmatprep.subr.bf16.mxu0 0
    %5225 = vmatpush1.bf16.msra.mxu0 %v4043
    %5226 = vmatprep.subr.bf16.mxu0 0
    %5227 = vmatpush1.bf16.msra.mxu0 %v4044
    %5228 = vmatprep.subr.bf16.mxu0 0
    %5229 = vmatpush1.bf16.msra.mxu0 %v4045
    %5230 = vmatprep.subr.bf16.mxu0 0
    %5231 = vmatpush1.bf16.msra.mxu0 %v4046
    %5232 = vmatprep.subr.bf16.mxu0 0
    %5233 = vmatpush1.bf16.msra.mxu0 %v4047
    %5234 = vmatprep.subr.bf16.mxu0 0
    %5235 = vmatpush1.bf16.msra.mxu0 %v4048
    %5236 = vmatprep.subr.bf16.mxu0 0
    %5237 = vmatpush1.bf16.msra.mxu0 %v4049
    %5238 = vmatprep.subr.bf16.mxu0 0
    %5239 = vmatpush1.bf16.msra.mxu0 %v4050
    %5240 = vmatprep.subr.bf16.mxu0 0
    %5241 = vmatpush1.bf16.msra.mxu0 %v4051
    %5242 = vmatprep.subr.bf16.mxu0 0
    %5243 = vmatpush1.bf16.msra.mxu0 %v4052
    %5244 = vmatprep.subr.bf16.mxu0 0
    %5245 = vmatpush1.bf16.msra.mxu0 %v4053
    %5246 = vmatprep.mubr.bf16.mxu0 %v1252
    %5247 = vmatmul.mubr.bf16.gmra.mrb[0].mxu0 %v1250
    %v5248 = vpop.f32.mrb[0].mxu0
    %v5249 = vadd.f32 %v5209, %v5248
    %v5250 = vpop.f32.mrb[0].mxu0
    %v5251 = vpop.f32.mrb[0].mxu0
    %v5252 = vpop.f32.mrb[0].mxu0
    %5253 = vdwg.mxu0
    %5254 = vmatprep.subr.bf16.mxu0 0
    %5255 = vmatpush1.bf16.msra.mxu0 %v4054
    %5256 = vmatprep.subr.bf16.mxu0 0
    %5257 = vmatpush1.bf16.msra.mxu0 %v4055
    %5258 = vmatprep.subr.bf16.mxu0 0
    %5259 = vmatpush1.bf16.msra.mxu0 %v4056
    %5260 = vmatprep.subr.bf16.mxu0 0
    %5261 = vmatpush1.bf16.msra.mxu0 %v4057
    %5262 = vmatprep.subr.bf16.mxu0 0
    %5263 = vmatpush1.bf16.msra.mxu0 %v4058
    %5264 = vmatprep.subr.bf16.mxu0 0
    %5265 = vmatpush1.bf16.msra.mxu0 %v4059
    %5266 = vmatprep.subr.bf16.mxu0 0
    %5267 = vmatpush1.bf16.msra.mxu0 %v4060
    %5268 = vmatprep.subr.bf16.mxu0 0
    %5269 = vmatpush1.bf16.msra.mxu0 %v4061
    %5270 = vmatprep.subr.bf16.mxu0 0
    %5271 = vmatpush1.bf16.msra.mxu0 %v4062
    %5272 = vmatprep.subr.bf16.mxu0 0
    %5273 = vmatpush1.bf16.msra.mxu0 %v4063
    %5274 = vmatprep.subr.bf16.mxu0 0
    %5275 = vmatpush1.bf16.msra.mxu0 %v4064
    %5276 = vmatprep.subr.bf16.mxu0 0
    %5277 = vmatpush1.bf16.msra.mxu0 %v4065
    %5278 = vmatprep.subr.bf16.mxu0 0
    %5279 = vmatpush1.bf16.msra.mxu0 %v4066
    %5280 = vmatprep.subr.bf16.mxu0 0
    %5281 = vmatpush1.bf16.msra.mxu0 %v4067
    %5282 = vmatprep.subr.bf16.mxu0 0
    %5283 = vmatpush1.bf16.msra.mxu0 %v4068
    %5284 = vmatprep.subr.bf16.mxu0 0
    %5285 = vmatpush1.bf16.msra.mxu0 %v4069
    %5286 = vmatprep.mubr.bf16.mxu0 %v1249
    %5287 = vmatmul.mubr.bf16.gmra.mrb[0].mxu0 %v1235
    %v5288 = vpop.f32.mrb[0].mxu0
    %v5289 = vadd.f32 %v5249, %v5288
    %v5290 = vpop.f32.mrb[0].mxu0
    %v5291 = vpop.f32.mrb[0].mxu0
    %v5292 = vpop.f32.mrb[0].mxu0
    %5293 = vdwg.mxu0
    %5294 = vmatprep.subr.bf16.mxu0 0
    %5295 = vmatpush1.bf16.msra.mxu0 %v4070
    %5296 = vmatprep.subr.bf16.mxu0 0
    %5297 = vmatpush1.bf16.msra.mxu0 %v4071
    %5298 = vmatprep.subr.bf16.mxu0 0
    %5299 = vmatpush1.bf16.msra.mxu0 %v4072
    %5300 = vmatprep.subr.bf16.mxu0 0
    %5301 = vmatpush1.bf16.msra.mxu0 %v4073
    %5302 = vmatprep.subr.bf16.mxu0 0
    %5303 = vmatpush1.bf16.msra.mxu0 %v4074
    %5304 = vmatprep.subr.bf16.mxu0 0
    %5305 = vmatpush1.bf16.msra.mxu0 %v4075
    %5306 = vmatprep.subr.bf16.mxu0 0
    %5307 = vmatpush1.bf16.msra.mxu0 %v4076
    %5308 = vmatprep.subr.bf16.mxu0 0
    %5309 = vmatpush1.bf16.msra.mxu0 %v4077
    %5310 = vmatprep.subr.bf16.mxu0 0
    %5311 = vmatpush1.bf16.msra.mxu0 %v4078
    %5312 = vmatprep.subr.bf16.mxu0 0
    %5313 = vmatpush1.bf16.msra.mxu0 %v4079
    %5314 = vmatprep.subr.bf16.mxu0 0
    %5315 = vmatpush1.bf16.msra.mxu0 %v4080
    %5316 = vmatprep.subr.bf16.mxu0 0
    %5317 = vmatpush1.bf16.msra.mxu0 %v4081
    %5318 = vmatprep.subr.bf16.mxu0 0
    %5319 = vmatpush1.bf16.msra.mxu0 %v4082
    %5320 = vmatprep.subr.bf16.mxu0 0
    %5321 = vmatpush1.bf16.msra.mxu0 %v4083
    %5322 = vmatprep.subr.bf16.mxu0 0
    %5323 = vmatpush1.bf16.msra.mxu0 %v4084
    %5324 = vmatprep.subr.bf16.mxu0 0
    %5325 = vmatpush1.bf16.msra.mxu0 %v4085
    %5326 = vmatprep.mubr.bf16.mxu0 %v1253
    %5327 = vmatmul.mubr.bf16.gmra.mrb[0].mxu0 %v1251
    %v5328 = vpop.f32.mrb[0].mxu0
    %v5329 = vadd.f32 %v5289, %v5328
    %v5330 = vpop.f32.mrb[0].mxu0
    %v5331 = vpop.f32.mrb[0].mxu0
    %v5332 = vpop.f32.mrb[0].mxu0
    %5333 = vdwg.mxu0
    %5334 = vmatprep.subr.bf16.mxu0 0
    %5335 = vmatpush1.bf16.msra.mxu0 %v4086
    %5336 = vmatprep.subr.bf16.mxu0 0
    %5337 = vmatpush1.bf16.msra.mxu0 %v4087
    %5338 = vmatprep.subr.bf16.mxu0 0
    %5339 = vmatpush1.bf16.msra.mxu0 %v4088
    %5340 = vmatprep.subr.bf16.mxu0 0
    %5341 = vmatpush1.bf16.msra.mxu0 %v4089
    %5342 = vmatprep.subr.bf16.mxu0 0
    %5343 = vmatpush1.bf16.msra.mxu0 %v4090
    %5344 = vmatprep.subr.bf16.mxu0 0
    %5345 = vmatpush1.bf16.msra.mxu0 %v4091
    %5346 = vmatprep.subr.bf16.mxu0 0
    %5347 = vmatpush1.bf16.msra.mxu0 %v4092
    %5348 = vmatprep.subr.bf16.mxu0 0
    %5349 = vmatpush1.bf16.msra.mxu0 %v4093
    %5350 = vmatprep.subr.bf16.mxu0 0
    %5351 = vmatpush1.bf16.msra.mxu0 %v4094
    %5352 = vmatprep.subr.bf16.mxu0 0
    %5353 = vmatpush1.bf16.msra.mxu0 %v4095
    %5354 = vmatprep.subr.bf16.mxu0 0
    %5355 = vmatpush1.bf16.msra.mxu0 %v4096
    %5356 = vmatprep.subr.bf16.mxu0 0
    %5357 = vmatpush1.bf16.msra.mxu0 %v4097
    %5358 = vmatprep.subr.bf16.mxu0 0
    %5359 = vmatpush1.bf16.msra.mxu0 %v4098
    %5360 = vmatprep.subr.bf16.mxu0 0
    %5361 = vmatpush1.bf16.msra.mxu0 %v4099
    %5362 = vmatprep.subr.bf16.mxu0 0
    %5363 = vmatpush1.bf16.msra.mxu0 %v4100
    %5364 = vmatprep.subr.bf16.mxu0 0
    %5365 = vmatpush1.bf16.msra.mxu0 %v4101
    %5366 = vmatprep.mubr.bf16.mxu0 %v1291
    %5367 = vmatmul.mubr.bf16.gmra.mrb[0].mxu0 %v1277
    %v5368 = vpop.f32.mrb[0].mxu0
    %v5369 = vadd.f32 %v5329, %v5368
    %v5370 = vpop.f32.mrb[0].mxu0
    %v5371 = vpop.f32.mrb[0].mxu0
    %v5372 = vpop.f32.mrb[0].mxu0
    %5373 = vdwg.mxu0
    %5374 = vmatprep.subr.bf16.mxu0 0
    %5375 = vmatpush1.bf16.msra.mxu0 %v4102
    %5376 = vmatprep.subr.bf16.mxu0 0
    %5377 = vmatpush1.bf16.msra.mxu0 %v4103
    %5378 = vmatprep.subr.bf16.mxu0 0
    %5379 = vmatpush1.bf16.msra.mxu0 %v4104
    %5380 = vmatprep.subr.bf16.mxu0 0
    %5381 = vmatpush1.bf16.msra.mxu0 %v4105
    %5382 = vmatprep.subr.bf16.mxu0 0
    %5383 = vmatpush1.bf16.msra.mxu0 %v4106
    %5384 = vmatprep.subr.bf16.mxu0 0
    %5385 = vmatpush1.bf16.msra.mxu0 %v4107
    %5386 = vmatprep.subr.bf16.mxu0 0
    %5387 = vmatpush1.bf16.msra.mxu0 %v4108
    %5388 = vmatprep.subr.bf16.mxu0 0
    %5389 = vmatpush1.bf16.msra.mxu0 %v4109
    %5390 = vmatprep.subr.bf16.mxu0 0
    %5391 = vmatpush1.bf16.msra.mxu0 %v4110
    %5392 = vmatprep.subr.bf16.mxu0 0
    %5393 = vmatpush1.bf16.msra.mxu0 %v4111
    %5394 = vmatprep.subr.bf16.mxu0 0
    %5395 = vmatpush1.bf16.msra.mxu0 %v4112
    %5396 = vmatprep.subr.bf16.mxu0 0
    %5397 = vmatpush1.bf16.msra.mxu0 %v4113
    %5398 = vmatprep.subr.bf16.mxu0 0
    %5399 = vmatpush1.bf16.msra.mxu0 %v4114
    %5400 = vmatprep.subr.bf16.mxu0 0
    %5401 = vmatpush1.bf16.msra.mxu0 %v4115
    %5402 = vmatprep.subr.bf16.mxu0 0
    %5403 = vmatpush1.bf16.msra.mxu0 %v4116
    %5404 = vmatprep.subr.bf16.mxu0 0
    %5405 = vmatpush1.bf16.msra.mxu0 %v4117
    %5406 = vmatprep.mubr.bf16.mxu0 %v1301
    %5407 = vmatmul.mubr.bf16.gmra.mrb[0].mxu0 %v1299
    %v5408 = vpop.f32.mrb[0].mxu0
    %v5409 = vadd.f32 %v5369, %v5408
    %v5410 = vpop.f32.mrb[0].mxu0
    %v5411 = vpop.f32.mrb[0].mxu0
    %v5412 = vpop.f32.mrb[0].mxu0
    %5413 = vdwg.mxu0
    %5414 = vmatprep.subr.bf16.mxu0 0
    %5415 = vmatpush1.bf16.msra.mxu0 %v4118
    %5416 = vmatprep.subr.bf16.mxu0 0
    %5417 = vmatpush1.bf16.msra.mxu0 %v4119
    %5418 = vmatprep.subr.bf16.mxu0 0
    %5419 = vmatpush1.bf16.msra.mxu0 %v4120
    %5420 = vmatprep.subr.bf16.mxu0 0
    %5421 = vmatpush1.bf16.msra.mxu0 %v4121
    %5422 = vmatprep.subr.bf16.mxu0 0
    %5423 = vmatpush1.bf16.msra.mxu0 %v4122
    %5424 = vmatprep.subr.bf16.mxu0 0
    %5425 = vmatpush1.bf16.msra.mxu0 %v4123
    %5426 = vmatprep.subr.bf16.mxu0 0
    %5427 = vmatpush1.bf16.msra.mxu0 %v4124
    %5428 = vmatprep.subr.bf16.mxu0 0
    %5429 = vmatpush1.bf16.msra.mxu0 %v4125
    %5430 = vmatprep.subr.bf16.mxu0 0
    %5431 = vmatpush1.bf16.msra.mxu0 %v4126
    %5432 = vmatprep.subr.bf16.mxu0 0
    %5433 = vmatpush1.bf16.msra.mxu0 %v4127
    %5434 = vmatprep.subr.bf16.mxu0 0
    %5435 = vmatpush1.bf16.msra.mxu0 %v4128
    %5436 = vmatprep.subr.bf16.mxu0 0
    %5437 = vmatpush1.bf16.msra.mxu0 %v4129
    %5438 = vmatprep.subr.bf16.mxu0 0
    %5439 = vmatpush1.bf16.msra.mxu0 %v4130
    %5440 = vmatprep.subr.bf16.mxu0 0
    %5441 = vmatpush1.bf16.msra.mxu0 %v4131
    %5442 = vmatprep.subr.bf16.mxu0 0
    %5443 = vmatpush1.bf16.msra.mxu0 %v4132
    %5444 = vmatprep.subr.bf16.mxu0 0
    %5445 = vmatpush1.bf16.msra.mxu0 %v4133
    %5446 = vmatprep.mubr.bf16.mxu0 %v1298
    %5447 = vmatmul.mubr.bf16.gmra.mrb[0].mxu0 %v1284
    %v5448 = vpop.f32.mrb[0].mxu0
    %v5449 = vadd.f32 %v5409, %v5448
    %v5450 = vpop.f32.mrb[0].mxu0
    %v5451 = vpop.f32.mrb[0].mxu0
    %v5452 = vpop.f32.mrb[0].mxu0
    %5453 = vdwg.mxu0
    %5454 = vmatprep.subr.bf16.mxu0 0
    %5455 = vmatpush1.bf16.msra.mxu0 %v4134
    %5456 = vmatprep.subr.bf16.mxu0 0
    %5457 = vmatpush1.bf16.msra.mxu0 %v4135
    %5458 = vmatprep.subr.bf16.mxu0 0
    %5459 = vmatpush1.bf16.msra.mxu0 %v4136
    %5460 = vmatprep.subr.bf16.mxu0 0
    %5461 = vmatpush1.bf16.msra.mxu0 %v4137
    %5462 = vmatprep.subr.bf16.mxu0 0
    %5463 = vmatpush1.bf16.msra.mxu0 %v4138
    %5464 = vmatprep.subr.bf16.mxu0 0
    %5465 = vmatpush1.bf16.msra.mxu0 %v4139
    %5466 = vmatprep.subr.bf16.mxu0 0
    %5467 = vmatpush1.bf16.msra.mxu0 %v4140
    %5468 = vmatprep.subr.bf16.mxu0 0
    %5469 = vmatpush1.bf16.msra.mxu0 %v4141
    %5470 = vmatprep.subr.bf16.mxu0 0
    %5471 = vmatpush1.bf16.msra.mxu0 %v4142
    %5472 = vmatprep.subr.bf16.mxu0 0
    %5473 = vmatpush1.bf16.msra.mxu0 %v4143
    %5474 = vmatprep.subr.bf16.mxu0 0
    %5475 = vmatpush1.bf16.msra.mxu0 %v4144
    %5476 = vmatprep.subr.bf16.mxu0 0
    %5477 = vmatpush1.bf16.msra.mxu0 %v4145
    %5478 = vmatprep.subr.bf16.mxu0 0
    %5479 = vmatpush1.bf16.msra.mxu0 %v4146
    %5480 = vmatprep.subr.bf16.mxu0 0
    %5481 = vmatpush1.bf16.msra.mxu0 %v4147
    %5482 = vmatprep.subr.bf16.mxu0 0
    %5483 = vmatpush1.bf16.msra.mxu0 %v4148
    %5484 = vmatprep.subr.bf16.mxu0 0
    %5485 = vmatpush1.bf16.msra.mxu0 %v4149
    %5486 = vmatprep.mubr.bf16.mxu0 %v1302
    %5487 = vmatmul.mubr.bf16.gmra.mrb[0].mxu0 %v1300
    %v5488 = vpop.f32.mrb[0].mxu0
    %v5489 = vadd.f32 %v5449, %v5488
    %v5490 = vpop.f32.mrb[0].mxu0
    %v5491 = vpop.f32.mrb[0].mxu0
    %v5492 = vpop.f32.mrb[0].mxu0
    %5493 = vdwg.mxu0
    %5494 = vmatprep.subr.bf16.mxu0 0
    %5495 = vmatpush1.bf16.msra.mxu0 %v4150
    %5496 = vmatprep.subr.bf16.mxu0 0
    %5497 = vmatpush1.bf16.msra.mxu0 %v4151
    %5498 = vmatprep.subr.bf16.mxu0 0
    %5499 = vmatpush1.bf16.msra.mxu0 %v4152
    %5500 = vmatprep.subr.bf16.mxu0 0
    %5501 = vmatpush1.bf16.msra.mxu0 %v4153
    %5502 = vmatprep.subr.bf16.mxu0 0
    %5503 = vmatpush1.bf16.msra.mxu0 %v4154
    %5504 = vmatprep.subr.bf16.mxu0 0
    %5505 = vmatpush1.bf16.msra.mxu0 %v4155
    %5506 = vmatprep.subr.bf16.mxu0 0
    %5507 = vmatpush1.bf16.msra.mxu0 %v4156
    %5508 = vmatprep.subr.bf16.mxu0 0
    %5509 = vmatpush1.bf16.msra.mxu0 %v4157
    %5510 = vmatprep.subr.bf16.mxu0 0
    %5511 = vmatpush1.bf16.msra.mxu0 %v4158
    %5512 = vmatprep.subr.bf16.mxu0 0
    %5513 = vmatpush1.bf16.msra.mxu0 %v4159
    %5514 = vmatprep.subr.bf16.mxu0 0
    %5515 = vmatpush1.bf16.msra.mxu0 %v4160
    %5516 = vmatprep.subr.bf16.mxu0 0
    %5517 = vmatpush1.bf16.msra.mxu0 %v4161
    %5518 = vmatprep.subr.bf16.mxu0 0
    %5519 = vmatpush1.bf16.msra.mxu0 %v4162
    %5520 = vmatprep.subr.bf16.mxu0 0
    %5521 = vmatpush1.bf16.msra.mxu0 %v4163
    %5522 = vmatprep.subr.bf16.mxu0 0
    %5523 = vmatpush1.bf16.msra.mxu0 %v4164
    %5524 = vmatprep.subr.bf16.mxu0 0
    %5525 = vmatpush1.bf16.msra.mxu0 %v4165
    %5526 = vmatprep.mubr.bf16.mxu0 %v1340
    %5527 = vmatmul.mubr.bf16.gmra.mrb[0].mxu0 %v1326
    %v5528 = vpop.f32.mrb[0].mxu0
    %v5529 = vadd.f32 %v5489, %v5528
    %v5530 = vpop.f32.mrb[0].mxu0
    %v5531 = vpop.f32.mrb[0].mxu0
    %v5532 = vpop.f32.mrb[0].mxu0
    %5533 = vdwg.mxu0
    %5534 = vmatprep.subr.bf16.mxu0 0
    %5535 = vmatpush1.bf16.msra.mxu0 %v4166
    %5536 = vmatprep.subr.bf16.mxu0 0
    %5537 = vmatpush1.bf16.msra.mxu0 %v4167
    %5538 = vmatprep.subr.bf16.mxu0 0
    %5539 = vmatpush1.bf16.msra.mxu0 %v4168
    %5540 = vmatprep.subr.bf16.mxu0 0
    %5541 = vmatpush1.bf16.msra.mxu0 %v4169
    %5542 = vmatprep.subr.bf16.mxu0 0
    %5543 = vmatpush1.bf16.msra.mxu0 %v4170
    %5544 = vmatprep.subr.bf16.mxu0 0
    %5545 = vmatpush1.bf16.msra.mxu0 %v4171
    %5546 = vmatprep.subr.bf16.mxu0 0
    %5547 = vmatpush1.bf16.msra.mxu0 %v4172
    %5548 = vmatprep.subr.bf16.mxu0 0
    %5549 = vmatpush1.bf16.msra.mxu0 %v4173
    %5550 = vmatprep.subr.bf16.mxu0 0
    %5551 = vmatpush1.bf16.msra.mxu0 %v4174
    %5552 = vmatprep.subr.bf16.mxu0 0
    %5553 = vmatpush1.bf16.msra.mxu0 %v4175
    %5554 = vmatprep.subr.bf16.mxu0 0
    %5555 = vmatpush1.bf16.msra.mxu0 %v4176
    %5556 = vmatprep.subr.bf16.mxu0 0
    %5557 = vmatpush1.bf16.msra.mxu0 %v4177
    %5558 = vmatprep.subr.bf16.mxu0 0
    %5559 = vmatpush1.bf16.msra.mxu0 %v4178
    %5560 = vmatprep.subr.bf16.mxu0 0
    %5561 = vmatpush1.bf16.msra.mxu0 %v4179
    %5562 = vmatprep.subr.bf16.mxu0 0
    %5563 = vmatpush1.bf16.msra.mxu0 %v4180
    %5564 = vmatprep.subr.bf16.mxu0 0
    %5565 = vmatpush1.bf16.msra.mxu0 %v4181
    %5566 = vmatprep.mubr.bf16.mxu0 %v1350
    %5567 = vmatmul.mubr.bf16.gmra.mrb[0].mxu0 %v1348
    %v5568 = vpop.f32.mrb[0].mxu0
    %v5569 = vadd.f32 %v5529, %v5568
    %v5570 = vpop.f32.mrb[0].mxu0
    %v5571 = vpop.f32.mrb[0].mxu0
    %v5572 = vpop.f32.mrb[0].mxu0
    %5573 = vdwg.mxu0
    %5574 = vmatprep.subr.bf16.mxu0 0
    %5575 = vmatpush1.bf16.msra.mxu0 %v4182
    %5576 = vmatprep.subr.bf16.mxu0 0
    %5577 = vmatpush1.bf16.msra.mxu0 %v4183
    %5578 = vmatprep.subr.bf16.mxu0 0
    %5579 = vmatpush1.bf16.msra.mxu0 %v4184
    %5580 = vmatprep.subr.bf16.mxu0 0
    %5581 = vmatpush1.bf16.msra.mxu0 %v4185
    %5582 = vmatprep.subr.bf16.mxu0 0
    %5583 = vmatpush1.bf16.msra.mxu0 %v4186
    %5584 = vmatprep.subr.bf16.mxu0 0
    %5585 = vmatpush1.bf16.msra.mxu0 %v4187
    %5586 = vmatprep.subr.bf16.mxu0 0
    %5587 = vmatpush1.bf16.msra.mxu0 %v4188
    %5588 = vmatprep.subr.bf16.mxu0 0
    %5589 = vmatpush1.bf16.msra.mxu0 %v4189
    %5590 = vmatprep.subr.bf16.mxu0 0
    %5591 = vmatpush1.bf16.msra.mxu0 %v4190
    %5592 = vmatprep.subr.bf16.mxu0 0
    %5593 = vmatpush1.bf16.msra.mxu0 %v4191
    %5594 = vmatprep.subr.bf16.mxu0 0
    %5595 = vmatpush1.bf16.msra.mxu0 %v4192
    %5596 = vmatprep.subr.bf16.mxu0 0
    %5597 = vmatpush1.bf16.msra.mxu0 %v4193
    %5598 = vmatprep.subr.bf16.mxu0 0
    %5599 = vmatpush1.bf16.msra.mxu0 %v4194
    %5600 = vmatprep.subr.bf16.mxu0 0
    %5601 = vmatpush1.bf16.msra.mxu0 %v4195
    %5602 = vmatprep.subr.bf16.mxu0 0
    %5603 = vmatpush1.bf16.msra.mxu0 %v4196
    %5604 = vmatprep.subr.bf16.mxu0 0
    %5605 = vmatpush1.bf16.msra.mxu0 %v4197
    %5606 = vmatprep.mubr.bf16.mxu0 %v1347
    %5607 = vmatmul.mubr.bf16.gmra.mrb[0].mxu0 %v1333
    %v5608 = vpop.f32.mrb[0].mxu0
    %v5609 = vadd.f32 %v5569, %v5608
    %v5610 = vpop.f32.mrb[0].mxu0
    %v5611 = vpop.f32.mrb[0].mxu0
    %v5612 = vpop.f32.mrb[0].mxu0
    %5613 = vdwg.mxu0
    %5614 = vmatprep.subr.bf16.mxu0 0
    %5615 = vmatpush1.bf16.msra.mxu0 %v4198
    %5616 = vmatprep.subr.bf16.mxu0 0
    %5617 = vmatpush1.bf16.msra.mxu0 %v4199
    %5618 = vmatprep.subr.bf16.mxu0 0
    %5619 = vmatpush1.bf16.msra.mxu0 %v4200
    %5620 = vmatprep.subr.bf16.mxu0 0
    %5621 = vmatpush1.bf16.msra.mxu0 %v4201
    %5622 = vmatprep.subr.bf16.mxu0 0
    %5623 = vmatpush1.bf16.msra.mxu0 %v4202
    %5624 = vmatprep.subr.bf16.mxu0 0
    %5625 = vmatpush1.bf16.msra.mxu0 %v4203
    %5626 = vmatprep.subr.bf16.mxu0 0
    %5627 = vmatpush1.bf16.msra.mxu0 %v4204
    %5628 = vmatprep.subr.bf16.mxu0 0
    %5629 = vmatpush1.bf16.msra.mxu0 %v4205
    %5630 = vmatprep.subr.bf16.mxu0 0
    %5631 = vmatpush1.bf16.msra.mxu0 %v4206
    %5632 = vmatprep.subr.bf16.mxu0 0
    %5633 = vmatpush1.bf16.msra.mxu0 %v4207
    %5634 = vmatprep.subr.bf16.mxu0 0
    %5635 = vmatpush1.bf16.msra.mxu0 %v4208
    %5636 = vmatprep.subr.bf16.mxu0 0
    %5637 = vmatpush1.bf16.msra.mxu0 %v4209
    %5638 = vmatprep.subr.bf16.mxu0 0
    %5639 = vmatpush1.bf16.msra.mxu0 %v4210
    %5640 = vmatprep.subr.bf16.mxu0 0
    %5641 = vmatpush1.bf16.msra.mxu0 %v4211
    %5642 = vmatprep.subr.bf16.mxu0 0
    %5643 = vmatpush1.bf16.msra.mxu0 %v4212
    %5644 = vmatprep.subr.bf16.mxu0 0
    %5645 = vmatpush1.bf16.msra.mxu0 %v4213
    %5646 = vmatprep.mubr.bf16.mxu0 %v1351
    %5647 = vmatmul.mubr.bf16.gmra.mrb[0].mxu0 %v1349
    %v5648 = vpop.f32.mrb[0].mxu0
    %v5649 = vadd.f32 %v5609, %v5648
    %v5650 = vpop.f32.mrb[0].mxu0
    %v5651 = vpop.f32.mrb[0].mxu0
    %v5652 = vpop.f32.mrb[0].mxu0
    %5653 = vdwg.mxu0
    %5654 = vmatprep.subr.bf16.mxu0 0
    %5655 = vmatpush1.bf16.msra.mxu0 %v4214
    %5656 = vmatprep.subr.bf16.mxu0 0
    %5657 = vmatpush1.bf16.msra.mxu0 %v4215
    %5658 = vmatprep.subr.bf16.mxu0 0
    %5659 = vmatpush1.bf16.msra.mxu0 %v4216
    %5660 = vmatprep.subr.bf16.mxu0 0
    %5661 = vmatpush1.bf16.msra.mxu0 %v4217
    %5662 = vmatprep.subr.bf16.mxu0 0
    %5663 = vmatpush1.bf16.msra.mxu0 %v4218
    %5664 = vmatprep.subr.bf16.mxu0 0
    %5665 = vmatpush1.bf16.msra.mxu0 %v4219
    %5666 = vmatprep.subr.bf16.mxu0 0
    %5667 = vmatpush1.bf16.msra.mxu0 %v4220
    %5668 = vmatprep.subr.bf16.mxu0 0
    %5669 = vmatpush1.bf16.msra.mxu0 %v4221
    %5670 = vmatprep.subr.bf16.mxu0 0
    %5671 = vmatpush1.bf16.msra.mxu0 %v4222
    %5672 = vmatprep.subr.bf16.mxu0 0
    %5673 = vmatpush1.bf16.msra.mxu0 %v4223
    %5674 = vmatprep.subr.bf16.mxu0 0
    %5675 = vmatpush1.bf16.msra.mxu0 %v4224
    %5676 = vmatprep.subr.bf16.mxu0 0
    %5677 = vmatpush1.bf16.msra.mxu0 %v4225
    %5678 = vmatprep.subr.bf16.mxu0 0
    %5679 = vmatpush1.bf16.msra.mxu0 %v4226
    %5680 = vmatprep.subr.bf16.mxu0 0
    %5681 = vmatpush1.bf16.msra.mxu0 %v4227
    %5682 = vmatprep.subr.bf16.mxu0 0
    %5683 = vmatpush1.bf16.msra.mxu0 %v4228
    %5684 = vmatprep.subr.bf16.mxu0 0
    %5685 = vmatpush1.bf16.msra.mxu0 %v4229
    %5686 = vmatprep.mubr.bf16.mxu0 %v1389
    %5687 = vmatmul.mubr.bf16.gmra.mrb[0].mxu0 %v1375
    %v5688 = vpop.f32.mrb[0].mxu0
    %v5689 = vadd.f32 %v5649, %v5688
    %v5690 = vpop.f32.mrb[0].mxu0
    %v5691 = vpop.f32.mrb[0].mxu0
    %v5692 = vpop.f32.mrb[0].mxu0
    %5693 = vdwg.mxu0
    %5694 = vmatprep.subr.bf16.mxu0 0
    %5695 = vmatpush1.bf16.msra.mxu0 %v4230
    %5696 = vmatprep.subr.bf16.mxu0 0
    %5697 = vmatpush1.bf16.msra.mxu0 %v4231
    %5698 = vmatprep.subr.bf16.mxu0 0
    %5699 = vmatpush1.bf16.msra.mxu0 %v4232
    %5700 = vmatprep.subr.bf16.mxu0 0
    %5701 = vmatpush1.bf16.msra.mxu0 %v4233
    %5702 = vmatprep.subr.bf16.mxu0 0
    %5703 = vmatpush1.bf16.msra.mxu0 %v4234
    %5704 = vmatprep.subr.bf16.mxu0 0
    %5705 = vmatpush1.bf16.msra.mxu0 %v4235
    %5706 = vmatprep.subr.bf16.mxu0 0
    %5707 = vmatpush1.bf16.msra.mxu0 %v4236
    %5708 = vmatprep.subr.bf16.mxu0 0
    %5709 = vmatpush1.bf16.msra.mxu0 %v4237
    %5710 = vmatprep.subr.bf16.mxu0 0
    %5711 = vmatpush1.bf16.msra.mxu0 %v4238
    %5712 = vmatprep.subr.bf16.mxu0 0
    %5713 = vmatpush1.bf16.msra.mxu0 %v4239
    %5714 = vmatprep.subr.bf16.mxu0 0
    %5715 = vmatpush1.bf16.msra.mxu0 %v4240
    %5716 = vmatprep.subr.bf16.mxu0 0
    %5717 = vmatpush1.bf16.msra.mxu0 %v4241
    %5718 = vmatprep.subr.bf16.mxu0 0
    %5719 = vmatpush1.bf16.msra.mxu0 %v4242
    %5720 = vmatprep.subr.bf16.mxu0 0
    %5721 = vmatpush1.bf16.msra.mxu0 %v4243
    %5722 = vmatprep.subr.bf16.mxu0 0
    %5723 = vmatpush1.bf16.msra.mxu0 %v4244
    %5724 = vmatprep.subr.bf16.mxu0 0
    %5725 = vmatpush1.bf16.msra.mxu0 %v4245
    %5726 = vmatprep.mubr.bf16.mxu0 %v1399
    %5727 = vmatmul.mubr.bf16.gmra.mrb[0].mxu0 %v1397
    %v5728 = vpop.f32.mrb[0].mxu0
    %v5729 = vadd.f32 %v5689, %v5728
    %v5730 = vpop.f32.mrb[0].mxu0
    %v5731 = vpop.f32.mrb[0].mxu0
    %v5732 = vpop.f32.mrb[0].mxu0
    %5733 = vdwg.mxu0
    %5734 = vmatprep.subr.bf16.mxu0 0
    %5735 = vmatpush1.bf16.msra.mxu0 %v4246
    %5736 = vmatprep.subr.bf16.mxu0 0
    %5737 = vmatpush1.bf16.msra.mxu0 %v4247
    %5738 = vmatprep.subr.bf16.mxu0 0
    %5739 = vmatpush1.bf16.msra.mxu0 %v4248
    %5740 = vmatprep.subr.bf16.mxu0 0
    %5741 = vmatpush1.bf16.msra.mxu0 %v4249
    %5742 = vmatprep.subr.bf16.mxu0 0
    %5743 = vmatpush1.bf16.msra.mxu0 %v4250
    %5744 = vmatprep.subr.bf16.mxu0 0
    %5745 = vmatpush1.bf16.msra.mxu0 %v4251
    %5746 = vmatprep.subr.bf16.mxu0 0
    %5747 = vmatpush1.bf16.msra.mxu0 %v4252
    %5748 = vmatprep.subr.bf16.mxu0 0
    %5749 = vmatpush1.bf16.msra.mxu0 %v4253
    %5750 = vmatprep.subr.bf16.mxu0 0
    %5751 = vmatpush1.bf16.msra.mxu0 %v4254
    %5752 = vmatprep.subr.bf16.mxu0 0
    %5753 = vmatpush1.bf16.msra.mxu0 %v4255
    %5754 = vmatprep.subr.bf16.mxu0 0
    %5755 = vmatpush1.bf16.msra.mxu0 %v4256
    %5756 = vmatprep.subr.bf16.mxu0 0
    %5757 = vmatpush1.bf16.msra.mxu0 %v4257
    %5758 = vmatprep.subr.bf16.mxu0 0
    %5759 = vmatpush1.bf16.msra.mxu0 %v4258
    %5760 = vmatprep.subr.bf16.mxu0 0
    %5761 = vmatpush1.bf16.msra.mxu0 %v4259
    %5762 = vmatprep.subr.bf16.mxu0 0
    %5763 = vmatpush1.bf16.msra.mxu0 %v4260
    %5764 = vmatprep.subr.bf16.mxu0 0
    %5765 = vmatpush1.bf16.msra.mxu0 %v4261
    %5766 = vmatprep.mubr.bf16.mxu0 %v1396
    %5767 = vmatmul.mubr.bf16.gmra.mrb[0].mxu0 %v1382
    %v5768 = vpop.f32.mrb[0].mxu0
    %v5769 = vadd.f32 %v5729, %v5768
    %v5770 = vpop.f32.mrb[0].mxu0
    %v5771 = vpop.f32.mrb[0].mxu0
    %v5772 = vpop.f32.mrb[0].mxu0
    %5773 = vdwg.mxu0
    %5774 = vmatprep.subr.bf16.mxu0 0
    %5775 = vmatpush1.bf16.msra.mxu0 %v4262
    %5776 = vmatprep.subr.bf16.mxu0 0
    %5777 = vmatpush1.bf16.msra.mxu0 %v4263
    %5778 = vmatprep.subr.bf16.mxu0 0
    %5779 = vmatpush1.bf16.msra.mxu0 %v4264
    %5780 = vmatprep.subr.bf16.mxu0 0
    %5781 = vmatpush1.bf16.msra.mxu0 %v4265
    %5782 = vmatprep.subr.bf16.mxu0 0
    %5783 = vmatpush1.bf16.msra.mxu0 %v4266
    %5784 = vmatprep.subr.bf16.mxu0 0
    %5785 = vmatpush1.bf16.msra.mxu0 %v4267
    %5786 = vmatprep.subr.bf16.mxu0 0
    %5787 = vmatpush1.bf16.msra.mxu0 %v4268
    %5788 = vmatprep.subr.bf16.mxu0 0
    %5789 = vmatpush1.bf16.msra.mxu0 %v4269
    %5790 = vmatprep.subr.bf16.mxu0 0
    %5791 = vmatpush1.bf16.msra.mxu0 %v4270
    %5792 = vmatprep.subr.bf16.mxu0 0
    %5793 = vmatpush1.bf16.msra.mxu0 %v4271
    %5794 = vmatprep.subr.bf16.mxu0 0
    %5795 = vmatpush1.bf16.msra.mxu0 %v4272
    %5796 = vmatprep.subr.bf16.mxu0 0
    %5797 = vmatpush1.bf16.msra.mxu0 %v4273
    %5798 = vmatprep.subr.bf16.mxu0 0
    %5799 = vmatpush1.bf16.msra.mxu0 %v4274
    %5800 = vmatprep.subr.bf16.mxu0 0
    %5801 = vmatpush1.bf16.msra.mxu0 %v4275
    %5802 = vmatprep.subr.bf16.mxu0 0
    %5803 = vmatpush1.bf16.msra.mxu0 %v4276
    %5804 = vmatprep.subr.bf16.mxu0 0
    %5805 = vmatpush1.bf16.msra.mxu0 %v4277
    %5806 = vmatprep.mubr.bf16.mxu0 %v1400
    %5807 = vmatmul.mubr.bf16.gmra.mrb[0].mxu0 %v1398
    %v5808 = vpop.f32.mrb[0].mxu0
    %v5809 = vadd.f32 %v5769, %v5808
    %v5810 = vpop.f32.mrb[0].mxu0
    %v5811 = vpop.f32.mrb[0].mxu0
    %v5812 = vpop.f32.mrb[0].mxu0
    %5813 = vdwg.mxu0
    %5814 = vmatprep.subr.bf16.mxu0 0
    %5815 = vmatpush1.bf16.msra.mxu0 %v4278
    %5816 = vmatprep.subr.bf16.mxu0 0
    %5817 = vmatpush1.bf16.msra.mxu0 %v4279
    %5818 = vmatprep.subr.bf16.mxu0 0
    %5819 = vmatpush1.bf16.msra.mxu0 %v4280
    %5820 = vmatprep.subr.bf16.mxu0 0
    %5821 = vmatpush1.bf16.msra.mxu0 %v4281
    %5822 = vmatprep.subr.bf16.mxu0 0
    %5823 = vmatpush1.bf16.msra.mxu0 %v4282
    %5824 = vmatprep.subr.bf16.mxu0 0
    %5825 = vmatpush1.bf16.msra.mxu0 %v4283
    %5826 = vmatprep.subr.bf16.mxu0 0
    %5827 = vmatpush1.bf16.msra.mxu0 %v4284
    %5828 = vmatprep.subr.bf16.mxu0 0
    %5829 = vmatpush1.bf16.msra.mxu0 %v4285
    %5830 = vmatprep.subr.bf16.mxu0 0
    %5831 = vmatpush1.bf16.msra.mxu0 %v4286
    %5832 = vmatprep.subr.bf16.mxu0 0
    %5833 = vmatpush1.bf16.msra.mxu0 %v4287
    %5834 = vmatprep.subr.bf16.mxu0 0
    %5835 = vmatpush1.bf16.msra.mxu0 %v4288
    %5836 = vmatprep.subr.bf16.mxu0 0
    %5837 = vmatpush1.bf16.msra.mxu0 %v4289
    %5838 = vmatprep.subr.bf16.mxu0 0
    %5839 = vmatpush1.bf16.msra.mxu0 %v4290
    %5840 = vmatprep.subr.bf16.mxu0 0
    %5841 = vmatpush1.bf16.msra.mxu0 %v4291
    %5842 = vmatprep.subr.bf16.mxu0 0
    %5843 = vmatpush1.bf16.msra.mxu0 %v4292
    %5844 = vmatprep.subr.bf16.mxu0 0
    %5845 = vmatpush1.bf16.msra.mxu0 %v4293
    %5846 = vmatprep.mubr.bf16.mxu0 %v1438
    %5847 = vmatmul.mubr.bf16.gmra.mrb[0].mxu0 %v1424
    %v5848 = vpop.f32.mrb[0].mxu0
    %v5849 = vadd.f32 %v5809, %v5848
    %v5850 = vpop.f32.mrb[0].mxu0
    %v5851 = vpop.f32.mrb[0].mxu0
    %v5852 = vpop.f32.mrb[0].mxu0
    %5853 = vdwg.mxu0
    %5854 = vmatprep.subr.bf16.mxu0 0
    %5855 = vmatpush1.bf16.msra.mxu0 %v4294
    %5856 = vmatprep.subr.bf16.mxu0 0
    %5857 = vmatpush1.bf16.msra.mxu0 %v4295
    %5858 = vmatprep.subr.bf16.mxu0 0
    %5859 = vmatpush1.bf16.msra.mxu0 %v4296
    %5860 = vmatprep.subr.bf16.mxu0 0
    %5861 = vmatpush1.bf16.msra.mxu0 %v4297
    %5862 = vmatprep.subr.bf16.mxu0 0
    %5863 = vmatpush1.bf16.msra.mxu0 %v4298
    %5864 = vmatprep.subr.bf16.mxu0 0
    %5865 = vmatpush1.bf16.msra.mxu0 %v4299
    %5866 = vmatprep.subr.bf16.mxu0 0
    %5867 = vmatpush1.bf16.msra.mxu0 %v4300
    %5868 = vmatprep.subr.bf16.mxu0 0
    %5869 = vmatpush1.bf16.msra.mxu0 %v4301
    %5870 = vmatprep.subr.bf16.mxu0 0
    %5871 = vmatpush1.bf16.msra.mxu0 %v4302
    %5872 = vmatprep.subr.bf16.mxu0 0
    %5873 = vmatpush1.bf16.msra.mxu0 %v4303
    %5874 = vmatprep.subr.bf16.mxu0 0
    %5875 = vmatpush1.bf16.msra.mxu0 %v4304
    %5876 = vmatprep.subr.bf16.mxu0 0
    %5877 = vmatpush1.bf16.msra.mxu0 %v4305
    %5878 = vmatprep.subr.bf16.mxu0 0
    %5879 = vmatpush1.bf16.msra.mxu0 %v4306
    %5880 = vmatprep.subr.bf16.mxu0 0
    %5881 = vmatpush1.bf16.msra.mxu0 %v4307
    %5882 = vmatprep.subr.bf16.mxu0 0
    %5883 = vmatpush1.bf16.msra.mxu0 %v4308
    %5884 = vmatprep.subr.bf16.mxu0 0
    %5885 = vmatpush1.bf16.msra.mxu0 %v4309
    %5886 = vmatprep.mubr.bf16.mxu0 %v1448
    %5887 = vmatmul.mubr.bf16.gmra.mrb[0].mxu0 %v1446
    %v5888 = vpop.f32.mrb[0].mxu0
    %v5889 = vadd.f32 %v5849, %v5888
    %v5890 = vpop.f32.mrb[0].mxu0
    %v5891 = vpop.f32.mrb[0].mxu0
    %v5892 = vpop.f32.mrb[0].mxu0
    %5893 = vdwg.mxu0
    %5894 = vmatprep.subr.bf16.mxu0 0
    %5895 = vmatpush1.bf16.msra.mxu0 %v4310
    %5896 = vmatprep.subr.bf16.mxu0 0
    %5897 = vmatpush1.bf16.msra.mxu0 %v4311
    %5898 = vmatprep.subr.bf16.mxu0 0
    %5899 = vmatpush1.bf16.msra.mxu0 %v4312
    %5900 = vmatprep.subr.bf16.mxu0 0
    %5901 = vmatpush1.bf16.msra.mxu0 %v4313
    %5902 = vmatprep.subr.bf16.mxu0 0
    %5903 = vmatpush1.bf16.msra.mxu0 %v4314
    %5904 = vmatprep.subr.bf16.mxu0 0
    %5905 = vmatpush1.bf16.msra.mxu0 %v4315
    %5906 = vmatprep.subr.bf16.mxu0 0
    %5907 = vmatpush1.bf16.msra.mxu0 %v4316
    %5908 = vmatprep.subr.bf16.mxu0 0
    %5909 = vmatpush1.bf16.msra.mxu0 %v4317
    %5910 = vmatprep.subr.bf16.mxu0 0
    %5911 = vmatpush1.bf16.msra.mxu0 %v4318
    %5912 = vmatprep.subr.bf16.mxu0 0
    %5913 = vmatpush1.bf16.msra.mxu0 %v4319
    %5914 = vmatprep.subr.bf16.mxu0 0
    %5915 = vmatpush1.bf16.msra.mxu0 %v4320
    %5916 = vmatprep.subr.bf16.mxu0 0
    %5917 = vmatpush1.bf16.msra.mxu0 %v4321
    %5918 = vmatprep.subr.bf16.mxu0 0
    %5919 = vmatpush1.bf16.msra.mxu0 %v4322
    %5920 = vmatprep.subr.bf16.mxu0 0
    %5921 = vmatpush1.bf16.msra.mxu0 %v4323
    %5922 = vmatprep.subr.bf16.mxu0 0
    %5923 = vmatpush1.bf16.msra.mxu0 %v4324
    %5924 = vmatprep.subr.bf16.mxu0 0
    %5925 = vmatpush1.bf16.msra.mxu0 %v4325
    %5926 = vmatprep.mubr.bf16.mxu0 %v1445
    %5927 = vmatmul.mubr.bf16.gmra.mrb[0].mxu0 %v1431
    %v5928 = vpop.f32.mrb[0].mxu0
    %v5929 = vadd.f32 %v5889, %v5928
    %v5930 = vpop.f32.mrb[0].mxu0
    %v5931 = vpop.f32.mrb[0].mxu0
    %v5932 = vpop.f32.mrb[0].mxu0
    %5933 = vdwg.mxu0
    %5934 = vmatprep.subr.bf16.mxu0 0
    %5935 = vmatpush1.bf16.msra.mxu0 %v4326
    %5936 = vmatprep.subr.bf16.mxu0 0
    %5937 = vmatpush1.bf16.msra.mxu0 %v4327
    %5938 = vmatprep.subr.bf16.mxu0 0
    %5939 = vmatpush1.bf16.msra.mxu0 %v4328
    %5940 = vmatprep.subr.bf16.mxu0 0
    %5941 = vmatpush1.bf16.msra.mxu0 %v4329
    %5942 = vmatprep.subr.bf16.mxu0 0
    %5943 = vmatpush1.bf16.msra.mxu0 %v4330
    %5944 = vmatprep.subr.bf16.mxu0 0
    %5945 = vmatpush1.bf16.msra.mxu0 %v4331
    %5946 = vmatprep.subr.bf16.mxu0 0
    %5947 = vmatpush1.bf16.msra.mxu0 %v4332
    %5948 = vmatprep.subr.bf16.mxu0 0
    %5949 = vmatpush1.bf16.msra.mxu0 %v4333
    %5950 = vmatprep.subr.bf16.mxu0 0
    %5951 = vmatpush1.bf16.msra.mxu0 %v4334
    %5952 = vmatprep.subr.bf16.mxu0 0
    %5953 = vmatpush1.bf16.msra.mxu0 %v4335
    %5954 = vmatprep.subr.bf16.mxu0 0
    %5955 = vmatpush1.bf16.msra.mxu0 %v4336
    %5956 = vmatprep.subr.bf16.mxu0 0
    %5957 = vmatpush1.bf16.msra.mxu0 %v4337
    %5958 = vmatprep.subr.bf16.mxu0 0
    %5959 = vmatpush1.bf16.msra.mxu0 %v4338
    %5960 = vmatprep.subr.bf16.mxu0 0
    %5961 = vmatpush1.bf16.msra.mxu0 %v4339
    %5962 = vmatprep.subr.bf16.mxu0 0
    %5963 = vmatpush1.bf16.msra.mxu0 %v4340
    %5964 = vmatprep.subr.bf16.mxu0 0
    %5965 = vmatpush1.bf16.msra.mxu0 %v4341
    %5966 = vmatprep.mubr.bf16.mxu0 %v1449
    %5967 = vmatmul.mubr.bf16.gmra.mrb[0].mxu0 %v1447
    %v5968 = vpop.f32.mrb[0].mxu0
    %v5969 = vadd.f32 %v5929, %v5968
    %v5970 = vpop.f32.mrb[0].mxu0
    %v5971 = vpop.f32.mrb[0].mxu0
    %v5972 = vpop.f32.mrb[0].mxu0
    %5973 = vdwg.mxu0
    %5974 = vmatprep.subr.bf16.mxu0 0
    %5975 = vmatpush1.bf16.msra.mxu0 %v4342
    %5976 = vmatprep.subr.bf16.mxu0 0
    %5977 = vmatpush1.bf16.msra.mxu0 %v4343
    %5978 = vmatprep.subr.bf16.mxu0 0
    %5979 = vmatpush1.bf16.msra.mxu0 %v4344
    %5980 = vmatprep.subr.bf16.mxu0 0
    %5981 = vmatpush1.bf16.msra.mxu0 %v4345
    %5982 = vmatprep.subr.bf16.mxu0 0
    %5983 = vmatpush1.bf16.msra.mxu0 %v4346
    %5984 = vmatprep.subr.bf16.mxu0 0
    %5985 = vmatpush1.bf16.msra.mxu0 %v4347
    %5986 = vmatprep.subr.bf16.mxu0 0
    %5987 = vmatpush1.bf16.msra.mxu0 %v4348
    %5988 = vmatprep.subr.bf16.mxu0 0
    %5989 = vmatpush1.bf16.msra.mxu0 %v4349
    %5990 = vmatprep.subr.bf16.mxu0 0
    %5991 = vmatpush1.bf16.msra.mxu0 %v4350
    %5992 = vmatprep.subr.bf16.mxu0 0
    %5993 = vmatpush1.bf16.msra.mxu0 %v4351
    %5994 = vmatprep.subr.bf16.mxu0 0
    %5995 = vmatpush1.bf16.msra.mxu0 %v4352
    %5996 = vmatprep.subr.bf16.mxu0 0
    %5997 = vmatpush1.bf16.msra.mxu0 %v4353
    %5998 = vmatprep.subr.bf16.mxu0 0
    %5999 = vmatpush1.bf16.msra.mxu0 %v4354
    %6000 = vmatprep.subr.bf16.mxu0 0
    %6001 = vmatpush1.bf16.msra.mxu0 %v4355
    %6002 = vmatprep.subr.bf16.mxu0 0
    %6003 = vmatpush1.bf16.msra.mxu0 %v4356
    %6004 = vmatprep.subr.bf16.mxu0 0
    %6005 = vmatpush1.bf16.msra.mxu0 %v4357
    %6006 = vmatprep.mubr.bf16.mxu0 %v1487
    %6007 = vmatmul.mubr.bf16.gmra.mrb[0].mxu0 %v1473
    %v6008 = vpop.f32.mrb[0].mxu0
    %v6009 = vadd.f32 %v5969, %v6008
    %v6010 = vpop.f32.mrb[0].mxu0
    %v6011 = vpop.f32.mrb[0].mxu0
    %v6012 = vpop.f32.mrb[0].mxu0
    %6013 = vdwg.mxu0
    %6014 = vmatprep.subr.bf16.mxu0 0
    %6015 = vmatpush1.bf16.msra.mxu0 %v4358
    %6016 = vmatprep.subr.bf16.mxu0 0
    %6017 = vmatpush1.bf16.msra.mxu0 %v4359
    %6018 = vmatprep.subr.bf16.mxu0 0
    %6019 = vmatpush1.bf16.msra.mxu0 %v4360
    %6020 = vmatprep.subr.bf16.mxu0 0
    %6021 = vmatpush1.bf16.msra.mxu0 %v4361
    %6022 = vmatprep.subr.bf16.mxu0 0
    %6023 = vmatpush1.bf16.msra.mxu0 %v4362
    %6024 = vmatprep.subr.bf16.mxu0 0
    %6025 = vmatpush1.bf16.msra.mxu0 %v4363
    %6026 = vmatprep.subr.bf16.mxu0 0
    %6027 = vmatpush1.bf16.msra.mxu0 %v4364
    %6028 = vmatprep.subr.bf16.mxu0 0
    %6029 = vmatpush1.bf16.msra.mxu0 %v4365
    %6030 = vmatprep.subr.bf16.mxu0 0
    %6031 = vmatpush1.bf16.msra.mxu0 %v4366
    %6032 = vmatprep.subr.bf16.mxu0 0
    %6033 = vmatpush1.bf16.msra.mxu0 %v4367
    %6034 = vmatprep.subr.bf16.mxu0 0
    %6035 = vmatpush1.bf16.msra.mxu0 %v4368
    %6036 = vmatprep.subr.bf16.mxu0 0
    %6037 = vmatpush1.bf16.msra.mxu0 %v4369
    %6038 = vmatprep.subr.bf16.mxu0 0
    %6039 = vmatpush1.bf16.msra.mxu0 %v4370
    %6040 = vmatprep.subr.bf16.mxu0 0
    %6041 = vmatpush1.bf16.msra.mxu0 %v4371
    %6042 = vmatprep.subr.bf16.mxu0 0
    %6043 = vmatpush1.bf16.msra.mxu0 %v4372
    %6044 = vmatprep.subr.bf16.mxu0 0
    %6045 = vmatpush1.bf16.msra.mxu0 %v4373
    %6046 = vmatprep.mubr.bf16.mxu0 %v1497
    %6047 = vmatmul.mubr.bf16.gmra.mrb[0].mxu0 %v1495
    %v6048 = vpop.f32.mrb[0].mxu0
    %v6049 = vadd.f32 %v6009, %v6048
    %v6050 = vpop.f32.mrb[0].mxu0
    %v6051 = vpop.f32.mrb[0].mxu0
    %v6052 = vpop.f32.mrb[0].mxu0
    %6053 = vdwg.mxu0
    %6054 = vmatprep.subr.bf16.mxu0 0
    %6055 = vmatpush1.bf16.msra.mxu0 %v4374
    %6056 = vmatprep.subr.bf16.mxu0 0
    %6057 = vmatpush1.bf16.msra.mxu0 %v4375
    %6058 = vmatprep.subr.bf16.mxu0 0
    %6059 = vmatpush1.bf16.msra.mxu0 %v4376
    %6060 = vmatprep.subr.bf16.mxu0 0
    %6061 = vmatpush1.bf16.msra.mxu0 %v4377
    %6062 = vmatprep.subr.bf16.mxu0 0
    %6063 = vmatpush1.bf16.msra.mxu0 %v4378
    %6064 = vmatprep.subr.bf16.mxu0 0
    %6065 = vmatpush1.bf16.msra.mxu0 %v4379
    %6066 = vmatprep.subr.bf16.mxu0 0
    %6067 = vmatpush1.bf16.msra.mxu0 %v4380
    %6068 = vmatprep.subr.bf16.mxu0 0
    %6069 = vmatpush1.bf16.msra.mxu0 %v4381
    %6070 = vmatprep.subr.bf16.mxu0 0
    %6071 = vmatpush1.bf16.msra.mxu0 %v4382
    %6072 = vmatprep.subr.bf16.mxu0 0
    %6073 = vmatpush1.bf16.msra.mxu0 %v4383
    %6074 = vmatprep.subr.bf16.mxu0 0
    %6075 = vmatpush1.bf16.msra.mxu0 %v4384
    %6076 = vmatprep.subr.bf16.mxu0 0
    %6077 = vmatpush1.bf16.msra.mxu0 %v4385
    %6078 = vmatprep.subr.bf16.mxu0 0
    %6079 = vmatpush1.bf16.msra.mxu0 %v4386
    %6080 = vmatprep.subr.bf16.mxu0 0
    %6081 = vmatpush1.bf16.msra.mxu0 %v4387
    %6082 = vmatprep.subr.bf16.mxu0 0
    %6083 = vmatpush1.bf16.msra.mxu0 %v4388
    %6084 = vmatprep.subr.bf16.mxu0 0
    %6085 = vmatpush1.bf16.msra.mxu0 %v4389
    %6086 = vmatprep.mubr.bf16.mxu0 %v1494
    %6087 = vmatmul.mubr.bf16.gmra.mrb[0].mxu0 %v1480
    %v6088 = vpop.f32.mrb[0].mxu0
    %v6089 = vadd.f32 %v6049, %v6088
    %v6090 = vpop.f32.mrb[0].mxu0
    %v6091 = vpop.f32.mrb[0].mxu0
    %v6092 = vpop.f32.mrb[0].mxu0
    %6093 = vdwg.mxu0
    %6094 = vmatprep.subr.bf16.mxu0 0
    %6095 = vmatpush1.bf16.msra.mxu0 %v4390
    %6096 = vmatprep.subr.bf16.mxu0 0
    %6097 = vmatpush1.bf16.msra.mxu0 %v4391
    %6098 = vmatprep.subr.bf16.mxu0 0
    %6099 = vmatpush1.bf16.msra.mxu0 %v4392
    %6100 = vmatprep.subr.bf16.mxu0 0
    %6101 = vmatpush1.bf16.msra.mxu0 %v4393
    %6102 = vmatprep.subr.bf16.mxu0 0
    %6103 = vmatpush1.bf16.msra.mxu0 %v4394
    %6104 = vmatprep.subr.bf16.mxu0 0
    %6105 = vmatpush1.bf16.msra.mxu0 %v4395
    %6106 = vmatprep.subr.bf16.mxu0 0
    %6107 = vmatpush1.bf16.msra.mxu0 %v4396
    %6108 = vmatprep.subr.bf16.mxu0 0
    %6109 = vmatpush1.bf16.msra.mxu0 %v4397
    %6110 = vmatprep.subr.bf16.mxu0 0
    %6111 = vmatpush1.bf16.msra.mxu0 %v4398
    %6112 = vmatprep.subr.bf16.mxu0 0
    %6113 = vmatpush1.bf16.msra.mxu0 %v4399
    %6114 = vmatprep.subr.bf16.mxu0 0
    %6115 = vmatpush1.bf16.msra.mxu0 %v4400
    %6116 = vmatprep.subr.bf16.mxu0 0
    %6117 = vmatpush1.bf16.msra.mxu0 %v4401
    %6118 = vmatprep.subr.bf16.mxu0 0
    %6119 = vmatpush1.bf16.msra.mxu0 %v4402
    %6120 = vmatprep.subr.bf16.mxu0 0
    %6121 = vmatpush1.bf16.msra.mxu0 %v4403
    %6122 = vmatprep.subr.bf16.mxu0 0
    %6123 = vmatpush1.bf16.msra.mxu0 %v4404
    %6124 = vmatprep.subr.bf16.mxu0 0
    %6125 = vmatpush1.bf16.msra.mxu0 %v4405
    %6126 = vmatprep.mubr.bf16.mxu0 %v1498
    %6127 = vmatmul.mubr.bf16.gmra.mrb[0].mxu0 %v1496
    %v6128 = vpop.f32.mrb[0].mxu0
    %v6129 = vadd.f32 %v6089, %v6128
    %v6130 = vpop.f32.mrb[0].mxu0
    %v6131 = vpop.f32.mrb[0].mxu0
    %v6132 = vpop.f32.mrb[0].mxu0
    %6133 = vdwg.mxu0
    %6134 = vmatprep.subr.bf16.mxu0 0
    %6135 = vmatpush1.bf16.msra.mxu0 %v4406
    %6136 = vmatprep.subr.bf16.mxu0 0
    %6137 = vmatpush1.bf16.msra.mxu0 %v4407
    %6138 = vmatprep.subr.bf16.mxu0 0
    %6139 = vmatpush1.bf16.msra.mxu0 %v4408
    %6140 = vmatprep.subr.bf16.mxu0 0
    %6141 = vmatpush1.bf16.msra.mxu0 %v4409
    %6142 = vmatprep.subr.bf16.mxu0 0
    %6143 = vmatpush1.bf16.msra.mxu0 %v4410
    %6144 = vmatprep.subr.bf16.mxu0 0
    %6145 = vmatpush1.bf16.msra.mxu0 %v4411
    %6146 = vmatprep.subr.bf16.mxu0 0
    %6147 = vmatpush1.bf16.msra.mxu0 %v4412
    %6148 = vmatprep.subr.bf16.mxu0 0
    %6149 = vmatpush1.bf16.msra.mxu0 %v4413
    %6150 = vmatprep.subr.bf16.mxu0 0
    %6151 = vmatpush1.bf16.msra.mxu0 %v4414
    %6152 = vmatprep.subr.bf16.mxu0 0
    %6153 = vmatpush1.bf16.msra.mxu0 %v4415
    %6154 = vmatprep.subr.bf16.mxu0 0
    %6155 = vmatpush1.bf16.msra.mxu0 %v4416
    %6156 = vmatprep.subr.bf16.mxu0 0
    %6157 = vmatpush1.bf16.msra.mxu0 %v4417
    %6158 = vmatprep.subr.bf16.mxu0 0
    %6159 = vmatpush1.bf16.msra.mxu0 %v4418
    %6160 = vmatprep.subr.bf16.mxu0 0
    %6161 = vmatpush1.bf16.msra.mxu0 %v4419
    %6162 = vmatprep.subr.bf16.mxu0 0
    %6163 = vmatpush1.bf16.msra.mxu0 %v4420
    %6164 = vmatprep.subr.bf16.mxu0 0
    %6165 = vmatpush1.bf16.msra.mxu0 %v4421
    %6166 = vmatprep.mubr.bf16.mxu0 %v1536
    %6167 = vmatmul.mubr.bf16.gmra.mrb[0].mxu0 %v1522
    %v6168 = vpop.f32.mrb[0].mxu0
    %v6169 = vadd.f32 %v6129, %v6168
    %v6170 = vpop.f32.mrb[0].mxu0
    %v6171 = vpop.f32.mrb[0].mxu0
    %v6172 = vpop.f32.mrb[0].mxu0
    %6173 = vdwg.mxu0
    %6174 = vmatprep.subr.bf16.mxu0 0
    %6175 = vmatpush1.bf16.msra.mxu0 %v4422
    %6176 = vmatprep.subr.bf16.mxu0 0
    %6177 = vmatpush1.bf16.msra.mxu0 %v4423
    %6178 = vmatprep.subr.bf16.mxu0 0
    %6179 = vmatpush1.bf16.msra.mxu0 %v4424
    %6180 = vmatprep.subr.bf16.mxu0 0
    %6181 = vmatpush1.bf16.msra.mxu0 %v4425
    %6182 = vmatprep.subr.bf16.mxu0 0
    %6183 = vmatpush1.bf16.msra.mxu0 %v4426
    %6184 = vmatprep.subr.bf16.mxu0 0
    %6185 = vmatpush1.bf16.msra.mxu0 %v4427
    %6186 = vmatprep.subr.bf16.mxu0 0
    %6187 = vmatpush1.bf16.msra.mxu0 %v4428
    %6188 = vmatprep.subr.bf16.mxu0 0
    %6189 = vmatpush1.bf16.msra.mxu0 %v4429
    %6190 = vmatprep.subr.bf16.mxu0 0
    %6191 = vmatpush1.bf16.msra.mxu0 %v4430
    %6192 = vmatprep.subr.bf16.mxu0 0
    %6193 = vmatpush1.bf16.msra.mxu0 %v4431
    %6194 = vmatprep.subr.bf16.mxu0 0
    %6195 = vmatpush1.bf16.msra.mxu0 %v4432
    %6196 = vmatprep.subr.bf16.mxu0 0
    %6197 = vmatpush1.bf16.msra.mxu0 %v4433
    %6198 = vmatprep.subr.bf16.mxu0 0
    %6199 = vmatpush1.bf16.msra.mxu0 %v4434
    %6200 = vmatprep.subr.bf16.mxu0 0
    %6201 = vmatpush1.bf16.msra.mxu0 %v4435
    %6202 = vmatprep.subr.bf16.mxu0 0
    %6203 = vmatpush1.bf16.msra.mxu0 %v4436
    %6204 = vmatprep.subr.bf16.mxu0 0
    %6205 = vmatpush1.bf16.msra.mxu0 %v4437
    %6206 = vmatprep.mubr.bf16.mxu0 %v1546
    %6207 = vmatmul.mubr.bf16.gmra.mrb[0].mxu0 %v1544
    %v6208 = vpop.f32.mrb[0].mxu0
    %v6209 = vadd.f32 %v6169, %v6208
    %v6210 = vpop.f32.mrb[0].mxu0
    %v6211 = vpop.f32.mrb[0].mxu0
    %v6212 = vpop.f32.mrb[0].mxu0
    %6213 = vdwg.mxu0
    %6214 = vmatprep.subr.bf16.mxu0 0
    %6215 = vmatpush1.bf16.msra.mxu0 %v4438
    %6216 = vmatprep.subr.bf16.mxu0 0
    %6217 = vmatpush1.bf16.msra.mxu0 %v4439
    %6218 = vmatprep.subr.bf16.mxu0 0
    %6219 = vmatpush1.bf16.msra.mxu0 %v4440
    %6220 = vmatprep.subr.bf16.mxu0 0
    %6221 = vmatpush1.bf16.msra.mxu0 %v4441
    %6222 = vmatprep.subr.bf16.mxu0 0
    %6223 = vmatpush1.bf16.msra.mxu0 %v4442
    %6224 = vmatprep.subr.bf16.mxu0 0
    %6225 = vmatpush1.bf16.msra.mxu0 %v4443
    %6226 = vmatprep.subr.bf16.mxu0 0
    %6227 = vmatpush1.bf16.msra.mxu0 %v4444
    %6228 = vmatprep.subr.bf16.mxu0 0
    %6229 = vmatpush1.bf16.msra.mxu0 %v4445
    %6230 = vmatprep.subr.bf16.mxu0 0
    %6231 = vmatpush1.bf16.msra.mxu0 %v4446
    %6232 = vmatprep.subr.bf16.mxu0 0
    %6233 = vmatpush1.bf16.msra.mxu0 %v4447
    %6234 = vmatprep.subr.bf16.mxu0 0
    %6235 = vmatpush1.bf16.msra.mxu0 %v4448
    %6236 = vmatprep.subr.bf16.mxu0 0
    %6237 = vmatpush1.bf16.msra.mxu0 %v4449
    %6238 = vmatprep.subr.bf16.mxu0 0
    %6239 = vmatpush1.bf16.msra.mxu0 %v4450
    %6240 = vmatprep.subr.bf16.mxu0 0
    %6241 = vmatpush1.bf16.msra.mxu0 %v4451
    %6242 = vmatprep.subr.bf16.mxu0 0
    %6243 = vmatpush1.bf16.msra.mxu0 %v4452
    %6244 = vmatprep.subr.bf16.mxu0 0
    %6245 = vmatpush1.bf16.msra.mxu0 %v4453
    %6246 = vmatprep.mubr.bf16.mxu0 %v1543
    %6247 = vmatmul.mubr.bf16.gmra.mrb[0].mxu0 %v1529
    %v6248 = vpop.f32.mrb[0].mxu0
    %v6249 = vadd.f32 %v6209, %v6248
    %v6250 = vpop.f32.mrb[0].mxu0
    %v6251 = vpop.f32.mrb[0].mxu0
    %v6252 = vpop.f32.mrb[0].mxu0
    %6253 = vdwg.mxu0
    %6254 = vmatprep.subr.bf16.mxu0 0
    %6255 = vmatpush1.bf16.msra.mxu0 %v4454
    %6256 = vmatprep.subr.bf16.mxu0 0
    %6257 = vmatpush1.bf16.msra.mxu0 %v4455
    %6258 = vmatprep.subr.bf16.mxu0 0
    %6259 = vmatpush1.bf16.msra.mxu0 %v4456
    %6260 = vmatprep.subr.bf16.mxu0 0
    %6261 = vmatpush1.bf16.msra.mxu0 %v4457
    %6262 = vmatprep.subr.bf16.mxu0 0
    %6263 = vmatpush1.bf16.msra.mxu0 %v4458
    %6264 = vmatprep.subr.bf16.mxu0 0
    %6265 = vmatpush1.bf16.msra.mxu0 %v4459
    %6266 = vmatprep.subr.bf16.mxu0 0
    %6267 = vmatpush1.bf16.msra.mxu0 %v4460
    %6268 = vmatprep.subr.bf16.mxu0 0
    %6269 = vmatpush1.bf16.msra.mxu0 %v4461
    %6270 = vmatprep.subr.bf16.mxu0 0
    %6271 = vmatpush1.bf16.msra.mxu0 %v4462
    %6272 = vmatprep.subr.bf16.mxu0 0
    %6273 = vmatpush1.bf16.msra.mxu0 %v4463
    %6274 = vmatprep.subr.bf16.mxu0 0
    %6275 = vmatpush1.bf16.msra.mxu0 %v4464
    %6276 = vmatprep.subr.bf16.mxu0 0
    %6277 = vmatpush1.bf16.msra.mxu0 %v4465
    %6278 = vmatprep.subr.bf16.mxu0 0
    %6279 = vmatpush1.bf16.msra.mxu0 %v4466
    %6280 = vmatprep.subr.bf16.mxu0 0
    %6281 = vmatpush1.bf16.msra.mxu0 %v4467
    %6282 = vmatprep.subr.bf16.mxu0 0
    %6283 = vmatpush1.bf16.msra.mxu0 %v4468
    %6284 = vmatprep.subr.bf16.mxu0 0
    %6285 = vmatpush1.bf16.msra.mxu0 %v4469
    %6286 = vmatprep.mubr.bf16.mxu0 %v1547
    %6287 = vmatmul.mubr.bf16.gmra.mrb[0].mxu0 %v1545
    %v6288 = vpop.f32.mrb[0].mxu0
    %v6289 = vadd.f32 %v6249, %v6288
    %v6290 = vpop.f32.mrb[0].mxu0
    %v6291 = vpop.f32.mrb[0].mxu0
    %v6292 = vpop.f32.mrb[0].mxu0
    %6293 = vdwg.mxu0
    %6294 = vmatprep.subr.bf16.mxu0 0
    %6295 = vmatpush1.bf16.msra.mxu0 %v4470
    %6296 = vmatprep.subr.bf16.mxu0 0
    %6297 = vmatpush1.bf16.msra.mxu0 %v4471
    %6298 = vmatprep.subr.bf16.mxu0 0
    %6299 = vmatpush1.bf16.msra.mxu0 %v4472
    %6300 = vmatprep.subr.bf16.mxu0 0
    %6301 = vmatpush1.bf16.msra.mxu0 %v4473
    %6302 = vmatprep.subr.bf16.mxu0 0
    %6303 = vmatpush1.bf16.msra.mxu0 %v4474
    %6304 = vmatprep.subr.bf16.mxu0 0
    %6305 = vmatpush1.bf16.msra.mxu0 %v4475
    %6306 = vmatprep.subr.bf16.mxu0 0
    %6307 = vmatpush1.bf16.msra.mxu0 %v4476
    %6308 = vmatprep.subr.bf16.mxu0 0
    %6309 = vmatpush1.bf16.msra.mxu0 %v4477
    %6310 = vmatprep.subr.bf16.mxu0 0
    %6311 = vmatpush1.bf16.msra.mxu0 %v4478
    %6312 = vmatprep.subr.bf16.mxu0 0
    %6313 = vmatpush1.bf16.msra.mxu0 %v4479
    %6314 = vmatprep.subr.bf16.mxu0 0
    %6315 = vmatpush1.bf16.msra.mxu0 %v4480
    %6316 = vmatprep.subr.bf16.mxu0 0
    %6317 = vmatpush1.bf16.msra.mxu0 %v4481
    %6318 = vmatprep.subr.bf16.mxu0 0
    %6319 = vmatpush1.bf16.msra.mxu0 %v4482
    %6320 = vmatprep.subr.bf16.mxu0 0
    %6321 = vmatpush1.bf16.msra.mxu0 %v4483
    %6322 = vmatprep.subr.bf16.mxu0 0
    %6323 = vmatpush1.bf16.msra.mxu0 %v4484
    %6324 = vmatprep.subr.bf16.mxu0 0
    %6325 = vmatpush1.bf16.msra.mxu0 %v4485
    %6326 = vmatprep.mubr.bf16.mxu0 %v1585
    %6327 = vmatmul.mubr.bf16.gmra.mrb[0].mxu0 %v1571
    %v6328 = vpop.f32.mrb[0].mxu0
    %v6329 = vadd.f32 %v6289, %v6328
    %v6330 = vpop.f32.mrb[0].mxu0
    %v6331 = vpop.f32.mrb[0].mxu0
    %v6332 = vpop.f32.mrb[0].mxu0
    %6333 = vdwg.mxu0
    %6334 = vmatprep.subr.bf16.mxu0 0
    %6335 = vmatpush1.bf16.msra.mxu0 %v4486
    %6336 = vmatprep.subr.bf16.mxu0 0
    %6337 = vmatpush1.bf16.msra.mxu0 %v4487
    %6338 = vmatprep.subr.bf16.mxu0 0
    %6339 = vmatpush1.bf16.msra.mxu0 %v4488
    %6340 = vmatprep.subr.bf16.mxu0 0
    %6341 = vmatpush1.bf16.msra.mxu0 %v4489
    %6342 = vmatprep.subr.bf16.mxu0 0
    %6343 = vmatpush1.bf16.msra.mxu0 %v4490
    %6344 = vmatprep.subr.bf16.mxu0 0
    %6345 = vmatpush1.bf16.msra.mxu0 %v4491
    %6346 = vmatprep.subr.bf16.mxu0 0
    %6347 = vmatpush1.bf16.msra.mxu0 %v4492
    %6348 = vmatprep.subr.bf16.mxu0 0
    %6349 = vmatpush1.bf16.msra.mxu0 %v4493
    %6350 = vmatprep.subr.bf16.mxu0 0
    %6351 = vmatpush1.bf16.msra.mxu0 %v4494
    %6352 = vmatprep.subr.bf16.mxu0 0
    %6353 = vmatpush1.bf16.msra.mxu0 %v4495
    %6354 = vmatprep.subr.bf16.mxu0 0
    %6355 = vmatpush1.bf16.msra.mxu0 %v4496
    %6356 = vmatprep.subr.bf16.mxu0 0
    %6357 = vmatpush1.bf16.msra.mxu0 %v4497
    %6358 = vmatprep.subr.bf16.mxu0 0
    %6359 = vmatpush1.bf16.msra.mxu0 %v4498
    %6360 = vmatprep.subr.bf16.mxu0 0
    %6361 = vmatpush1.bf16.msra.mxu0 %v4499
    %6362 = vmatprep.subr.bf16.mxu0 0
    %6363 = vmatpush1.bf16.msra.mxu0 %v4500
    %6364 = vmatprep.subr.bf16.mxu0 0
    %6365 = vmatpush1.bf16.msra.mxu0 %v4501
    %6366 = vmatprep.mubr.bf16.mxu0 %v1595
    %6367 = vmatmul.mubr.bf16.gmra.mrb[0].mxu0 %v1593
    %v6368 = vpop.f32.mrb[0].mxu0
    %v6369 = vadd.f32 %v6329, %v6368
    %v6370 = vpop.f32.mrb[0].mxu0
    %v6371 = vpop.f32.mrb[0].mxu0
    %v6372 = vpop.f32.mrb[0].mxu0
    %6373 = vdwg.mxu0
    %6374 = vmatprep.subr.bf16.mxu0 0
    %6375 = vmatpush1.bf16.msra.mxu0 %v4502
    %6376 = vmatprep.subr.bf16.mxu0 0
    %6377 = vmatpush1.bf16.msra.mxu0 %v4503
    %6378 = vmatprep.subr.bf16.mxu0 0
    %6379 = vmatpush1.bf16.msra.mxu0 %v4504
    %6380 = vmatprep.subr.bf16.mxu0 0
    %6381 = vmatpush1.bf16.msra.mxu0 %v4505
    %6382 = vmatprep.subr.bf16.mxu0 0
    %6383 = vmatpush1.bf16.msra.mxu0 %v4506
    %6384 = vmatprep.subr.bf16.mxu0 0
    %6385 = vmatpush1.bf16.msra.mxu0 %v4507
    %6386 = vmatprep.subr.bf16.mxu0 0
    %6387 = vmatpush1.bf16.msra.mxu0 %v4508
    %6388 = vmatprep.subr.bf16.mxu0 0
    %6389 = vmatpush1.bf16.msra.mxu0 %v4509
    %6390 = vmatprep.subr.bf16.mxu0 0
    %6391 = vmatpush1.bf16.msra.mxu0 %v4510
    %6392 = vmatprep.subr.bf16.mxu0 0
    %6393 = vmatpush1.bf16.msra.mxu0 %v4511
    %6394 = vmatprep.subr.bf16.mxu0 0
    %6395 = vmatpush1.bf16.msra.mxu0 %v4512
    %6396 = vmatprep.subr.bf16.mxu0 0
    %6397 = vmatpush1.bf16.msra.mxu0 %v4513
    %6398 = vmatprep.subr.bf16.mxu0 0
    %6399 = vmatpush1.bf16.msra.mxu0 %v4514
    %6400 = vmatprep.subr.bf16.mxu0 0
    %6401 = vmatpush1.bf16.msra.mxu0 %v4515
    %6402 = vmatprep.subr.bf16.mxu0 0
    %6403 = vmatpush1.bf16.msra.mxu0 %v4516
    %6404 = vmatprep.subr.bf16.mxu0 0
    %6405 = vmatpush1.bf16.msra.mxu0 %v4517
    %6406 = vmatprep.mubr.bf16.mxu0 %v1592
    %6407 = vmatmul.mubr.bf16.gmra.mrb[0].mxu0 %v1578
    %v6408 = vpop.f32.mrb[0].mxu0
    %v6409 = vadd.f32 %v6369, %v6408
    %v6410 = vpop.f32.mrb[0].mxu0
    %v6411 = vpop.f32.mrb[0].mxu0
    %v6412 = vpop.f32.mrb[0].mxu0
    %6413 = vdwg.mxu0
    %6414 = vmatprep.subr.bf16.mxu0 0
    %6415 = vmatpush1.bf16.msra.mxu0 %v4518
    %6416 = vmatprep.subr.bf16.mxu0 0
    %6417 = vmatpush1.bf16.msra.mxu0 %v4519
    %6418 = vmatprep.subr.bf16.mxu0 0
    %6419 = vmatpush1.bf16.msra.mxu0 %v4520
    %6420 = vmatprep.subr.bf16.mxu0 0
    %6421 = vmatpush1.bf16.msra.mxu0 %v4521
    %6422 = vmatprep.subr.bf16.mxu0 0
    %6423 = vmatpush1.bf16.msra.mxu0 %v4522
    %6424 = vmatprep.subr.bf16.mxu0 0
    %6425 = vmatpush1.bf16.msra.mxu0 %v4523
    %6426 = vmatprep.subr.bf16.mxu0 0
    %6427 = vmatpush1.bf16.msra.mxu0 %v4524
    %6428 = vmatprep.subr.bf16.mxu0 0
    %6429 = vmatpush1.bf16.msra.mxu0 %v4525
    %6430 = vmatprep.subr.bf16.mxu0 0
    %6431 = vmatpush1.bf16.msra.mxu0 %v4526
    %6432 = vmatprep.subr.bf16.mxu0 0
    %6433 = vmatpush1.bf16.msra.mxu0 %v4527
    %6434 = vmatprep.subr.bf16.mxu0 0
    %6435 = vmatpush1.bf16.msra.mxu0 %v4528
    %6436 = vmatprep.subr.bf16.mxu0 0
    %6437 = vmatpush1.bf16.msra.mxu0 %v4529
    %6438 = vmatprep.subr.bf16.mxu0 0
    %6439 = vmatpush1.bf16.msra.mxu0 %v4530
    %6440 = vmatprep.subr.bf16.mxu0 0
    %6441 = vmatpush1.bf16.msra.mxu0 %v4531
    %6442 = vmatprep.subr.bf16.mxu0 0
    %6443 = vmatpush1.bf16.msra.mxu0 %v4532
    %6444 = vmatprep.subr.bf16.mxu0 0
    %6445 = vmatpush1.bf16.msra.mxu0 %v4533
    %6446 = vmatprep.mubr.bf16.mxu0 %v1596
    %6447 = vmatmul.mubr.bf16.gmra.mrb[0].mxu0 %v1594
    %v6448 = vpop.f32.mrb[0].mxu0
    %v6449 = vadd.f32 %v6409, %v6448
    %v6450 = vpop.f32.mrb[0].mxu0
    %v6451 = vpop.f32.mrb[0].mxu0
    %v6452 = vpop.f32.mrb[0].mxu0
    %6453 = vdwg.mxu0
    %6454 = vmatprep.subr.bf16.mxu0 0
    %6455 = vmatpush1.bf16.msra.mxu0 %v4534
    %6456 = vmatprep.subr.bf16.mxu0 0
    %6457 = vmatpush1.bf16.msra.mxu0 %v4535
    %6458 = vmatprep.subr.bf16.mxu0 0
    %6459 = vmatpush1.bf16.msra.mxu0 %v4536
    %6460 = vmatprep.subr.bf16.mxu0 0
    %6461 = vmatpush1.bf16.msra.mxu0 %v4537
    %6462 = vmatprep.subr.bf16.mxu0 0
    %6463 = vmatpush1.bf16.msra.mxu0 %v4538
    %6464 = vmatprep.subr.bf16.mxu0 0
    %6465 = vmatpush1.bf16.msra.mxu0 %v4539
    %6466 = vmatprep.subr.bf16.mxu0 0
    %6467 = vmatpush1.bf16.msra.mxu0 %v4540
    %6468 = vmatprep.subr.bf16.mxu0 0
    %6469 = vmatpush1.bf16.msra.mxu0 %v4541
    %6470 = vmatprep.subr.bf16.mxu0 0
    %6471 = vmatpush1.bf16.msra.mxu0 %v4542
    %6472 = vmatprep.subr.bf16.mxu0 0
    %6473 = vmatpush1.bf16.msra.mxu0 %v4543
    %6474 = vmatprep.subr.bf16.mxu0 0
    %6475 = vmatpush1.bf16.msra.mxu0 %v4544
    %6476 = vmatprep.subr.bf16.mxu0 0
    %6477 = vmatpush1.bf16.msra.mxu0 %v4545
    %6478 = vmatprep.subr.bf16.mxu0 0
    %6479 = vmatpush1.bf16.msra.mxu0 %v4546
    %6480 = vmatprep.subr.bf16.mxu0 0
    %6481 = vmatpush1.bf16.msra.mxu0 %v4547
    %6482 = vmatprep.subr.bf16.mxu0 0
    %6483 = vmatpush1.bf16.msra.mxu0 %v4548
    %6484 = vmatprep.subr.bf16.mxu0 0
    %6485 = vmatpush1.bf16.msra.mxu0 %v4549
    %6486 = vmatprep.mubr.bf16.mxu0 %v1634
    %6487 = vmatmul.mubr.bf16.gmra.mrb[0].mxu0 %v1620
    %v6488 = vpop.f32.mrb[0].mxu0
    %v6489 = vadd.f32 %v6449, %v6488
    %v6490 = vpop.f32.mrb[0].mxu0
    %v6491 = vpop.f32.mrb[0].mxu0
    %v6492 = vpop.f32.mrb[0].mxu0
    %6493 = vdwg.mxu0
    %6494 = vmatprep.subr.bf16.mxu0 0
    %6495 = vmatpush1.bf16.msra.mxu0 %v4550
    %6496 = vmatprep.subr.bf16.mxu0 0
    %6497 = vmatpush1.bf16.msra.mxu0 %v4551
    %6498 = vmatprep.subr.bf16.mxu0 0
    %6499 = vmatpush1.bf16.msra.mxu0 %v4552
    %6500 = vmatprep.subr.bf16.mxu0 0
    %6501 = vmatpush1.bf16.msra.mxu0 %v4553
    %6502 = vmatprep.subr.bf16.mxu0 0
    %6503 = vmatpush1.bf16.msra.mxu0 %v4554
    %6504 = vmatprep.subr.bf16.mxu0 0
    %6505 = vmatpush1.bf16.msra.mxu0 %v4555
    %6506 = vmatprep.subr.bf16.mxu0 0
    %6507 = vmatpush1.bf16.msra.mxu0 %v4556
    %6508 = vmatprep.subr.bf16.mxu0 0
    %6509 = vmatpush1.bf16.msra.mxu0 %v4557
    %6510 = vmatprep.subr.bf16.mxu0 0
    %6511 = vmatpush1.bf16.msra.mxu0 %v4558
    %6512 = vmatprep.subr.bf16.mxu0 0
    %6513 = vmatpush1.bf16.msra.mxu0 %v4559
    %6514 = vmatprep.subr.bf16.mxu0 0
    %6515 = vmatpush1.bf16.msra.mxu0 %v4560
    %6516 = vmatprep.subr.bf16.mxu0 0
    %6517 = vmatpush1.bf16.msra.mxu0 %v4561
    %6518 = vmatprep.subr.bf16.mxu0 0
    %6519 = vmatpush1.bf16.msra.mxu0 %v4562
    %6520 = vmatprep.subr.bf16.mxu0 0
    %6521 = vmatpush1.bf16.msra.mxu0 %v4563
    %6522 = vmatprep.subr.bf16.mxu0 0
    %6523 = vmatpush1.bf16.msra.mxu0 %v4564
    %6524 = vmatprep.subr.bf16.mxu0 0
    %6525 = vmatpush1.bf16.msra.mxu0 %v4565
    %6526 = vmatprep.mubr.bf16.mxu0 %v1644
    %6527 = vmatmul.mubr.bf16.gmra.mrb[0].mxu0 %v1642
    %v6528 = vpop.f32.mrb[0].mxu0
    %v6529 = vadd.f32 %v6489, %v6528
    %v6530 = vpop.f32.mrb[0].mxu0
    %v6531 = vpop.f32.mrb[0].mxu0
    %v6532 = vpop.f32.mrb[0].mxu0
    %6533 = vdwg.mxu0
    %6534 = vmatprep.subr.bf16.mxu0 0
    %6535 = vmatpush1.bf16.msra.mxu0 %v4566
    %6536 = vmatprep.subr.bf16.mxu0 0
    %6537 = vmatpush1.bf16.msra.mxu0 %v4567
    %6538 = vmatprep.subr.bf16.mxu0 0
    %6539 = vmatpush1.bf16.msra.mxu0 %v4568
    %6540 = vmatprep.subr.bf16.mxu0 0
    %6541 = vmatpush1.bf16.msra.mxu0 %v4569
    %6542 = vmatprep.subr.bf16.mxu0 0
    %6543 = vmatpush1.bf16.msra.mxu0 %v4570
    %6544 = vmatprep.subr.bf16.mxu0 0
    %6545 = vmatpush1.bf16.msra.mxu0 %v4571
    %6546 = vmatprep.subr.bf16.mxu0 0
    %6547 = vmatpush1.bf16.msra.mxu0 %v4572
    %6548 = vmatprep.subr.bf16.mxu0 0
    %6549 = vmatpush1.bf16.msra.mxu0 %v4573
    %6550 = vmatprep.subr.bf16.mxu0 0
    %6551 = vmatpush1.bf16.msra.mxu0 %v4574
    %6552 = vmatprep.subr.bf16.mxu0 0
    %6553 = vmatpush1.bf16.msra.mxu0 %v4575
    %6554 = vmatprep.subr.bf16.mxu0 0
    %6555 = vmatpush1.bf16.msra.mxu0 %v4576
    %6556 = vmatprep.subr.bf16.mxu0 0
    %6557 = vmatpush1.bf16.msra.mxu0 %v4577
    %6558 = vmatprep.subr.bf16.mxu0 0
    %6559 = vmatpush1.bf16.msra.mxu0 %v4578
    %6560 = vmatprep.subr.bf16.mxu0 0
    %6561 = vmatpush1.bf16.msra.mxu0 %v4579
    %6562 = vmatprep.subr.bf16.mxu0 0
    %6563 = vmatpush1.bf16.msra.mxu0 %v4580
    %6564 = vmatprep.subr.bf16.mxu0 0
    %6565 = vmatpush1.bf16.msra.mxu0 %v4581
    %6566 = vmatprep.mubr.bf16.mxu0 %v1641
    %6567 = vmatmul.mubr.bf16.gmra.mrb[0].mxu0 %v1627
    %v6568 = vpop.f32.mrb[0].mxu0
    %v6569 = vadd.f32 %v6529, %v6568
    %v6570 = vpop.f32.mrb[0].mxu0
    %v6571 = vpop.f32.mrb[0].mxu0
    %v6572 = vpop.f32.mrb[0].mxu0
    %6573 = vdwg.mxu0
    %6574 = vmatprep.subr.bf16.mxu0 0
    %6575 = vmatpush1.bf16.msra.mxu0 %v4582
    %6576 = vmatprep.subr.bf16.mxu0 0
    %6577 = vmatpush1.bf16.msra.mxu0 %v4583
    %6578 = vmatprep.subr.bf16.mxu0 0
    %6579 = vmatpush1.bf16.msra.mxu0 %v4584
    %6580 = vmatprep.subr.bf16.mxu0 0
    %6581 = vmatpush1.bf16.msra.mxu0 %v4585
    %6582 = vmatprep.subr.bf16.mxu0 0
    %6583 = vmatpush1.bf16.msra.mxu0 %v4586
    %6584 = vmatprep.subr.bf16.mxu0 0
    %6585 = vmatpush1.bf16.msra.mxu0 %v4587
    %6586 = vmatprep.subr.bf16.mxu0 0
    %6587 = vmatpush1.bf16.msra.mxu0 %v4588
    %6588 = vmatprep.subr.bf16.mxu0 0
    %6589 = vmatpush1.bf16.msra.mxu0 %v4589
    %6590 = vmatprep.subr.bf16.mxu0 0
    %6591 = vmatpush1.bf16.msra.mxu0 %v4590
    %6592 = vmatprep.subr.bf16.mxu0 0
    %6593 = vmatpush1.bf16.msra.mxu0 %v4591
    %6594 = vmatprep.subr.bf16.mxu0 0
    %6595 = vmatpush1.bf16.msra.mxu0 %v4592
    %6596 = vmatprep.subr.bf16.mxu0 0
    %6597 = vmatpush1.bf16.msra.mxu0 %v4593
    %6598 = vmatprep.subr.bf16.mxu0 0
    %6599 = vmatpush1.bf16.msra.mxu0 %v4594
    %6600 = vmatprep.subr.bf16.mxu0 0
    %6601 = vmatpush1.bf16.msra.mxu0 %v4595
    %6602 = vmatprep.subr.bf16.mxu0 0
    %6603 = vmatpush1.bf16.msra.mxu0 %v4596
    %6604 = vmatprep.subr.bf16.mxu0 0
    %6605 = vmatpush1.bf16.msra.mxu0 %v4597
    %6606 = vmatprep.mubr.bf16.mxu0 %v1645
    %6607 = vmatmul.mubr.bf16.gmra.mrb[0].mxu0 %v1643
    %v6608 = vpop.f32.mrb[0].mxu0
    %v6609 = vadd.f32 %v6569, %v6608
    %v6610 = vpop.f32.mrb[0].mxu0
    %v6611 = vpop.f32.mrb[0].mxu0
    %v6612 = vpop.f32.mrb[0].mxu0
    %6613 = vdwg.mxu0
    %v6614 = vpack.c.bf16 %v6609, %v6609
    %v6615 = vld [vmem:[%s3] sm:$0xf]
    %v6616 = vld [vmem:[%s3 + $0x4] sm:$0xf]
    %v6617 = vld [vmem:[%s3 + $0x8] sm:$0xf]
    %v6618 = vld [vmem:[%s3 + $0xc] sm:$0xf]
    %v6619 = vld [vmem:[%s3 + $0x10] sm:$0xf]
    %v6620 = vld [vmem:[%s3 + $0x14] sm:$0xf]
    %v6621 = vld [vmem:[%s3 + $0x18] sm:$0xf]
    %v6622 = vld [vmem:[%s3 + $0x1c] sm:$0xf]
    %v6623 = vld [vmem:[%s3 + $0x20] sm:$0xf]
    %v6624 = vld [vmem:[%s3 + $0x24] sm:$0xf]
    %v6625 = vld [vmem:[%s3 + $0x28] sm:$0xf]
    %v6626 = vld [vmem:[%s3 + $0x2c] sm:$0xf]
    %v6627 = vld [vmem:[%s3 + $0x30] sm:$0xf]
    %v6628 = vld [vmem:[%s3 + $0x34] sm:$0xf]
    %v6629 = vld [vmem:[%s3 + $0x38] sm:$0xf]
    %v6630 = vld [vmem:[%s4] sm:$0x1]
    %v6632 = vlaneseq
    %v6633 = vshrl.u32 %v6632, 7
    %v6634 = vsub.s32 0, %v6633
    %v6635 = vrot.slane %v6630, %v6634
    %v6652 = vunpack.c.l.b16 %v6615
    %v6653 = vunpack.c.l.b16 %v6616
    %v6654 = vunpack.c.l.b16 %v6617
    %v6655 = vunpack.c.l.b16 %v6618
    %v6656 = vunpack.c.l.b16 %v6619
    %v6657 = vunpack.c.l.b16 %v6620
    %v6658 = vunpack.c.l.b16 %v6621
    %v6659 = vunpack.c.l.b16 %v6622
    %v6660 = vunpack.c.l.b16 %v6623
    %v6661 = vunpack.c.l.b16 %v6624
    %v6662 = vunpack.c.l.b16 %v6625
    %v6663 = vunpack.c.l.b16 %v6626
    %v6664 = vunpack.c.l.b16 %v6627
    %v6665 = vunpack.c.l.b16 %v6628
    %v6666 = vunpack.c.l.b16 %v6629
    %v6667 = vpack.c.b16 %v6653, %v6652
    %v6668 = vpack.c.b16 %v6655, %v6654
    %v6669 = vpack.c.b16 %v6657, %v6656
    %v6670 = vpack.c.b16 %v6659, %v6658
    %v6671 = vpack.c.b16 %v6661, %v6660
    %v6672 = vpack.c.b16 %v6663, %v6662
    %v6673 = vpack.c.b16 %v6665, %v6664
    %v6674 = vpack.c.b16 %v6666, %v6666
    %vm6682 = vcmask 982016
    %v6684 = vsel %vm6682, %v6614, 0
    %vm6686 = vcmask 1043456
    %v6688 = vsel %vm6686, %v6674, 0
    %6690 = vmatprep.subr.bf16.mxu0 0
    %6691 = vmatpush1.bf16.msra.mxu0 %v6667
    %6692 = vmatprep.subr.bf16.mxu0 0
    %6693 = vmatpush1.bf16.msra.mxu0 %v6668
    %6694 = vmatprep.subr.bf16.mxu0 0
    %6695 = vmatpush1.bf16.msra.mxu0 %v6669
    %6696 = vmatprep.subr.bf16.mxu0 0
    %6697 = vmatpush1.bf16.msra.mxu0 %v6670
    %6698 = vmatprep.subr.bf16.mxu0 0
    %6699 = vmatpush1.bf16.msra.mxu0 %v6671
    %6700 = vmatprep.subr.bf16.mxu0 0
    %6701 = vmatpush1.bf16.msra.mxu0 %v6672
    %6702 = vmatprep.subr.bf16.mxu0 0
    %6703 = vmatpush1.bf16.msra.mxu0 %v6673
    %6704 = vmatprep.subr.bf16.mxu0 0
    %6705 = vmatpush1.bf16.msra.mxu0 %v6688
    %6706 = vmatprep.subr.bf16.mxu0 0
    %6707 = vmatpush1.bf16.msra.mxu0 0
    %6708 = vmatprep.subr.bf16.mxu0 0
    %6709 = vmatpush1.bf16.msra.mxu0 0
    %6710 = vmatprep.subr.bf16.mxu0 0
    %6711 = vmatpush1.bf16.msra.mxu0 0
    %6712 = vmatprep.subr.bf16.mxu0 0
    %6713 = vmatpush1.bf16.msra.mxu0 0
    %6714 = vmatprep.subr.bf16.mxu0 0
    %6715 = vmatpush1.bf16.msra.mxu0 0
    %6716 = vmatprep.subr.bf16.mxu0 0
    %6717 = vmatpush1.bf16.msra.mxu0 0
    %6718 = vmatprep.subr.bf16.mxu0 0
    %6719 = vmatpush1.bf16.msra.mxu0 0
    %6720 = vmatprep.subr.bf16.mxu0 0
    %6721 = vmatpush1.bf16.msra.mxu0 0
    %6722 = vmatprep.mubr.bf16.mxu0 0
    %6723 = vmatmul.mubr.bf16.gmra.mrb[0].mxu0 %v6684
    %v6724 = vpop.f32.mrb[0].mxu0
    %v6725 = vadd.f32 %v6635, %v6724
    %v6726 = vpop.f32.mrb[0].mxu0
    %v6727 = vpop.f32.mrb[0].mxu0
    %v6728 = vpop.f32.mrb[0].mxu0
    %6729 = vdwg.mxu0
    %v6730 = vpack.c.bf16 %v6725, %v6725
    %v6731 = vld [vmem:[%s5] sm:$0xf]
    %v6732 = vld [vmem:[%s5 + $0x4] sm:$0xf]
    %v6733 = vld [vmem:[%s5 + $0x8] sm:$0xf]
    %v6734 = vld [vmem:[%s5 + $0xc] sm:$0xf]
    %v6735 = vld [vmem:[%s5 + $0x10] sm:$0xf]
    %v6736 = vld [vmem:[%s5 + $0x14] sm:$0xf]
    %v6737 = vld [vmem:[%s5 + $0x18] sm:$0xf]
    %v6738 = vld [vmem:[%s5 + $0x1c] sm:$0xf]
    %v6739 = vld [vmem:[%s5 + $0x20] sm:$0xf]
    %v6740 = vld [vmem:[%s5 + $0x24] sm:$0xf]
    %v6741 = vld [vmem:[%s5 + $0x28] sm:$0x3]
    %v6742 = vld [vmem:[%s6] sm:$0x1]
    %v6744 = vlaneseq
    %v6745 = vshrl.u32 %v6744, 7
    %v6746 = vsub.s32 0, %v6745
    %v6747 = vrot.slane %v6742, %v6746
    %v6760 = vunpack.c.l.b16 %v6731
    %v6761 = vunpack.c.l.b16 %v6732
    %v6762 = vunpack.c.l.b16 %v6733
    %v6763 = vunpack.c.l.b16 %v6734
    %v6764 = vunpack.c.l.b16 %v6735
    %v6765 = vunpack.c.l.b16 %v6736
    %v6766 = vunpack.c.l.b16 %v6737
    %v6767 = vunpack.c.l.b16 %v6738
    %v6768 = vunpack.c.l.b16 %v6739
    %v6769 = vunpack.c.l.b16 %v6740
    %v6770 = vunpack.c.l.b16 %v6741
    %v6771 = vpack.c.b16 %v6761, %v6760
    %v6772 = vpack.c.b16 %v6763, %v6762
    %v6773 = vpack.c.b16 %v6765, %v6764
    %v6774 = vpack.c.b16 %v6767, %v6766
    %v6775 = vpack.c.b16 %v6769, %v6768
    %v6776 = vpack.c.b16 %v6770, %v6770
    %vm6782 = vcmask 687104
    %v6784 = vsel %vm6782, %v6730, 0
    %vm6786 = vcmask 1041408
    %v6788 = vsel %vm6786, %v6776, 0
    %6790 = vmatprep.subr.bf16.mxu0 0
    %6791 = vmatpush1.bf16.msra.mxu0 %v6771
    %6792 = vmatprep.subr.bf16.mxu0 0
    %6793 = vmatpush1.bf16.msra.mxu0 %v6772
    %6794 = vmatprep.subr.bf16.mxu0 0
    %6795 = vmatpush1.bf16.msra.mxu0 %v6773
    %6796 = vmatprep.subr.bf16.mxu0 0
    %6797 = vmatpush1.bf16.msra.mxu0 %v6774
    %6798 = vmatprep.subr.bf16.mxu0 0
    %6799 = vmatpush1.bf16.msra.mxu0 %v6775
    %6800 = vmatprep.subr.bf16.mxu0 0
    %6801 = vmatpush1.bf16.msra.mxu0 %v6788
    %6802 = vmatprep.subr.bf16.mxu0 0
    %6803 = vmatpush1.bf16.msra.mxu0 0
    %6804 = vmatprep.subr.bf16.mxu0 0
    %6805 = vmatpush1.bf16.msra.mxu0 0
    %6806 = vmatprep.subr.bf16.mxu0 0
    %6807 = vmatpush1.bf16.msra.mxu0 0
    %6808 = vmatprep.subr.bf16.mxu0 0
    %6809 = vmatpush1.bf16.msra.mxu0 0
    %6810 = vmatprep.subr.bf16.mxu0 0
    %6811 = vmatpush1.bf16.msra.mxu0 0
    %6812 = vmatprep.subr.bf16.mxu0 0
    %6813 = vmatpush1.bf16.msra.mxu0 0
    %6814 = vmatprep.subr.bf16.mxu0 0
    %6815 = vmatpush1.bf16.msra.mxu0 0
    %6816 = vmatprep.subr.bf16.mxu0 0
    %6817 = vmatpush1.bf16.msra.mxu0 0
    %6818 = vmatprep.subr.bf16.mxu0 0
    %6819 = vmatpush1.bf16.msra.mxu0 0
    %6820 = vmatprep.subr.bf16.mxu0 0
    %6821 = vmatpush1.bf16.msra.mxu0 0
    %6822 = vmatprep.mubr.bf16.mxu0 0
    %6823 = vmatmul.mubr.bf16.gmra.mrb[0].mxu0 %v6784
    %v6824 = vpop.f32.mrb[0].mxu0
    %v6825 = vadd.f32 %v6747, %v6824
    %v6826 = vpop.f32.mrb[0].mxu0
    %v6827 = vpop.f32.mrb[0].mxu0
    %v6828 = vpop.f32.mrb[0].mxu0
    %6829 = vdwg.mxu0
    %vm6830 = vcmask 812032
    %6831 = vst.msk [vmem:[#allocation2] sm:$0x3] %vm6830, %v6825
    // Predicated region
    $region30: #{forward.7} parent=1 // pred_check
      _
    $region31: #{forward.7} parent=1 // pred_check_branch
      %6833 = sbr.rel (0) target = $region33
    $region32: #{forward.7} parent=1 // pred_region
      %s6835 = ssub.s32 32, 32
      %6836 = vsyncadd [#allocation3], %s6835
      %s6838 = sshll.u32 [#allocation2], 4
      %s6839 = int_to_ptr.vmem [resolvable:$true] %s6838
      %6841 = dma.vmem_to_hbm [thread:$0]  %s6839, 32, %s7, [#allocation3]
    $region33: #{forward.7} parent=1 // pred_fallthru
      _
    // Predicated region
    $region34: #{forward.7} parent=1 // pred_check
      _
    $region35: #{forward.7} parent=1 // pred_check_branch
      %6843 = sbr.rel (0) target = $region37
    $region36: #{forward.7} parent=1 // pred_region
      %6844 = dma.done [#allocation3], 32
    $region37: #{forward.7} parent=1 // pred_fallthru
      _
    %6845 = vsyncpa [#allocation3], 1

// kernel: forward.8
$region0: #{forward.8}
  #allocation0 [shape = 'u32[]', space=smem, size = 0x4, offset = 0x4, fixed_abs, tag = 'smem constant byte address 0x4 - core index']
  #allocation1 [shape = 'u32[144,128]{1,0:T(1,128)}', space=vmem, size = 0x12000, scoped, tag = 'internal scratch']
  %s0 = inlined_call_operand.vmem [shape: bf16[6,400], index: 0, kind: input, shape index: {}]
  %s1 = inlined_call_operand.vmem [shape: bf16[400,1568], index: 1, kind: input, shape index: {}]
  %s2 = inlined_call_operand.vmem [shape: f32[6,1], index: 2, kind: input, shape index: {}]
  %s3 = inlined_call_operand.vmem [shape: f32[6,1568], index: 3, kind: output, shape index: {}]
  %s4 = sld [smem:[#allocation0]]
  $region22: #{forward.8} parent=0
    _
  %s6 = ssub.s32 1, %s4
  %s7 = scalar_select 0, %s6, %s4
  // Predicated region
  $region2: #{forward.8} parent=0 // pred_check
    _
  $region3: #{forward.8} parent=0 // pred_check_branch
    %9 = sbr.rel (0) target = $region5
  $region4: #{forward.8} parent=0 // pred_region
    _
  $region5: #{forward.8} parent=0 // pred_fallthru
    _
  // Predicated region
  $region6: #{forward.8} parent=0 // pred_check
    _
  $region7: #{forward.8} parent=0 // pred_check_branch
    %11 = sbr.rel (0) target = $region9
  $region8: #{forward.8} parent=0 // pred_region
    _
  $region9: #{forward.8} parent=0 // pred_fallthru
    _
  // Predicated region
  $region10: #{forward.8} parent=0 // pred_check
    _
  $region11: #{forward.8} parent=0 // pred_check_branch
    %13 = sbr.rel (0) target = $region13
  $region12: #{forward.8} parent=0 // pred_region
    _
  $region13: #{forward.8} parent=0 // pred_fallthru
    _
  %v15 = vld [vmem:[%s0] sm:$0x77]
  %v16 = vld [vmem:[%s0 + $0x8] sm:$0x77]
  %v17 = vld [vmem:[%s1] sm:$0xff]
  %v18 = vld [vmem:[%s1 + $0x8] sm:$0xff]
  %v19 = vld [vmem:[%s1 + $0x10] sm:$0xff]
  %v20 = vld [vmem:[%s1 + $0x18] sm:$0xff]
  %v21 = vld [vmem:[%s1 + $0x20] sm:$0xff]
  %v22 = vld [vmem:[%s1 + $0x28] sm:$0xff]
  %v23 = vld [vmem:[%s1 + $0x30] sm:$0xf]
  %v24 = vld [vmem:[%s1 + $0x34] sm:$0xff]
  %v25 = vld [vmem:[%s1 + $0x3c] sm:$0xff]
  %v26 = vld [vmem:[%s1 + $0x44] sm:$0xff]
  %v27 = vld [vmem:[%s1 + $0x4c] sm:$0xff]
  %v28 = vld [vmem:[%s1 + $0x54] sm:$0xff]
  %v29 = vld [vmem:[%s1 + $0x5c] sm:$0xff]
  %v30 = vld [vmem:[%s1 + $0x64] sm:$0xf]
  %v31 = vld [vmem:[%s1 + $0x68] sm:$0xff]
  %v32 = vld [vmem:[%s1 + $0x70] sm:$0xff]
  %v33 = vld [vmem:[%s1 + $0x78] sm:$0xff]
  %v34 = vld [vmem:[%s1 + $0x80] sm:$0xff]
  %v35 = vld [vmem:[%s1 + $0x88] sm:$0xff]
  %v36 = vld [vmem:[%s1 + $0x90] sm:$0xff]
  %v37 = vld [vmem:[%s1 + $0x98] sm:$0xf]
  %v38 = vld [vmem:[%s1 + $0x9c] sm:$0xff]
  %v39 = vld [vmem:[%s1 + $0xa4] sm:$0xff]
  %v40 = vld [vmem:[%s1 + $0xac] sm:$0xff]
  %v41 = vld [vmem:[%s1 + $0xb4] sm:$0xff]
  %v42 = vld [vmem:[%s1 + $0xbc] sm:$0xff]
  %v43 = vld [vmem:[%s1 + $0xc4] sm:$0xff]
  %v44 = vld [vmem:[%s1 + $0xcc] sm:$0xf]
  %v45 = vld [vmem:[%s1 + $0xd0] sm:$0xff]
  %v46 = vld [vmem:[%s1 + $0xd8] sm:$0xff]
  %v47 = vld [vmem:[%s1 + $0xe0] sm:$0xff]
  %v48 = vld [vmem:[%s1 + $0xe8] sm:$0xff]
  %v49 = vld [vmem:[%s1 + $0xf0] sm:$0xff]
  %v50 = vld [vmem:[%s1 + $0xf8] sm:$0xff]
  %v51 = vld [vmem:[%s1 + $0x100] sm:$0xf]
  %v52 = vld [vmem:[%s1 + $0x104] sm:$0xff]
  %v53 = vld [vmem:[%s1 + $0x10c] sm:$0xff]
  %v54 = vld [vmem:[%s1 + $0x114] sm:$0xff]
  %v55 = vld [vmem:[%s1 + $0x11c] sm:$0xff]
  %v56 = vld [vmem:[%s1 + $0x124] sm:$0xff]
  %v57 = vld [vmem:[%s1 + $0x12c] sm:$0xff]
  %v58 = vld [vmem:[%s1 + $0x134] sm:$0xf]
  %v59 = vld [vmem:[%s1 + $0x138] sm:$0xff]
  %v60 = vld [vmem:[%s1 + $0x140] sm:$0xff]
  %v61 = vld [vmem:[%s1 + $0x148] sm:$0xff]
  %v62 = vld [vmem:[%s1 + $0x150] sm:$0xff]
  %v63 = vld [vmem:[%s1 + $0x158] sm:$0xff]
  %v64 = vld [vmem:[%s1 + $0x160] sm:$0xff]
  %v65 = vld [vmem:[%s1 + $0x168] sm:$0xf]
  %v66 = vld [vmem:[%s1 + $0x16c] sm:$0xff]
  %v67 = vld [vmem:[%s1 + $0x174] sm:$0xff]
  %v68 = vld [vmem:[%s1 + $0x17c] sm:$0xff]
  %v69 = vld [vmem:[%s1 + $0x184] sm:$0xff]
  %v70 = vld [vmem:[%s1 + $0x18c] sm:$0xff]
  %v71 = vld [vmem:[%s1 + $0x194] sm:$0xff]
  %v72 = vld [vmem:[%s1 + $0x19c] sm:$0xf]
  %v73 = vld [vmem:[%s1 + $0x1a0] sm:$0xff]
  %v74 = vld [vmem:[%s1 + $0x1a8] sm:$0xff]
  %v75 = vld [vmem:[%s1 + $0x1b0] sm:$0xff]
  %v76 = vld [vmem:[%s1 + $0x1b8] sm:$0xff]
  %v77 = vld [vmem:[%s1 + $0x1c0] sm:$0xff]
  %v78 = vld [vmem:[%s1 + $0x1c8] sm:$0xff]
  %v79 = vld [vmem:[%s1 + $0x1d0] sm:$0xf]
  %v80 = vld [vmem:[%s1 + $0x1d4] sm:$0xff]
  %v81 = vld [vmem:[%s1 + $0x1dc] sm:$0xff]
  %v82 = vld [vmem:[%s1 + $0x1e4] sm:$0xff]
  %v83 = vld [vmem:[%s1 + $0x1ec] sm:$0xff]
  %v84 = vld [vmem:[%s1 + $0x1f4] sm:$0xff]
  %v85 = vld [vmem:[%s1 + $0x1fc] sm:$0xff]
  %v86 = vld [vmem:[%s1 + $0x204] sm:$0xf]
  %v87 = vld [vmem:[%s1 + $0x208] sm:$0xff]
  %v88 = vld [vmem:[%s1 + $0x210] sm:$0xff]
  %v89 = vld [vmem:[%s1 + $0x218] sm:$0xff]
  %v90 = vld [vmem:[%s1 + $0x220] sm:$0xff]
  %v91 = vld [vmem:[%s1 + $0x228] sm:$0xff]
  %v92 = vld [vmem:[%s1 + $0x230] sm:$0xff]
  %v93 = vld [vmem:[%s1 + $0x238] sm:$0xf]
  %v94 = vld [vmem:[%s1 + $0x23c] sm:$0xff]
  %v95 = vld [vmem:[%s1 + $0x244] sm:$0xff]
  %v96 = vld [vmem:[%s1 + $0x24c] sm:$0xff]
  %v97 = vld [vmem:[%s1 + $0x254] sm:$0xff]
  %v98 = vld [vmem:[%s1 + $0x25c] sm:$0xff]
  %v99 = vld [vmem:[%s1 + $0x264] sm:$0xff]
  %v100 = vld [vmem:[%s1 + $0x26c] sm:$0xf]
  %v101 = vld [vmem:[%s1 + $0x270] sm:$0xff]
  %v102 = vld [vmem:[%s1 + $0x278] sm:$0xff]
  %v103 = vld [vmem:[%s1 + $0x280] sm:$0xff]
  %v104 = vld [vmem:[%s1 + $0x288] sm:$0xff]
  %v105 = vld [vmem:[%s1 + $0x290] sm:$0xff]
  %v106 = vld [vmem:[%s1 + $0x298] sm:$0xff]
  %v107 = vld [vmem:[%s1 + $0x2a0] sm:$0xf]
  %v108 = vld [vmem:[%s1 + $0x2a4] sm:$0xff]
  %v109 = vld [vmem:[%s1 + $0x2ac] sm:$0xff]
  %v110 = vld [vmem:[%s1 + $0x2b4] sm:$0xff]
  %v111 = vld [vmem:[%s1 + $0x2bc] sm:$0xff]
  %v112 = vld [vmem:[%s1 + $0x2c4] sm:$0xff]
  %v113 = vld [vmem:[%s1 + $0x2cc] sm:$0xff]
  %v114 = vld [vmem:[%s1 + $0x2d4] sm:$0xf]
  %v115 = vld [vmem:[%s1 + $0x2d8] sm:$0xff]
  %v116 = vld [vmem:[%s1 + $0x2e0] sm:$0xff]
  %v117 = vld [vmem:[%s1 + $0x2e8] sm:$0xff]
  %v118 = vld [vmem:[%s1 + $0x2f0] sm:$0xff]
  %v119 = vld [vmem:[%s1 + $0x2f8] sm:$0xff]
  %v120 = vld [vmem:[%s1 + $0x300] sm:$0xff]
  %v121 = vld [vmem:[%s1 + $0x308] sm:$0xf]
  %v122 = vld [vmem:[%s1 + $0x30c] sm:$0xff]
  %v123 = vld [vmem:[%s1 + $0x314] sm:$0xff]
  %v124 = vld [vmem:[%s1 + $0x31c] sm:$0xff]
  %v125 = vld [vmem:[%s1 + $0x324] sm:$0xff]
  %v126 = vld [vmem:[%s1 + $0x32c] sm:$0xff]
  %v127 = vld [vmem:[%s1 + $0x334] sm:$0xff]
  %v128 = vld [vmem:[%s1 + $0x33c] sm:$0xf]
  %v129 = vld [vmem:[%s1 + $0x340] sm:$0xff]
  %v130 = vld [vmem:[%s1 + $0x348] sm:$0xff]
  %v131 = vld [vmem:[%s1 + $0x350] sm:$0xff]
  %v132 = vld [vmem:[%s1 + $0x358] sm:$0xff]
  %v133 = vld [vmem:[%s1 + $0x360] sm:$0xff]
  %v134 = vld [vmem:[%s1 + $0x368] sm:$0xff]
  %v135 = vld [vmem:[%s1 + $0x370] sm:$0xf]
  %v136 = vld [vmem:[%s1 + $0x374] sm:$0xff]
  %v137 = vld [vmem:[%s1 + $0x37c] sm:$0xff]
  %v138 = vld [vmem:[%s1 + $0x384] sm:$0xff]
  %v139 = vld [vmem:[%s1 + $0x38c] sm:$0xff]
  %v140 = vld [vmem:[%s1 + $0x394] sm:$0xff]
  %v141 = vld [vmem:[%s1 + $0x39c] sm:$0xff]
  %v142 = vld [vmem:[%s1 + $0x3a4] sm:$0xf]
  %v143 = vld [vmem:[%s1 + $0x3a8] sm:$0xff]
  %v144 = vld [vmem:[%s1 + $0x3b0] sm:$0xff]
  %v145 = vld [vmem:[%s1 + $0x3b8] sm:$0xff]
  %v146 = vld [vmem:[%s1 + $0x3c0] sm:$0xff]
  %v147 = vld [vmem:[%s1 + $0x3c8] sm:$0xff]
  %v148 = vld [vmem:[%s1 + $0x3d0] sm:$0xff]
  %v149 = vld [vmem:[%s1 + $0x3d8] sm:$0xf]
  %v150 = vld [vmem:[%s1 + $0x3dc] sm:$0xff]
  %v151 = vld [vmem:[%s1 + $0x3e4] sm:$0xff]
  %v152 = vld [vmem:[%s1 + $0x3ec] sm:$0xff]
  %v153 = vld [vmem:[%s1 + $0x3f4] sm:$0xff]
  %v154 = vld [vmem:[%s1 + $0x3fc] sm:$0xff]
  %v155 = vld [vmem:[%s1 + $0x404] sm:$0xff]
  %v156 = vld [vmem:[%s1 + $0x40c] sm:$0xf]
  %v157 = vld [vmem:[%s1 + $0x410] sm:$0xff]
  %v158 = vld [vmem:[%s1 + $0x418] sm:$0xff]
  %v159 = vld [vmem:[%s1 + $0x420] sm:$0xff]
  %v160 = vld [vmem:[%s1 + $0x428] sm:$0xff]
  %v161 = vld [vmem:[%s1 + $0x430] sm:$0xff]
  %v162 = vld [vmem:[%s1 + $0x438] sm:$0xff]
  %v163 = vld [vmem:[%s1 + $0x440] sm:$0xf]
  %v164 = vld [vmem:[%s1 + $0x444] sm:$0xff]
  %v165 = vld [vmem:[%s1 + $0x44c] sm:$0xff]
  %v166 = vld [vmem:[%s1 + $0x454] sm:$0xff]
  %v167 = vld [vmem:[%s1 + $0x45c] sm:$0xff]
  %v168 = vld [vmem:[%s1 + $0x464] sm:$0xff]
  %v169 = vld [vmem:[%s1 + $0x46c] sm:$0xff]
  %v170 = vld [vmem:[%s1 + $0x474] sm:$0xf]
  %v171 = vld [vmem:[%s1 + $0x478] sm:$0xff]
  %v172 = vld [vmem:[%s1 + $0x480] sm:$0xff]
  %v173 = vld [vmem:[%s1 + $0x488] sm:$0xff]
  %v174 = vld [vmem:[%s1 + $0x490] sm:$0xff]
  %v175 = vld [vmem:[%s1 + $0x498] sm:$0xff]
  %v176 = vld [vmem:[%s1 + $0x4a0] sm:$0xff]
  %v177 = vld [vmem:[%s1 + $0x4a8] sm:$0xf]
  %v178 = vld [vmem:[%s1 + $0x4ac] sm:$0xff]
  %v179 = vld [vmem:[%s1 + $0x4b4] sm:$0xff]
  %v180 = vld [vmem:[%s1 + $0x4bc] sm:$0xff]
  %v181 = vld [vmem:[%s1 + $0x4c4] sm:$0xff]
  %v182 = vld [vmem:[%s1 + $0x4cc] sm:$0xff]
  %v183 = vld [vmem:[%s1 + $0x4d4] sm:$0xff]
  %v184 = vld [vmem:[%s1 + $0x4dc] sm:$0xf]
  %v185 = vld [vmem:[%s1 + $0x4e0] sm:$0xff]
  %v186 = vld [vmem:[%s1 + $0x4e8] sm:$0xff]
  %v187 = vld [vmem:[%s1 + $0x4f0] sm:$0xff]
  %v188 = vld [vmem:[%s1 + $0x4f8] sm:$0xff]
  %v189 = vld [vmem:[%s1 + $0x500] sm:$0xff]
  %v190 = vld [vmem:[%s1 + $0x508] sm:$0xff]
  %v191 = vld [vmem:[%s1 + $0x510] sm:$0xf]
  %v192 = vld [vmem:[%s1 + $0x514] sm:$0xff]
  %v193 = vld [vmem:[%s1 + $0x51c] sm:$0xff]
  %v194 = vld [vmem:[%s1 + $0x524] sm:$0xff]
  %v195 = vld [vmem:[%s1 + $0x52c] sm:$0xff]
  %v196 = vld [vmem:[%s1 + $0x534] sm:$0xff]
  %v197 = vld [vmem:[%s1 + $0x53c] sm:$0xff]
  %v198 = vld [vmem:[%s1 + $0x544] sm:$0xf]
  %v199 = vld [vmem:[%s1 + $0x548] sm:$0xff]
  %v200 = vld [vmem:[%s1 + $0x550] sm:$0xff]
  %v201 = vld [vmem:[%s1 + $0x558] sm:$0xff]
  %v202 = vld [vmem:[%s1 + $0x560] sm:$0xff]
  %v203 = vld [vmem:[%s1 + $0x568] sm:$0xff]
  %v204 = vld [vmem:[%s1 + $0x570] sm:$0xff]
  %v205 = vld [vmem:[%s1 + $0x578] sm:$0xf]
  %v206 = vld [vmem:[%s1 + $0x57c] sm:$0xff]
  %v207 = vld [vmem:[%s1 + $0x584] sm:$0xff]
  %v208 = vld [vmem:[%s1 + $0x58c] sm:$0xff]
  %v209 = vld [vmem:[%s1 + $0x594] sm:$0xff]
  %v210 = vld [vmem:[%s1 + $0x59c] sm:$0xff]
  %v211 = vld [vmem:[%s1 + $0x5a4] sm:$0xff]
  %v212 = vld [vmem:[%s1 + $0x5ac] sm:$0xf]
  %v213 = vld [vmem:[%s1 + $0x5b0] sm:$0xff]
  %v214 = vld [vmem:[%s1 + $0x5b8] sm:$0xff]
  %v215 = vld [vmem:[%s1 + $0x5c0] sm:$0xff]
  %v216 = vld [vmem:[%s1 + $0x5c8] sm:$0xff]
  %v217 = vld [vmem:[%s1 + $0x5d0] sm:$0xff]
  %v218 = vld [vmem:[%s1 + $0x5d8] sm:$0xff]
  %v219 = vld [vmem:[%s1 + $0x5e0] sm:$0xf]
  %v220 = vld [vmem:[%s1 + $0x5e4] sm:$0xff]
  %v221 = vld [vmem:[%s1 + $0x5ec] sm:$0xff]
  %v222 = vld [vmem:[%s1 + $0x5f4] sm:$0xff]
  %v223 = vld [vmem:[%s1 + $0x5fc] sm:$0xff]
  %v224 = vld [vmem:[%s1 + $0x604] sm:$0xff]
  %v225 = vld [vmem:[%s1 + $0x60c] sm:$0xff]
  %v226 = vld [vmem:[%s1 + $0x614] sm:$0xf]
  %v227 = vld [vmem:[%s1 + $0x618] sm:$0xff]
  %v228 = vld [vmem:[%s1 + $0x620] sm:$0xff]
  %v229 = vld [vmem:[%s1 + $0x628] sm:$0xff]
  %v230 = vld [vmem:[%s1 + $0x630] sm:$0xff]
  %v231 = vld [vmem:[%s1 + $0x638] sm:$0xff]
  %v232 = vld [vmem:[%s1 + $0x640] sm:$0xff]
  %v233 = vld [vmem:[%s1 + $0x648] sm:$0xf]
  %v234 = vld [vmem:[%s1 + $0x64c] sm:$0xff]
  %v235 = vld [vmem:[%s1 + $0x654] sm:$0xff]
  %v236 = vld [vmem:[%s1 + $0x65c] sm:$0xff]
  %v237 = vld [vmem:[%s1 + $0x664] sm:$0xff]
  %v238 = vld [vmem:[%s1 + $0x66c] sm:$0xff]
  %v239 = vld [vmem:[%s1 + $0x674] sm:$0xff]
  %v240 = vld [vmem:[%s1 + $0x67c] sm:$0xf]
  %v241 = vld [vmem:[%s1 + $0x680] sm:$0xff]
  %v242 = vld [vmem:[%s1 + $0x688] sm:$0xff]
  %v243 = vld [vmem:[%s1 + $0x690] sm:$0xff]
  %v244 = vld [vmem:[%s1 + $0x698] sm:$0xff]
  %v245 = vld [vmem:[%s1 + $0x6a0] sm:$0xff]
  %v246 = vld [vmem:[%s1 + $0x6a8] sm:$0xff]
  %v247 = vld [vmem:[%s1 + $0x6b0] sm:$0xf]
  %v248 = vld [vmem:[%s1 + $0x6b4] sm:$0xff]
  %v249 = vld [vmem:[%s1 + $0x6bc] sm:$0xff]
  %v250 = vld [vmem:[%s1 + $0x6c4] sm:$0xff]
  %v251 = vld [vmem:[%s1 + $0x6cc] sm:$0xff]
  %v252 = vld [vmem:[%s1 + $0x6d4] sm:$0xff]
  %v253 = vld [vmem:[%s1 + $0x6dc] sm:$0xff]
  %v254 = vld [vmem:[%s1 + $0x6e4] sm:$0xf]
  %v255 = vld [vmem:[%s1 + $0x6e8] sm:$0xff]
  %v256 = vld [vmem:[%s1 + $0x6f0] sm:$0xff]
  %v257 = vld [vmem:[%s1 + $0x6f8] sm:$0xff]
  %v258 = vld [vmem:[%s1 + $0x700] sm:$0xff]
  %v259 = vld [vmem:[%s1 + $0x708] sm:$0xff]
  %v260 = vld [vmem:[%s1 + $0x710] sm:$0xff]
  %v261 = vld [vmem:[%s1 + $0x718] sm:$0xf]
  %v262 = vld [vmem:[%s1 + $0x71c] sm:$0xff]
  %v263 = vld [vmem:[%s1 + $0x724] sm:$0xff]
  %v264 = vld [vmem:[%s1 + $0x72c] sm:$0xff]
  %v265 = vld [vmem:[%s1 + $0x734] sm:$0xff]
  %v266 = vld [vmem:[%s1 + $0x73c] sm:$0xff]
  %v267 = vld [vmem:[%s1 + $0x744] sm:$0xff]
  %v268 = vld [vmem:[%s1 + $0x74c] sm:$0xf]
  %v269 = vld [vmem:[%s1 + $0x750] sm:$0xff]
  %v270 = vld [vmem:[%s1 + $0x758] sm:$0xff]
  %v271 = vld [vmem:[%s1 + $0x760] sm:$0xff]
  %v272 = vld [vmem:[%s1 + $0x768] sm:$0xff]
  %v273 = vld [vmem:[%s1 + $0x770] sm:$0xff]
  %v274 = vld [vmem:[%s1 + $0x778] sm:$0xff]
  %v275 = vld [vmem:[%s1 + $0x780] sm:$0xf]
  %v276 = vld [vmem:[%s1 + $0x784] sm:$0xff]
  %v277 = vld [vmem:[%s1 + $0x78c] sm:$0xff]
  %v278 = vld [vmem:[%s1 + $0x794] sm:$0xff]
  %v279 = vld [vmem:[%s1 + $0x79c] sm:$0xff]
  %v280 = vld [vmem:[%s1 + $0x7a4] sm:$0xff]
  %v281 = vld [vmem:[%s1 + $0x7ac] sm:$0xff]
  %v282 = vld [vmem:[%s1 + $0x7b4] sm:$0xf]
  %v283 = vld [vmem:[%s1 + $0x7b8] sm:$0xff]
  %v284 = vld [vmem:[%s1 + $0x7c0] sm:$0xff]
  %v285 = vld [vmem:[%s1 + $0x7c8] sm:$0xff]
  %v286 = vld [vmem:[%s1 + $0x7d0] sm:$0xff]
  %v287 = vld [vmem:[%s1 + $0x7d8] sm:$0xff]
  %v288 = vld [vmem:[%s1 + $0x7e0] sm:$0xff]
  %v289 = vld [vmem:[%s1 + $0x7e8] sm:$0xf]
  %v290 = vld [vmem:[%s1 + $0x7ec] sm:$0xff]
  %v291 = vld [vmem:[%s1 + $0x7f4] sm:$0xff]
  %v292 = vld [vmem:[%s1 + $0x7fc] sm:$0xff]
  %v293 = vld [vmem:[%s1 + $0x804] sm:$0xff]
  %v294 = vld [vmem:[%s1 + $0x80c] sm:$0xff]
  %v295 = vld [vmem:[%s1 + $0x814] sm:$0xff]
  %v296 = vld [vmem:[%s1 + $0x81c] sm:$0xf]
  %v297 = vld [vmem:[%s1 + $0x820] sm:$0xff]
  %v298 = vld [vmem:[%s1 + $0x828] sm:$0xff]
  %v299 = vld [vmem:[%s1 + $0x830] sm:$0xff]
  %v300 = vld [vmem:[%s1 + $0x838] sm:$0xff]
  %v301 = vld [vmem:[%s1 + $0x840] sm:$0xff]
  %v302 = vld [vmem:[%s1 + $0x848] sm:$0xff]
  %v303 = vld [vmem:[%s1 + $0x850] sm:$0xf]
  %v304 = vld [vmem:[%s1 + $0x854] sm:$0xff]
  %v305 = vld [vmem:[%s1 + $0x85c] sm:$0xff]
  %v306 = vld [vmem:[%s1 + $0x864] sm:$0xff]
  %v307 = vld [vmem:[%s1 + $0x86c] sm:$0xff]
  %v308 = vld [vmem:[%s1 + $0x874] sm:$0xff]
  %v309 = vld [vmem:[%s1 + $0x87c] sm:$0xff]
  %v310 = vld [vmem:[%s1 + $0x884] sm:$0xf]
  %v311 = vld [vmem:[%s1 + $0x888] sm:$0xff]
  %v312 = vld [vmem:[%s1 + $0x890] sm:$0xff]
  %v313 = vld [vmem:[%s1 + $0x898] sm:$0xff]
  %v314 = vld [vmem:[%s1 + $0x8a0] sm:$0xff]
  %v315 = vld [vmem:[%s1 + $0x8a8] sm:$0xff]
  %v316 = vld [vmem:[%s1 + $0x8b0] sm:$0xff]
  %v317 = vld [vmem:[%s1 + $0x8b8] sm:$0xf]
  %v318 = vld [vmem:[%s1 + $0x8bc] sm:$0xff]
  %v319 = vld [vmem:[%s1 + $0x8c4] sm:$0xff]
  %v320 = vld [vmem:[%s1 + $0x8cc] sm:$0xff]
  %v321 = vld [vmem:[%s1 + $0x8d4] sm:$0xff]
  %v322 = vld [vmem:[%s1 + $0x8dc] sm:$0xff]
  %v323 = vld [vmem:[%s1 + $0x8e4] sm:$0xff]
  %v324 = vld [vmem:[%s1 + $0x8ec] sm:$0xf]
  %v325 = vld [vmem:[%s1 + $0x8f0] sm:$0xff]
  %v326 = vld [vmem:[%s1 + $0x8f8] sm:$0xff]
  %v327 = vld [vmem:[%s1 + $0x900] sm:$0xff]
  %v328 = vld [vmem:[%s1 + $0x908] sm:$0xff]
  %v329 = vld [vmem:[%s1 + $0x910] sm:$0xff]
  %v330 = vld [vmem:[%s1 + $0x918] sm:$0xff]
  %v331 = vld [vmem:[%s1 + $0x920] sm:$0xf]
  %v332 = vld [vmem:[%s1 + $0x924] sm:$0xff]
  %v333 = vld [vmem:[%s1 + $0x92c] sm:$0xff]
  %v334 = vld [vmem:[%s1 + $0x934] sm:$0xff]
  %v335 = vld [vmem:[%s1 + $0x93c] sm:$0xff]
  %v336 = vld [vmem:[%s1 + $0x944] sm:$0xff]
  %v337 = vld [vmem:[%s1 + $0x94c] sm:$0xff]
  %v338 = vld [vmem:[%s1 + $0x954] sm:$0xf]
  %v339 = vld [vmem:[%s1 + $0x958] sm:$0xff]
  %v340 = vld [vmem:[%s1 + $0x960] sm:$0xff]
  %v341 = vld [vmem:[%s1 + $0x968] sm:$0xff]
  %v342 = vld [vmem:[%s1 + $0x970] sm:$0xff]
  %v343 = vld [vmem:[%s1 + $0x978] sm:$0xff]
  %v344 = vld [vmem:[%s1 + $0x980] sm:$0xff]
  %v345 = vld [vmem:[%s1 + $0x988] sm:$0xf]
  %v346 = vld [vmem:[%s1 + $0x98c] sm:$0xff]
  %v347 = vld [vmem:[%s1 + $0x994] sm:$0xff]
  %v348 = vld [vmem:[%s1 + $0x99c] sm:$0xff]
  %v349 = vld [vmem:[%s1 + $0x9a4] sm:$0xff]
  %v350 = vld [vmem:[%s1 + $0x9ac] sm:$0xff]
  %v351 = vld [vmem:[%s1 + $0x9b4] sm:$0xff]
  %v352 = vld [vmem:[%s1 + $0x9bc] sm:$0xf]
  %v353 = vld [vmem:[%s1 + $0x9c0] sm:$0xff]
  %v354 = vld [vmem:[%s1 + $0x9c8] sm:$0xff]
  %v355 = vld [vmem:[%s1 + $0x9d0] sm:$0xff]
  %v356 = vld [vmem:[%s1 + $0x9d8] sm:$0xff]
  %v357 = vld [vmem:[%s1 + $0x9e0] sm:$0xff]
  %v358 = vld [vmem:[%s1 + $0x9e8] sm:$0xff]
  %v359 = vld [vmem:[%s1 + $0x9f0] sm:$0xf]
  %v360 = vld [vmem:[%s1 + $0x9f4] sm:$0xff]
  %v361 = vld [vmem:[%s1 + $0x9fc] sm:$0xff]
  %v362 = vld [vmem:[%s1 + $0xa04] sm:$0xff]
  %v363 = vld [vmem:[%s1 + $0xa0c] sm:$0xff]
  %v364 = vld [vmem:[%s1 + $0xa14] sm:$0xff]
  %v365 = vld [vmem:[%s1 + $0xa1c] sm:$0xff]
  %v366 = vld [vmem:[%s1 + $0xa24] sm:$0xf]
  %v367 = vld [vmem:[%s2] sm:$0x3f]
  %369 = vset.pattern.permute.xlu0 0
  %370 = vperm.xlu0 %369, %v367
  %v371 = vpop.permute.xlu0 %370
  %v375 = vunpack.c.l.b16 %v15
  %v376 = vunpack.c.h.b16 %v15
  %v377 = vunpack.c.l.b16 %v16
  %v378 = vunpack.c.h.b16 %v16
  %v379 = vpack.c.b16 %v375, %v375
  %v380 = vpack.c.b16 %v376, %v376
  %v381 = vpack.c.b16 %v377, %v377
  %v382 = vpack.c.b16 %v378, %v378
  %v736 = vunpack.c.l.b16 %v17
  %v737 = vunpack.c.h.b16 %v17
  %v738 = vunpack.c.l.b16 %v18
  %v739 = vunpack.c.h.b16 %v18
  %v740 = vunpack.c.l.b16 %v19
  %v741 = vunpack.c.h.b16 %v19
  %v742 = vunpack.c.l.b16 %v20
  %v743 = vunpack.c.h.b16 %v20
  %v744 = vunpack.c.l.b16 %v21
  %v745 = vunpack.c.h.b16 %v21
  %v746 = vunpack.c.l.b16 %v22
  %v747 = vunpack.c.h.b16 %v22
  %v748 = vunpack.c.l.b16 %v23
  %v749 = vunpack.c.l.b16 %v24
  %v750 = vunpack.c.h.b16 %v24
  %v751 = vunpack.c.l.b16 %v25
  %v752 = vunpack.c.h.b16 %v25
  %v753 = vunpack.c.l.b16 %v26
  %v754 = vunpack.c.h.b16 %v26
  %v755 = vunpack.c.l.b16 %v27
  %v756 = vunpack.c.h.b16 %v27
  %v757 = vunpack.c.l.b16 %v28
  %v758 = vunpack.c.h.b16 %v28
  %v759 = vunpack.c.l.b16 %v29
  %v760 = vunpack.c.h.b16 %v29
  %v761 = vunpack.c.l.b16 %v30
  %v762 = vunpack.c.l.b16 %v31
  %v763 = vunpack.c.h.b16 %v31
  %v764 = vunpack.c.l.b16 %v32
  %v765 = vunpack.c.h.b16 %v32
  %v766 = vunpack.c.l.b16 %v33
  %v767 = vunpack.c.h.b16 %v33
  %v768 = vunpack.c.l.b16 %v34
  %v769 = vunpack.c.h.b16 %v34
  %v770 = vunpack.c.l.b16 %v35
  %v771 = vunpack.c.h.b16 %v35
  %v772 = vunpack.c.l.b16 %v36
  %v773 = vunpack.c.h.b16 %v36
  %v774 = vunpack.c.l.b16 %v37
  %v775 = vunpack.c.l.b16 %v38
  %v776 = vunpack.c.h.b16 %v38
  %v777 = vunpack.c.l.b16 %v39
  %v778 = vunpack.c.h.b16 %v39
  %v779 = vunpack.c.l.b16 %v40
  %v780 = vunpack.c.h.b16 %v40
  %v781 = vunpack.c.l.b16 %v41
  %v782 = vunpack.c.h.b16 %v41
  %v783 = vunpack.c.l.b16 %v42
  %v784 = vunpack.c.h.b16 %v42
  %v785 = vunpack.c.l.b16 %v43
  %v786 = vunpack.c.h.b16 %v43
  %v787 = vunpack.c.l.b16 %v44
  %v788 = vunpack.c.l.b16 %v45
  %v789 = vunpack.c.h.b16 %v45
  %v790 = vunpack.c.l.b16 %v46
  %v791 = vunpack.c.h.b16 %v46
  %v792 = vunpack.c.l.b16 %v47
  %v793 = vunpack.c.h.b16 %v47
  %v794 = vunpack.c.l.b16 %v48
  %v795 = vunpack.c.h.b16 %v48
  %v796 = vunpack.c.l.b16 %v49
  %v797 = vunpack.c.h.b16 %v49
  %v798 = vunpack.c.l.b16 %v50
  %v799 = vunpack.c.h.b16 %v50
  %v800 = vunpack.c.l.b16 %v51
  %v801 = vunpack.c.l.b16 %v52
  %v802 = vunpack.c.h.b16 %v52
  %v803 = vunpack.c.l.b16 %v53
  %v804 = vunpack.c.h.b16 %v53
  %v805 = vunpack.c.l.b16 %v54
  %v806 = vunpack.c.h.b16 %v54
  %v807 = vunpack.c.l.b16 %v55
  %v808 = vunpack.c.h.b16 %v55
  %v809 = vunpack.c.l.b16 %v56
  %v810 = vunpack.c.h.b16 %v56
  %v811 = vunpack.c.l.b16 %v57
  %v812 = vunpack.c.h.b16 %v57
  %v813 = vunpack.c.l.b16 %v58
  %v814 = vunpack.c.l.b16 %v59
  %v815 = vunpack.c.h.b16 %v59
  %v816 = vunpack.c.l.b16 %v60
  %v817 = vunpack.c.h.b16 %v60
  %v818 = vunpack.c.l.b16 %v61
  %v819 = vunpack.c.h.b16 %v61
  %v820 = vunpack.c.l.b16 %v62
  %v821 = vunpack.c.h.b16 %v62
  %v822 = vunpack.c.l.b16 %v63
  %v823 = vunpack.c.h.b16 %v63
  %v824 = vunpack.c.l.b16 %v64
  %v825 = vunpack.c.h.b16 %v64
  %v826 = vunpack.c.l.b16 %v65
  %v827 = vunpack.c.l.b16 %v66
  %v828 = vunpack.c.h.b16 %v66
  %v829 = vunpack.c.l.b16 %v67
  %v830 = vunpack.c.h.b16 %v67
  %v831 = vunpack.c.l.b16 %v68
  %v832 = vunpack.c.h.b16 %v68
  %v833 = vunpack.c.l.b16 %v69
  %v834 = vunpack.c.h.b16 %v69
  %v835 = vunpack.c.l.b16 %v70
  %v836 = vunpack.c.h.b16 %v70
  %v837 = vunpack.c.l.b16 %v71
  %v838 = vunpack.c.h.b16 %v71
  %v839 = vunpack.c.l.b16 %v72
  %v840 = vunpack.c.l.b16 %v73
  %v841 = vunpack.c.h.b16 %v73
  %v842 = vunpack.c.l.b16 %v74
  %v843 = vunpack.c.h.b16 %v74
  %v844 = vunpack.c.l.b16 %v75
  %v845 = vunpack.c.h.b16 %v75
  %v846 = vunpack.c.l.b16 %v76
  %v847 = vunpack.c.h.b16 %v76
  %v848 = vunpack.c.l.b16 %v77
  %v849 = vunpack.c.h.b16 %v77
  %v850 = vunpack.c.l.b16 %v78
  %v851 = vunpack.c.h.b16 %v78
  %v852 = vunpack.c.l.b16 %v79
  %v853 = vunpack.c.l.b16 %v80
  %v854 = vunpack.c.h.b16 %v80
  %v855 = vunpack.c.l.b16 %v81
  %v856 = vunpack.c.h.b16 %v81
  %v857 = vunpack.c.l.b16 %v82
  %v858 = vunpack.c.h.b16 %v82
  %v859 = vunpack.c.l.b16 %v83
  %v860 = vunpack.c.h.b16 %v83
  %v861 = vunpack.c.l.b16 %v84
  %v862 = vunpack.c.h.b16 %v84
  %v863 = vunpack.c.l.b16 %v85
  %v864 = vunpack.c.h.b16 %v85
  %v865 = vunpack.c.l.b16 %v86
  %v866 = vunpack.c.l.b16 %v87
  %v867 = vunpack.c.h.b16 %v87
  %v868 = vunpack.c.l.b16 %v88
  %v869 = vunpack.c.h.b16 %v88
  %v870 = vunpack.c.l.b16 %v89
  %v871 = vunpack.c.h.b16 %v89
  %v872 = vunpack.c.l.b16 %v90
  %v873 = vunpack.c.h.b16 %v90
  %v874 = vunpack.c.l.b16 %v91
  %v875 = vunpack.c.h.b16 %v91
  %v876 = vunpack.c.l.b16 %v92
  %v877 = vunpack.c.h.b16 %v92
  %v878 = vunpack.c.l.b16 %v93
  %v879 = vunpack.c.l.b16 %v94
  %v880 = vunpack.c.h.b16 %v94
  %v881 = vunpack.c.l.b16 %v95
  %v882 = vunpack.c.h.b16 %v95
  %v883 = vunpack.c.l.b16 %v96
  %v884 = vunpack.c.h.b16 %v96
  %v885 = vunpack.c.l.b16 %v97
  %v886 = vunpack.c.h.b16 %v97
  %v887 = vunpack.c.l.b16 %v98
  %v888 = vunpack.c.h.b16 %v98
  %v889 = vunpack.c.l.b16 %v99
  %v890 = vunpack.c.h.b16 %v99
  %v891 = vunpack.c.l.b16 %v100
  %v892 = vunpack.c.l.b16 %v101
  %v893 = vunpack.c.h.b16 %v101
  %v894 = vunpack.c.l.b16 %v102
  %v895 = vunpack.c.h.b16 %v102
  %v896 = vunpack.c.l.b16 %v103
  %v897 = vunpack.c.h.b16 %v103
  %v898 = vunpack.c.l.b16 %v104
  %v899 = vunpack.c.h.b16 %v104
  %v900 = vunpack.c.l.b16 %v105
  %v901 = vunpack.c.h.b16 %v105
  %v902 = vunpack.c.l.b16 %v106
  %v903 = vunpack.c.h.b16 %v106
  %v904 = vunpack.c.l.b16 %v107
  %v905 = vunpack.c.l.b16 %v108
  %v906 = vunpack.c.h.b16 %v108
  %v907 = vunpack.c.l.b16 %v109
  %v908 = vunpack.c.h.b16 %v109
  %v909 = vunpack.c.l.b16 %v110
  %v910 = vunpack.c.h.b16 %v110
  %v911 = vunpack.c.l.b16 %v111
  %v912 = vunpack.c.h.b16 %v111
  %v913 = vunpack.c.l.b16 %v112
  %v914 = vunpack.c.h.b16 %v112
  %v915 = vunpack.c.l.b16 %v113
  %v916 = vunpack.c.h.b16 %v113
  %v917 = vunpack.c.l.b16 %v114
  %v918 = vunpack.c.l.b16 %v115
  %v919 = vunpack.c.h.b16 %v115
  %v920 = vunpack.c.l.b16 %v116
  %v921 = vunpack.c.h.b16 %v116
  %v922 = vunpack.c.l.b16 %v117
  %v923 = vunpack.c.h.b16 %v117
  %v924 = vunpack.c.l.b16 %v118
  %v925 = vunpack.c.h.b16 %v118
  %v926 = vunpack.c.l.b16 %v119
  %v927 = vunpack.c.h.b16 %v119
  %v928 = vunpack.c.l.b16 %v120
  %v929 = vunpack.c.h.b16 %v120
  %v930 = vunpack.c.l.b16 %v121
  %v931 = vunpack.c.l.b16 %v122
  %v932 = vunpack.c.h.b16 %v122
  %v933 = vunpack.c.l.b16 %v123
  %v934 = vunpack.c.h.b16 %v123
  %v935 = vunpack.c.l.b16 %v124
  %v936 = vunpack.c.h.b16 %v124
  %v937 = vunpack.c.l.b16 %v125
  %v938 = vunpack.c.h.b16 %v125
  %v939 = vunpack.c.l.b16 %v126
  %v940 = vunpack.c.h.b16 %v126
  %v941 = vunpack.c.l.b16 %v127
  %v942 = vunpack.c.h.b16 %v127
  %v943 = vunpack.c.l.b16 %v128
  %v944 = vunpack.c.l.b16 %v129
  %v945 = vunpack.c.h.b16 %v129
  %v946 = vunpack.c.l.b16 %v130
  %v947 = vunpack.c.h.b16 %v130
  %v948 = vunpack.c.l.b16 %v131
  %v949 = vunpack.c.h.b16 %v131
  %v950 = vunpack.c.l.b16 %v132
  %v951 = vunpack.c.h.b16 %v132
  %v952 = vunpack.c.l.b16 %v133
  %v953 = vunpack.c.h.b16 %v133
  %v954 = vunpack.c.l.b16 %v134
  %v955 = vunpack.c.h.b16 %v134
  %v956 = vunpack.c.l.b16 %v135
  %v957 = vunpack.c.l.b16 %v136
  %v958 = vunpack.c.h.b16 %v136
  %v959 = vunpack.c.l.b16 %v137
  %v960 = vunpack.c.h.b16 %v137
  %v961 = vunpack.c.l.b16 %v138
  %v962 = vunpack.c.h.b16 %v138
  %v963 = vunpack.c.l.b16 %v139
  %v964 = vunpack.c.h.b16 %v139
  %v965 = vunpack.c.l.b16 %v140
  %v966 = vunpack.c.h.b16 %v140
  %v967 = vunpack.c.l.b16 %v141
  %v968 = vunpack.c.h.b16 %v141
  %v969 = vunpack.c.l.b16 %v142
  %v970 = vunpack.c.l.b16 %v143
  %v971 = vunpack.c.h.b16 %v143
  %v972 = vunpack.c.l.b16 %v144
  %v973 = vunpack.c.h.b16 %v144
  %v974 = vunpack.c.l.b16 %v145
  %v975 = vunpack.c.h.b16 %v145
  %v976 = vunpack.c.l.b16 %v146
  %v977 = vunpack.c.h.b16 %v146
  %v978 = vunpack.c.l.b16 %v147
  %v979 = vunpack.c.h.b16 %v147
  %v980 = vunpack.c.l.b16 %v148
  %v981 = vunpack.c.h.b16 %v148
  %v982 = vunpack.c.l.b16 %v149
  %v983 = vunpack.c.l.b16 %v150
  %v984 = vunpack.c.h.b16 %v150
  %v985 = vunpack.c.l.b16 %v151
  %v986 = vunpack.c.h.b16 %v151
  %v987 = vunpack.c.l.b16 %v152
  %v988 = vunpack.c.h.b16 %v152
  %v989 = vunpack.c.l.b16 %v153
  %v990 = vunpack.c.h.b16 %v153
  %v991 = vunpack.c.l.b16 %v154
  %v992 = vunpack.c.h.b16 %v154
  %v993 = vunpack.c.l.b16 %v155
  %v994 = vunpack.c.h.b16 %v155
  %v995 = vunpack.c.l.b16 %v156
  %v996 = vunpack.c.l.b16 %v157
  %v997 = vunpack.c.h.b16 %v157
  %v998 = vunpack.c.l.b16 %v158
  %v999 = vunpack.c.h.b16 %v158
  %v1000 = vunpack.c.l.b16 %v159
  %v1001 = vunpack.c.h.b16 %v159
  %v1002 = vunpack.c.l.b16 %v160
  %v1003 = vunpack.c.h.b16 %v160
  %v1004 = vunpack.c.l.b16 %v161
  %v1005 = vunpack.c.h.b16 %v161
  %v1006 = vunpack.c.l.b16 %v162
  %v1007 = vunpack.c.h.b16 %v162
  %v1008 = vunpack.c.l.b16 %v163
  %v1009 = vunpack.c.l.b16 %v164
  %v1010 = vunpack.c.h.b16 %v164
  %v1011 = vunpack.c.l.b16 %v165
  %v1012 = vunpack.c.h.b16 %v165
  %v1013 = vunpack.c.l.b16 %v166
  %v1014 = vunpack.c.h.b16 %v166
  %v1015 = vunpack.c.l.b16 %v167
  %v1016 = vunpack.c.h.b16 %v167
  %v1017 = vunpack.c.l.b16 %v168
  %v1018 = vunpack.c.h.b16 %v168
  %v1019 = vunpack.c.l.b16 %v169
  %v1020 = vunpack.c.h.b16 %v169
  %v1021 = vunpack.c.l.b16 %v170
  %v1022 = vunpack.c.l.b16 %v171
  %v1023 = vunpack.c.h.b16 %v171
  %v1024 = vunpack.c.l.b16 %v172
  %v1025 = vunpack.c.h.b16 %v172
  %v1026 = vunpack.c.l.b16 %v173
  %v1027 = vunpack.c.h.b16 %v173
  %v1028 = vunpack.c.l.b16 %v174
  %v1029 = vunpack.c.h.b16 %v174
  %v1030 = vunpack.c.l.b16 %v175
  %v1031 = vunpack.c.h.b16 %v175
  %v1032 = vunpack.c.l.b16 %v176
  %v1033 = vunpack.c.h.b16 %v176
  %v1034 = vunpack.c.l.b16 %v177
  %v1035 = vunpack.c.l.b16 %v178
  %v1036 = vunpack.c.h.b16 %v178
  %v1037 = vunpack.c.l.b16 %v179
  %v1038 = vunpack.c.h.b16 %v179
  %v1039 = vunpack.c.l.b16 %v180
  %v1040 = vunpack.c.h.b16 %v180
  %v1041 = vunpack.c.l.b16 %v181
  %v1042 = vunpack.c.h.b16 %v181
  %v1043 = vunpack.c.l.b16 %v182
  %v1044 = vunpack.c.h.b16 %v182
  %v1045 = vunpack.c.l.b16 %v183
  %v1046 = vunpack.c.h.b16 %v183
  %v1047 = vunpack.c.l.b16 %v184
  %v1048 = vunpack.c.l.b16 %v185
  %v1049 = vunpack.c.h.b16 %v185
  %v1050 = vunpack.c.l.b16 %v186
  %v1051 = vunpack.c.h.b16 %v186
  %v1052 = vunpack.c.l.b16 %v187
  %v1053 = vunpack.c.h.b16 %v187
  %v1054 = vunpack.c.l.b16 %v188
  %v1055 = vunpack.c.h.b16 %v188
  %v1056 = vunpack.c.l.b16 %v189
  %v1057 = vunpack.c.h.b16 %v189
  %v1058 = vunpack.c.l.b16 %v190
  %v1059 = vunpack.c.h.b16 %v190
  %v1060 = vunpack.c.l.b16 %v191
  %v1061 = vunpack.c.l.b16 %v192
  %v1062 = vunpack.c.h.b16 %v192
  %v1063 = vunpack.c.l.b16 %v193
  %v1064 = vunpack.c.h.b16 %v193
  %v1065 = vunpack.c.l.b16 %v194
  %v1066 = vunpack.c.h.b16 %v194
  %v1067 = vunpack.c.l.b16 %v195
  %v1068 = vunpack.c.h.b16 %v195
  %v1069 = vunpack.c.l.b16 %v196
  %v1070 = vunpack.c.h.b16 %v196
  %v1071 = vunpack.c.l.b16 %v197
  %v1072 = vunpack.c.h.b16 %v197
  %v1073 = vunpack.c.l.b16 %v198
  %v1074 = vunpack.c.l.b16 %v199
  %v1075 = vunpack.c.h.b16 %v199
  %v1076 = vunpack.c.l.b16 %v200
  %v1077 = vunpack.c.h.b16 %v200
  %v1078 = vunpack.c.l.b16 %v201
  %v1079 = vunpack.c.h.b16 %v201
  %v1080 = vunpack.c.l.b16 %v202
  %v1081 = vunpack.c.h.b16 %v202
  %v1082 = vunpack.c.l.b16 %v203
  %v1083 = vunpack.c.h.b16 %v203
  %v1084 = vunpack.c.l.b16 %v204
  %v1085 = vunpack.c.h.b16 %v204
  %v1086 = vunpack.c.l.b16 %v205
  %v1087 = vunpack.c.l.b16 %v206
  %v1088 = vunpack.c.h.b16 %v206
  %v1089 = vunpack.c.l.b16 %v207
  %v1090 = vunpack.c.h.b16 %v207
  %v1091 = vunpack.c.l.b16 %v208
  %v1092 = vunpack.c.h.b16 %v208
  %v1093 = vunpack.c.l.b16 %v209
  %v1094 = vunpack.c.h.b16 %v209
  %v1095 = vunpack.c.l.b16 %v210
  %v1096 = vunpack.c.h.b16 %v210
  %v1097 = vunpack.c.l.b16 %v211
  %v1098 = vunpack.c.h.b16 %v211
  %v1099 = vunpack.c.l.b16 %v212
  %v1100 = vunpack.c.l.b16 %v213
  %v1101 = vunpack.c.h.b16 %v213
  %v1102 = vunpack.c.l.b16 %v214
  %v1103 = vunpack.c.h.b16 %v214
  %v1104 = vunpack.c.l.b16 %v215
  %v1105 = vunpack.c.h.b16 %v215
  %v1106 = vunpack.c.l.b16 %v216
  %v1107 = vunpack.c.h.b16 %v216
  %v1108 = vunpack.c.l.b16 %v217
  %v1109 = vunpack.c.h.b16 %v217
  %v1110 = vunpack.c.l.b16 %v218
  %v1111 = vunpack.c.h.b16 %v218
  %v1112 = vunpack.c.l.b16 %v219
  %v1113 = vunpack.c.l.b16 %v220
  %v1114 = vunpack.c.h.b16 %v220
  %v1115 = vunpack.c.l.b16 %v221
  %v1116 = vunpack.c.h.b16 %v221
  %v1117 = vunpack.c.l.b16 %v222
  %v1118 = vunpack.c.h.b16 %v222
  %v1119 = vunpack.c.l.b16 %v223
  %v1120 = vunpack.c.h.b16 %v223
  %v1121 = vunpack.c.l.b16 %v224
  %v1122 = vunpack.c.h.b16 %v224
  %v1123 = vunpack.c.l.b16 %v225
  %v1124 = vunpack.c.h.b16 %v225
  %v1125 = vunpack.c.l.b16 %v226
  %v1126 = vunpack.c.l.b16 %v227
  %v1127 = vunpack.c.h.b16 %v227
  %v1128 = vunpack.c.l.b16 %v228
  %v1129 = vunpack.c.h.b16 %v228
  %v1130 = vunpack.c.l.b16 %v229
  %v1131 = vunpack.c.h.b16 %v229
  %v1132 = vunpack.c.l.b16 %v230
  %v1133 = vunpack.c.h.b16 %v230
  %v1134 = vunpack.c.l.b16 %v231
  %v1135 = vunpack.c.h.b16 %v231
  %v1136 = vunpack.c.l.b16 %v232
  %v1137 = vunpack.c.h.b16 %v232
  %v1138 = vunpack.c.l.b16 %v233
  %v1139 = vunpack.c.l.b16 %v234
  %v1140 = vunpack.c.h.b16 %v234
  %v1141 = vunpack.c.l.b16 %v235
  %v1142 = vunpack.c.h.b16 %v235
  %v1143 = vunpack.c.l.b16 %v236
  %v1144 = vunpack.c.h.b16 %v236
  %v1145 = vunpack.c.l.b16 %v237
  %v1146 = vunpack.c.h.b16 %v237
  %v1147 = vunpack.c.l.b16 %v238
  %v1148 = vunpack.c.h.b16 %v238
  %v1149 = vunpack.c.l.b16 %v239
  %v1150 = vunpack.c.h.b16 %v239
  %v1151 = vunpack.c.l.b16 %v240
  %v1152 = vunpack.c.l.b16 %v241
  %v1153 = vunpack.c.h.b16 %v241
  %v1154 = vunpack.c.l.b16 %v242
  %v1155 = vunpack.c.h.b16 %v242
  %v1156 = vunpack.c.l.b16 %v243
  %v1157 = vunpack.c.h.b16 %v243
  %v1158 = vunpack.c.l.b16 %v244
  %v1159 = vunpack.c.h.b16 %v244
  %v1160 = vunpack.c.l.b16 %v245
  %v1161 = vunpack.c.h.b16 %v245
  %v1162 = vunpack.c.l.b16 %v246
  %v1163 = vunpack.c.h.b16 %v246
  %v1164 = vunpack.c.l.b16 %v247
  %v1165 = vunpack.c.l.b16 %v248
  %v1166 = vunpack.c.h.b16 %v248
  %v1167 = vunpack.c.l.b16 %v249
  %v1168 = vunpack.c.h.b16 %v249
  %v1169 = vunpack.c.l.b16 %v250
  %v1170 = vunpack.c.h.b16 %v250
  %v1171 = vunpack.c.l.b16 %v251
  %v1172 = vunpack.c.h.b16 %v251
  %v1173 = vunpack.c.l.b16 %v252
  %v1174 = vunpack.c.h.b16 %v252
  %v1175 = vunpack.c.l.b16 %v253
  %v1176 = vunpack.c.h.b16 %v253
  %v1177 = vunpack.c.l.b16 %v254
  %v1178 = vunpack.c.l.b16 %v255
  %v1179 = vunpack.c.h.b16 %v255
  %v1180 = vunpack.c.l.b16 %v256
  %v1181 = vunpack.c.h.b16 %v256
  %v1182 = vunpack.c.l.b16 %v257
  %v1183 = vunpack.c.h.b16 %v257
  %v1184 = vunpack.c.l.b16 %v258
  %v1185 = vunpack.c.h.b16 %v258
  %v1186 = vunpack.c.l.b16 %v259
  %v1187 = vunpack.c.h.b16 %v259
  %v1188 = vunpack.c.l.b16 %v260
  %v1189 = vunpack.c.h.b16 %v260
  %v1190 = vunpack.c.l.b16 %v261
  %v1191 = vunpack.c.l.b16 %v262
  %v1192 = vunpack.c.h.b16 %v262
  %v1193 = vunpack.c.l.b16 %v263
  %v1194 = vunpack.c.h.b16 %v263
  %v1195 = vunpack.c.l.b16 %v264
  %v1196 = vunpack.c.h.b16 %v264
  %v1197 = vunpack.c.l.b16 %v265
  %v1198 = vunpack.c.h.b16 %v265
  %v1199 = vunpack.c.l.b16 %v266
  %v1200 = vunpack.c.h.b16 %v266
  %v1201 = vunpack.c.l.b16 %v267
  %v1202 = vunpack.c.h.b16 %v267
  %v1203 = vunpack.c.l.b16 %v268
  %v1204 = vunpack.c.l.b16 %v269
  %v1205 = vunpack.c.h.b16 %v269
  %v1206 = vunpack.c.l.b16 %v270
  %v1207 = vunpack.c.h.b16 %v270
  %v1208 = vunpack.c.l.b16 %v271
  %v1209 = vunpack.c.h.b16 %v271
  %v1210 = vunpack.c.l.b16 %v272
  %v1211 = vunpack.c.h.b16 %v272
  %v1212 = vunpack.c.l.b16 %v273
  %v1213 = vunpack.c.h.b16 %v273
  %v1214 = vunpack.c.l.b16 %v274
  %v1215 = vunpack.c.h.b16 %v274
  %v1216 = vunpack.c.l.b16 %v275
  %v1217 = vunpack.c.l.b16 %v276
  %v1218 = vunpack.c.h.b16 %v276
  %v1219 = vunpack.c.l.b16 %v277
  %v1220 = vunpack.c.h.b16 %v277
  %v1221 = vunpack.c.l.b16 %v278
  %v1222 = vunpack.c.h.b16 %v278
  %v1223 = vunpack.c.l.b16 %v279
  %v1224 = vunpack.c.h.b16 %v279
  %v1225 = vunpack.c.l.b16 %v280
  %v1226 = vunpack.c.h.b16 %v280
  %v1227 = vunpack.c.l.b16 %v281
  %v1228 = vunpack.c.h.b16 %v281
  %v1229 = vunpack.c.l.b16 %v282
  %v1230 = vunpack.c.l.b16 %v283
  %v1231 = vunpack.c.h.b16 %v283
  %v1232 = vunpack.c.l.b16 %v284
  %v1233 = vunpack.c.h.b16 %v284
  %v1234 = vunpack.c.l.b16 %v285
  %v1235 = vunpack.c.h.b16 %v285
  %v1236 = vunpack.c.l.b16 %v286
  %v1237 = vunpack.c.h.b16 %v286
  %v1238 = vunpack.c.l.b16 %v287
  %v1239 = vunpack.c.h.b16 %v287
  %v1240 = vunpack.c.l.b16 %v288
  %v1241 = vunpack.c.h.b16 %v288
  %v1242 = vunpack.c.l.b16 %v289
  %v1243 = vunpack.c.l.b16 %v290
  %v1244 = vunpack.c.h.b16 %v290
  %v1245 = vunpack.c.l.b16 %v291
  %v1246 = vunpack.c.h.b16 %v291
  %v1247 = vunpack.c.l.b16 %v292
  %v1248 = vunpack.c.h.b16 %v292
  %v1249 = vunpack.c.l.b16 %v293
  %v1250 = vunpack.c.h.b16 %v293
  %v1251 = vunpack.c.l.b16 %v294
  %v1252 = vunpack.c.h.b16 %v294
  %v1253 = vunpack.c.l.b16 %v295
  %v1254 = vunpack.c.h.b16 %v295
  %v1255 = vunpack.c.l.b16 %v296
  %v1256 = vunpack.c.l.b16 %v297
  %v1257 = vunpack.c.h.b16 %v297
  %v1258 = vunpack.c.l.b16 %v298
  %v1259 = vunpack.c.h.b16 %v298
  %v1260 = vunpack.c.l.b16 %v299
  %v1261 = vunpack.c.h.b16 %v299
  %v1262 = vunpack.c.l.b16 %v300
  %v1263 = vunpack.c.h.b16 %v300
  %v1264 = vunpack.c.l.b16 %v301
  %v1265 = vunpack.c.h.b16 %v301
  %v1266 = vunpack.c.l.b16 %v302
  %v1267 = vunpack.c.h.b16 %v302
  %v1268 = vunpack.c.l.b16 %v303
  %v1269 = vunpack.c.l.b16 %v304
  %v1270 = vunpack.c.h.b16 %v304
  %v1271 = vunpack.c.l.b16 %v305
  %v1272 = vunpack.c.h.b16 %v305
  %v1273 = vunpack.c.l.b16 %v306
  %v1274 = vunpack.c.h.b16 %v306
  %v1275 = vunpack.c.l.b16 %v307
  %v1276 = vunpack.c.h.b16 %v307
  %v1277 = vunpack.c.l.b16 %v308
  %v1278 = vunpack.c.h.b16 %v308
  %v1279 = vunpack.c.l.b16 %v309
  %v1280 = vunpack.c.h.b16 %v309
  %v1281 = vunpack.c.l.b16 %v310
  %v1282 = vunpack.c.l.b16 %v311
  %v1283 = vunpack.c.h.b16 %v311
  %v1284 = vunpack.c.l.b16 %v312
  %v1285 = vunpack.c.h.b16 %v312
  %v1286 = vunpack.c.l.b16 %v313
  %v1287 = vunpack.c.h.b16 %v313
  %v1288 = vunpack.c.l.b16 %v314
  %v1289 = vunpack.c.h.b16 %v314
  %v1290 = vunpack.c.l.b16 %v315
  %v1291 = vunpack.c.h.b16 %v315
  %v1292 = vunpack.c.l.b16 %v316
  %v1293 = vunpack.c.h.b16 %v316
  %v1294 = vunpack.c.l.b16 %v317
  %v1295 = vunpack.c.l.b16 %v318
  %v1296 = vunpack.c.h.b16 %v318
  %v1297 = vunpack.c.l.b16 %v319
  %v1298 = vunpack.c.h.b16 %v319
  %v1299 = vunpack.c.l.b16 %v320
  %v1300 = vunpack.c.h.b16 %v320
  %v1301 = vunpack.c.l.b16 %v321
  %v1302 = vunpack.c.h.b16 %v321
  %v1303 = vunpack.c.l.b16 %v322
  %v1304 = vunpack.c.h.b16 %v322
  %v1305 = vunpack.c.l.b16 %v323
  %v1306 = vunpack.c.h.b16 %v323
  %v1307 = vunpack.c.l.b16 %v324
  %v1308 = vunpack.c.l.b16 %v325
  %v1309 = vunpack.c.h.b16 %v325
  %v1310 = vunpack.c.l.b16 %v326
  %v1311 = vunpack.c.h.b16 %v326
  %v1312 = vunpack.c.l.b16 %v327
  %v1313 = vunpack.c.h.b16 %v327
  %v1314 = vunpack.c.l.b16 %v328
  %v1315 = vunpack.c.h.b16 %v328
  %v1316 = vunpack.c.l.b16 %v329
  %v1317 = vunpack.c.h.b16 %v329
  %v1318 = vunpack.c.l.b16 %v330
  %v1319 = vunpack.c.h.b16 %v330
  %v1320 = vunpack.c.l.b16 %v331
  %v1321 = vunpack.c.l.b16 %v332
  %v1322 = vunpack.c.h.b16 %v332
  %v1323 = vunpack.c.l.b16 %v333
  %v1324 = vunpack.c.h.b16 %v333
  %v1325 = vunpack.c.l.b16 %v334
  %v1326 = vunpack.c.h.b16 %v334
  %v1327 = vunpack.c.l.b16 %v335
  %v1328 = vunpack.c.h.b16 %v335
  %v1329 = vunpack.c.l.b16 %v336
  %v1330 = vunpack.c.h.b16 %v336
  %v1331 = vunpack.c.l.b16 %v337
  %v1332 = vunpack.c.h.b16 %v337
  %v1333 = vunpack.c.l.b16 %v338
  %v1334 = vunpack.c.l.b16 %v339
  %v1335 = vunpack.c.h.b16 %v339
  %v1336 = vunpack.c.l.b16 %v340
  %v1337 = vunpack.c.h.b16 %v340
  %v1338 = vunpack.c.l.b16 %v341
  %v1339 = vunpack.c.h.b16 %v341
  %v1340 = vunpack.c.l.b16 %v342
  %v1341 = vunpack.c.h.b16 %v342
  %v1342 = vunpack.c.l.b16 %v343
  %v1343 = vunpack.c.h.b16 %v343
  %v1344 = vunpack.c.l.b16 %v344
  %v1345 = vunpack.c.h.b16 %v344
  %v1346 = vunpack.c.l.b16 %v345
  %v1347 = vunpack.c.l.b16 %v346
  %v1348 = vunpack.c.h.b16 %v346
  %v1349 = vunpack.c.l.b16 %v347
  %v1350 = vunpack.c.h.b16 %v347
  %v1351 = vunpack.c.l.b16 %v348
  %v1352 = vunpack.c.h.b16 %v348
  %v1353 = vunpack.c.l.b16 %v349
  %v1354 = vunpack.c.h.b16 %v349
  %v1355 = vunpack.c.l.b16 %v350
  %v1356 = vunpack.c.h.b16 %v350
  %v1357 = vunpack.c.l.b16 %v351
  %v1358 = vunpack.c.h.b16 %v351
  %v1359 = vunpack.c.l.b16 %v352
  %v1360 = vunpack.c.l.b16 %v353
  %v1361 = vunpack.c.h.b16 %v353
  %v1362 = vunpack.c.l.b16 %v354
  %v1363 = vunpack.c.h.b16 %v354
  %v1364 = vunpack.c.l.b16 %v355
  %v1365 = vunpack.c.h.b16 %v355
  %v1366 = vunpack.c.l.b16 %v356
  %v1367 = vunpack.c.h.b16 %v356
  %v1368 = vunpack.c.l.b16 %v357
  %v1369 = vunpack.c.h.b16 %v357
  %v1370 = vunpack.c.l.b16 %v358
  %v1371 = vunpack.c.h.b16 %v358
  %v1372 = vunpack.c.l.b16 %v359
  %v1373 = vunpack.c.l.b16 %v360
  %v1374 = vunpack.c.h.b16 %v360
  %v1375 = vunpack.c.l.b16 %v361
  %v1376 = vunpack.c.h.b16 %v361
  %v1377 = vunpack.c.l.b16 %v362
  %v1378 = vunpack.c.h.b16 %v362
  %v1379 = vunpack.c.l.b16 %v363
  %v1380 = vunpack.c.h.b16 %v363
  %v1381 = vunpack.c.l.b16 %v364
  %v1382 = vunpack.c.h.b16 %v364
  %v1383 = vunpack.c.l.b16 %v365
  %v1384 = vunpack.c.h.b16 %v365
  %v1385 = vunpack.c.l.b16 %v366
  %v1386 = vpack.c.b16 %v749, %v736
  %v1387 = vpack.c.b16 %v750, %v737
  %v1388 = vpack.c.b16 %v751, %v738
  %v1389 = vpack.c.b16 %v752, %v739
  %v1390 = vpack.c.b16 %v753, %v740
  %v1391 = vpack.c.b16 %v754, %v741
  %v1392 = vpack.c.b16 %v755, %v742
  %v1393 = vpack.c.b16 %v756, %v743
  %v1394 = vpack.c.b16 %v757, %v744
  %v1395 = vpack.c.b16 %v758, %v745
  %v1396 = vpack.c.b16 %v759, %v746
  %v1397 = vpack.c.b16 %v760, %v747
  %v1398 = vpack.c.b16 %v761, %v748
  %v1399 = vpack.c.b16 %v775, %v762
  %v1400 = vpack.c.b16 %v776, %v763
  %v1401 = vpack.c.b16 %v777, %v764
  %v1402 = vpack.c.b16 %v778, %v765
  %v1403 = vpack.c.b16 %v779, %v766
  %v1404 = vpack.c.b16 %v780, %v767
  %v1405 = vpack.c.b16 %v781, %v768
  %v1406 = vpack.c.b16 %v782, %v769
  %v1407 = vpack.c.b16 %v783, %v770
  %v1408 = vpack.c.b16 %v784, %v771
  %v1409 = vpack.c.b16 %v785, %v772
  %v1410 = vpack.c.b16 %v786, %v773
  %v1411 = vpack.c.b16 %v787, %v774
  %v1412 = vpack.c.b16 %v801, %v788
  %v1413 = vpack.c.b16 %v802, %v789
  %v1414 = vpack.c.b16 %v803, %v790
  %v1415 = vpack.c.b16 %v804, %v791
  %v1416 = vpack.c.b16 %v805, %v792
  %v1417 = vpack.c.b16 %v806, %v793
  %v1418 = vpack.c.b16 %v807, %v794
  %v1419 = vpack.c.b16 %v808, %v795
  %v1420 = vpack.c.b16 %v809, %v796
  %v1421 = vpack.c.b16 %v810, %v797
  %v1422 = vpack.c.b16 %v811, %v798
  %v1423 = vpack.c.b16 %v812, %v799
  %v1424 = vpack.c.b16 %v813, %v800
  %v1425 = vpack.c.b16 %v827, %v814
  %v1426 = vpack.c.b16 %v828, %v815
  %v1427 = vpack.c.b16 %v829, %v816
  %v1428 = vpack.c.b16 %v830, %v817
  %v1429 = vpack.c.b16 %v831, %v818
  %v1430 = vpack.c.b16 %v832, %v819
  %v1431 = vpack.c.b16 %v833, %v820
  %v1432 = vpack.c.b16 %v834, %v821
  %v1433 = vpack.c.b16 %v835, %v822
  %v1434 = vpack.c.b16 %v836, %v823
  %v1435 = vpack.c.b16 %v837, %v824
  %v1436 = vpack.c.b16 %v838, %v825
  %v1437 = vpack.c.b16 %v839, %v826
  %v1438 = vpack.c.b16 %v853, %v840
  %v1439 = vpack.c.b16 %v854, %v841
  %v1440 = vpack.c.b16 %v855, %v842
  %v1441 = vpack.c.b16 %v856, %v843
  %v1442 = vpack.c.b16 %v857, %v844
  %v1443 = vpack.c.b16 %v858, %v845
  %v1444 = vpack.c.b16 %v859, %v846
  %v1445 = vpack.c.b16 %v860, %v847
  %v1446 = vpack.c.b16 %v861, %v848
  %v1447 = vpack.c.b16 %v862, %v849
  %v1448 = vpack.c.b16 %v863, %v850
  %v1449 = vpack.c.b16 %v864, %v851
  %v1450 = vpack.c.b16 %v865, %v852
  %v1451 = vpack.c.b16 %v879, %v866
  %v1452 = vpack.c.b16 %v880, %v867
  %v1453 = vpack.c.b16 %v881, %v868
  %v1454 = vpack.c.b16 %v882, %v869
  %v1455 = vpack.c.b16 %v883, %v870
  %v1456 = vpack.c.b16 %v884, %v871
  %v1457 = vpack.c.b16 %v885, %v872
  %v1458 = vpack.c.b16 %v886, %v873
  %v1459 = vpack.c.b16 %v887, %v874
  %v1460 = vpack.c.b16 %v888, %v875
  %v1461 = vpack.c.b16 %v889, %v876
  %v1462 = vpack.c.b16 %v890, %v877
  %v1463 = vpack.c.b16 %v891, %v878
  %v1464 = vpack.c.b16 %v905, %v892
  %v1465 = vpack.c.b16 %v906, %v893
  %v1466 = vpack.c.b16 %v907, %v894
  %v1467 = vpack.c.b16 %v908, %v895
  %v1468 = vpack.c.b16 %v909, %v896
  %v1469 = vpack.c.b16 %v910, %v897
  %v1470 = vpack.c.b16 %v911, %v898
  %v1471 = vpack.c.b16 %v912, %v899
  %v1472 = vpack.c.b16 %v913, %v900
  %v1473 = vpack.c.b16 %v914, %v901
  %v1474 = vpack.c.b16 %v915, %v902
  %v1475 = vpack.c.b16 %v916, %v903
  %v1476 = vpack.c.b16 %v917, %v904
  %v1477 = vpack.c.b16 %v931, %v918
  %v1478 = vpack.c.b16 %v932, %v919
  %v1479 = vpack.c.b16 %v933, %v920
  %v1480 = vpack.c.b16 %v934, %v921
  %v1481 = vpack.c.b16 %v935, %v922
  %v1482 = vpack.c.b16 %v936, %v923
  %v1483 = vpack.c.b16 %v937, %v924
  %v1484 = vpack.c.b16 %v938, %v925
  %v1485 = vpack.c.b16 %v939, %v926
  %v1486 = vpack.c.b16 %v940, %v927
  %v1487 = vpack.c.b16 %v941, %v928
  %v1488 = vpack.c.b16 %v942, %v929
  %v1489 = vpack.c.b16 %v943, %v930
  %v1490 = vpack.c.b16 %v957, %v944
  %v1491 = vpack.c.b16 %v958, %v945
  %v1492 = vpack.c.b16 %v959, %v946
  %v1493 = vpack.c.b16 %v960, %v947
  %v1494 = vpack.c.b16 %v961, %v948
  %v1495 = vpack.c.b16 %v962, %v949
  %v1496 = vpack.c.b16 %v963, %v950
  %v1497 = vpack.c.b16 %v964, %v951
  %v1498 = vpack.c.b16 %v965, %v952
  %v1499 = vpack.c.b16 %v966, %v953
  %v1500 = vpack.c.b16 %v967, %v954
  %v1501 = vpack.c.b16 %v968, %v955
  %v1502 = vpack.c.b16 %v969, %v956
  %v1503 = vpack.c.b16 %v983, %v970
  %v1504 = vpack.c.b16 %v984, %v971
  %v1505 = vpack.c.b16 %v985, %v972
  %v1506 = vpack.c.b16 %v986, %v973
  %v1507 = vpack.c.b16 %v987, %v974
  %v1508 = vpack.c.b16 %v988, %v975
  %v1509 = vpack.c.b16 %v989, %v976
  %v1510 = vpack.c.b16 %v990, %v977
  %v1511 = vpack.c.b16 %v991, %v978
  %v1512 = vpack.c.b16 %v992, %v979
  %v1513 = vpack.c.b16 %v993, %v980
  %v1514 = vpack.c.b16 %v994, %v981
  %v1515 = vpack.c.b16 %v995, %v982
  %v1516 = vpack.c.b16 %v1009, %v996
  %v1517 = vpack.c.b16 %v1010, %v997
  %v1518 = vpack.c.b16 %v1011, %v998
  %v1519 = vpack.c.b16 %v1012, %v999
  %v1520 = vpack.c.b16 %v1013, %v1000
  %v1521 = vpack.c.b16 %v1014, %v1001
  %v1522 = vpack.c.b16 %v1015, %v1002
  %v1523 = vpack.c.b16 %v1016, %v1003
  %v1524 = vpack.c.b16 %v1017, %v1004
  %v1525 = vpack.c.b16 %v1018, %v1005
  %v1526 = vpack.c.b16 %v1019, %v1006
  %v1527 = vpack.c.b16 %v1020, %v1007
  %v1528 = vpack.c.b16 %v1021, %v1008
  %v1529 = vpack.c.b16 %v1035, %v1022
  %v1530 = vpack.c.b16 %v1036, %v1023
  %v1531 = vpack.c.b16 %v1037, %v1024
  %v1532 = vpack.c.b16 %v1038, %v1025
  %v1533 = vpack.c.b16 %v1039, %v1026
  %v1534 = vpack.c.b16 %v1040, %v1027
  %v1535 = vpack.c.b16 %v1041, %v1028
  %v1536 = vpack.c.b16 %v1042, %v1029
  %v1537 = vpack.c.b16 %v1043, %v1030
  %v1538 = vpack.c.b16 %v1044, %v1031
  %v1539 = vpack.c.b16 %v1045, %v1032
  %v1540 = vpack.c.b16 %v1046, %v1033
  %v1541 = vpack.c.b16 %v1047, %v1034
  %v1542 = vpack.c.b16 %v1061, %v1048
  %v1543 = vpack.c.b16 %v1062, %v1049
  %v1544 = vpack.c.b16 %v1063, %v1050
  %v1545 = vpack.c.b16 %v1064, %v1051
  %v1546 = vpack.c.b16 %v1065, %v1052
  %v1547 = vpack.c.b16 %v1066, %v1053
  %v1548 = vpack.c.b16 %v1067, %v1054
  %v1549 = vpack.c.b16 %v1068, %v1055
  %v1550 = vpack.c.b16 %v1069, %v1056
  %v1551 = vpack.c.b16 %v1070, %v1057
  %v1552 = vpack.c.b16 %v1071, %v1058
  %v1553 = vpack.c.b16 %v1072, %v1059
  %v1554 = vpack.c.b16 %v1073, %v1060
  %v1555 = vpack.c.b16 %v1087, %v1074
  %v1556 = vpack.c.b16 %v1088, %v1075
  %v1557 = vpack.c.b16 %v1089, %v1076
  %v1558 = vpack.c.b16 %v1090, %v1077
  %v1559 = vpack.c.b16 %v1091, %v1078
  %v1560 = vpack.c.b16 %v1092, %v1079
  %v1561 = vpack.c.b16 %v1093, %v1080
  %v1562 = vpack.c.b16 %v1094, %v1081
  %v1563 = vpack.c.b16 %v1095, %v1082
  %v1564 = vpack.c.b16 %v1096, %v1083
  %v1565 = vpack.c.b16 %v1097, %v1084
  %v1566 = vpack.c.b16 %v1098, %v1085
  %v1567 = vpack.c.b16 %v1099, %v1086
  %v1568 = vpack.c.b16 %v1113, %v1100
  %v1569 = vpack.c.b16 %v1114, %v1101
  %v1570 = vpack.c.b16 %v1115, %v1102
  %v1571 = vpack.c.b16 %v1116, %v1103
  %v1572 = vpack.c.b16 %v1117, %v1104
  %v1573 = vpack.c.b16 %v1118, %v1105
  %v1574 = vpack.c.b16 %v1119, %v1106
  %v1575 = vpack.c.b16 %v1120, %v1107
  %v1576 = vpack.c.b16 %v1121, %v1108
  %v1577 = vpack.c.b16 %v1122, %v1109
  %v1578 = vpack.c.b16 %v1123, %v1110
  %v1579 = vpack.c.b16 %v1124, %v1111
  %v1580 = vpack.c.b16 %v1125, %v1112
  %v1581 = vpack.c.b16 %v1139, %v1126
  %v1582 = vpack.c.b16 %v1140, %v1127
  %v1583 = vpack.c.b16 %v1141, %v1128
  %v1584 = vpack.c.b16 %v1142, %v1129
  %v1585 = vpack.c.b16 %v1143, %v1130
  %v1586 = vpack.c.b16 %v1144, %v1131
  %v1587 = vpack.c.b16 %v1145, %v1132
  %v1588 = vpack.c.b16 %v1146, %v1133
  %v1589 = vpack.c.b16 %v1147, %v1134
  %v1590 = vpack.c.b16 %v1148, %v1135
  %v1591 = vpack.c.b16 %v1149, %v1136
  %v1592 = vpack.c.b16 %v1150, %v1137
  %v1593 = vpack.c.b16 %v1151, %v1138
  %v1594 = vpack.c.b16 %v1165, %v1152
  %v1595 = vpack.c.b16 %v1166, %v1153
  %v1596 = vpack.c.b16 %v1167, %v1154
  %v1597 = vpack.c.b16 %v1168, %v1155
  %v1598 = vpack.c.b16 %v1169, %v1156
  %v1599 = vpack.c.b16 %v1170, %v1157
  %v1600 = vpack.c.b16 %v1171, %v1158
  %v1601 = vpack.c.b16 %v1172, %v1159
  %v1602 = vpack.c.b16 %v1173, %v1160
  %v1603 = vpack.c.b16 %v1174, %v1161
  %v1604 = vpack.c.b16 %v1175, %v1162
  %v1605 = vpack.c.b16 %v1176, %v1163
  %v1606 = vpack.c.b16 %v1177, %v1164
  %v1607 = vpack.c.b16 %v1191, %v1178
  %v1608 = vpack.c.b16 %v1192, %v1179
  %v1609 = vpack.c.b16 %v1193, %v1180
  %v1610 = vpack.c.b16 %v1194, %v1181
  %v1611 = vpack.c.b16 %v1195, %v1182
  %v1612 = vpack.c.b16 %v1196, %v1183
  %v1613 = vpack.c.b16 %v1197, %v1184
  %v1614 = vpack.c.b16 %v1198, %v1185
  %v1615 = vpack.c.b16 %v1199, %v1186
  %v1616 = vpack.c.b16 %v1200, %v1187
  %v1617 = vpack.c.b16 %v1201, %v1188
  %v1618 = vpack.c.b16 %v1202, %v1189
  %v1619 = vpack.c.b16 %v1203, %v1190
  %v1620 = vpack.c.b16 %v1217, %v1204
  %v1621 = vpack.c.b16 %v1218, %v1205
  %v1622 = vpack.c.b16 %v1219, %v1206
  %v1623 = vpack.c.b16 %v1220, %v1207
  %v1624 = vpack.c.b16 %v1221, %v1208
  %v1625 = vpack.c.b16 %v1222, %v1209
  %v1626 = vpack.c.b16 %v1223, %v1210
  %v1627 = vpack.c.b16 %v1224, %v1211
  %v1628 = vpack.c.b16 %v1225, %v1212
  %v1629 = vpack.c.b16 %v1226, %v1213
  %v1630 = vpack.c.b16 %v1227, %v1214
  %v1631 = vpack.c.b16 %v1228, %v1215
  %v1632 = vpack.c.b16 %v1229, %v1216
  %v1633 = vpack.c.b16 %v1243, %v1230
  %v1634 = vpack.c.b16 %v1244, %v1231
  %v1635 = vpack.c.b16 %v1245, %v1232
  %v1636 = vpack.c.b16 %v1246, %v1233
  %v1637 = vpack.c.b16 %v1247, %v1234
  %v1638 = vpack.c.b16 %v1248, %v1235
  %v1639 = vpack.c.b16 %v1249, %v1236
  %v1640 = vpack.c.b16 %v1250, %v1237
  %v1641 = vpack.c.b16 %v1251, %v1238
  %v1642 = vpack.c.b16 %v1252, %v1239
  %v1643 = vpack.c.b16 %v1253, %v1240
  %v1644 = vpack.c.b16 %v1254, %v1241
  %v1645 = vpack.c.b16 %v1255, %v1242
  %v1646 = vpack.c.b16 %v1269, %v1256
  %v1647 = vpack.c.b16 %v1270, %v1257
  %v1648 = vpack.c.b16 %v1271, %v1258
  %v1649 = vpack.c.b16 %v1272, %v1259
  %v1650 = vpack.c.b16 %v1273, %v1260
  %v1651 = vpack.c.b16 %v1274, %v1261
  %v1652 = vpack.c.b16 %v1275, %v1262
  %v1653 = vpack.c.b16 %v1276, %v1263
  %v1654 = vpack.c.b16 %v1277, %v1264
  %v1655 = vpack.c.b16 %v1278, %v1265
  %v1656 = vpack.c.b16 %v1279, %v1266
  %v1657 = vpack.c.b16 %v1280, %v1267
  %v1658 = vpack.c.b16 %v1281, %v1268
  %v1659 = vpack.c.b16 %v1295, %v1282
  %v1660 = vpack.c.b16 %v1296, %v1283
  %v1661 = vpack.c.b16 %v1297, %v1284
  %v1662 = vpack.c.b16 %v1298, %v1285
  %v1663 = vpack.c.b16 %v1299, %v1286
  %v1664 = vpack.c.b16 %v1300, %v1287
  %v1665 = vpack.c.b16 %v1301, %v1288
  %v1666 = vpack.c.b16 %v1302, %v1289
  %v1667 = vpack.c.b16 %v1303, %v1290
  %v1668 = vpack.c.b16 %v1304, %v1291
  %v1669 = vpack.c.b16 %v1305, %v1292
  %v1670 = vpack.c.b16 %v1306, %v1293
  %v1671 = vpack.c.b16 %v1307, %v1294
  %v1672 = vpack.c.b16 %v1321, %v1308
  %v1673 = vpack.c.b16 %v1322, %v1309
  %v1674 = vpack.c.b16 %v1323, %v1310
  %v1675 = vpack.c.b16 %v1324, %v1311
  %v1676 = vpack.c.b16 %v1325, %v1312
  %v1677 = vpack.c.b16 %v1326, %v1313
  %v1678 = vpack.c.b16 %v1327, %v1314
  %v1679 = vpack.c.b16 %v1328, %v1315
  %v1680 = vpack.c.b16 %v1329, %v1316
  %v1681 = vpack.c.b16 %v1330, %v1317
  %v1682 = vpack.c.b16 %v1331, %v1318
  %v1683 = vpack.c.b16 %v1332, %v1319
  %v1684 = vpack.c.b16 %v1333, %v1320
  %v1685 = vpack.c.b16 %v1347, %v1334
  %v1686 = vpack.c.b16 %v1348, %v1335
  %v1687 = vpack.c.b16 %v1349, %v1336
  %v1688 = vpack.c.b16 %v1350, %v1337
  %v1689 = vpack.c.b16 %v1351, %v1338
  %v1690 = vpack.c.b16 %v1352, %v1339
  %v1691 = vpack.c.b16 %v1353, %v1340
  %v1692 = vpack.c.b16 %v1354, %v1341
  %v1693 = vpack.c.b16 %v1355, %v1342
  %v1694 = vpack.c.b16 %v1356, %v1343
  %v1695 = vpack.c.b16 %v1357, %v1344
  %v1696 = vpack.c.b16 %v1358, %v1345
  %v1697 = vpack.c.b16 %v1359, %v1346
  %v1698 = vpack.c.b16 %v1373, %v1360
  %v1699 = vpack.c.b16 %v1374, %v1361
  %v1700 = vpack.c.b16 %v1375, %v1362
  %v1701 = vpack.c.b16 %v1376, %v1363
  %v1702 = vpack.c.b16 %v1377, %v1364
  %v1703 = vpack.c.b16 %v1378, %v1365
  %v1704 = vpack.c.b16 %v1379, %v1366
  %v1705 = vpack.c.b16 %v1380, %v1367
  %v1706 = vpack.c.b16 %v1381, %v1368
  %v1707 = vpack.c.b16 %v1382, %v1369
  %v1708 = vpack.c.b16 %v1383, %v1370
  %v1709 = vpack.c.b16 %v1384, %v1371
  %v1710 = vpack.c.b16 %v1385, %v1372
  %vm2036 = vcmask 130048
  %v2038 = vsel %vm2036, %v382, 0
  %2040 = vmatprep.subr.bf16.mxu0 %v1387
  %2041 = vmatpush1.bf16.msra.mxu0 %v1386
  %2042 = vmatprep.subr.bf16.mxu0 %v1400
  %2043 = vmatpush1.bf16.msra.mxu0 %v1399
  %2044 = vmatprep.subr.bf16.mxu0 %v1413
  %2045 = vmatpush1.bf16.msra.mxu0 %v1412
  %2046 = vmatprep.subr.bf16.mxu0 %v1426
  %2047 = vmatpush1.bf16.msra.mxu0 %v1425
  %2048 = vmatprep.subr.bf16.mxu0 %v1439
  %2049 = vmatpush1.bf16.msra.mxu0 %v1438
  %2050 = vmatprep.subr.bf16.mxu0 %v1452
  %2051 = vmatpush1.bf16.msra.mxu0 %v1451
  %2052 = vmatprep.subr.bf16.mxu0 %v1465
  %2053 = vmatpush1.bf16.msra.mxu0 %v1464
  %2054 = vmatprep.subr.bf16.mxu0 %v1478
  %2055 = vmatpush1.bf16.msra.mxu0 %v1477
  %2056 = vmatprep.subr.bf16.mxu0 %v1491
  %2057 = vmatpush1.bf16.msra.mxu0 %v1490
  %2058 = vmatprep.subr.bf16.mxu0 %v1504
  %2059 = vmatpush1.bf16.msra.mxu0 %v1503
  %2060 = vmatprep.subr.bf16.mxu0 %v1517
  %2061 = vmatpush1.bf16.msra.mxu0 %v1516
  %2062 = vmatprep.subr.bf16.mxu0 %v1530
  %2063 = vmatpush1.bf16.msra.mxu0 %v1529
  %2064 = vmatprep.subr.bf16.mxu0 %v1543
  %2065 = vmatpush1.bf16.msra.mxu0 %v1542
  %2066 = vmatprep.subr.bf16.mxu0 %v1556
  %2067 = vmatpush1.bf16.msra.mxu0 %v1555
  %2068 = vmatprep.subr.bf16.mxu0 %v1569
  %2069 = vmatpush1.bf16.msra.mxu0 %v1568
  %2070 = vmatprep.subr.bf16.mxu0 %v1582
  %2071 = vmatpush1.bf16.msra.mxu0 %v1581
  %2072 = vmatprep.mubr.bf16.mxu0 %v380
  %2073 = vmatmul.mubr.bf16.gmra.mrb[0].mxu0 %v379
  %v2074 = vpop.f32.mrb[0].mxu0
  %v2075 = vadd.f32 %v371, %v2074
  %v2076 = vpop.f32.mrb[0].mxu0
  %v2077 = vadd.f32 %v371, %v2076
  %v2078 = vpop.f32.mrb[0].mxu0
  %v2079 = vpop.f32.mrb[0].mxu0
  %2080 = vdwg.mxu0
  %2081 = vmatprep.subr.bf16.mxu0 %v1595
  %2082 = vmatpush1.bf16.msra.mxu0 %v1594
  %2083 = vmatprep.subr.bf16.mxu0 %v1608
  %2084 = vmatpush1.bf16.msra.mxu0 %v1607
  %2085 = vmatprep.subr.bf16.mxu0 %v1621
  %2086 = vmatpush1.bf16.msra.mxu0 %v1620
  %2087 = vmatprep.subr.bf16.mxu0 %v1634
  %2088 = vmatpush1.bf16.msra.mxu0 %v1633
  %2089 = vmatprep.subr.bf16.mxu0 %v1647
  %2090 = vmatpush1.bf16.msra.mxu0 %v1646
  %2091 = vmatprep.subr.bf16.mxu0 %v1660
  %2092 = vmatpush1.bf16.msra.mxu0 %v1659
  %2093 = vmatprep.subr.bf16.mxu0 %v1673
  %2094 = vmatpush1.bf16.msra.mxu0 %v1672
  %2095 = vmatprep.subr.bf16.mxu0 %v1686
  %2096 = vmatpush1.bf16.msra.mxu0 %v1685
  %2097 = vmatprep.subr.bf16.mxu0 %v1699
  %2098 = vmatpush1.bf16.msra.mxu0 %v1698
  %2099 = vmatprep.subr.bf16.mxu0 0
  %2100 = vmatpush1.bf16.msra.mxu0 0
  %2101 = vmatprep.subr.bf16.mxu0 0
  %2102 = vmatpush1.bf16.msra.mxu0 0
  %2103 = vmatprep.subr.bf16.mxu0 0
  %2104 = vmatpush1.bf16.msra.mxu0 0
  %2105 = vmatprep.subr.bf16.mxu0 0
  %2106 = vmatpush1.bf16.msra.mxu0 0
  %2107 = vmatprep.subr.bf16.mxu0 0
  %2108 = vmatpush1.bf16.msra.mxu0 0
  %2109 = vmatprep.subr.bf16.mxu0 0
  %2110 = vmatpush1.bf16.msra.mxu0 0
  %2111 = vmatprep.subr.bf16.mxu0 0
  %2112 = vmatpush1.bf16.msra.mxu0 0
  %2113 = vmatprep.mubr.bf16.mxu0 %v2038
  %2114 = vmatmul.mubr.bf16.gmra.mrb[0].mxu0 %v381
  %v2115 = vpop.f32.mrb[0].mxu0
  %v2116 = vadd.f32 %v2075, %v2115
  %v2117 = vpop.f32.mrb[0].mxu0
  %v2118 = vadd.f32 %v2077, %v2117
  %v2119 = vpop.f32.mrb[0].mxu0
  %v2120 = vpop.f32.mrb[0].mxu0
  %2121 = vdwg.mxu0
  %2122 = vmatprep.subr.bf16.mxu0 %v1389
  %2123 = vmatpush1.bf16.msra.mxu0 %v1388
  %2124 = vmatprep.subr.bf16.mxu0 %v1402
  %2125 = vmatpush1.bf16.msra.mxu0 %v1401
  %2126 = vmatprep.subr.bf16.mxu0 %v1415
  %2127 = vmatpush1.bf16.msra.mxu0 %v1414
  %2128 = vmatprep.subr.bf16.mxu0 %v1428
  %2129 = vmatpush1.bf16.msra.mxu0 %v1427
  %2130 = vmatprep.subr.bf16.mxu0 %v1441
  %2131 = vmatpush1.bf16.msra.mxu0 %v1440
  %2132 = vmatprep.subr.bf16.mxu0 %v1454
  %2133 = vmatpush1.bf16.msra.mxu0 %v1453
  %2134 = vmatprep.subr.bf16.mxu0 %v1467
  %2135 = vmatpush1.bf16.msra.mxu0 %v1466
  %2136 = vmatprep.subr.bf16.mxu0 %v1480
  %2137 = vmatpush1.bf16.msra.mxu0 %v1479
  %2138 = vmatprep.subr.bf16.mxu0 %v1493
  %2139 = vmatpush1.bf16.msra.mxu0 %v1492
  %2140 = vmatprep.subr.bf16.mxu0 %v1506
  %2141 = vmatpush1.bf16.msra.mxu0 %v1505
  %2142 = vmatprep.subr.bf16.mxu0 %v1519
  %2143 = vmatpush1.bf16.msra.mxu0 %v1518
  %2144 = vmatprep.subr.bf16.mxu0 %v1532
  %2145 = vmatpush1.bf16.msra.mxu0 %v1531
  %2146 = vmatprep.subr.bf16.mxu0 %v1545
  %2147 = vmatpush1.bf16.msra.mxu0 %v1544
  %2148 = vmatprep.subr.bf16.mxu0 %v1558
  %2149 = vmatpush1.bf16.msra.mxu0 %v1557
  %2150 = vmatprep.subr.bf16.mxu0 %v1571
  %2151 = vmatpush1.bf16.msra.mxu0 %v1570
  %2152 = vmatprep.subr.bf16.mxu0 %v1584
  %2153 = vmatpush1.bf16.msra.mxu0 %v1583
  %2154 = vmatprep.mubr.bf16.mxu0 %v380
  %2155 = vmatmul.mubr.bf16.gmra.mrb[0].mxu0 %v379
  %v2156 = vpop.f32.mrb[0].mxu0
  %v2157 = vadd.f32 %v371, %v2156
  %v2158 = vpop.f32.mrb[0].mxu0
  %v2159 = vadd.f32 %v371, %v2158
  %v2160 = vpop.f32.mrb[0].mxu0
  %v2161 = vpop.f32.mrb[0].mxu0
  %2162 = vdwg.mxu0
  %2163 = vmatprep.subr.bf16.mxu0 %v1597
  %2164 = vmatpush1.bf16.msra.mxu0 %v1596
  %2165 = vmatprep.subr.bf16.mxu0 %v1610
  %2166 = vmatpush1.bf16.msra.mxu0 %v1609
  %2167 = vmatprep.subr.bf16.mxu0 %v1623
  %2168 = vmatpush1.bf16.msra.mxu0 %v1622
  %2169 = vmatprep.subr.bf16.mxu0 %v1636
  %2170 = vmatpush1.bf16.msra.mxu0 %v1635
  %2171 = vmatprep.subr.bf16.mxu0 %v1649
  %2172 = vmatpush1.bf16.msra.mxu0 %v1648
  %2173 = vmatprep.subr.bf16.mxu0 %v1662
  %2174 = vmatpush1.bf16.msra.mxu0 %v1661
  %2175 = vmatprep.subr.bf16.mxu0 %v1675
  %2176 = vmatpush1.bf16.msra.mxu0 %v1674
  %2177 = vmatprep.subr.bf16.mxu0 %v1688
  %2178 = vmatpush1.bf16.msra.mxu0 %v1687
  %2179 = vmatprep.subr.bf16.mxu0 %v1701
  %2180 = vmatpush1.bf16.msra.mxu0 %v1700
  %2181 = vmatprep.subr.bf16.mxu0 0
  %2182 = vmatpush1.bf16.msra.mxu0 0
  %2183 = vmatprep.subr.bf16.mxu0 0
  %2184 = vmatpush1.bf16.msra.mxu0 0
  %2185 = vmatprep.subr.bf16.mxu0 0
  %2186 = vmatpush1.bf16.msra.mxu0 0
  %2187 = vmatprep.subr.bf16.mxu0 0
  %2188 = vmatpush1.bf16.msra.mxu0 0
  %2189 = vmatprep.subr.bf16.mxu0 0
  %2190 = vmatpush1.bf16.msra.mxu0 0
  %2191 = vmatprep.subr.bf16.mxu0 0
  %2192 = vmatpush1.bf16.msra.mxu0 0
  %2193 = vmatprep.subr.bf16.mxu0 0
  %2194 = vmatpush1.bf16.msra.mxu0 0
  %2195 = vmatprep.mubr.bf16.mxu0 %v2038
  %2196 = vmatmul.mubr.bf16.gmra.mrb[0].mxu0 %v381
  %v2197 = vpop.f32.mrb[0].mxu0
  %v2198 = vadd.f32 %v2157, %v2197
  %v2199 = vpop.f32.mrb[0].mxu0
  %v2200 = vadd.f32 %v2159, %v2199
  %v2201 = vpop.f32.mrb[0].mxu0
  %v2202 = vpop.f32.mrb[0].mxu0
  %2203 = vdwg.mxu0
  %2204 = vmatprep.subr.bf16.mxu0 %v1391
  %2205 = vmatpush1.bf16.msra.mxu0 %v1390
  %2206 = vmatprep.subr.bf16.mxu0 %v1404
  %2207 = vmatpush1.bf16.msra.mxu0 %v1403
  %2208 = vmatprep.subr.bf16.mxu0 %v1417
  %2209 = vmatpush1.bf16.msra.mxu0 %v1416
  %2210 = vmatprep.subr.bf16.mxu0 %v1430
  %2211 = vmatpush1.bf16.msra.mxu0 %v1429
  %2212 = vmatprep.subr.bf16.mxu0 %v1443
  %2213 = vmatpush1.bf16.msra.mxu0 %v1442
  %2214 = vmatprep.subr.bf16.mxu0 %v1456
  %2215 = vmatpush1.bf16.msra.mxu0 %v1455
  %2216 = vmatprep.subr.bf16.mxu0 %v1469
  %2217 = vmatpush1.bf16.msra.mxu0 %v1468
  %2218 = vmatprep.subr.bf16.mxu0 %v1482
  %2219 = vmatpush1.bf16.msra.mxu0 %v1481
  %2220 = vmatprep.subr.bf16.mxu0 %v1495
  %2221 = vmatpush1.bf16.msra.mxu0 %v1494
  %2222 = vmatprep.subr.bf16.mxu0 %v1508
  %2223 = vmatpush1.bf16.msra.mxu0 %v1507
  %2224 = vmatprep.subr.bf16.mxu0 %v1521
  %2225 = vmatpush1.bf16.msra.mxu0 %v1520
  %2226 = vmatprep.subr.bf16.mxu0 %v1534
  %2227 = vmatpush1.bf16.msra.mxu0 %v1533
  %2228 = vmatprep.subr.bf16.mxu0 %v1547
  %2229 = vmatpush1.bf16.msra.mxu0 %v1546
  %2230 = vmatprep.subr.bf16.mxu0 %v1560
  %2231 = vmatpush1.bf16.msra.mxu0 %v1559
  %2232 = vmatprep.subr.bf16.mxu0 %v1573
  %2233 = vmatpush1.bf16.msra.mxu0 %v1572
  %2234 = vmatprep.subr.bf16.mxu0 %v1586
  %2235 = vmatpush1.bf16.msra.mxu0 %v1585
  %2236 = vmatprep.mubr.bf16.mxu0 %v380
  %2237 = vmatmul.mubr.bf16.gmra.mrb[0].mxu0 %v379
  %v2238 = vpop.f32.mrb[0].mxu0
  %v2239 = vadd.f32 %v371, %v2238
  %v2240 = vpop.f32.mrb[0].mxu0
  %v2241 = vadd.f32 %v371, %v2240
  %v2242 = vpop.f32.mrb[0].mxu0
  %v2243 = vpop.f32.mrb[0].mxu0
  %2244 = vdwg.mxu0
  %2245 = vmatprep.subr.bf16.mxu0 %v1599
  %2246 = vmatpush1.bf16.msra.mxu0 %v1598
  %2247 = vmatprep.subr.bf16.mxu0 %v1612
  %2248 = vmatpush1.bf16.msra.mxu0 %v1611
  %2249 = vmatprep.subr.bf16.mxu0 %v1625
  %2250 = vmatpush1.bf16.msra.mxu0 %v1624
  %2251 = vmatprep.subr.bf16.mxu0 %v1638
  %2252 = vmatpush1.bf16.msra.mxu0 %v1637
  %2253 = vmatprep.subr.bf16.mxu0 %v1651
  %2254 = vmatpush1.bf16.msra.mxu0 %v1650
  %2255 = vmatprep.subr.bf16.mxu0 %v1664
  %2256 = vmatpush1.bf16.msra.mxu0 %v1663
  %2257 = vmatprep.subr.bf16.mxu0 %v1677
  %2258 = vmatpush1.bf16.msra.mxu0 %v1676
  %2259 = vmatprep.subr.bf16.mxu0 %v1690
  %2260 = vmatpush1.bf16.msra.mxu0 %v1689
  %2261 = vmatprep.subr.bf16.mxu0 %v1703
  %2262 = vmatpush1.bf16.msra.mxu0 %v1702
  %2263 = vmatprep.subr.bf16.mxu0 0
  %2264 = vmatpush1.bf16.msra.mxu0 0
  %2265 = vmatprep.subr.bf16.mxu0 0
  %2266 = vmatpush1.bf16.msra.mxu0 0
  %2267 = vmatprep.subr.bf16.mxu0 0
  %2268 = vmatpush1.bf16.msra.mxu0 0
  %2269 = vmatprep.subr.bf16.mxu0 0
  %2270 = vmatpush1.bf16.msra.mxu0 0
  %2271 = vmatprep.subr.bf16.mxu0 0
  %2272 = vmatpush1.bf16.msra.mxu0 0
  %2273 = vmatprep.subr.bf16.mxu0 0
  %2274 = vmatpush1.bf16.msra.mxu0 0
  %2275 = vmatprep.subr.bf16.mxu0 0
  %2276 = vmatpush1.bf16.msra.mxu0 0
  %2277 = vmatprep.mubr.bf16.mxu0 %v2038
  %2278 = vmatmul.mubr.bf16.gmra.mrb[0].mxu0 %v381
  %v2279 = vpop.f32.mrb[0].mxu0
  %v2280 = vadd.f32 %v2239, %v2279
  %v2281 = vpop.f32.mrb[0].mxu0
  %v2282 = vadd.f32 %v2241, %v2281
  %v2283 = vpop.f32.mrb[0].mxu0
  %v2284 = vpop.f32.mrb[0].mxu0
  %2285 = vdwg.mxu0
  %2286 = vmatprep.subr.bf16.mxu0 %v1393
  %2287 = vmatpush1.bf16.msra.mxu0 %v1392
  %2288 = vmatprep.subr.bf16.mxu0 %v1406
  %2289 = vmatpush1.bf16.msra.mxu0 %v1405
  %2290 = vmatprep.subr.bf16.mxu0 %v1419
  %2291 = vmatpush1.bf16.msra.mxu0 %v1418
  %2292 = vmatprep.subr.bf16.mxu0 %v1432
  %2293 = vmatpush1.bf16.msra.mxu0 %v1431
  %2294 = vmatprep.subr.bf16.mxu0 %v1445
  %2295 = vmatpush1.bf16.msra.mxu0 %v1444
  %2296 = vmatprep.subr.bf16.mxu0 %v1458
  %2297 = vmatpush1.bf16.msra.mxu0 %v1457
  %2298 = vmatprep.subr.bf16.mxu0 %v1471
  %2299 = vmatpush1.bf16.msra.mxu0 %v1470
  %2300 = vmatprep.subr.bf16.mxu0 %v1484
  %2301 = vmatpush1.bf16.msra.mxu0 %v1483
  %2302 = vmatprep.subr.bf16.mxu0 %v1497
  %2303 = vmatpush1.bf16.msra.mxu0 %v1496
  %2304 = vmatprep.subr.bf16.mxu0 %v1510
  %2305 = vmatpush1.bf16.msra.mxu0 %v1509
  %2306 = vmatprep.subr.bf16.mxu0 %v1523
  %2307 = vmatpush1.bf16.msra.mxu0 %v1522
  %2308 = vmatprep.subr.bf16.mxu0 %v1536
  %2309 = vmatpush1.bf16.msra.mxu0 %v1535
  %2310 = vmatprep.subr.bf16.mxu0 %v1549
  %2311 = vmatpush1.bf16.msra.mxu0 %v1548
  %2312 = vmatprep.subr.bf16.mxu0 %v1562
  %2313 = vmatpush1.bf16.msra.mxu0 %v1561
  %2314 = vmatprep.subr.bf16.mxu0 %v1575
  %2315 = vmatpush1.bf16.msra.mxu0 %v1574
  %2316 = vmatprep.subr.bf16.mxu0 %v1588
  %2317 = vmatpush1.bf16.msra.mxu0 %v1587
  %2318 = vmatprep.mubr.bf16.mxu0 %v380
  %2319 = vmatmul.mubr.bf16.gmra.mrb[0].mxu0 %v379
  %v2320 = vpop.f32.mrb[0].mxu0
  %v2321 = vadd.f32 %v371, %v2320
  %v2322 = vpop.f32.mrb[0].mxu0
  %v2323 = vadd.f32 %v371, %v2322
  %v2324 = vpop.f32.mrb[0].mxu0
  %v2325 = vpop.f32.mrb[0].mxu0
  %2326 = vdwg.mxu0
  %2327 = vmatprep.subr.bf16.mxu0 %v1601
  %2328 = vmatpush1.bf16.msra.mxu0 %v1600
  %2329 = vmatprep.subr.bf16.mxu0 %v1614
  %2330 = vmatpush1.bf16.msra.mxu0 %v1613
  %2331 = vmatprep.subr.bf16.mxu0 %v1627
  %2332 = vmatpush1.bf16.msra.mxu0 %v1626
  %2333 = vmatprep.subr.bf16.mxu0 %v1640
  %2334 = vmatpush1.bf16.msra.mxu0 %v1639
  %2335 = vmatprep.subr.bf16.mxu0 %v1653
  %2336 = vmatpush1.bf16.msra.mxu0 %v1652
  %2337 = vmatprep.subr.bf16.mxu0 %v1666
  %2338 = vmatpush1.bf16.msra.mxu0 %v1665
  %2339 = vmatprep.subr.bf16.mxu0 %v1679
  %2340 = vmatpush1.bf16.msra.mxu0 %v1678
  %2341 = vmatprep.subr.bf16.mxu0 %v1692
  %2342 = vmatpush1.bf16.msra.mxu0 %v1691
  %2343 = vmatprep.subr.bf16.mxu0 %v1705
  %2344 = vmatpush1.bf16.msra.mxu0 %v1704
  %2345 = vmatprep.subr.bf16.mxu0 0
  %2346 = vmatpush1.bf16.msra.mxu0 0
  %2347 = vmatprep.subr.bf16.mxu0 0
  %2348 = vmatpush1.bf16.msra.mxu0 0
  %2349 = vmatprep.subr.bf16.mxu0 0
  %2350 = vmatpush1.bf16.msra.mxu0 0
  %2351 = vmatprep.subr.bf16.mxu0 0
  %2352 = vmatpush1.bf16.msra.mxu0 0
  %2353 = vmatprep.subr.bf16.mxu0 0
  %2354 = vmatpush1.bf16.msra.mxu0 0
  %2355 = vmatprep.subr.bf16.mxu0 0
  %2356 = vmatpush1.bf16.msra.mxu0 0
  %2357 = vmatprep.subr.bf16.mxu0 0
  %2358 = vmatpush1.bf16.msra.mxu0 0
  %2359 = vmatprep.mubr.bf16.mxu0 %v2038
  %2360 = vmatmul.mubr.bf16.gmra.mrb[0].mxu0 %v381
  %v2361 = vpop.f32.mrb[0].mxu0
  %v2362 = vadd.f32 %v2321, %v2361
  %v2363 = vpop.f32.mrb[0].mxu0
  %v2364 = vadd.f32 %v2323, %v2363
  %v2365 = vpop.f32.mrb[0].mxu0
  %v2366 = vpop.f32.mrb[0].mxu0
  %2367 = vdwg.mxu0
  %2368 = vmatprep.subr.bf16.mxu0 %v1395
  %2369 = vmatpush1.bf16.msra.mxu0 %v1394
  %2370 = vmatprep.subr.bf16.mxu0 %v1408
  %2371 = vmatpush1.bf16.msra.mxu0 %v1407
  %2372 = vmatprep.subr.bf16.mxu0 %v1421
  %2373 = vmatpush1.bf16.msra.mxu0 %v1420
  %2374 = vmatprep.subr.bf16.mxu0 %v1434
  %2375 = vmatpush1.bf16.msra.mxu0 %v1433
  %2376 = vmatprep.subr.bf16.mxu0 %v1447
  %2377 = vmatpush1.bf16.msra.mxu0 %v1446
  %2378 = vmatprep.subr.bf16.mxu0 %v1460
  %2379 = vmatpush1.bf16.msra.mxu0 %v1459
  %2380 = vmatprep.subr.bf16.mxu0 %v1473
  %2381 = vmatpush1.bf16.msra.mxu0 %v1472
  %2382 = vmatprep.subr.bf16.mxu0 %v1486
  %2383 = vmatpush1.bf16.msra.mxu0 %v1485
  %2384 = vmatprep.subr.bf16.mxu0 %v1499
  %2385 = vmatpush1.bf16.msra.mxu0 %v1498
  %2386 = vmatprep.subr.bf16.mxu0 %v1512
  %2387 = vmatpush1.bf16.msra.mxu0 %v1511
  %2388 = vmatprep.subr.bf16.mxu0 %v1525
  %2389 = vmatpush1.bf16.msra.mxu0 %v1524
  %2390 = vmatprep.subr.bf16.mxu0 %v1538
  %2391 = vmatpush1.bf16.msra.mxu0 %v1537
  %2392 = vmatprep.subr.bf16.mxu0 %v1551
  %2393 = vmatpush1.bf16.msra.mxu0 %v1550
  %2394 = vmatprep.subr.bf16.mxu0 %v1564
  %2395 = vmatpush1.bf16.msra.mxu0 %v1563
  %2396 = vmatprep.subr.bf16.mxu0 %v1577
  %2397 = vmatpush1.bf16.msra.mxu0 %v1576
  %2398 = vmatprep.subr.bf16.mxu0 %v1590
  %2399 = vmatpush1.bf16.msra.mxu0 %v1589
  %2400 = vmatprep.mubr.bf16.mxu0 %v380
  %2401 = vmatmul.mubr.bf16.gmra.mrb[0].mxu0 %v379
  %v2402 = vpop.f32.mrb[0].mxu0
  %v2403 = vadd.f32 %v371, %v2402
  %v2404 = vpop.f32.mrb[0].mxu0
  %v2405 = vadd.f32 %v371, %v2404
  %v2406 = vpop.f32.mrb[0].mxu0
  %v2407 = vpop.f32.mrb[0].mxu0
  %2408 = vdwg.mxu0
  %2409 = vmatprep.subr.bf16.mxu0 %v1603
  %2410 = vmatpush1.bf16.msra.mxu0 %v1602
  %2411 = vmatprep.subr.bf16.mxu0 %v1616
  %2412 = vmatpush1.bf16.msra.mxu0 %v1615
  %2413 = vmatprep.subr.bf16.mxu0 %v1629
  %2414 = vmatpush1.bf16.msra.mxu0 %v1628
  %2415 = vmatprep.subr.bf16.mxu0 %v1642
  %2416 = vmatpush1.bf16.msra.mxu0 %v1641
  %2417 = vmatprep.subr.bf16.mxu0 %v1655
  %2418 = vmatpush1.bf16.msra.mxu0 %v1654
  %2419 = vmatprep.subr.bf16.mxu0 %v1668
  %2420 = vmatpush1.bf16.msra.mxu0 %v1667
  %2421 = vmatprep.subr.bf16.mxu0 %v1681
  %2422 = vmatpush1.bf16.msra.mxu0 %v1680
  %2423 = vmatprep.subr.bf16.mxu0 %v1694
  %2424 = vmatpush1.bf16.msra.mxu0 %v1693
  %2425 = vmatprep.subr.bf16.mxu0 %v1707
  %2426 = vmatpush1.bf16.msra.mxu0 %v1706
  %2427 = vmatprep.subr.bf16.mxu0 0
  %2428 = vmatpush1.bf16.msra.mxu0 0
  %2429 = vmatprep.subr.bf16.mxu0 0
  %2430 = vmatpush1.bf16.msra.mxu0 0
  %2431 = vmatprep.subr.bf16.mxu0 0
  %2432 = vmatpush1.bf16.msra.mxu0 0
  %2433 = vmatprep.subr.bf16.mxu0 0
  %2434 = vmatpush1.bf16.msra.mxu0 0
  %2435 = vmatprep.subr.bf16.mxu0 0
  %2436 = vmatpush1.bf16.msra.mxu0 0
  %2437 = vmatprep.subr.bf16.mxu0 0
  %2438 = vmatpush1.bf16.msra.mxu0 0
  %2439 = vmatprep.subr.bf16.mxu0 0
  %2440 = vmatpush1.bf16.msra.mxu0 0
  %2441 = vmatprep.mubr.bf16.mxu0 %v2038
  %2442 = vmatmul.mubr.bf16.gmra.mrb[0].mxu0 %v381
  %v2443 = vpop.f32.mrb[0].mxu0
  %v2444 = vadd.f32 %v2403, %v2443
  %v2445 = vpop.f32.mrb[0].mxu0
  %v2446 = vadd.f32 %v2405, %v2445
  %v2447 = vpop.f32.mrb[0].mxu0
  %v2448 = vpop.f32.mrb[0].mxu0
  %2449 = vdwg.mxu0
  %2450 = vmatprep.subr.bf16.mxu0 %v1397
  %2451 = vmatpush1.bf16.msra.mxu0 %v1396
  %2452 = vmatprep.subr.bf16.mxu0 %v1410
  %2453 = vmatpush1.bf16.msra.mxu0 %v1409
  %2454 = vmatprep.subr.bf16.mxu0 %v1423
  %2455 = vmatpush1.bf16.msra.mxu0 %v1422
  %2456 = vmatprep.subr.bf16.mxu0 %v1436
  %2457 = vmatpush1.bf16.msra.mxu0 %v1435
  %2458 = vmatprep.subr.bf16.mxu0 %v1449
  %2459 = vmatpush1.bf16.msra.mxu0 %v1448
  %2460 = vmatprep.subr.bf16.mxu0 %v1462
  %2461 = vmatpush1.bf16.msra.mxu0 %v1461
  %2462 = vmatprep.subr.bf16.mxu0 %v1475
  %2463 = vmatpush1.bf16.msra.mxu0 %v1474
  %2464 = vmatprep.subr.bf16.mxu0 %v1488
  %2465 = vmatpush1.bf16.msra.mxu0 %v1487
  %2466 = vmatprep.subr.bf16.mxu0 %v1501
  %2467 = vmatpush1.bf16.msra.mxu0 %v1500
  %2468 = vmatprep.subr.bf16.mxu0 %v1514
  %2469 = vmatpush1.bf16.msra.mxu0 %v1513
  %2470 = vmatprep.subr.bf16.mxu0 %v1527
  %2471 = vmatpush1.bf16.msra.mxu0 %v1526
  %2472 = vmatprep.subr.bf16.mxu0 %v1540
  %2473 = vmatpush1.bf16.msra.mxu0 %v1539
  %2474 = vmatprep.subr.bf16.mxu0 %v1553
  %2475 = vmatpush1.bf16.msra.mxu0 %v1552
  %2476 = vmatprep.subr.bf16.mxu0 %v1566
  %2477 = vmatpush1.bf16.msra.mxu0 %v1565
  %2478 = vmatprep.subr.bf16.mxu0 %v1579
  %2479 = vmatpush1.bf16.msra.mxu0 %v1578
  %2480 = vmatprep.subr.bf16.mxu0 %v1592
  %2481 = vmatpush1.bf16.msra.mxu0 %v1591
  %2482 = vmatprep.mubr.bf16.mxu0 %v380
  %2483 = vmatmul.mubr.bf16.gmra.mrb[0].mxu0 %v379
  %v2484 = vpop.f32.mrb[0].mxu0
  %v2485 = vadd.f32 %v371, %v2484
  %v2486 = vpop.f32.mrb[0].mxu0
  %v2487 = vadd.f32 %v371, %v2486
  %v2488 = vpop.f32.mrb[0].mxu0
  %v2489 = vpop.f32.mrb[0].mxu0
  %2490 = vdwg.mxu0
  %2491 = vmatprep.subr.bf16.mxu0 %v1605
  %2492 = vmatpush1.bf16.msra.mxu0 %v1604
  %2493 = vmatprep.subr.bf16.mxu0 %v1618
  %2494 = vmatpush1.bf16.msra.mxu0 %v1617
  %2495 = vmatprep.subr.bf16.mxu0 %v1631
  %2496 = vmatpush1.bf16.msra.mxu0 %v1630
  %2497 = vmatprep.subr.bf16.mxu0 %v1644
  %2498 = vmatpush1.bf16.msra.mxu0 %v1643
  %2499 = vmatprep.subr.bf16.mxu0 %v1657
  %2500 = vmatpush1.bf16.msra.mxu0 %v1656
  %2501 = vmatprep.subr.bf16.mxu0 %v1670
  %2502 = vmatpush1.bf16.msra.mxu0 %v1669
  %2503 = vmatprep.subr.bf16.mxu0 %v1683
  %2504 = vmatpush1.bf16.msra.mxu0 %v1682
  %2505 = vmatprep.subr.bf16.mxu0 %v1696
  %2506 = vmatpush1.bf16.msra.mxu0 %v1695
  %2507 = vmatprep.subr.bf16.mxu0 %v1709
  %2508 = vmatpush1.bf16.msra.mxu0 %v1708
  %2509 = vmatprep.subr.bf16.mxu0 0
  %2510 = vmatpush1.bf16.msra.mxu0 0
  %2511 = vmatprep.subr.bf16.mxu0 0
  %2512 = vmatpush1.bf16.msra.mxu0 0
  %2513 = vmatprep.subr.bf16.mxu0 0
  %2514 = vmatpush1.bf16.msra.mxu0 0
  %2515 = vmatprep.subr.bf16.mxu0 0
  %2516 = vmatpush1.bf16.msra.mxu0 0
  %2517 = vmatprep.subr.bf16.mxu0 0
  %2518 = vmatpush1.bf16.msra.mxu0 0
  %2519 = vmatprep.subr.bf16.mxu0 0
  %2520 = vmatpush1.bf16.msra.mxu0 0
  %2521 = vmatprep.subr.bf16.mxu0 0
  %2522 = vmatpush1.bf16.msra.mxu0 0
  %2523 = vmatprep.mubr.bf16.mxu0 %v2038
  %2524 = vmatmul.mubr.bf16.gmra.mrb[0].mxu0 %v381
  %v2525 = vpop.f32.mrb[0].mxu0
  %v2526 = vadd.f32 %v2485, %v2525
  %v2527 = vpop.f32.mrb[0].mxu0
  %v2528 = vadd.f32 %v2487, %v2527
  %v2529 = vpop.f32.mrb[0].mxu0
  %v2530 = vpop.f32.mrb[0].mxu0
  %2531 = vdwg.mxu0
  %2532 = vmatprep.subr.bf16.mxu0 0
  %2533 = vmatpush1.bf16.msra.mxu0 %v1398
  %2534 = vmatprep.subr.bf16.mxu0 0
  %2535 = vmatpush1.bf16.msra.mxu0 %v1411
  %2536 = vmatprep.subr.bf16.mxu0 0
  %2537 = vmatpush1.bf16.msra.mxu0 %v1424
  %2538 = vmatprep.subr.bf16.mxu0 0
  %2539 = vmatpush1.bf16.msra.mxu0 %v1437
  %2540 = vmatprep.subr.bf16.mxu0 0
  %2541 = vmatpush1.bf16.msra.mxu0 %v1450
  %2542 = vmatprep.subr.bf16.mxu0 0
  %2543 = vmatpush1.bf16.msra.mxu0 %v1463
  %2544 = vmatprep.subr.bf16.mxu0 0
  %2545 = vmatpush1.bf16.msra.mxu0 %v1476
  %2546 = vmatprep.subr.bf16.mxu0 0
  %2547 = vmatpush1.bf16.msra.mxu0 %v1489
  %2548 = vmatprep.subr.bf16.mxu0 0
  %2549 = vmatpush1.bf16.msra.mxu0 %v1502
  %2550 = vmatprep.subr.bf16.mxu0 0
  %2551 = vmatpush1.bf16.msra.mxu0 %v1515
  %2552 = vmatprep.subr.bf16.mxu0 0
  %2553 = vmatpush1.bf16.msra.mxu0 %v1528
  %2554 = vmatprep.subr.bf16.mxu0 0
  %2555 = vmatpush1.bf16.msra.mxu0 %v1541
  %2556 = vmatprep.subr.bf16.mxu0 0
  %2557 = vmatpush1.bf16.msra.mxu0 %v1554
  %2558 = vmatprep.subr.bf16.mxu0 0
  %2559 = vmatpush1.bf16.msra.mxu0 %v1567
  %2560 = vmatprep.subr.bf16.mxu0 0
  %2561 = vmatpush1.bf16.msra.mxu0 %v1580
  %2562 = vmatprep.subr.bf16.mxu0 0
  %2563 = vmatpush1.bf16.msra.mxu0 %v1593
  %2564 = vmatprep.mubr.bf16.mxu0 %v380
  %2565 = vmatmul.mubr.bf16.gmra.mrb[0].mxu0 %v379
  %v2566 = vpop.f32.mrb[0].mxu0
  %v2567 = vadd.f32 %v371, %v2566
  %v2568 = vpop.f32.mrb[0].mxu0
  %v2569 = vpop.f32.mrb[0].mxu0
  %v2570 = vpop.f32.mrb[0].mxu0
  %2571 = vdwg.mxu0
  %2572 = vmatprep.subr.bf16.mxu0 0
  %2573 = vmatpush1.bf16.msra.mxu0 %v1606
  %2574 = vmatprep.subr.bf16.mxu0 0
  %2575 = vmatpush1.bf16.msra.mxu0 %v1619
  %2576 = vmatprep.subr.bf16.mxu0 0
  %2577 = vmatpush1.bf16.msra.mxu0 %v1632
  %2578 = vmatprep.subr.bf16.mxu0 0
  %2579 = vmatpush1.bf16.msra.mxu0 %v1645
  %2580 = vmatprep.subr.bf16.mxu0 0
  %2581 = vmatpush1.bf16.msra.mxu0 %v1658
  %2582 = vmatprep.subr.bf16.mxu0 0
  %2583 = vmatpush1.bf16.msra.mxu0 %v1671
  %2584 = vmatprep.subr.bf16.mxu0 0
  %2585 = vmatpush1.bf16.msra.mxu0 %v1684
  %2586 = vmatprep.subr.bf16.mxu0 0
  %2587 = vmatpush1.bf16.msra.mxu0 %v1697
  %2588 = vmatprep.subr.bf16.mxu0 0
  %2589 = vmatpush1.bf16.msra.mxu0 %v1710
  %2590 = vmatprep.subr.bf16.mxu0 0
  %2591 = vmatpush1.bf16.msra.mxu0 0
  %2592 = vmatprep.subr.bf16.mxu0 0
  %2593 = vmatpush1.bf16.msra.mxu0 0
  %2594 = vmatprep.subr.bf16.mxu0 0
  %2595 = vmatpush1.bf16.msra.mxu0 0
  %2596 = vmatprep.subr.bf16.mxu0 0
  %2597 = vmatpush1.bf16.msra.mxu0 0
  %2598 = vmatprep.subr.bf16.mxu0 0
  %2599 = vmatpush1.bf16.msra.mxu0 0
  %2600 = vmatprep.subr.bf16.mxu0 0
  %2601 = vmatpush1.bf16.msra.mxu0 0
  %2602 = vmatprep.subr.bf16.mxu0 0
  %2603 = vmatpush1.bf16.msra.mxu0 0
  %2604 = vmatprep.mubr.bf16.mxu0 %v2038
  %2605 = vmatmul.mubr.bf16.gmra.mrb[0].mxu0 %v381
  %v2606 = vpop.f32.mrb[0].mxu0
  %v2607 = vadd.f32 %v2567, %v2606
  %v2608 = vpop.f32.mrb[0].mxu0
  %v2609 = vpop.f32.mrb[0].mxu0
  %v2610 = vpop.f32.mrb[0].mxu0
  %2611 = vdwg.mxu0
  %v2612 = vmax.f32 %v2116, 0.0
  %v2613 = vmax.f32 %v2118, 0.0
  %v2614 = vmax.f32 %v2198, 0.0
  %v2615 = vmax.f32 %v2200, 0.0
  %v2616 = vmax.f32 %v2280, 0.0
  %v2617 = vmax.f32 %v2282, 0.0
  %v2618 = vmax.f32 %v2362, 0.0
  %v2619 = vmax.f32 %v2364, 0.0
  %v2620 = vmax.f32 %v2444, 0.0
  %v2621 = vmax.f32 %v2446, 0.0
  %v2622 = vmax.f32 %v2526, 0.0
  %v2623 = vmax.f32 %v2528, 0.0
  %v2624 = vmax.f32 %v2607, 0.0
  %2625 = vst [vmem:[%s3] sm:$0x3f] %v2612
  %2626 = vst [vmem:[%s3 + $0x8] sm:$0x3f] %v2613
  %2627 = vst [vmem:[%s3 + $0x10] sm:$0x3f] %v2614
  %2628 = vst [vmem:[%s3 + $0x18] sm:$0x3f] %v2615
  %2629 = vst [vmem:[%s3 + $0x20] sm:$0x3f] %v2616
  %2630 = vst [vmem:[%s3 + $0x28] sm:$0x3f] %v2617
  %2631 = vst [vmem:[%s3 + $0x30] sm:$0x3f] %v2618
  %2632 = vst [vmem:[%s3 + $0x38] sm:$0x3f] %v2619
  %2633 = vst [vmem:[%s3 + $0x40] sm:$0x3f] %v2620
  %2634 = vst [vmem:[%s3 + $0x48] sm:$0x3f] %v2621
  %2635 = vst [vmem:[%s3 + $0x50] sm:$0x3f] %v2622
  %2636 = vst [vmem:[%s3 + $0x58] sm:$0x3f] %v2623
  %vm2637 = vcmask 259072
  %2638 = vst.msk [vmem:[%s3 + $0x60] sm:$0x3f] %vm2637, %v2624
  // Predicated region
  $region14: #{forward.8} parent=0 // pred_check
    _
  $region15: #{forward.8} parent=0 // pred_check_branch
    %2640 = sbr.rel (0) target = $region17
  $region16: #{forward.8} parent=0 // pred_region
    _
  $region17: #{forward.8} parent=0 // pred_fallthru
    _
  // Predicated region
  $region18: #{forward.8} parent=0 // pred_check
    _
  $region19: #{forward.8} parent=0 // pred_check_branch
    %2642 = sbr.rel (0) target = $region21
  $region20: #{forward.8} parent=0 // pred_region
    _
  $region21: #{forward.8} parent=0 // pred_fallthru
    _

// kernel: forward.9
$region0: #{forward.9}
  #allocation0 [shape = 'u32[]', space=smem, size = 0x4, offset = 0x4, fixed_abs, tag = 'smem constant byte address 0x4 - core index']
  #allocation1 [shape = 'u32[144,128]{1,0:T(1,128)}', space=vmem, size = 0x12000, scoped, tag = 'internal scratch']
  %s0 = inlined_call_operand.vmem [shape: bf16[3,150], index: 0, kind: input, shape index: {}]
  %s1 = inlined_call_operand.vmem [shape: bf16[150,2048], index: 1, kind: input, shape index: {}]
  %s2 = inlined_call_operand.vmem [shape: f32[3,1], index: 2, kind: input, shape index: {}]
  %s3 = inlined_call_operand.vmem [shape: f32[3,2048], index: 3, kind: output, shape index: {}]
  %s4 = sld [smem:[#allocation0]]
  $region68: #{forward.9} parent=0
    _
  %s6 = ssub.s32 1, %s4
  %s7 = scalar_select 0, %s6, %s4
  $region1: #{forward.9} parent=0
    #allocation2 [shape = 'u8[311296]{0}', space=vmem, size = 0x4c000, scoped, tag = 'input window, operand 1']
    loop: start=0, step=1, limit=6
    $region2: #{forward.9} parent=1 // loop_pre_header
      _
    $region3: #{forward.9} parent=1 // loop_header
      %s9 = sphi 0, %s13
      %p10 = scmp.ge.s32.totalorder %s9, 6
      %s17 = sphi 0, %s17
      %s19 = sphi 0, %s17
      %s20 = sphi 0, %s19
      %s34 = sphi 0, %s20
      %s40 = sphi 0, %s42
      %s43 = sphi 0, %s40
      %s44 = sphi 0, %s43
      %s60 = sphi 0, %s44
      %s64 = sphi 0, %s64
      %s66 = sphi 0, %s64
      %s67 = sphi 0, %s66
      %s81 = sphi 0, %s67
      %s87 = sphi 0, %s89
      %s90 = sphi 0, %s87
      %s91 = sphi 0, %s90
      %s107 = sphi 0, %s91
    $region4: #{forward.9} parent=1 // loop_header_branch
      %12 = sbr.rel (%p10) target = $region8
    $region5: #{forward.9} parent=1 // loop_body
      %s14 = ssub.s32 %s9, 1
      %s15 = ssub.s32 %s9, 2
      %s16 = sadd.s32 %s9, 1
      %s18 = sadd.s32 %s17, 1
      %p21 = scmp.eq.s32.totalorder %s9, 3
      %p22 = scmp.ne.s32.totalorder %s17, %s19
      %p23 = scmp.eq.s32.totalorder %s9, 0
      %p24 = por %p22, %p23
      %p25 = scmp.ne.s32.totalorder %s17, %s19
      %p26 = scmp.eq.s32.totalorder %s14, 3
      %p27 = por %p25, %p26
      %p28 = scmp.ne.s32.totalorder %s19, %s20
      %p29 = scmp.eq.s32.totalorder %s14, 0
      %p30 = por %p28, %p29
      %p31 = scmp.ne.s32.totalorder %s19, %s20
      %p32 = scmp.eq.s32.totalorder %s15, 3
      %p33 = por %p31, %p32
      %p35 = scmp.ne.s32.totalorder %s20, %s34
      %p36 = scmp.eq.s32.totalorder %s15, 0
      %p37 = por %p35, %p36
      %s38 = ssub.s32 %s9, %s16
      %p39 = scmp.eq.s32.totalorder %s38, 0
      %s41 = sadd.s32 %s40, 1
      %s42 = scalar_select %p39, %s40, %s41
      %p45 = pneg %p39
      %p46 = scmp.eq.s32.totalorder %s9, 3
      %p47 = por %p45, %p46
      %p48 = scmp.ne.s32.totalorder %s40, %s43
      %p49 = scmp.eq.s32.totalorder %s9, 0
      %p50 = por %p48, %p49
      %p51 = scmp.ne.s32.totalorder %s40, %s43
      %p52 = scmp.eq.s32.totalorder %s14, 3
      %p53 = por %p51, %p52
      %p54 = scmp.ne.s32.totalorder %s43, %s44
      %p55 = scmp.eq.s32.totalorder %s14, 0
      %p56 = por %p54, %p55
      %p57 = scmp.ne.s32.totalorder %s43, %s44
      %p58 = scmp.eq.s32.totalorder %s15, 3
      %p59 = por %p57, %p58
      %p61 = scmp.ne.s32.totalorder %s44, %s60
      %p62 = scmp.eq.s32.totalorder %s15, 0
      %p63 = por %p61, %p62
      %s65 = sadd.s32 %s64, 1
      %p68 = scmp.eq.s32.totalorder %s9, 3
      %p69 = scmp.ne.s32.totalorder %s64, %s66
      %p70 = scmp.eq.s32.totalorder %s9, 0
      %p71 = por %p69, %p70
      %p72 = scmp.ne.s32.totalorder %s64, %s66
      %p73 = scmp.eq.s32.totalorder %s14, 3
      %p74 = por %p72, %p73
      %p75 = scmp.ne.s32.totalorder %s66, %s67
      %p76 = scmp.eq.s32.totalorder %s14, 0
      %p77 = por %p75, %p76
      %p78 = scmp.ne.s32.totalorder %s66, %s67
      %p79 = scmp.eq.s32.totalorder %s15, 3
      %p80 = por %p78, %p79
      %p82 = scmp.ne.s32.totalorder %s67, %s81
      %p83 = scmp.eq.s32.totalorder %s15, 0
      %p84 = por %p82, %p83
      %s85 = ssub.s32 %s9, %s16
      %p86 = scmp.eq.s32.totalorder %s85, 0
      %s88 = sadd.s32 %s87, 1
      %s89 = scalar_select %p86, %s87, %s88
      %p92 = pneg %p86
      %p93 = scmp.eq.s32.totalorder %s9, 3
      %p94 = por %p92, %p93
      %p95 = scmp.ne.s32.totalorder %s87, %s90
      %p96 = scmp.eq.s32.totalorder %s9, 0
      %p97 = por %p95, %p96
      %p98 = scmp.ne.s32.totalorder %s87, %s90
      %p99 = scmp.eq.s32.totalorder %s14, 3
      %p100 = por %p98, %p99
      %p101 = scmp.ne.s32.totalorder %s90, %s91
      %p102 = scmp.eq.s32.totalorder %s14, 0
      %p103 = por %p101, %p102
      %p104 = scmp.ne.s32.totalorder %s90, %s91
      %p105 = scmp.eq.s32.totalorder %s15, 3
      %p106 = por %p104, %p105
      %p108 = scmp.ne.s32.totalorder %s91, %s107
      %p109 = scmp.eq.s32.totalorder %s15, 0
      %p110 = por %p108, %p109
      %p111 = scmp.le.s32.totalorder 1, %s9
      %p112 = scmp.lt.s32.totalorder %s9, 5
      %p113 = pnand %p111, %p112
      %p114 = pneg %p113
      // Predicated region
      $region9: #{forward.9} parent=5 // pred_check
        _
      $region10: #{forward.9} parent=5 // pred_check_branch
        %116 = sbr.rel (%p113) target = $region12
      $region11: #{forward.9} parent=5 // pred_region
        %s117 = ssub.s32 %s9, 1
        // Predicated region
        $region13: #{forward.9} parent=11 // pred_check
          %p118 = pneg %p30
        $region14: #{forward.9} parent=11 // pred_check_branch
          %120 = sbr.rel (%p118) target = $region16
        $region15: #{forward.9} parent=11 // pred_region
          _
        $region16: #{forward.9} parent=11 // pred_fallthru
          _
        // Predicated region
        $region17: #{forward.9} parent=11 // pred_check
          %p121 = pneg %p77
        $region18: #{forward.9} parent=11 // pred_check_branch
          %123 = sbr.rel (%p121) target = $region20
        $region19: #{forward.9} parent=11 // pred_region
          _
        $region20: #{forward.9} parent=11 // pred_fallthru
          _
      $region12: #{forward.9} parent=5 // pred_fallthru
        _
      %p124 = scmp.lt.s32.totalorder %s9, 4
      // Predicated region
      $region21: #{forward.9} parent=5 // pred_check
        %p125 = pneg %p124
      $region22: #{forward.9} parent=5 // pred_check_branch
        %127 = sbr.rel (%p125) target = $region24
      $region23: #{forward.9} parent=5 // pred_region
        // Predicated region
        $region25: #{forward.9} parent=23 // pred_check
          %p128 = pneg %p50
        $region26: #{forward.9} parent=23 // pred_check_branch
          %130 = sbr.rel (%p128) target = $region28
        $region27: #{forward.9} parent=23 // pred_region
          %s131 = sand.u32 %s40, 1
          %s132 = sand.u32 %s40, 1
          %s133 = smul.addr %s132, 304
          %s134 = scalar_lea.vmem [#allocation2], %s133
          %s135 = smul.u32 4, %s9
          %s136 = smul.addr %s135, 4
          %s137 = scalar_lea.vmem %s1, %s136
          // Predicated region
          $region29: #{forward.9} parent=27 // pred_check
            _
          $region30: #{forward.9} parent=27 // pred_check_branch
            %139 = sbr.rel (0) target = $region32
          $region31: #{forward.9} parent=27 // pred_region
            // Predicated region
            $region33: #{forward.9} parent=31 // pred_check
              _
            $region34: #{forward.9} parent=31 // pred_check_branch
              %141 = sbr.rel (0) target = $region36
            $region35: #{forward.9} parent=31 // pred_region
              loop: start=0, step=1, limit=1
              $region37: #{forward.9} parent=35 // loop_pre_header
                _
              $region38: #{forward.9} parent=35 // loop_header
                %s143 = sphi 0, %s147
                %p144 = scmp.ge.s32.totalorder %s143, 1
                %s148 = sphi %s137, %s137
                %s149 = sphi %s134, %s134
              $region39: #{forward.9} parent=35 // loop_header_branch
                %146 = sbr.rel (%p144) target = $region43
              $region40: #{forward.9} parent=35 // loop_body
                %v150 = vld [vmem:[%s148] sm:$0xff]
                %151 = vst [vmem:[%s149] sm:$0xff] %v150
                %v152 = vld [vmem:[%s148 + $0x8] sm:$0xff]
                %153 = vst [vmem:[%s149 + $0x8] sm:$0xff] %v152
                %v154 = vld [vmem:[%s148 + $0x40] sm:$0xff]
                %155 = vst [vmem:[%s149 + $0x10] sm:$0xff] %v154
                %v156 = vld [vmem:[%s148 + $0x48] sm:$0xff]
                %157 = vst [vmem:[%s149 + $0x18] sm:$0xff] %v156
                %v158 = vld [vmem:[%s148 + $0x80] sm:$0xff]
                %159 = vst [vmem:[%s149 + $0x20] sm:$0xff] %v158
                %v160 = vld [vmem:[%s148 + $0x88] sm:$0xff]
                %161 = vst [vmem:[%s149 + $0x28] sm:$0xff] %v160
                %v162 = vld [vmem:[%s148 + $0xc0] sm:$0xff]
                %163 = vst [vmem:[%s149 + $0x30] sm:$0xff] %v162
                %v164 = vld [vmem:[%s148 + $0xc8] sm:$0xff]
                %165 = vst [vmem:[%s149 + $0x38] sm:$0xff] %v164
                %v166 = vld [vmem:[%s148 + $0x100] sm:$0xff]
                %167 = vst [vmem:[%s149 + $0x40] sm:$0xff] %v166
                %v168 = vld [vmem:[%s148 + $0x108] sm:$0xff]
                %169 = vst [vmem:[%s149 + $0x48] sm:$0xff] %v168
                %v170 = vld [vmem:[%s148 + $0x140] sm:$0xff]
                %171 = vst [vmem:[%s149 + $0x50] sm:$0xff] %v170
                %v172 = vld [vmem:[%s148 + $0x148] sm:$0xff]
                %173 = vst [vmem:[%s149 + $0x58] sm:$0xff] %v172
                %v174 = vld [vmem:[%s148 + $0x180] sm:$0xff]
                %175 = vst [vmem:[%s149 + $0x60] sm:$0xff] %v174
                %v176 = vld [vmem:[%s148 + $0x188] sm:$0xff]
                %177 = vst [vmem:[%s149 + $0x68] sm:$0xff] %v176
                %v178 = vld [vmem:[%s148 + $0x1c0] sm:$0xff]
                %179 = vst [vmem:[%s149 + $0x70] sm:$0xff] %v178
                %v180 = vld [vmem:[%s148 + $0x1c8] sm:$0xff]
                %181 = vst [vmem:[%s149 + $0x78] sm:$0xff] %v180
                %v182 = vld [vmem:[%s148 + $0x200] sm:$0xff]
                %183 = vst [vmem:[%s149 + $0x80] sm:$0xff] %v182
                %v184 = vld [vmem:[%s148 + $0x208] sm:$0xff]
                %185 = vst [vmem:[%s149 + $0x88] sm:$0xff] %v184
                %v186 = vld [vmem:[%s148 + $0x240] sm:$0xff]
                %187 = vst [vmem:[%s149 + $0x90] sm:$0xff] %v186
                %v188 = vld [vmem:[%s148 + $0x248] sm:$0xff]
                %189 = vst [vmem:[%s149 + $0x98] sm:$0xff] %v188
                %v190 = vld [vmem:[%s148 + $0x280] sm:$0xff]
                %191 = vst [vmem:[%s149 + $0xa0] sm:$0xff] %v190
                %v192 = vld [vmem:[%s148 + $0x288] sm:$0xff]
                %193 = vst [vmem:[%s149 + $0xa8] sm:$0xff] %v192
                %v194 = vld [vmem:[%s148 + $0x2c0] sm:$0xff]
                %195 = vst [vmem:[%s149 + $0xb0] sm:$0xff] %v194
                %v196 = vld [vmem:[%s148 + $0x2c8] sm:$0xff]
                %197 = vst [vmem:[%s149 + $0xb8] sm:$0xff] %v196
                %v198 = vld [vmem:[%s148 + $0x300] sm:$0xff]
                %199 = vst [vmem:[%s149 + $0xc0] sm:$0xff] %v198
                %v200 = vld [vmem:[%s148 + $0x308] sm:$0xff]
                %201 = vst [vmem:[%s149 + $0xc8] sm:$0xff] %v200
                %v202 = vld [vmem:[%s148 + $0x340] sm:$0xff]
                %203 = vst [vmem:[%s149 + $0xd0] sm:$0xff] %v202
                %v204 = vld [vmem:[%s148 + $0x348] sm:$0xff]
                %205 = vst [vmem:[%s149 + $0xd8] sm:$0xff] %v204
                %v206 = vld [vmem:[%s148 + $0x380] sm:$0xff]
                %207 = vst [vmem:[%s149 + $0xe0] sm:$0xff] %v206
                %v208 = vld [vmem:[%s148 + $0x388] sm:$0xff]
                %209 = vst [vmem:[%s149 + $0xe8] sm:$0xff] %v208
                %v210 = vld [vmem:[%s148 + $0x3c0] sm:$0xff]
                %211 = vst [vmem:[%s149 + $0xf0] sm:$0xff] %v210
                %v212 = vld [vmem:[%s148 + $0x3c8] sm:$0xff]
                %213 = vst [vmem:[%s149 + $0xf8] sm:$0xff] %v212
                %v214 = vld [vmem:[%s148 + $0x400] sm:$0xff]
                %215 = vst [vmem:[%s149 + $0x100] sm:$0xff] %v214
                %v216 = vld [vmem:[%s148 + $0x408] sm:$0xff]
                %217 = vst [vmem:[%s149 + $0x108] sm:$0xff] %v216
                %v218 = vld [vmem:[%s148 + $0x440] sm:$0xff]
                %219 = vst [vmem:[%s149 + $0x110] sm:$0xff] %v218
                %v220 = vld [vmem:[%s148 + $0x448] sm:$0xff]
                %221 = vst [vmem:[%s149 + $0x118] sm:$0xff] %v220
                %v222 = vld [vmem:[%s148 + $0x480] sm:$0xff]
                %223 = vst [vmem:[%s149 + $0x120] sm:$0xff] %v222
                %v224 = vld [vmem:[%s148 + $0x488] sm:$0xff]
                %225 = vst [vmem:[%s149 + $0x128] sm:$0xff] %v224
              $region41: #{forward.9} parent=35 // loop_footer
                %s147 = sadd.s32 1, %s143
              $region42: #{forward.9} parent=35 // loop_footer_branch
                %142 = sbr.rel target = $region38
              $region43: #{forward.9} parent=35 // loop_exit
                _
            $region36: #{forward.9} parent=31 // pred_fallthru
              _
            // Predicated region
            $region44: #{forward.9} parent=31 // pred_check
              _
            $region45: #{forward.9} parent=31 // pred_check_branch
              %227 = sbr.rel target = $region47
            $region46: #{forward.9} parent=31 // pred_region
              _
            $region47: #{forward.9} parent=31 // pred_fallthru
              _
          $region32: #{forward.9} parent=27 // pred_fallthru
            _
          %228 = vnop
        $region28: #{forward.9} parent=23 // pred_fallthru
          _
      $region24: #{forward.9} parent=5 // pred_fallthru
        _
      %p229 = scmp.le.s32.totalorder 1, %s9
      %p230 = scmp.lt.s32.totalorder %s9, 5
      %p231 = pnand %p229, %p230
      %p232 = pneg %p231
      // Predicated region
      $region48: #{forward.9} parent=5 // pred_check
        _
      $region49: #{forward.9} parent=5 // pred_check_branch
        %234 = sbr.rel (%p231) target = $region51
      $region50: #{forward.9} parent=5 // pred_region
        %s235 = ssub.s32 %s9, 1
        %s236 = sand.u32 %s43, 1
        %s237 = sand.u32 %s43, 1
        %s238 = smul.addr %s237, 304
        %s239 = scalar_lea.vmem [#allocation2], %s238
        // Predicated region
        $region52: #{forward.9} parent=50 // pred_check
          %p240 = pneg %p56
        $region53: #{forward.9} parent=50 // pred_check_branch
          %242 = sbr.rel (%p240) target = $region55
        $region54: #{forward.9} parent=50 // pred_region
          _
        $region55: #{forward.9} parent=50 // pred_fallthru
          _
        %p243 = pneg %p30
        %p244 = pneg %p27
        %s245 = sand.u32 %s43, 1
        %s246 = sand.u32 %s43, 1
        %s247 = smul.addr %s246, 304
        %s248 = scalar_lea.vmem [#allocation2], %s247
        %p249 = pneg %p56
        %p250 = pneg %p53
        %p251 = pneg %p77
        %p252 = pneg %p74
        %p253 = pneg %p103
        %p254 = pneg %p100
        %s255 = smul.u32 4, %s14
        %p256 = scmp.lt.s32.totalorder %s255, 15
        %s257 = scalar_select %p256, %s255, 15
        %s258 = smul.addr %s257, 4
        %s259 = scalar_lea.vmem %s3, %s258
        %s260 = smul.u32 4, %s14
        %s261 = smul.u32 4, %s14
        %p262 = scmp.lt.s32.totalorder %s261, 15
        %s263 = scalar_select %p262, %s261, 15
        %s264 = smul.addr %s263, 4
        %s265 = scalar_lea.vmem %s3, %s264
        %s266 = smul.u32 4, %s14
        %v268 = vld [vmem:[%s0] sm:$0xf]
        %v269 = vld [vmem:[%s239] sm:$0xff]
        %v270 = vld [vmem:[%s239 + $0x8] sm:$0xff]
        %v271 = vld [vmem:[%s239 + $0x10] sm:$0xff]
        %v272 = vld [vmem:[%s239 + $0x18] sm:$0xff]
        %v273 = vld [vmem:[%s239 + $0x20] sm:$0xff]
        %v274 = vld [vmem:[%s239 + $0x28] sm:$0xff]
        %v275 = vld [vmem:[%s239 + $0x30] sm:$0xff]
        %v276 = vld [vmem:[%s239 + $0x38] sm:$0xff]
        %v277 = vld [vmem:[%s239 + $0x40] sm:$0xff]
        %v278 = vld [vmem:[%s239 + $0x48] sm:$0xff]
        %v279 = vld [vmem:[%s239 + $0x50] sm:$0xff]
        %v280 = vld [vmem:[%s239 + $0x58] sm:$0xff]
        %v281 = vld [vmem:[%s239 + $0x60] sm:$0xff]
        %v282 = vld [vmem:[%s239 + $0x68] sm:$0xff]
        %v283 = vld [vmem:[%s239 + $0x70] sm:$0xff]
        %v284 = vld [vmem:[%s239 + $0x78] sm:$0xff]
        %v285 = vld [vmem:[%s239 + $0x80] sm:$0xff]
        %v286 = vld [vmem:[%s239 + $0x88] sm:$0xff]
        %v287 = vld [vmem:[%s239 + $0x90] sm:$0xff]
        %v288 = vld [vmem:[%s239 + $0x98] sm:$0xff]
        %v289 = vld [vmem:[%s239 + $0xa0] sm:$0xff]
        %v290 = vld [vmem:[%s239 + $0xa8] sm:$0xff]
        %v291 = vld [vmem:[%s239 + $0xb0] sm:$0xff]
        %v292 = vld [vmem:[%s239 + $0xb8] sm:$0xff]
        %v293 = vld [vmem:[%s239 + $0xc0] sm:$0xff]
        %v294 = vld [vmem:[%s239 + $0xc8] sm:$0xff]
        %v295 = vld [vmem:[%s239 + $0xd0] sm:$0xff]
        %v296 = vld [vmem:[%s239 + $0xd8] sm:$0xff]
        %v297 = vld [vmem:[%s239 + $0xe0] sm:$0xff]
        %v298 = vld [vmem:[%s239 + $0xe8] sm:$0xff]
        %v299 = vld [vmem:[%s239 + $0xf0] sm:$0xff]
        %v300 = vld [vmem:[%s239 + $0xf8] sm:$0xff]
        %v301 = vld [vmem:[%s239 + $0x100] sm:$0xff]
        %v302 = vld [vmem:[%s239 + $0x108] sm:$0xff]
        %v303 = vld [vmem:[%s239 + $0x110] sm:$0xff]
        %v304 = vld [vmem:[%s239 + $0x118] sm:$0xff]
        %v305 = vld [vmem:[%s239 + $0x120] sm:$0x77]
        %v306 = vld [vmem:[%s239 + $0x128] sm:$0x77]
        %v307 = vld [vmem:[%s2] sm:$0x7]
        %309 = vset.pattern.permute.xlu0 0
        %310 = vperm.xlu0 %309, %v307
        %v311 = vpop.permute.xlu0 %310
        %v315 = vunpack.c.l.s4 1983009808
        %v316 = vunpack.c.0.s8 %v315
        %v317 = vlaneseq
        %v318 = vshrl.u32 %v317, 7
        %v319 = vsub.s32 %v316, %v318
        %v320 = vrot.slane %v268, %v319
        %v321 = vcombine.high %v320, %v320
        %v361 = vunpack.c.l.b16 %v269
        %v362 = vunpack.c.h.b16 %v269
        %v363 = vunpack.c.l.b16 %v270
        %v364 = vunpack.c.h.b16 %v270
        %v365 = vunpack.c.l.b16 %v271
        %v366 = vunpack.c.h.b16 %v271
        %v367 = vunpack.c.l.b16 %v272
        %v368 = vunpack.c.h.b16 %v272
        %v369 = vunpack.c.l.b16 %v273
        %v370 = vunpack.c.h.b16 %v273
        %v371 = vunpack.c.l.b16 %v274
        %v372 = vunpack.c.h.b16 %v274
        %v373 = vunpack.c.l.b16 %v275
        %v374 = vunpack.c.h.b16 %v275
        %v375 = vunpack.c.l.b16 %v276
        %v376 = vunpack.c.h.b16 %v276
        %v377 = vunpack.c.l.b16 %v277
        %v378 = vunpack.c.h.b16 %v277
        %v379 = vunpack.c.l.b16 %v278
        %v380 = vunpack.c.h.b16 %v278
        %v381 = vunpack.c.l.b16 %v279
        %v382 = vunpack.c.h.b16 %v279
        %v383 = vunpack.c.l.b16 %v280
        %v384 = vunpack.c.h.b16 %v280
        %v385 = vunpack.c.l.b16 %v281
        %v386 = vunpack.c.h.b16 %v281
        %v387 = vunpack.c.l.b16 %v282
        %v388 = vunpack.c.h.b16 %v282
        %v389 = vunpack.c.l.b16 %v283
        %v390 = vunpack.c.h.b16 %v283
        %v391 = vunpack.c.l.b16 %v284
        %v392 = vunpack.c.h.b16 %v284
        %v393 = vunpack.c.l.b16 %v285
        %v394 = vunpack.c.h.b16 %v285
        %v395 = vunpack.c.l.b16 %v286
        %v396 = vunpack.c.h.b16 %v286
        %v397 = vunpack.c.l.b16 %v287
        %v398 = vunpack.c.h.b16 %v287
        %v399 = vunpack.c.l.b16 %v288
        %v400 = vunpack.c.h.b16 %v288
        %v401 = vunpack.c.l.b16 %v289
        %v402 = vunpack.c.h.b16 %v289
        %v403 = vunpack.c.l.b16 %v290
        %v404 = vunpack.c.h.b16 %v290
        %v405 = vunpack.c.l.b16 %v291
        %v406 = vunpack.c.h.b16 %v291
        %v407 = vunpack.c.l.b16 %v292
        %v408 = vunpack.c.h.b16 %v292
        %v409 = vunpack.c.l.b16 %v293
        %v410 = vunpack.c.h.b16 %v293
        %v411 = vunpack.c.l.b16 %v294
        %v412 = vunpack.c.h.b16 %v294
        %v413 = vunpack.c.l.b16 %v295
        %v414 = vunpack.c.h.b16 %v295
        %v415 = vunpack.c.l.b16 %v296
        %v416 = vunpack.c.h.b16 %v296
        %v417 = vunpack.c.l.b16 %v297
        %v418 = vunpack.c.h.b16 %v297
        %v419 = vunpack.c.l.b16 %v298
        %v420 = vunpack.c.h.b16 %v298
        %v421 = vunpack.c.l.b16 %v299
        %v422 = vunpack.c.h.b16 %v299
        %v423 = vunpack.c.l.b16 %v300
        %v424 = vunpack.c.h.b16 %v300
        %v425 = vunpack.c.l.b16 %v301
        %v426 = vunpack.c.h.b16 %v301
        %v427 = vunpack.c.l.b16 %v302
        %v428 = vunpack.c.h.b16 %v302
        %v429 = vunpack.c.l.b16 %v303
        %v430 = vunpack.c.h.b16 %v303
        %v431 = vunpack.c.l.b16 %v304
        %v432 = vunpack.c.h.b16 %v304
        %v433 = vunpack.c.l.b16 %v305
        %v434 = vunpack.c.h.b16 %v305
        %v435 = vunpack.c.l.b16 %v306
        %v436 = vunpack.c.h.b16 %v306
        %v437 = vpack.c.b16 %v365, %v361
        %v438 = vpack.c.b16 %v366, %v362
        %v439 = vpack.c.b16 %v367, %v363
        %v440 = vpack.c.b16 %v368, %v364
        %v441 = vpack.c.b16 %v373, %v369
        %v442 = vpack.c.b16 %v374, %v370
        %v443 = vpack.c.b16 %v375, %v371
        %v444 = vpack.c.b16 %v376, %v372
        %v445 = vpack.c.b16 %v381, %v377
        %v446 = vpack.c.b16 %v382, %v378
        %v447 = vpack.c.b16 %v383, %v379
        %v448 = vpack.c.b16 %v384, %v380
        %v449 = vpack.c.b16 %v389, %v385
        %v450 = vpack.c.b16 %v390, %v386
        %v451 = vpack.c.b16 %v391, %v387
        %v452 = vpack.c.b16 %v392, %v388
        %v453 = vpack.c.b16 %v397, %v393
        %v454 = vpack.c.b16 %v398, %v394
        %v455 = vpack.c.b16 %v399, %v395
        %v456 = vpack.c.b16 %v400, %v396
        %v457 = vpack.c.b16 %v405, %v401
        %v458 = vpack.c.b16 %v406, %v402
        %v459 = vpack.c.b16 %v407, %v403
        %v460 = vpack.c.b16 %v408, %v404
        %v461 = vpack.c.b16 %v413, %v409
        %v462 = vpack.c.b16 %v414, %v410
        %v463 = vpack.c.b16 %v415, %v411
        %v464 = vpack.c.b16 %v416, %v412
        %v465 = vpack.c.b16 %v421, %v417
        %v466 = vpack.c.b16 %v422, %v418
        %v467 = vpack.c.b16 %v423, %v419
        %v468 = vpack.c.b16 %v424, %v420
        %v469 = vpack.c.b16 %v429, %v425
        %v470 = vpack.c.b16 %v430, %v426
        %v471 = vpack.c.b16 %v431, %v427
        %v472 = vpack.c.b16 %v432, %v428
        %v473 = vpack.c.b16 %v433, %v433
        %v474 = vpack.c.b16 %v434, %v434
        %v475 = vpack.c.b16 %v435, %v435
        %v476 = vpack.c.b16 %v436, %v436
        %vm513 = vcmask 179200
        %v515 = vsel %vm513, %v321, 0
        %vm517 = vcmask 1042432
        %v519 = vsel %vm517, %v473, 0
        %v522 = vsel %vm517, %v474, 0
        %v525 = vsel %vm517, %v475, 0
        %v528 = vsel %vm517, %v476, 0
        %530 = vmatprep.subr.bf16.mxu0 %v438
        %531 = vmatpush1.bf16.msra.mxu0 %v437
        %532 = vmatprep.subr.bf16.mxu0 %v442
        %533 = vmatpush1.bf16.msra.mxu0 %v441
        %534 = vmatprep.subr.bf16.mxu0 %v446
        %535 = vmatpush1.bf16.msra.mxu0 %v445
        %536 = vmatprep.subr.bf16.mxu0 %v450
        %537 = vmatpush1.bf16.msra.mxu0 %v449
        %538 = vmatprep.subr.bf16.mxu0 %v454
        %539 = vmatpush1.bf16.msra.mxu0 %v453
        %540 = vmatprep.subr.bf16.mxu0 %v458
        %541 = vmatpush1.bf16.msra.mxu0 %v457
        %542 = vmatprep.subr.bf16.mxu0 %v462
        %543 = vmatpush1.bf16.msra.mxu0 %v461
        %544 = vmatprep.subr.bf16.mxu0 %v466
        %545 = vmatpush1.bf16.msra.mxu0 %v465
        %546 = vmatprep.subr.bf16.mxu0 %v470
        %547 = vmatpush1.bf16.msra.mxu0 %v469
        %548 = vmatprep.subr.bf16.mxu0 %v522
        %549 = vmatpush1.bf16.msra.mxu0 %v519
        %550 = vmatprep.subr.bf16.mxu0 0
        %551 = vmatpush1.bf16.msra.mxu0 0
        %552 = vmatprep.subr.bf16.mxu0 0
        %553 = vmatpush1.bf16.msra.mxu0 0
        %554 = vmatprep.subr.bf16.mxu0 0
        %555 = vmatpush1.bf16.msra.mxu0 0
        %556 = vmatprep.subr.bf16.mxu0 0
        %557 = vmatpush1.bf16.msra.mxu0 0
        %558 = vmatprep.subr.bf16.mxu0 0
        %559 = vmatpush1.bf16.msra.mxu0 0
        %560 = vmatprep.subr.bf16.mxu0 0
        %561 = vmatpush1.bf16.msra.mxu0 0
        %562 = vmatprep.mubr.bf16.mxu0 %v515
        %563 = vmatmul.mubr.bf16.gmra.mrb[0].mxu0 %v320
        %v564 = vpop.f32.mrb[0].mxu0
        %v565 = vadd.f32 %v311, %v564
        %v566 = vpop.f32.mrb[0].mxu0
        %v567 = vadd.f32 %v311, %v566
        %v568 = vpop.f32.mrb[0].mxu0
        %v569 = vpop.f32.mrb[0].mxu0
        %570 = vdwg.mxu0
        %571 = vmatprep.subr.bf16.mxu0 %v440
        %572 = vmatpush1.bf16.msra.mxu0 %v439
        %573 = vmatprep.subr.bf16.mxu0 %v444
        %574 = vmatpush1.bf16.msra.mxu0 %v443
        %575 = vmatprep.subr.bf16.mxu0 %v448
        %576 = vmatpush1.bf16.msra.mxu0 %v447
        %577 = vmatprep.subr.bf16.mxu0 %v452
        %578 = vmatpush1.bf16.msra.mxu0 %v451
        %579 = vmatprep.subr.bf16.mxu0 %v456
        %580 = vmatpush1.bf16.msra.mxu0 %v455
        %581 = vmatprep.subr.bf16.mxu0 %v460
        %582 = vmatpush1.bf16.msra.mxu0 %v459
        %583 = vmatprep.subr.bf16.mxu0 %v464
        %584 = vmatpush1.bf16.msra.mxu0 %v463
        %585 = vmatprep.subr.bf16.mxu0 %v468
        %586 = vmatpush1.bf16.msra.mxu0 %v467
        %587 = vmatprep.subr.bf16.mxu0 %v472
        %588 = vmatpush1.bf16.msra.mxu0 %v471
        %589 = vmatprep.subr.bf16.mxu0 %v528
        %590 = vmatpush1.bf16.msra.mxu0 %v525
        %591 = vmatprep.subr.bf16.mxu0 0
        %592 = vmatpush1.bf16.msra.mxu0 0
        %593 = vmatprep.subr.bf16.mxu0 0
        %594 = vmatpush1.bf16.msra.mxu0 0
        %595 = vmatprep.subr.bf16.mxu0 0
        %596 = vmatpush1.bf16.msra.mxu0 0
        %597 = vmatprep.subr.bf16.mxu0 0
        %598 = vmatpush1.bf16.msra.mxu0 0
        %599 = vmatprep.subr.bf16.mxu0 0
        %600 = vmatpush1.bf16.msra.mxu0 0
        %601 = vmatprep.subr.bf16.mxu0 0
        %602 = vmatpush1.bf16.msra.mxu0 0
        %603 = vmatprep.mubr.bf16.mxu0 %v515
        %604 = vmatmul.mubr.bf16.gmra.mrb[0].mxu0 %v320
        %v605 = vpop.f32.mrb[0].mxu0
        %v606 = vadd.f32 %v311, %v605
        %v607 = vpop.f32.mrb[0].mxu0
        %v608 = vadd.f32 %v311, %v607
        %v609 = vpop.f32.mrb[0].mxu0
        %v610 = vpop.f32.mrb[0].mxu0
        %611 = vdwg.mxu0
        %v612 = vmax.f32 %v565, 0.0
        %v613 = vmax.f32 %v567, 0.0
        %v614 = vmax.f32 %v606, 0.0
        %v615 = vmax.f32 %v608, 0.0
        %v620 = vcombine.low %v612, %v613
        %v621 = vcombine.low %v614, %v615
        %624 = vst [vmem:[%s265] sm:$0x77] %v620
        %625 = vst [vmem:[%s265 + $0x8] sm:$0x77] %v621
        %s626 = smul.u32 4, %s14
        %p627 = scmp.lt.s32.totalorder %s626, 15
        %s628 = scalar_select %p627, %s626, 15
        %s629 = smul.addr %s628, 4
        %s630 = scalar_lea.vmem %s3, %s629
        // Predicated region
        $region56: #{forward.9} parent=50 // pred_check
          %p631 = pneg %p100
        $region57: #{forward.9} parent=50 // pred_check_branch
          %633 = sbr.rel (%p631) target = $region59
        $region58: #{forward.9} parent=50 // pred_region
          %s634 = smul.u32 4, %s14
        $region59: #{forward.9} parent=50 // pred_fallthru
          _
      $region51: #{forward.9} parent=5 // pred_fallthru
        _
      %p635 = scmp.le.s32.totalorder 2, %s9
      // Predicated region
      $region60: #{forward.9} parent=5 // pred_check
        %p636 = pneg %p635
      $region61: #{forward.9} parent=5 // pred_check_branch
        %638 = sbr.rel (%p636) target = $region63
      $region62: #{forward.9} parent=5 // pred_region
        %s639 = ssub.s32 %s9, 2
        // Predicated region
        $region64: #{forward.9} parent=62 // pred_check
          %p640 = pneg %p106
        $region65: #{forward.9} parent=62 // pred_check_branch
          %642 = sbr.rel (%p640) target = $region67
        $region66: #{forward.9} parent=62 // pred_region
          %s643 = smul.u32 4, %s15
          %p644 = scmp.lt.s32.totalorder %s643, 15
          %s645 = scalar_select %p644, %s643, 15
          %s646 = smul.addr %s645, 4
          %s647 = scalar_lea.vmem %s3, %s646
        $region67: #{forward.9} parent=62 // pred_fallthru
          _
      $region63: #{forward.9} parent=5 // pred_fallthru
        _
    $region6: #{forward.9} parent=1 // loop_footer
      %s13 = sadd.s32 1, %s9
    $region7: #{forward.9} parent=1 // loop_footer_branch
      %8 = sbr.rel target = $region3
    $region8: #{forward.9} parent=1 // loop_exit
      _

</llo_original>
